<compile_context>
chip_gen: v7x
topology: tpu7x:2x2x1
jax: 0.10.0
libtpu: 0.0.40
codegen_flags: <defaults>
</compile_context>

<pallas_src>
import math
import functools

import jax
import jax.numpy as jnp
from jax import lax
from jax.experimental import pallas as pl
from jax.experimental.pallas import tpu as pltpu

# ----- module hyper-parameters (input dims are hard-coded in the PyTorch module) -----
D_MODEL = 128          # d_model (kept small; module default is 256)
N_HEADS = 8
HEAD_DIM = D_MODEL // N_HEADS
D_FF = 4 * D_MODEL
TAB_DIM, TEXT_DIM, TS_DIM = 50, 100, 32
LN_EPS = 1e-5          # torch.nn.LayerNorm default


# ---------------------------------------------------------------------------
# in-kernel math helpers (pure jnp, traced inside the Pallas body, f32)
# ---------------------------------------------------------------------------
def _erf(x):
    # Abramowitz & Stegun 7.1.26 rational approximation (|err| < 1.5e-7, ~f32 exact),
    # so the kernel only needs exp on the EUP (no reliance on an erf lowering).
    a1, a2, a3, a4, a5 = 0.254829592, -0.284496736, 1.421413741, -1.453152027, 1.061405429
    p = 0.3275911
    sgn = jnp.where(x >= 0.0, 1.0, -1.0)
    ax = jnp.abs(x)
    t = 1.0 / (1.0 + p * ax)
    poly = ((((a5 * t + a4) * t + a3) * t + a2) * t + a1) * t
    return sgn * (1.0 - poly * jnp.exp(-ax * ax))


def _gelu(x):
    # exact (erf-based) GELU, matching torch.nn.GELU() default (approximate='none')
    return 0.5 * x * (1.0 + _erf(x * (1.0 / math.sqrt(2.0))))


def _layernorm(x, g, b):
    mu = jnp.mean(x, axis=-1, keepdims=True)
    xc = x - mu
    var = jnp.mean(xc * xc, axis=-1, keepdims=True)   # biased, as in torch LayerNorm
    return xc * lax.rsqrt(var + LN_EPS) * g + b


# ---------------------------------------------------------------------------
# Pallas kernel: projections + 3x cross-attention blocks + fusion MLP
# ---------------------------------------------------------------------------
def mmca_kernel(tab_ref, text_ref, ts_ref,
                seg_ref, seg_t_ref,
                wp_tab_ref, bp_tab_ref, wp_text_ref, bp_text_ref, wp_ts_ref, bp_ts_ref,
                wqkv_ref, bqkv_ref, wo_ref, bo_ref,
                ln_g_ref, ln_b_ref,
                wff1_ref, bff1_ref, wff2_ref, bff2_ref,
                wfu1_ref, bfu1_ref, wfu2_ref, bfu2_ref,
                out_ref):
    D = D_MODEL
    TB = out_ref.shape[0]
    scale = 1.0 / math.sqrt(HEAD_DIM)
    bf16 = jnp.bfloat16

    # ----- modality projections (bf16 MXU operands, f32 accumulate + f32 bias) -----
    tab_p = jnp.dot(tab_ref[...].astype(bf16), wp_tab_ref[...],
                    preferred_element_type=jnp.float32) + bp_tab_ref[...]
    text_p = jnp.dot(text_ref[...].astype(bf16), wp_text_ref[...],
                     preferred_element_type=jnp.float32) + bp_text_ref[...]
    ts_p = jnp.dot(ts_ref[...].astype(bf16), wp_ts_ref[...],
                   preferred_element_type=jnp.float32) + bp_ts_ref[...]
    proj = [tab_p, text_p, ts_p]                               # each (TB, D), f32

    # single stacked token matrix reused by every attention block (sublane concat, aligned)
    stack_bf = jnp.concatenate(proj, axis=0).astype(bf16)      # (3*TB, D)

    seg = seg_ref[...]        # (D, H)  per-head segment reduce matrix (f32)
    seg_t = seg_t_ref[...]    # (H, D)  per-head broadcast matrix (f32)

    attended = []
    for i in range(3):                                         # static (unrolled) modality loop
        # fused Q|K|V projection for ALL three token slabs under modality i's weights:
        # (3*TB, D) @ (D, 3*D)  -> rows: [tab | text | ts], cols: [q | k | v]
        qkv = jnp.dot(stack_bf, wqkv_ref[i],
                      preferred_element_type=jnp.float32) + bqkv_ref[i]
        js = [j for j in range(3) if j != i]                   # the two context modalities
        q = qkv[i * TB:(i + 1) * TB, 0:D]
        k0 = qkv[js[0] * TB:(js[0] + 1) * TB, D:2 * D]
        k1 = qkv[js[1] * TB:(js[1] + 1) * TB, D:2 * D]
        v0 = qkv[js[0] * TB:(js[0] + 1) * TB, 2 * D:3 * D]
        v1 = qkv[js[1] * TB:(js[1] + 1) * TB, 2 * D:3 * D]

        # per-head logits against the two context tokens, both in ONE matmul: (2*TB, H)
        qk = jnp.concatenate([q * k0, q * k1], axis=0)         # (2*TB, D)
        l = jnp.dot(qk, seg, preferred_element_type=jnp.float32) * scale
        l0, l1 = l[:TB], l[TB:]
        m = jnp.maximum(l0, l1)
        e0 = jnp.exp(l0 - m)
        e1 = jnp.exp(l1 - m)
        inv = pl.reciprocal(e0 + e1, approx=True)              # EUP slot
        # softmax weights broadcast back to per-head feature lanes, again ONE matmul
        w = jnp.concatenate([e0 * inv, e1 * inv], axis=0)      # (2*TB, H)
        p = jnp.dot(w, seg_t, preferred_element_type=jnp.float32)   # (2*TB, D)
        attn = p[:TB] * v0 + p[TB:] * v1

        attn_o = jnp.dot(attn.astype(bf16), wo_ref[i],
                         preferred_element_type=jnp.float32) + bo_ref[i]

        # residual + LayerNorm, FFN (GELU), residual + LayerNorm (all f32)
        x = _layernorm(proj[i] + attn_o, ln_g_ref[2 * i], ln_b_ref[2 * i])
        h = _gelu(jnp.dot(x.astype(bf16), wff1_ref[i],
                          preferred_element_type=jnp.float32) + bff1_ref[i])
        ffn = jnp.dot(h.astype(bf16), wff2_ref[i],
                      preferred_element_type=jnp.float32) + bff2_ref[i]
        y = _layernorm(x + ffn, ln_g_ref[2 * i + 1], ln_b_ref[2 * i + 1])
        attended.append(y)

    # ----- fusion head: Linear(3D -> 2D) + GELU + (Dropout=id) + Linear(2D -> D) + Tanh -----
    # wfu1 is pre-split into three (D, 2D) slabs -> no lane-axis concatenate needed.
    f_pre = (jnp.dot(attended[0].astype(bf16), wfu1_ref[0], preferred_element_type=jnp.float32)
             + jnp.dot(attended[1].astype(bf16), wfu1_ref[1], preferred_element_type=jnp.float32)
             + jnp.dot(attended[2].astype(bf16), wfu1_ref[2], preferred_element_type=jnp.float32)
             + bfu1_ref[...])
    f = _gelu(f_pre)
    out_ref[...] = jnp.tanh(
        jnp.dot(f.astype(bf16), wfu2_ref[...], preferred_element_type=jnp.float32) + bfu2_ref[...])


# ---------------------------------------------------------------------------
# wrapper: grid over batch tiles, weights broadcast as full blocks
# ---------------------------------------------------------------------------
def _round_up(x, m):
    return ((x + m - 1) // m) * m


def _make_seg():
    head_of_lane = jnp.arange(D_MODEL, dtype=jnp.int32) // HEAD_DIM          # (D,)
    seg = (head_of_lane[:, None] ==
           jnp.arange(N_HEADS, dtype=jnp.int32)[None, :]).astype(jnp.float32)  # (D, H)
    return seg, jnp.transpose(seg)                                            # (D,H), (H,D)


def multimodal_cross_attention(tab, text, ts, params, tb=None):
    B = tab.shape[0]
    if tb is None:
        b8 = _round_up(B, 8)
        # one big tile for small batches; cap at 256 so large batches keep >=2 grid steps
        # (keeps both v7x TensorCores busy via the 'parallel' grid axis).
        tb = b8 if b8 <= 256 else 256
    Bp = _round_up(B, tb)
    if Bp != B:
        pad = lambda x: jnp.pad(x, ((0, Bp - B), (0, 0)))
        tab, text, ts = pad(tab), pad(text), pad(ts)

    seg, seg_t = _make_seg()

    weights = (params["wp_tab"], params["bp_tab"], params["wp_text"], params["bp_text"],
               params["wp_ts"], params["bp_ts"],
               params["wqkv"], params["bqkv"], params["wo"], params["bo"],
               params["ln_g"], params["ln_b"],
               params["wff1"], params["bff1"], params["wff2"], params["bff2"],
               params["wfu1"], params["bfu1"], params["wfu2"], params["bfu2"])
    consts = (seg, seg_t) + weights

    def _zero_map(nd, b):
        return (0,) * nd

    in_specs = [
        pl.BlockSpec((tb, TAB_DIM), lambda b: (b, 0)),
        pl.BlockSpec((tb, TEXT_DIM), lambda b: (b, 0)),
        pl.BlockSpec((tb, TS_DIM), lambda b: (b, 0)),
    ] + [pl.BlockSpec(c.shape, functools.partial(_zero_map, c.ndim)) for c in consts]

    # ----- advisory cost estimate -----
    D, Dff, H = D_MODEL, D_FF, N_HEADS
    flops_per_row = 2 * (
        (TAB_DIM + TEXT_DIM + TS_DIM) * D          # input projections
        + 3 * (3 * D * 3 * D)                      # fused QKV (3 stacked slabs per modality)
        + 3 * (2 * 2 * D * H)                      # logit + softmax-broadcast matmuls
        + 3 * (D * D)                              # attention output projections
        + 3 * (D * Dff + Dff * D)                  # FFNs
        + (3 * D * 2 * D + 2 * D * D)              # fusion MLP
    )
    steps = Bp // tb
    const_bytes = sum(int(c.size) * c.dtype.itemsize for c in consts)
    io_bytes = sum(int(x.size) * x.dtype.itemsize for x in (tab, text, ts)) + Bp * D * 4
    cost = pl.CostEstimate(flops=int(flops_per_row) * Bp,
                           transcendentals=2048 * Bp,
                           bytes_accessed=int(const_bytes * steps + io_bytes))

    out = pl.pallas_call(
        mmca_kernel,
        out_shape=jax.ShapeDtypeStruct((Bp, D_MODEL), jnp.float32),
        grid=(steps,),
        in_specs=in_specs,
        out_specs=pl.BlockSpec((tb, D_MODEL), lambda b: (b, 0)),
        compiler_params=pltpu.CompilerParams(
            dimension_semantics=("parallel",),
            vmem_limit_bytes=32 * 1024 * 1024),   # well within physical VMEM on v5e/v6e/v7x
        cost_estimate=cost,
    )(tab, text, ts, *consts)
    return out[:B]


# ---------------------------------------------------------------------------
# deterministic parameter construction (synthetic weights, no checkpoint load)
# matmul weights are stored in bf16 (MXU-native); biases / LayerNorm params in f32.
# ---------------------------------------------------------------------------
def init_params(key):
    ks = jax.random.split(key, 18)

    def lin(k, fan_in, shape, dtype=jnp.bfloat16):
        bound = 1.0 / math.sqrt(fan_in)
        w = jax.random.uniform(k, shape, jnp.float32, -bound, bound)
        return w.astype(dtype)

    D, Dff = D_MODEL, D_FF
    p = {}
    # input projections (Linear weights stored pre-transposed: x @ W + b)
    p["wp_tab"] = lin(ks[0], TAB_DIM, (TAB_DIM, D))
    p["bp_tab"] = lin(ks[1], TAB_DIM, (1, D), jnp.float32)
    p["wp_text"] = lin(ks[2], TEXT_DIM, (TEXT_DIM, D))
    p["bp_text"] = lin(ks[3], TEXT_DIM, (1, D), jnp.float32)
    p["wp_ts"] = lin(ks[4], TS_DIM, (TS_DIM, D))
    p["bp_ts"] = lin(ks[5], TS_DIM, (1, D), jnp.float32)
    # 3 MultiheadAttention blocks: per modality the q|k|v weights are concatenated on the
    # output (lane) axis so the kernel can do one fused (3*TB,D)@(D,3D) projection.
    p["wqkv"] = lin(ks[6], D, (3, D, 3 * D))
    p["bqkv"] = lin(ks[7], D, (3, 1, 3 * D), jnp.float32)
    p["wo"] = lin(ks[8], D, (3, D, D))
    p["bo"] = lin(ks[9], D, (3, 1, D), jnp.float32)
    # 6 LayerNorms (torch init: gamma=1, beta=0)
    p["ln_g"] = jnp.ones((6, 1, D), jnp.float32)
    p["ln_b"] = jnp.zeros((6, 1, D), jnp.float32)
    # 3 FFNs
    p["wff1"] = lin(ks[10], D, (3, D, Dff))
    p["bff1"] = lin(ks[11], D, (3, 1, Dff), jnp.float32)
    p["wff2"] = lin(ks[12], Dff, (3, Dff, D))
    p["bff2"] = lin(ks[13], Dff, (3, 1, D), jnp.float32)
    # fusion MLP; first layer stored as 3 lane-aligned (D, 2D) slabs (one per modality)
    p["wfu1"] = lin(ks[14], 3 * D, (3, D, 2 * D))
    p["bfu1"] = lin(ks[15], 3 * D, (1, 2 * D), jnp.float32)
    p["wfu2"] = lin(ks[16], 2 * D, (2 * D, D))
    p["bfu2"] = lin(ks[17], 2 * D, (1, D), jnp.float32)
    return p


if __name__ == "__main__":
    key = jax.random.PRNGKey(0)
    kp, k1, k2, k3 = jax.random.split(key, 4)
    params = init_params(kp)

    B = 16
    tabular_features = jax.random.normal(k1, (B, TAB_DIM), jnp.float32)
    text_features = jax.random.normal(k2, (B, TEXT_DIM), jnp.float32)
    timeseries_features = jax.random.normal(k3, (B, TS_DIM), jnp.float32)

    out = multimodal_cross_attention(tabular_features, text_features,
                                     timeseries_features, params)
    jax.block_until_ready(out)
    assert out.shape == (B, D_MODEL) and out.dtype == jnp.float32
    assert bool(jnp.all(jnp.isfinite(out)))
    # TODO(synk): missing-modality branches (mask / <2 modalities) are data-dependent Python
    # control flow in the PyTorch module; this kernel implements the all-3-modalities path.
    print("KERNEL_OK")
</pallas_src>

<mosaic_0001>
module attributes {stable_mosaic.version = 11 : i64} {
  func.func @mmca_kernel(%arg0: i32, %arg1: memref<16x50xf32, #tpu.memory_space<vmem>>, %arg2: memref<16x100xf32, #tpu.memory_space<vmem>>, %arg3: memref<16x32xf32, #tpu.memory_space<vmem>>, %arg4: memref<128x8xf32, #tpu.memory_space<vmem>>, %arg5: memref<8x128xf32, #tpu.memory_space<vmem>>, %arg6: memref<50x128xbf16, #tpu.memory_space<vmem>>, %arg7: memref<1x128xf32, #tpu.memory_space<vmem>>, %arg8: memref<100x128xbf16, #tpu.memory_space<vmem>>, %arg9: memref<1x128xf32, #tpu.memory_space<vmem>>, %arg10: memref<32x128xbf16, #tpu.memory_space<vmem>>, %arg11: memref<1x128xf32, #tpu.memory_space<vmem>>, %arg12: memref<3x128x384xbf16, #tpu.memory_space<vmem>>, %arg13: memref<3x1x384xf32, #tpu.memory_space<vmem>>, %arg14: memref<3x128x128xbf16, #tpu.memory_space<vmem>>, %arg15: memref<3x1x128xf32, #tpu.memory_space<vmem>>, %arg16: memref<6x1x128xf32, #tpu.memory_space<vmem>>, %arg17: memref<6x1x128xf32, #tpu.memory_space<vmem>>, %arg18: memref<3x128x512xbf16, #tpu.memory_space<vmem>>, %arg19: memref<3x1x512xf32, #tpu.memory_space<vmem>>, %arg20: memref<3x512x128xbf16, #tpu.memory_space<vmem>>, %arg21: memref<3x1x128xf32, #tpu.memory_space<vmem>>, %arg22: memref<3x128x256xbf16, #tpu.memory_space<vmem>>, %arg23: memref<1x256xf32, #tpu.memory_space<vmem>>, %arg24: memref<256x128xbf16, #tpu.memory_space<vmem>>, %arg25: memref<1x128xf32, #tpu.memory_space<vmem>>, %arg26: memref<16x128xf32, #tpu.memory_space<vmem>>) attributes {dimension_semantics = [#tpu.dimension_semantics<parallel>], iteration_bounds = array<i64: 1>, scalar_prefetch = 0 : i64, scratch_operands = 0 : i64, tpu.core_type = #tpu.core_type<tc>, window_params = [{transform_indices = @transform_0, window_bounds = array<i64: 16, 50>}, {transform_indices = @transform_1, window_bounds = array<i64: 16, 100>}, {transform_indices = @transform_2, window_bounds = array<i64: 16, 32>}, {pipeline_mode = #tpu.pipeline_mode<synchronous>, transform_indices = @transform_3, window_bounds = array<i64: 128, 8>}, {pipeline_mode = #tpu.pipeline_mode<synchronous>, transform_indices = @transform_4, window_bounds = array<i64: 8, 128>}, {pipeline_mode = #tpu.pipeline_mode<synchronous>, transform_indices = @transform_5, window_bounds = array<i64: 50, 128>}, {pipeline_mode = #tpu.pipeline_mode<synchronous>, transform_indices = @transform_6, window_bounds = array<i64: 1, 128>}, {pipeline_mode = #tpu.pipeline_mode<synchronous>, transform_indices = @transform_7, window_bounds = array<i64: 100, 128>}, {pipeline_mode = #tpu.pipeline_mode<synchronous>, transform_indices = @transform_8, window_bounds = array<i64: 1, 128>}, {pipeline_mode = #tpu.pipeline_mode<synchronous>, transform_indices = @transform_9, window_bounds = array<i64: 32, 128>}, {pipeline_mode = #tpu.pipeline_mode<synchronous>, transform_indices = @transform_10, window_bounds = array<i64: 1, 128>}, {pipeline_mode = #tpu.pipeline_mode<synchronous>, transform_indices = @transform_11, window_bounds = array<i64: 3, 128, 384>}, {pipeline_mode = #tpu.pipeline_mode<synchronous>, transform_indices = @transform_12, window_bounds = array<i64: 3, 1, 384>}, {pipeline_mode = #tpu.pipeline_mode<synchronous>, transform_indices = @transform_13, window_bounds = array<i64: 3, 128, 128>}, {pipeline_mode = #tpu.pipeline_mode<synchronous>, transform_indices = @transform_14, window_bounds = array<i64: 3, 1, 128>}, {pipeline_mode = #tpu.pipeline_mode<synchronous>, transform_indices = @transform_15, window_bounds = array<i64: 6, 1, 128>}, {pipeline_mode = #tpu.pipeline_mode<synchronous>, transform_indices = @transform_16, window_bounds = array<i64: 6, 1, 128>}, {pipeline_mode = #tpu.pipeline_mode<synchronous>, transform_indices = @transform_17, window_bounds = array<i64: 3, 128, 512>}, {pipeline_mode = #tpu.pipeline_mode<synchronous>, transform_indices = @transform_18, window_bounds = array<i64: 3, 1, 512>}, {pipeline_mode = #tpu.pipeline_mode<synchronous>, transform_indices = @transform_19, window_bounds = array<i64: 3, 512, 128>}, {pipeline_mode = #tpu.pipeline_mode<synchronous>, transform_indices = @transform_20, window_bounds = array<i64: 3, 1, 128>}, {pipeline_mode = #tpu.pipeline_mode<synchronous>, transform_indices = @transform_21, window_bounds = array<i64: 3, 128, 256>}, {pipeline_mode = #tpu.pipeline_mode<synchronous>, transform_indices = @transform_22, window_bounds = array<i64: 1, 256>}, {pipeline_mode = #tpu.pipeline_mode<synchronous>, transform_indices = @transform_23, window_bounds = array<i64: 256, 128>}, {pipeline_mode = #tpu.pipeline_mode<synchronous>, transform_indices = @transform_24, window_bounds = array<i64: 1, 128>}, {transform_indices = @transform_25, window_bounds = array<i64: 16, 128>}]} {
    %c0 = arith.constant 0 : index
    %c0_0 = arith.constant 0 : index
    %0 = vector.load %arg1[%c0, %c0_0] : memref<16x50xf32, #tpu.memory_space<vmem>>, vector<16x50xf32>
    %1 = arith.truncf %0 : vector<16x50xf32> to vector<16x50xbf16>
    %c0_1 = arith.constant 0 : index
    %c0_2 = arith.constant 0 : index
    %2 = vector.load %arg6[%c0_1, %c0_2] : memref<50x128xbf16, #tpu.memory_space<vmem>>, vector<50x128xbf16>
    %cst = arith.constant dense<0.000000e+00> : vector<16x128xf32>
    %3 = tpu.matmul %1, %2, %cst {dimension_numbers = #tpu.dot_dimension_numbers<[1], [0], [0], [1], [0, 0, 1, 1], [], []>} : vector<16x50xbf16>, vector<50x128xbf16>, vector<16x128xf32> -> vector<16x128xf32>
    %c0_3 = arith.constant 0 : index
    %c0_4 = arith.constant 0 : index
    %4 = vector.load %arg7[%c0_3, %c0_4] : memref<1x128xf32, #tpu.memory_space<vmem>>, vector<1x128xf32>
    %5 = vector.broadcast %4 : vector<1x128xf32> to vector<16x128xf32>
    %6 = arith.addf %3, %5 : vector<16x128xf32>
    %c0_5 = arith.constant 0 : index
    %c0_6 = arith.constant 0 : index
    %7 = vector.load %arg2[%c0_5, %c0_6] : memref<16x100xf32, #tpu.memory_space<vmem>>, vector<16x100xf32>
    %8 = arith.truncf %7 : vector<16x100xf32> to vector<16x100xbf16>
    %c0_7 = arith.constant 0 : index
    %c0_8 = arith.constant 0 : index
    %9 = vector.load %arg8[%c0_7, %c0_8] : memref<100x128xbf16, #tpu.memory_space<vmem>>, vector<100x128xbf16>
    %cst_9 = arith.constant dense<0.000000e+00> : vector<16x128xf32>
    %10 = tpu.matmul %8, %9, %cst_9 {dimension_numbers = #tpu.dot_dimension_numbers<[1], [0], [0], [1], [0, 0, 1, 1], [], []>} : vector<16x100xbf16>, vector<100x128xbf16>, vector<16x128xf32> -> vector<16x128xf32>
    %c0_10 = arith.constant 0 : index
    %c0_11 = arith.constant 0 : index
    %11 = vector.load %arg9[%c0_10, %c0_11] : memref<1x128xf32, #tpu.memory_space<vmem>>, vector<1x128xf32>
    %12 = vector.broadcast %11 : vector<1x128xf32> to vector<16x128xf32>
    %13 = arith.addf %10, %12 : vector<16x128xf32>
    %c0_12 = arith.constant 0 : index
    %c0_13 = arith.constant 0 : index
    %14 = vector.load %arg3[%c0_12, %c0_13] : memref<16x32xf32, #tpu.memory_space<vmem>>, vector<16x32xf32>
    %15 = arith.truncf %14 : vector<16x32xf32> to vector<16x32xbf16>
    %c0_14 = arith.constant 0 : index
    %c0_15 = arith.constant 0 : index
    %16 = vector.load %arg10[%c0_14, %c0_15] : memref<32x128xbf16, #tpu.memory_space<vmem>>, vector<32x128xbf16>
    %cst_16 = arith.constant dense<0.000000e+00> : vector<16x128xf32>
    %17 = tpu.matmul %15, %16, %cst_16 {dimension_numbers = #tpu.dot_dimension_numbers<[1], [0], [0], [1], [0, 0, 1, 1], [], []>} : vector<16x32xbf16>, vector<32x128xbf16>, vector<16x128xf32> -> vector<16x128xf32>
    %c0_17 = arith.constant 0 : index
    %c0_18 = arith.constant 0 : index
    %18 = vector.load %arg11[%c0_17, %c0_18] : memref<1x128xf32, #tpu.memory_space<vmem>>, vector<1x128xf32>
    %19 = vector.broadcast %18 : vector<1x128xf32> to vector<16x128xf32>
    %20 = arith.addf %17, %19 : vector<16x128xf32>
    %21 = tpu.concatenate %6, %13, %20 in 0 : vector<16x128xf32>, vector<16x128xf32>, vector<16x128xf32> -> vector<48x128xf32>
    %22 = arith.truncf %21 : vector<48x128xf32> to vector<48x128xbf16>
    %c0_19 = arith.constant 0 : index
    %c0_20 = arith.constant 0 : index
    %23 = vector.load %arg4[%c0_19, %c0_20] : memref<128x8xf32, #tpu.memory_space<vmem>>, vector<128x8xf32>
    %c0_21 = arith.constant 0 : index
    %c0_22 = arith.constant 0 : index
    %24 = vector.load %arg5[%c0_21, %c0_22] : memref<8x128xf32, #tpu.memory_space<vmem>>, vector<8x128xf32>
    %c0_23 = arith.constant 0 : index
    %c0_24 = arith.constant 0 : index
    %c0_25 = arith.constant 0 : index
    %25 = vector.load %arg12[%c0_23, %c0_24, %c0_25] : memref<3x128x384xbf16, #tpu.memory_space<vmem>>, vector<1x128x384xbf16>
    %26 = vector.shape_cast %25 : vector<1x128x384xbf16> to vector<128x384xbf16>
    %cst_26 = arith.constant dense<0.000000e+00> : vector<48x384xf32>
    %27 = tpu.matmul %22, %26, %cst_26 {dimension_numbers = #tpu.dot_dimension_numbers<[1], [0], [0], [1], [0, 0, 1, 1], [], []>} : vector<48x128xbf16>, vector<128x384xbf16>, vector<48x384xf32> -> vector<48x384xf32>
    %c0_27 = arith.constant 0 : index
    %c0_28 = arith.constant 0 : index
    %c0_29 = arith.constant 0 : index
    %28 = vector.load %arg13[%c0_27, %c0_28, %c0_29] : memref<3x1x384xf32, #tpu.memory_space<vmem>>, vector<1x1x384xf32>
    %29 = vector.shape_cast %28 : vector<1x1x384xf32> to vector<1x384xf32>
    %30 = vector.broadcast %29 : vector<1x384xf32> to vector<48x384xf32>
    %31 = arith.addf %27, %30 : vector<48x384xf32>
    %32 = vector.extract_strided_slice %31 {offsets = [0, 0], sizes = [16, 128], strides = [1, 1]} : vector<48x384xf32> to vector<16x128xf32>
    %33 = vector.extract_strided_slice %31 {offsets = [16, 128], sizes = [16, 128], strides = [1, 1]} : vector<48x384xf32> to vector<16x128xf32>
    %34 = vector.extract_strided_slice %31 {offsets = [32, 128], sizes = [16, 128], strides = [1, 1]} : vector<48x384xf32> to vector<16x128xf32>
    %35 = vector.extract_strided_slice %31 {offsets = [16, 256], sizes = [16, 128], strides = [1, 1]} : vector<48x384xf32> to vector<16x128xf32>
    %36 = vector.extract_strided_slice %31 {offsets = [32, 256], sizes = [16, 128], strides = [1, 1]} : vector<48x384xf32> to vector<16x128xf32>
    %37 = arith.mulf %32, %33 : vector<16x128xf32>
    %38 = arith.mulf %32, %34 : vector<16x128xf32>
    %39 = tpu.concatenate %37, %38 in 0 : vector<16x128xf32>, vector<16x128xf32> -> vector<32x128xf32>
    %cst_30 = arith.constant dense<0.000000e+00> : vector<32x8xf32>
    %40 = tpu.matmul %39, %23, %cst_30 {dimension_numbers = #tpu.dot_dimension_numbers<[1], [0], [0], [1], [0, 0, 1, 1], [], []>} : vector<32x128xf32>, vector<128x8xf32>, vector<32x8xf32> -> vector<32x8xf32>
    %cst_31 = arith.constant 2.500000e-01 : f32
    %41 = vector.broadcast %cst_31 : f32 to vector<32x8xf32>
    %42 = arith.mulf %40, %41 : vector<32x8xf32>
    %43 = vector.extract_strided_slice %42 {offsets = [0, 0], sizes = [16, 8], strides = [1, 1]} : vector<32x8xf32> to vector<16x8xf32>
    %44 = vector.extract_strided_slice %42 {offsets = [16, 0], sizes = [16, 8], strides = [1, 1]} : vector<32x8xf32> to vector<16x8xf32>
    %45 = arith.maximumf %43, %44 : vector<16x8xf32>
    %46 = arith.subf %43, %45 : vector<16x8xf32>
    %47 = math.exp %46 : vector<16x8xf32>
    %48 = arith.subf %44, %45 : vector<16x8xf32>
    %49 = math.exp %48 : vector<16x8xf32>
    %50 = arith.addf %47, %49 : vector<16x8xf32>
    %51 = tpu.reciprocal %50 {approx = true} : vector<16x8xf32> -> vector<16x8xf32>
    %52 = arith.mulf %47, %51 : vector<16x8xf32>
    %53 = arith.mulf %49, %51 : vector<16x8xf32>
    %54 = tpu.concatenate %52, %53 in 0 : vector<16x8xf32>, vector<16x8xf32> -> vector<32x8xf32>
    %cst_32 = arith.constant dense<0.000000e+00> : vector<32x128xf32>
    %55 = tpu.matmul %54, %24, %cst_32 {dimension_numbers = #tpu.dot_dimension_numbers<[1], [0], [0], [1], [0, 0, 1, 1], [], []>} : vector<32x8xf32>, vector<8x128xf32>, vector<32x128xf32> -> vector<32x128xf32>
    %56 = vector.extract_strided_slice %55 {offsets = [0, 0], sizes = [16, 128], strides = [1, 1]} : vector<32x128xf32> to vector<16x128xf32>
    %57 = arith.mulf %56, %35 : vector<16x128xf32>
    %58 = vector.extract_strided_slice %55 {offsets = [16, 0], sizes = [16, 128], strides = [1, 1]} : vector<32x128xf32> to vector<16x128xf32>
    %59 = arith.mulf %58, %36 : vector<16x128xf32>
    %60 = arith.addf %57, %59 : vector<16x128xf32>
    %61 = arith.truncf %60 : vector<16x128xf32> to vector<16x128xbf16>
    %c0_33 = arith.constant 0 : index
    %c0_34 = arith.constant 0 : index
    %c0_35 = arith.constant 0 : index
    %62 = vector.load %arg14[%c0_33, %c0_34, %c0_35] : memref<3x128x128xbf16, #tpu.memory_space<vmem>>, vector<1x128x128xbf16>
    %63 = vector.shape_cast %62 : vector<1x128x128xbf16> to vector<128x128xbf16>
    %cst_36 = arith.constant dense<0.000000e+00> : vector<16x128xf32>
    %64 = tpu.matmul %61, %63, %cst_36 {dimension_numbers = #tpu.dot_dimension_numbers<[1], [0], [0], [1], [0, 0, 1, 1], [], []>} : vector<16x128xbf16>, vector<128x128xbf16>, vector<16x128xf32> -> vector<16x128xf32>
    %c0_37 = arith.constant 0 : index
    %c0_38 = arith.constant 0 : index
    %c0_39 = arith.constant 0 : index
    %65 = vector.load %arg15[%c0_37, %c0_38, %c0_39] : memref<3x1x128xf32, #tpu.memory_space<vmem>>, vector<1x1x128xf32>
    %66 = vector.shape_cast %65 : vector<1x1x128xf32> to vector<1x128xf32>
    %67 = vector.broadcast %66 : vector<1x128xf32> to vector<16x128xf32>
    %68 = arith.addf %64, %67 : vector<16x128xf32>
    %69 = arith.addf %6, %68 : vector<16x128xf32>
    %c0_40 = arith.constant 0 : index
    %c0_41 = arith.constant 0 : index
    %c0_42 = arith.constant 0 : index
    %70 = vector.load %arg16[%c0_40, %c0_41, %c0_42] : memref<6x1x128xf32, #tpu.memory_space<vmem>>, vector<1x1x128xf32>
    %71 = vector.shape_cast %70 : vector<1x1x128xf32> to vector<1x128xf32>
    %c0_43 = arith.constant 0 : index
    %c0_44 = arith.constant 0 : index
    %c0_45 = arith.constant 0 : index
    %72 = vector.load %arg17[%c0_43, %c0_44, %c0_45] : memref<6x1x128xf32, #tpu.memory_space<vmem>>, vector<1x1x128xf32>
    %73 = vector.shape_cast %72 : vector<1x1x128xf32> to vector<1x128xf32>
    %cst_46 = arith.constant dense<0.000000e+00> : vector<16xf32>
    %74 = vector.multi_reduction <add>, %69, %cst_46 [1] : vector<16x128xf32> to vector<16xf32>
    %75 = vector.shape_cast %74 : vector<16xf32> to vector<16x1xf32>
    %cst_47 = arith.constant 1.280000e+02 : f32
    %76 = vector.broadcast %cst_47 : f32 to vector<16x1xf32>
    %77 = arith.divf %75, %76 : vector<16x1xf32>
    %78 = vector.broadcast %77 : vector<16x1xf32> to vector<16x128xf32>
    %79 = arith.subf %69, %78 : vector<16x128xf32>
    %80 = arith.mulf %79, %79 : vector<16x128xf32>
    %cst_48 = arith.constant dense<0.000000e+00> : vector<16xf32>
    %81 = vector.multi_reduction <add>, %80, %cst_48 [1] : vector<16x128xf32> to vector<16xf32>
    %82 = vector.shape_cast %81 : vector<16xf32> to vector<16x1xf32>
    %cst_49 = arith.constant 1.280000e+02 : f32
    %83 = vector.broadcast %cst_49 : f32 to vector<16x1xf32>
    %84 = arith.divf %82, %83 : vector<16x1xf32>
    %cst_50 = arith.constant 9.99999974E-6 : f32
    %85 = vector.broadcast %cst_50 : f32 to vector<16x1xf32>
    %86 = arith.addf %84, %85 : vector<16x1xf32>
    %87 = math.rsqrt %86 : vector<16x1xf32>
    %88 = vector.broadcast %87 : vector<16x1xf32> to vector<16x128xf32>
    %89 = arith.mulf %79, %88 : vector<16x128xf32>
    %90 = vector.broadcast %71 : vector<1x128xf32> to vector<16x128xf32>
    %91 = arith.mulf %89, %90 : vector<16x128xf32>
    %92 = vector.broadcast %73 : vector<1x128xf32> to vector<16x128xf32>
    %93 = arith.addf %91, %92 : vector<16x128xf32>
    %94 = arith.truncf %93 : vector<16x128xf32> to vector<16x128xbf16>
    %c0_51 = arith.constant 0 : index
    %c0_52 = arith.constant 0 : index
    %c0_53 = arith.constant 0 : index
    %95 = vector.load %arg18[%c0_51, %c0_52, %c0_53] : memref<3x128x512xbf16, #tpu.memory_space<vmem>>, vector<1x128x512xbf16>
    %96 = vector.shape_cast %95 : vector<1x128x512xbf16> to vector<128x512xbf16>
    %cst_54 = arith.constant dense<0.000000e+00> : vector<16x512xf32>
    %97 = tpu.matmul %94, %96, %cst_54 {dimension_numbers = #tpu.dot_dimension_numbers<[1], [0], [0], [1], [0, 0, 1, 1], [], []>} : vector<16x128xbf16>, vector<128x512xbf16>, vector<16x512xf32> -> vector<16x512xf32>
    %c0_55 = arith.constant 0 : index
    %c0_56 = arith.constant 0 : index
    %c0_57 = arith.constant 0 : index
    %98 = vector.load %arg19[%c0_55, %c0_56, %c0_57] : memref<3x1x512xf32, #tpu.memory_space<vmem>>, vector<1x1x512xf32>
    %99 = vector.shape_cast %98 : vector<1x1x512xf32> to vector<1x512xf32>
    %100 = vector.broadcast %99 : vector<1x512xf32> to vector<16x512xf32>
    %101 = arith.addf %97, %100 : vector<16x512xf32>
    %cst_58 = arith.constant 5.000000e-01 : f32
    %102 = vector.broadcast %cst_58 : f32 to vector<16x512xf32>
    %103 = arith.mulf %102, %101 : vector<16x512xf32>
    %cst_59 = arith.constant 0.707106769 : f32
    %104 = vector.broadcast %cst_59 : f32 to vector<16x512xf32>
    %105 = arith.mulf %101, %104 : vector<16x512xf32>
    %cst_60 = arith.constant 0.000000e+00 : f32
    %106 = vector.broadcast %cst_60 : f32 to vector<16x512xf32>
    %107 = arith.cmpf oge, %105, %106 : vector<16x512xf32>
    %cst_61 = arith.constant 1.000000e+00 : f32
    %cst_62 = arith.constant -1.000000e+00 : f32
    %108 = vector.broadcast %cst_61 : f32 to vector<16x512xf32>
    %109 = vector.broadcast %cst_62 : f32 to vector<16x512xf32>
    %110 = arith.select %107, %108, %109 : vector<16x512xi1>, vector<16x512xf32>
    %111 = math.absf %105 : vector<16x512xf32>
    %cst_63 = arith.constant 0.327591091 : f32
    %112 = vector.broadcast %cst_63 : f32 to vector<16x512xf32>
    %113 = arith.mulf %112, %111 : vector<16x512xf32>
    %cst_64 = arith.constant 1.000000e+00 : f32
    %114 = vector.broadcast %cst_64 : f32 to vector<16x512xf32>
    %115 = arith.addf %114, %113 : vector<16x512xf32>
    %cst_65 = arith.constant 1.000000e+00 : f32
    %116 = vector.broadcast %cst_65 : f32 to vector<16x512xf32>
    %117 = arith.divf %116, %115 : vector<16x512xf32>
    %cst_66 = arith.constant 1.06140542 : f32
    %118 = vector.broadcast %cst_66 : f32 to vector<16x512xf32>
    %119 = arith.mulf %118, %117 : vector<16x512xf32>
    %cst_67 = arith.constant -1.45315206 : f32
    %120 = vector.broadcast %cst_67 : f32 to vector<16x512xf32>
    %121 = arith.addf %119, %120 : vector<16x512xf32>
    %122 = arith.mulf %121, %117 : vector<16x512xf32>
    %cst_68 = arith.constant 1.42141378 : f32
    %123 = vector.broadcast %cst_68 : f32 to vector<16x512xf32>
    %124 = arith.addf %122, %123 : vector<16x512xf32>
    %125 = arith.mulf %124, %117 : vector<16x512xf32>
    %cst_69 = arith.constant -0.284496725 : f32
    %126 = vector.broadcast %cst_69 : f32 to vector<16x512xf32>
    %127 = arith.addf %125, %126 : vector<16x512xf32>
    %128 = arith.mulf %127, %117 : vector<16x512xf32>
    %cst_70 = arith.constant 0.254829586 : f32
    %129 = vector.broadcast %cst_70 : f32 to vector<16x512xf32>
    %130 = arith.addf %128, %129 : vector<16x512xf32>
    %131 = arith.mulf %130, %117 : vector<16x512xf32>
    %cst_71 = arith.constant 0.000000e+00 : f32
    %132 = vector.broadcast %cst_71 : f32 to vector<16x512xf32>
    %133 = arith.subf %132, %111 : vector<16x512xf32>
    %134 = arith.mulf %133, %111 : vector<16x512xf32>
    %135 = math.exp %134 : vector<16x512xf32>
    %136 = arith.mulf %131, %135 : vector<16x512xf32>
    %cst_72 = arith.constant 1.000000e+00 : f32
    %137 = vector.broadcast %cst_72 : f32 to vector<16x512xf32>
    %138 = arith.subf %137, %136 : vector<16x512xf32>
    %139 = arith.mulf %110, %138 : vector<16x512xf32>
    %cst_73 = arith.constant 1.000000e+00 : f32
    %140 = vector.broadcast %cst_73 : f32 to vector<16x512xf32>
    %141 = arith.addf %140, %139 : vector<16x512xf32>
    %142 = arith.mulf %103, %141 : vector<16x512xf32>
    %143 = arith.truncf %142 : vector<16x512xf32> to vector<16x512xbf16>
    %c0_74 = arith.constant 0 : index
    %c0_75 = arith.constant 0 : index
    %c0_76 = arith.constant 0 : index
    %144 = vector.load %arg20[%c0_74, %c0_75, %c0_76] : memref<3x512x128xbf16, #tpu.memory_space<vmem>>, vector<1x512x128xbf16>
    %145 = vector.shape_cast %144 : vector<1x512x128xbf16> to vector<512x128xbf16>
    %cst_77 = arith.constant dense<0.000000e+00> : vector<16x128xf32>
    %146 = tpu.matmul %143, %145, %cst_77 {dimension_numbers = #tpu.dot_dimension_numbers<[1], [0], [0], [1], [0, 0, 1, 1], [], []>} : vector<16x512xbf16>, vector<512x128xbf16>, vector<16x128xf32> -> vector<16x128xf32>
    %c0_78 = arith.constant 0 : index
    %c0_79 = arith.constant 0 : index
    %c0_80 = arith.constant 0 : index
    %147 = vector.load %arg21[%c0_78, %c0_79, %c0_80] : memref<3x1x128xf32, #tpu.memory_space<vmem>>, vector<1x1x128xf32>
    %148 = vector.shape_cast %147 : vector<1x1x128xf32> to vector<1x128xf32>
    %149 = vector.broadcast %148 : vector<1x128xf32> to vector<16x128xf32>
    %150 = arith.addf %146, %149 : vector<16x128xf32>
    %151 = arith.addf %93, %150 : vector<16x128xf32>
    %c1 = arith.constant 1 : index
    %c0_81 = arith.constant 0 : index
    %c0_82 = arith.constant 0 : index
    %152 = vector.load %arg16[%c1, %c0_81, %c0_82] : memref<6x1x128xf32, #tpu.memory_space<vmem>>, vector<1x1x128xf32>
    %153 = vector.shape_cast %152 : vector<1x1x128xf32> to vector<1x128xf32>
    %c1_83 = arith.constant 1 : index
    %c0_84 = arith.constant 0 : index
    %c0_85 = arith.constant 0 : index
    %154 = vector.load %arg17[%c1_83, %c0_84, %c0_85] : memref<6x1x128xf32, #tpu.memory_space<vmem>>, vector<1x1x128xf32>
    %155 = vector.shape_cast %154 : vector<1x1x128xf32> to vector<1x128xf32>
    %cst_86 = arith.constant dense<0.000000e+00> : vector<16xf32>
    %156 = vector.multi_reduction <add>, %151, %cst_86 [1] : vector<16x128xf32> to vector<16xf32>
    %157 = vector.shape_cast %156 : vector<16xf32> to vector<16x1xf32>
    %cst_87 = arith.constant 1.280000e+02 : f32
    %158 = vector.broadcast %cst_87 : f32 to vector<16x1xf32>
    %159 = arith.divf %157, %158 : vector<16x1xf32>
    %160 = vector.broadcast %159 : vector<16x1xf32> to vector<16x128xf32>
    %161 = arith.subf %151, %160 : vector<16x128xf32>
    %162 = arith.mulf %161, %161 : vector<16x128xf32>
    %cst_88 = arith.constant dense<0.000000e+00> : vector<16xf32>
    %163 = vector.multi_reduction <add>, %162, %cst_88 [1] : vector<16x128xf32> to vector<16xf32>
    %164 = vector.shape_cast %163 : vector<16xf32> to vector<16x1xf32>
    %cst_89 = arith.constant 1.280000e+02 : f32
    %165 = vector.broadcast %cst_89 : f32 to vector<16x1xf32>
    %166 = arith.divf %164, %165 : vector<16x1xf32>
    %cst_90 = arith.constant 9.99999974E-6 : f32
    %167 = vector.broadcast %cst_90 : f32 to vector<16x1xf32>
    %168 = arith.addf %166, %167 : vector<16x1xf32>
    %169 = math.rsqrt %168 : vector<16x1xf32>
    %170 = vector.broadcast %169 : vector<16x1xf32> to vector<16x128xf32>
    %171 = arith.mulf %161, %170 : vector<16x128xf32>
    %172 = vector.broadcast %153 : vector<1x128xf32> to vector<16x128xf32>
    %173 = arith.mulf %171, %172 : vector<16x128xf32>
    %174 = vector.broadcast %155 : vector<1x128xf32> to vector<16x128xf32>
    %175 = arith.addf %173, %174 : vector<16x128xf32>
    %c1_91 = arith.constant 1 : index
    %c0_92 = arith.constant 0 : index
    %c0_93 = arith.constant 0 : index
    %176 = vector.load %arg12[%c1_91, %c0_92, %c0_93] : memref<3x128x384xbf16, #tpu.memory_space<vmem>>, vector<1x128x384xbf16>
    %177 = vector.shape_cast %176 : vector<1x128x384xbf16> to vector<128x384xbf16>
    %cst_94 = arith.constant dense<0.000000e+00> : vector<48x384xf32>
    %178 = tpu.matmul %22, %177, %cst_94 {dimension_numbers = #tpu.dot_dimension_numbers<[1], [0], [0], [1], [0, 0, 1, 1], [], []>} : vector<48x128xbf16>, vector<128x384xbf16>, vector<48x384xf32> -> vector<48x384xf32>
    %c1_95 = arith.constant 1 : index
    %c0_96 = arith.constant 0 : index
    %c0_97 = arith.constant 0 : index
    %179 = vector.load %arg13[%c1_95, %c0_96, %c0_97] : memref<3x1x384xf32, #tpu.memory_space<vmem>>, vector<1x1x384xf32>
    %180 = vector.shape_cast %179 : vector<1x1x384xf32> to vector<1x384xf32>
    %181 = vector.broadcast %180 : vector<1x384xf32> to vector<48x384xf32>
    %182 = arith.addf %178, %181 : vector<48x384xf32>
    %183 = vector.extract_strided_slice %182 {offsets = [16, 0], sizes = [16, 128], strides = [1, 1]} : vector<48x384xf32> to vector<16x128xf32>
    %184 = vector.extract_strided_slice %182 {offsets = [0, 128], sizes = [16, 128], strides = [1, 1]} : vector<48x384xf32> to vector<16x128xf32>
    %185 = vector.extract_strided_slice %182 {offsets = [32, 128], sizes = [16, 128], strides = [1, 1]} : vector<48x384xf32> to vector<16x128xf32>
    %186 = vector.extract_strided_slice %182 {offsets = [0, 256], sizes = [16, 128], strides = [1, 1]} : vector<48x384xf32> to vector<16x128xf32>
    %187 = vector.extract_strided_slice %182 {offsets = [32, 256], sizes = [16, 128], strides = [1, 1]} : vector<48x384xf32> to vector<16x128xf32>
    %188 = arith.mulf %183, %184 : vector<16x128xf32>
    %189 = arith.mulf %183, %185 : vector<16x128xf32>
    %190 = tpu.concatenate %188, %189 in 0 : vector<16x128xf32>, vector<16x128xf32> -> vector<32x128xf32>
    %cst_98 = arith.constant dense<0.000000e+00> : vector<32x8xf32>
    %191 = tpu.matmul %190, %23, %cst_98 {dimension_numbers = #tpu.dot_dimension_numbers<[1], [0], [0], [1], [0, 0, 1, 1], [], []>} : vector<32x128xf32>, vector<128x8xf32>, vector<32x8xf32> -> vector<32x8xf32>
    %cst_99 = arith.constant 2.500000e-01 : f32
    %192 = vector.broadcast %cst_99 : f32 to vector<32x8xf32>
    %193 = arith.mulf %191, %192 : vector<32x8xf32>
    %194 = vector.extract_strided_slice %193 {offsets = [0, 0], sizes = [16, 8], strides = [1, 1]} : vector<32x8xf32> to vector<16x8xf32>
    %195 = vector.extract_strided_slice %193 {offsets = [16, 0], sizes = [16, 8], strides = [1, 1]} : vector<32x8xf32> to vector<16x8xf32>
    %196 = arith.maximumf %194, %195 : vector<16x8xf32>
    %197 = arith.subf %194, %196 : vector<16x8xf32>
    %198 = math.exp %197 : vector<16x8xf32>
    %199 = arith.subf %195, %196 : vector<16x8xf32>
    %200 = math.exp %199 : vector<16x8xf32>
    %201 = arith.addf %198, %200 : vector<16x8xf32>
    %202 = tpu.reciprocal %201 {approx = true} : vector<16x8xf32> -> vector<16x8xf32>
    %203 = arith.mulf %198, %202 : vector<16x8xf32>
    %204 = arith.mulf %200, %202 : vector<16x8xf32>
    %205 = tpu.concatenate %203, %204 in 0 : vector<16x8xf32>, vector<16x8xf32> -> vector<32x8xf32>
    %cst_100 = arith.constant dense<0.000000e+00> : vector<32x128xf32>
    %206 = tpu.matmul %205, %24, %cst_100 {dimension_numbers = #tpu.dot_dimension_numbers<[1], [0], [0], [1], [0, 0, 1, 1], [], []>} : vector<32x8xf32>, vector<8x128xf32>, vector<32x128xf32> -> vector<32x128xf32>
    %207 = vector.extract_strided_slice %206 {offsets = [0, 0], sizes = [16, 128], strides = [1, 1]} : vector<32x128xf32> to vector<16x128xf32>
    %208 = arith.mulf %207, %186 : vector<16x128xf32>
    %209 = vector.extract_strided_slice %206 {offsets = [16, 0], sizes = [16, 128], strides = [1, 1]} : vector<32x128xf32> to vector<16x128xf32>
    %210 = arith.mulf %209, %187 : vector<16x128xf32>
    %211 = arith.addf %208, %210 : vector<16x128xf32>
    %212 = arith.truncf %211 : vector<16x128xf32> to vector<16x128xbf16>
    %c1_101 = arith.constant 1 : index
    %c0_102 = arith.constant 0 : index
    %c0_103 = arith.constant 0 : index
    %213 = vector.load %arg14[%c1_101, %c0_102, %c0_103] : memref<3x128x128xbf16, #tpu.memory_space<vmem>>, vector<1x128x128xbf16>
    %214 = vector.shape_cast %213 : vector<1x128x128xbf16> to vector<128x128xbf16>
    %cst_104 = arith.constant dense<0.000000e+00> : vector<16x128xf32>
    %215 = tpu.matmul %212, %214, %cst_104 {dimension_numbers = #tpu.dot_dimension_numbers<[1], [0], [0], [1], [0, 0, 1, 1], [], []>} : vector<16x128xbf16>, vector<128x128xbf16>, vector<16x128xf32> -> vector<16x128xf32>
    %c1_105 = arith.constant 1 : index
    %c0_106 = arith.constant 0 : index
    %c0_107 = arith.constant 0 : index
    %216 = vector.load %arg15[%c1_105, %c0_106, %c0_107] : memref<3x1x128xf32, #tpu.memory_space<vmem>>, vector<1x1x128xf32>
    %217 = vector.shape_cast %216 : vector<1x1x128xf32> to vector<1x128xf32>
    %218 = vector.broadcast %217 : vector<1x128xf32> to vector<16x128xf32>
    %219 = arith.addf %215, %218 : vector<16x128xf32>
    %220 = arith.addf %13, %219 : vector<16x128xf32>
    %c2 = arith.constant 2 : index
    %c0_108 = arith.constant 0 : index
    %c0_109 = arith.constant 0 : index
    %221 = vector.load %arg16[%c2, %c0_108, %c0_109] : memref<6x1x128xf32, #tpu.memory_space<vmem>>, vector<1x1x128xf32>
    %222 = vector.shape_cast %221 : vector<1x1x128xf32> to vector<1x128xf32>
    %c2_110 = arith.constant 2 : index
    %c0_111 = arith.constant 0 : index
    %c0_112 = arith.constant 0 : index
    %223 = vector.load %arg17[%c2_110, %c0_111, %c0_112] : memref<6x1x128xf32, #tpu.memory_space<vmem>>, vector<1x1x128xf32>
    %224 = vector.shape_cast %223 : vector<1x1x128xf32> to vector<1x128xf32>
    %cst_113 = arith.constant dense<0.000000e+00> : vector<16xf32>
    %225 = vector.multi_reduction <add>, %220, %cst_113 [1] : vector<16x128xf32> to vector<16xf32>
    %226 = vector.shape_cast %225 : vector<16xf32> to vector<16x1xf32>
    %cst_114 = arith.constant 1.280000e+02 : f32
    %227 = vector.broadcast %cst_114 : f32 to vector<16x1xf32>
    %228 = arith.divf %226, %227 : vector<16x1xf32>
    %229 = vector.broadcast %228 : vector<16x1xf32> to vector<16x128xf32>
    %230 = arith.subf %220, %229 : vector<16x128xf32>
    %231 = arith.mulf %230, %230 : vector<16x128xf32>
    %cst_115 = arith.constant dense<0.000000e+00> : vector<16xf32>
    %232 = vector.multi_reduction <add>, %231, %cst_115 [1] : vector<16x128xf32> to vector<16xf32>
    %233 = vector.shape_cast %232 : vector<16xf32> to vector<16x1xf32>
    %cst_116 = arith.constant 1.280000e+02 : f32
    %234 = vector.broadcast %cst_116 : f32 to vector<16x1xf32>
    %235 = arith.divf %233, %234 : vector<16x1xf32>
    %cst_117 = arith.constant 9.99999974E-6 : f32
    %236 = vector.broadcast %cst_117 : f32 to vector<16x1xf32>
    %237 = arith.addf %235, %236 : vector<16x1xf32>
    %238 = math.rsqrt %237 : vector<16x1xf32>
    %239 = vector.broadcast %238 : vector<16x1xf32> to vector<16x128xf32>
    %240 = arith.mulf %230, %239 : vector<16x128xf32>
    %241 = vector.broadcast %222 : vector<1x128xf32> to vector<16x128xf32>
    %242 = arith.mulf %240, %241 : vector<16x128xf32>
    %243 = vector.broadcast %224 : vector<1x128xf32> to vector<16x128xf32>
    %244 = arith.addf %242, %243 : vector<16x128xf32>
    %245 = arith.truncf %244 : vector<16x128xf32> to vector<16x128xbf16>
    %c1_118 = arith.constant 1 : index
    %c0_119 = arith.constant 0 : index
    %c0_120 = arith.constant 0 : index
    %246 = vector.load %arg18[%c1_118, %c0_119, %c0_120] : memref<3x128x512xbf16, #tpu.memory_space<vmem>>, vector<1x128x512xbf16>
    %247 = vector.shape_cast %246 : vector<1x128x512xbf16> to vector<128x512xbf16>
    %cst_121 = arith.constant dense<0.000000e+00> : vector<16x512xf32>
    %248 = tpu.matmul %245, %247, %cst_121 {dimension_numbers = #tpu.dot_dimension_numbers<[1], [0], [0], [1], [0, 0, 1, 1], [], []>} : vector<16x128xbf16>, vector<128x512xbf16>, vector<16x512xf32> -> vector<16x512xf32>
    %c1_122 = arith.constant 1 : index
    %c0_123 = arith.constant 0 : index
    %c0_124 = arith.constant 0 : index
    %249 = vector.load %arg19[%c1_122, %c0_123, %c0_124] : memref<3x1x512xf32, #tpu.memory_space<vmem>>, vector<1x1x512xf32>
    %250 = vector.shape_cast %249 : vector<1x1x512xf32> to vector<1x512xf32>
    %251 = vector.broadcast %250 : vector<1x512xf32> to vector<16x512xf32>
    %252 = arith.addf %248, %251 : vector<16x512xf32>
    %cst_125 = arith.constant 5.000000e-01 : f32
    %253 = vector.broadcast %cst_125 : f32 to vector<16x512xf32>
    %254 = arith.mulf %253, %252 : vector<16x512xf32>
    %cst_126 = arith.constant 0.707106769 : f32
    %255 = vector.broadcast %cst_126 : f32 to vector<16x512xf32>
    %256 = arith.mulf %252, %255 : vector<16x512xf32>
    %cst_127 = arith.constant 0.000000e+00 : f32
    %257 = vector.broadcast %cst_127 : f32 to vector<16x512xf32>
    %258 = arith.cmpf oge, %256, %257 : vector<16x512xf32>
    %cst_128 = arith.constant 1.000000e+00 : f32
    %cst_129 = arith.constant -1.000000e+00 : f32
    %259 = vector.broadcast %cst_128 : f32 to vector<16x512xf32>
    %260 = vector.broadcast %cst_129 : f32 to vector<16x512xf32>
    %261 = arith.select %258, %259, %260 : vector<16x512xi1>, vector<16x512xf32>
    %262 = math.absf %256 : vector<16x512xf32>
    %cst_130 = arith.constant 0.327591091 : f32
    %263 = vector.broadcast %cst_130 : f32 to vector<16x512xf32>
    %264 = arith.mulf %263, %262 : vector<16x512xf32>
    %cst_131 = arith.constant 1.000000e+00 : f32
    %265 = vector.broadcast %cst_131 : f32 to vector<16x512xf32>
    %266 = arith.addf %265, %264 : vector<16x512xf32>
    %cst_132 = arith.constant 1.000000e+00 : f32
    %267 = vector.broadcast %cst_132 : f32 to vector<16x512xf32>
    %268 = arith.divf %267, %266 : vector<16x512xf32>
    %cst_133 = arith.constant 1.06140542 : f32
    %269 = vector.broadcast %cst_133 : f32 to vector<16x512xf32>
    %270 = arith.mulf %269, %268 : vector<16x512xf32>
    %cst_134 = arith.constant -1.45315206 : f32
    %271 = vector.broadcast %cst_134 : f32 to vector<16x512xf32>
    %272 = arith.addf %270, %271 : vector<16x512xf32>
    %273 = arith.mulf %272, %268 : vector<16x512xf32>
    %cst_135 = arith.constant 1.42141378 : f32
    %274 = vector.broadcast %cst_135 : f32 to vector<16x512xf32>
    %275 = arith.addf %273, %274 : vector<16x512xf32>
    %276 = arith.mulf %275, %268 : vector<16x512xf32>
    %cst_136 = arith.constant -0.284496725 : f32
    %277 = vector.broadcast %cst_136 : f32 to vector<16x512xf32>
    %278 = arith.addf %276, %277 : vector<16x512xf32>
    %279 = arith.mulf %278, %268 : vector<16x512xf32>
    %cst_137 = arith.constant 0.254829586 : f32
    %280 = vector.broadcast %cst_137 : f32 to vector<16x512xf32>
    %281 = arith.addf %279, %280 : vector<16x512xf32>
    %282 = arith.mulf %281, %268 : vector<16x512xf32>
    %cst_138 = arith.constant 0.000000e+00 : f32
    %283 = vector.broadcast %cst_138 : f32 to vector<16x512xf32>
    %284 = arith.subf %283, %262 : vector<16x512xf32>
    %285 = arith.mulf %284, %262 : vector<16x512xf32>
    %286 = math.exp %285 : vector<16x512xf32>
    %287 = arith.mulf %282, %286 : vector<16x512xf32>
    %cst_139 = arith.constant 1.000000e+00 : f32
    %288 = vector.broadcast %cst_139 : f32 to vector<16x512xf32>
    %289 = arith.subf %288, %287 : vector<16x512xf32>
    %290 = arith.mulf %261, %289 : vector<16x512xf32>
    %cst_140 = arith.constant 1.000000e+00 : f32
    %291 = vector.broadcast %cst_140 : f32 to vector<16x512xf32>
    %292 = arith.addf %291, %290 : vector<16x512xf32>
    %293 = arith.mulf %254, %292 : vector<16x512xf32>
    %294 = arith.truncf %293 : vector<16x512xf32> to vector<16x512xbf16>
    %c1_141 = arith.constant 1 : index
    %c0_142 = arith.constant 0 : index
    %c0_143 = arith.constant 0 : index
    %295 = vector.load %arg20[%c1_141, %c0_142, %c0_143] : memref<3x512x128xbf16, #tpu.memory_space<vmem>>, vector<1x512x128xbf16>
    %296 = vector.shape_cast %295 : vector<1x512x128xbf16> to vector<512x128xbf16>
    %cst_144 = arith.constant dense<0.000000e+00> : vector<16x128xf32>
    %297 = tpu.matmul %294, %296, %cst_144 {dimension_numbers = #tpu.dot_dimension_numbers<[1], [0], [0], [1], [0, 0, 1, 1], [], []>} : vector<16x512xbf16>, vector<512x128xbf16>, vector<16x128xf32> -> vector<16x128xf32>
    %c1_145 = arith.constant 1 : index
    %c0_146 = arith.constant 0 : index
    %c0_147 = arith.constant 0 : index
    %298 = vector.load %arg21[%c1_145, %c0_146, %c0_147] : memref<3x1x128xf32, #tpu.memory_space<vmem>>, vector<1x1x128xf32>
    %299 = vector.shape_cast %298 : vector<1x1x128xf32> to vector<1x128xf32>
    %300 = vector.broadcast %299 : vector<1x128xf32> to vector<16x128xf32>
    %301 = arith.addf %297, %300 : vector<16x128xf32>
    %302 = arith.addf %244, %301 : vector<16x128xf32>
    %c3 = arith.constant 3 : index
    %c0_148 = arith.constant 0 : index
    %c0_149 = arith.constant 0 : index
    %303 = vector.load %arg16[%c3, %c0_148, %c0_149] : memref<6x1x128xf32, #tpu.memory_space<vmem>>, vector<1x1x128xf32>
    %304 = vector.shape_cast %303 : vector<1x1x128xf32> to vector<1x128xf32>
    %c3_150 = arith.constant 3 : index
    %c0_151 = arith.constant 0 : index
    %c0_152 = arith.constant 0 : index
    %305 = vector.load %arg17[%c3_150, %c0_151, %c0_152] : memref<6x1x128xf32, #tpu.memory_space<vmem>>, vector<1x1x128xf32>
    %306 = vector.shape_cast %305 : vector<1x1x128xf32> to vector<1x128xf32>
    %cst_153 = arith.constant dense<0.000000e+00> : vector<16xf32>
    %307 = vector.multi_reduction <add>, %302, %cst_153 [1] : vector<16x128xf32> to vector<16xf32>
    %308 = vector.shape_cast %307 : vector<16xf32> to vector<16x1xf32>
    %cst_154 = arith.constant 1.280000e+02 : f32
    %309 = vector.broadcast %cst_154 : f32 to vector<16x1xf32>
    %310 = arith.divf %308, %309 : vector<16x1xf32>
    %311 = vector.broadcast %310 : vector<16x1xf32> to vector<16x128xf32>
    %312 = arith.subf %302, %311 : vector<16x128xf32>
    %313 = arith.mulf %312, %312 : vector<16x128xf32>
    %cst_155 = arith.constant dense<0.000000e+00> : vector<16xf32>
    %314 = vector.multi_reduction <add>, %313, %cst_155 [1] : vector<16x128xf32> to vector<16xf32>
    %315 = vector.shape_cast %314 : vector<16xf32> to vector<16x1xf32>
    %cst_156 = arith.constant 1.280000e+02 : f32
    %316 = vector.broadcast %cst_156 : f32 to vector<16x1xf32>
    %317 = arith.divf %315, %316 : vector<16x1xf32>
    %cst_157 = arith.constant 9.99999974E-6 : f32
    %318 = vector.broadcast %cst_157 : f32 to vector<16x1xf32>
    %319 = arith.addf %317, %318 : vector<16x1xf32>
    %320 = math.rsqrt %319 : vector<16x1xf32>
    %321 = vector.broadcast %320 : vector<16x1xf32> to vector<16x128xf32>
    %322 = arith.mulf %312, %321 : vector<16x128xf32>
    %323 = vector.broadcast %304 : vector<1x128xf32> to vector<16x128xf32>
    %324 = arith.mulf %322, %323 : vector<16x128xf32>
    %325 = vector.broadcast %306 : vector<1x128xf32> to vector<16x128xf32>
    %326 = arith.addf %324, %325 : vector<16x128xf32>
    %c2_158 = arith.constant 2 : index
    %c0_159 = arith.constant 0 : index
    %c0_160 = arith.constant 0 : index
    %327 = vector.load %arg12[%c2_158, %c0_159, %c0_160] : memref<3x128x384xbf16, #tpu.memory_space<vmem>>, vector<1x128x384xbf16>
    %328 = vector.shape_cast %327 : vector<1x128x384xbf16> to vector<128x384xbf16>
    %cst_161 = arith.constant dense<0.000000e+00> : vector<48x384xf32>
    %329 = tpu.matmul %22, %328, %cst_161 {dimension_numbers = #tpu.dot_dimension_numbers<[1], [0], [0], [1], [0, 0, 1, 1], [], []>} : vector<48x128xbf16>, vector<128x384xbf16>, vector<48x384xf32> -> vector<48x384xf32>
    %c2_162 = arith.constant 2 : index
    %c0_163 = arith.constant 0 : index
    %c0_164 = arith.constant 0 : index
    %330 = vector.load %arg13[%c2_162, %c0_163, %c0_164] : memref<3x1x384xf32, #tpu.memory_space<vmem>>, vector<1x1x384xf32>
    %331 = vector.shape_cast %330 : vector<1x1x384xf32> to vector<1x384xf32>
    %332 = vector.broadcast %331 : vector<1x384xf32> to vector<48x384xf32>
    %333 = arith.addf %329, %332 : vector<48x384xf32>
    %334 = vector.extract_strided_slice %333 {offsets = [32, 0], sizes = [16, 128], strides = [1, 1]} : vector<48x384xf32> to vector<16x128xf32>
    %335 = vector.extract_strided_slice %333 {offsets = [0, 128], sizes = [16, 128], strides = [1, 1]} : vector<48x384xf32> to vector<16x128xf32>
    %336 = vector.extract_strided_slice %333 {offsets = [16, 128], sizes = [16, 128], strides = [1, 1]} : vector<48x384xf32> to vector<16x128xf32>
    %337 = vector.extract_strided_slice %333 {offsets = [0, 256], sizes = [16, 128], strides = [1, 1]} : vector<48x384xf32> to vector<16x128xf32>
    %338 = vector.extract_strided_slice %333 {offsets = [16, 256], sizes = [16, 128], strides = [1, 1]} : vector<48x384xf32> to vector<16x128xf32>
    %339 = arith.mulf %334, %335 : vector<16x128xf32>
    %340 = arith.mulf %334, %336 : vector<16x128xf32>
    %341 = tpu.concatenate %339, %340 in 0 : vector<16x128xf32>, vector<16x128xf32> -> vector<32x128xf32>
    %cst_165 = arith.constant dense<0.000000e+00> : vector<32x8xf32>
    %342 = tpu.matmul %341, %23, %cst_165 {dimension_numbers = #tpu.dot_dimension_numbers<[1], [0], [0], [1], [0, 0, 1, 1], [], []>} : vector<32x128xf32>, vector<128x8xf32>, vector<32x8xf32> -> vector<32x8xf32>
    %cst_166 = arith.constant 2.500000e-01 : f32
    %343 = vector.broadcast %cst_166 : f32 to vector<32x8xf32>
    %344 = arith.mulf %342, %343 : vector<32x8xf32>
    %345 = vector.extract_strided_slice %344 {offsets = [0, 0], sizes = [16, 8], strides = [1, 1]} : vector<32x8xf32> to vector<16x8xf32>
    %346 = vector.extract_strided_slice %344 {offsets = [16, 0], sizes = [16, 8], strides = [1, 1]} : vector<32x8xf32> to vector<16x8xf32>
    %347 = arith.maximumf %345, %346 : vector<16x8xf32>
    %348 = arith.subf %345, %347 : vector<16x8xf32>
    %349 = math.exp %348 : vector<16x8xf32>
    %350 = arith.subf %346, %347 : vector<16x8xf32>
    %351 = math.exp %350 : vector<16x8xf32>
    %352 = arith.addf %349, %351 : vector<16x8xf32>
    %353 = tpu.reciprocal %352 {approx = true} : vector<16x8xf32> -> vector<16x8xf32>
    %354 = arith.mulf %349, %353 : vector<16x8xf32>
    %355 = arith.mulf %351, %353 : vector<16x8xf32>
    %356 = tpu.concatenate %354, %355 in 0 : vector<16x8xf32>, vector<16x8xf32> -> vector<32x8xf32>
    %cst_167 = arith.constant dense<0.000000e+00> : vector<32x128xf32>
    %357 = tpu.matmul %356, %24, %cst_167 {dimension_numbers = #tpu.dot_dimension_numbers<[1], [0], [0], [1], [0, 0, 1, 1], [], []>} : vector<32x8xf32>, vector<8x128xf32>, vector<32x128xf32> -> vector<32x128xf32>
    %358 = vector.extract_strided_slice %357 {offsets = [0, 0], sizes = [16, 128], strides = [1, 1]} : vector<32x128xf32> to vector<16x128xf32>
    %359 = arith.mulf %358, %337 : vector<16x128xf32>
    %360 = vector.extract_strided_slice %357 {offsets = [16, 0], sizes = [16, 128], strides = [1, 1]} : vector<32x128xf32> to vector<16x128xf32>
    %361 = arith.mulf %360, %338 : vector<16x128xf32>
    %362 = arith.addf %359, %361 : vector<16x128xf32>
    %363 = arith.truncf %362 : vector<16x128xf32> to vector<16x128xbf16>
    %c2_168 = arith.constant 2 : index
    %c0_169 = arith.constant 0 : index
    %c0_170 = arith.constant 0 : index
    %364 = vector.load %arg14[%c2_168, %c0_169, %c0_170] : memref<3x128x128xbf16, #tpu.memory_space<vmem>>, vector<1x128x128xbf16>
    %365 = vector.shape_cast %364 : vector<1x128x128xbf16> to vector<128x128xbf16>
    %cst_171 = arith.constant dense<0.000000e+00> : vector<16x128xf32>
    %366 = tpu.matmul %363, %365, %cst_171 {dimension_numbers = #tpu.dot_dimension_numbers<[1], [0], [0], [1], [0, 0, 1, 1], [], []>} : vector<16x128xbf16>, vector<128x128xbf16>, vector<16x128xf32> -> vector<16x128xf32>
    %c2_172 = arith.constant 2 : index
    %c0_173 = arith.constant 0 : index
    %c0_174 = arith.constant 0 : index
    %367 = vector.load %arg15[%c2_172, %c0_173, %c0_174] : memref<3x1x128xf32, #tpu.memory_space<vmem>>, vector<1x1x128xf32>
    %368 = vector.shape_cast %367 : vector<1x1x128xf32> to vector<1x128xf32>
    %369 = vector.broadcast %368 : vector<1x128xf32> to vector<16x128xf32>
    %370 = arith.addf %366, %369 : vector<16x128xf32>
    %371 = arith.addf %20, %370 : vector<16x128xf32>
    %c4 = arith.constant 4 : index
    %c0_175 = arith.constant 0 : index
    %c0_176 = arith.constant 0 : index
    %372 = vector.load %arg16[%c4, %c0_175, %c0_176] : memref<6x1x128xf32, #tpu.memory_space<vmem>>, vector<1x1x128xf32>
    %373 = vector.shape_cast %372 : vector<1x1x128xf32> to vector<1x128xf32>
    %c4_177 = arith.constant 4 : index
    %c0_178 = arith.constant 0 : index
    %c0_179 = arith.constant 0 : index
    %374 = vector.load %arg17[%c4_177, %c0_178, %c0_179] : memref<6x1x128xf32, #tpu.memory_space<vmem>>, vector<1x1x128xf32>
    %375 = vector.shape_cast %374 : vector<1x1x128xf32> to vector<1x128xf32>
    %cst_180 = arith.constant dense<0.000000e+00> : vector<16xf32>
    %376 = vector.multi_reduction <add>, %371, %cst_180 [1] : vector<16x128xf32> to vector<16xf32>
    %377 = vector.shape_cast %376 : vector<16xf32> to vector<16x1xf32>
    %cst_181 = arith.constant 1.280000e+02 : f32
    %378 = vector.broadcast %cst_181 : f32 to vector<16x1xf32>
    %379 = arith.divf %377, %378 : vector<16x1xf32>
    %380 = vector.broadcast %379 : vector<16x1xf32> to vector<16x128xf32>
    %381 = arith.subf %371, %380 : vector<16x128xf32>
    %382 = arith.mulf %381, %381 : vector<16x128xf32>
    %cst_182 = arith.constant dense<0.000000e+00> : vector<16xf32>
    %383 = vector.multi_reduction <add>, %382, %cst_182 [1] : vector<16x128xf32> to vector<16xf32>
    %384 = vector.shape_cast %383 : vector<16xf32> to vector<16x1xf32>
    %cst_183 = arith.constant 1.280000e+02 : f32
    %385 = vector.broadcast %cst_183 : f32 to vector<16x1xf32>
    %386 = arith.divf %384, %385 : vector<16x1xf32>
    %cst_184 = arith.constant 9.99999974E-6 : f32
    %387 = vector.broadcast %cst_184 : f32 to vector<16x1xf32>
    %388 = arith.addf %386, %387 : vector<16x1xf32>
    %389 = math.rsqrt %388 : vector<16x1xf32>
    %390 = vector.broadcast %389 : vector<16x1xf32> to vector<16x128xf32>
    %391 = arith.mulf %381, %390 : vector<16x128xf32>
    %392 = vector.broadcast %373 : vector<1x128xf32> to vector<16x128xf32>
    %393 = arith.mulf %391, %392 : vector<16x128xf32>
    %394 = vector.broadcast %375 : vector<1x128xf32> to vector<16x128xf32>
    %395 = arith.addf %393, %394 : vector<16x128xf32>
    %396 = arith.truncf %395 : vector<16x128xf32> to vector<16x128xbf16>
    %c2_185 = arith.constant 2 : index
    %c0_186 = arith.constant 0 : index
    %c0_187 = arith.constant 0 : index
    %397 = vector.load %arg18[%c2_185, %c0_186, %c0_187] : memref<3x128x512xbf16, #tpu.memory_space<vmem>>, vector<1x128x512xbf16>
    %398 = vector.shape_cast %397 : vector<1x128x512xbf16> to vector<128x512xbf16>
    %cst_188 = arith.constant dense<0.000000e+00> : vector<16x512xf32>
    %399 = tpu.matmul %396, %398, %cst_188 {dimension_numbers = #tpu.dot_dimension_numbers<[1], [0], [0], [1], [0, 0, 1, 1], [], []>} : vector<16x128xbf16>, vector<128x512xbf16>, vector<16x512xf32> -> vector<16x512xf32>
    %c2_189 = arith.constant 2 : index
    %c0_190 = arith.constant 0 : index
    %c0_191 = arith.constant 0 : index
    %400 = vector.load %arg19[%c2_189, %c0_190, %c0_191] : memref<3x1x512xf32, #tpu.memory_space<vmem>>, vector<1x1x512xf32>
    %401 = vector.shape_cast %400 : vector<1x1x512xf32> to vector<1x512xf32>
    %402 = vector.broadcast %401 : vector<1x512xf32> to vector<16x512xf32>
    %403 = arith.addf %399, %402 : vector<16x512xf32>
    %cst_192 = arith.constant 5.000000e-01 : f32
    %404 = vector.broadcast %cst_192 : f32 to vector<16x512xf32>
    %405 = arith.mulf %404, %403 : vector<16x512xf32>
    %cst_193 = arith.constant 0.707106769 : f32
    %406 = vector.broadcast %cst_193 : f32 to vector<16x512xf32>
    %407 = arith.mulf %403, %406 : vector<16x512xf32>
    %cst_194 = arith.constant 0.000000e+00 : f32
    %408 = vector.broadcast %cst_194 : f32 to vector<16x512xf32>
    %409 = arith.cmpf oge, %407, %408 : vector<16x512xf32>
    %cst_195 = arith.constant 1.000000e+00 : f32
    %cst_196 = arith.constant -1.000000e+00 : f32
    %410 = vector.broadcast %cst_195 : f32 to vector<16x512xf32>
    %411 = vector.broadcast %cst_196 : f32 to vector<16x512xf32>
    %412 = arith.select %409, %410, %411 : vector<16x512xi1>, vector<16x512xf32>
    %413 = math.absf %407 : vector<16x512xf32>
    %cst_197 = arith.constant 0.327591091 : f32
    %414 = vector.broadcast %cst_197 : f32 to vector<16x512xf32>
    %415 = arith.mulf %414, %413 : vector<16x512xf32>
    %cst_198 = arith.constant 1.000000e+00 : f32
    %416 = vector.broadcast %cst_198 : f32 to vector<16x512xf32>
    %417 = arith.addf %416, %415 : vector<16x512xf32>
    %cst_199 = arith.constant 1.000000e+00 : f32
    %418 = vector.broadcast %cst_199 : f32 to vector<16x512xf32>
    %419 = arith.divf %418, %417 : vector<16x512xf32>
    %cst_200 = arith.constant 1.06140542 : f32
    %420 = vector.broadcast %cst_200 : f32 to vector<16x512xf32>
    %421 = arith.mulf %420, %419 : vector<16x512xf32>
    %cst_201 = arith.constant -1.45315206 : f32
    %422 = vector.broadcast %cst_201 : f32 to vector<16x512xf32>
    %423 = arith.addf %421, %422 : vector<16x512xf32>
    %424 = arith.mulf %423, %419 : vector<16x512xf32>
    %cst_202 = arith.constant 1.42141378 : f32
    %425 = vector.broadcast %cst_202 : f32 to vector<16x512xf32>
    %426 = arith.addf %424, %425 : vector<16x512xf32>
    %427 = arith.mulf %426, %419 : vector<16x512xf32>
    %cst_203 = arith.constant -0.284496725 : f32
    %428 = vector.broadcast %cst_203 : f32 to vector<16x512xf32>
    %429 = arith.addf %427, %428 : vector<16x512xf32>
    %430 = arith.mulf %429, %419 : vector<16x512xf32>
    %cst_204 = arith.constant 0.254829586 : f32
    %431 = vector.broadcast %cst_204 : f32 to vector<16x512xf32>
    %432 = arith.addf %430, %431 : vector<16x512xf32>
    %433 = arith.mulf %432, %419 : vector<16x512xf32>
    %cst_205 = arith.constant 0.000000e+00 : f32
    %434 = vector.broadcast %cst_205 : f32 to vector<16x512xf32>
    %435 = arith.subf %434, %413 : vector<16x512xf32>
    %436 = arith.mulf %435, %413 : vector<16x512xf32>
    %437 = math.exp %436 : vector<16x512xf32>
    %438 = arith.mulf %433, %437 : vector<16x512xf32>
    %cst_206 = arith.constant 1.000000e+00 : f32
    %439 = vector.broadcast %cst_206 : f32 to vector<16x512xf32>
    %440 = arith.subf %439, %438 : vector<16x512xf32>
    %441 = arith.mulf %412, %440 : vector<16x512xf32>
    %cst_207 = arith.constant 1.000000e+00 : f32
    %442 = vector.broadcast %cst_207 : f32 to vector<16x512xf32>
    %443 = arith.addf %442, %441 : vector<16x512xf32>
    %444 = arith.mulf %405, %443 : vector<16x512xf32>
    %445 = arith.truncf %444 : vector<16x512xf32> to vector<16x512xbf16>
    %c2_208 = arith.constant 2 : index
    %c0_209 = arith.constant 0 : index
    %c0_210 = arith.constant 0 : index
    %446 = vector.load %arg20[%c2_208, %c0_209, %c0_210] : memref<3x512x128xbf16, #tpu.memory_space<vmem>>, vector<1x512x128xbf16>
    %447 = vector.shape_cast %446 : vector<1x512x128xbf16> to vector<512x128xbf16>
    %cst_211 = arith.constant dense<0.000000e+00> : vector<16x128xf32>
    %448 = tpu.matmul %445, %447, %cst_211 {dimension_numbers = #tpu.dot_dimension_numbers<[1], [0], [0], [1], [0, 0, 1, 1], [], []>} : vector<16x512xbf16>, vector<512x128xbf16>, vector<16x128xf32> -> vector<16x128xf32>
    %c2_212 = arith.constant 2 : index
    %c0_213 = arith.constant 0 : index
    %c0_214 = arith.constant 0 : index
    %449 = vector.load %arg21[%c2_212, %c0_213, %c0_214] : memref<3x1x128xf32, #tpu.memory_space<vmem>>, vector<1x1x128xf32>
    %450 = vector.shape_cast %449 : vector<1x1x128xf32> to vector<1x128xf32>
    %451 = vector.broadcast %450 : vector<1x128xf32> to vector<16x128xf32>
    %452 = arith.addf %448, %451 : vector<16x128xf32>
    %453 = arith.addf %395, %452 : vector<16x128xf32>
    %c5 = arith.constant 5 : index
    %c0_215 = arith.constant 0 : index
    %c0_216 = arith.constant 0 : index
    %454 = vector.load %arg16[%c5, %c0_215, %c0_216] : memref<6x1x128xf32, #tpu.memory_space<vmem>>, vector<1x1x128xf32>
    %455 = vector.shape_cast %454 : vector<1x1x128xf32> to vector<1x128xf32>
    %c5_217 = arith.constant 5 : index
    %c0_218 = arith.constant 0 : index
    %c0_219 = arith.constant 0 : index
    %456 = vector.load %arg17[%c5_217, %c0_218, %c0_219] : memref<6x1x128xf32, #tpu.memory_space<vmem>>, vector<1x1x128xf32>
    %457 = vector.shape_cast %456 : vector<1x1x128xf32> to vector<1x128xf32>
    %cst_220 = arith.constant dense<0.000000e+00> : vector<16xf32>
    %458 = vector.multi_reduction <add>, %453, %cst_220 [1] : vector<16x128xf32> to vector<16xf32>
    %459 = vector.shape_cast %458 : vector<16xf32> to vector<16x1xf32>
    %cst_221 = arith.constant 1.280000e+02 : f32
    %460 = vector.broadcast %cst_221 : f32 to vector<16x1xf32>
    %461 = arith.divf %459, %460 : vector<16x1xf32>
    %462 = vector.broadcast %461 : vector<16x1xf32> to vector<16x128xf32>
    %463 = arith.subf %453, %462 : vector<16x128xf32>
    %464 = arith.mulf %463, %463 : vector<16x128xf32>
    %cst_222 = arith.constant dense<0.000000e+00> : vector<16xf32>
    %465 = vector.multi_reduction <add>, %464, %cst_222 [1] : vector<16x128xf32> to vector<16xf32>
    %466 = vector.shape_cast %465 : vector<16xf32> to vector<16x1xf32>
    %cst_223 = arith.constant 1.280000e+02 : f32
    %467 = vector.broadcast %cst_223 : f32 to vector<16x1xf32>
    %468 = arith.divf %466, %467 : vector<16x1xf32>
    %cst_224 = arith.constant 9.99999974E-6 : f32
    %469 = vector.broadcast %cst_224 : f32 to vector<16x1xf32>
    %470 = arith.addf %468, %469 : vector<16x1xf32>
    %471 = math.rsqrt %470 : vector<16x1xf32>
    %472 = vector.broadcast %471 : vector<16x1xf32> to vector<16x128xf32>
    %473 = arith.mulf %463, %472 : vector<16x128xf32>
    %474 = vector.broadcast %455 : vector<1x128xf32> to vector<16x128xf32>
    %475 = arith.mulf %473, %474 : vector<16x128xf32>
    %476 = vector.broadcast %457 : vector<1x128xf32> to vector<16x128xf32>
    %477 = arith.addf %475, %476 : vector<16x128xf32>
    %478 = arith.truncf %175 : vector<16x128xf32> to vector<16x128xbf16>
    %c0_225 = arith.constant 0 : index
    %c0_226 = arith.constant 0 : index
    %c0_227 = arith.constant 0 : index
    %479 = vector.load %arg22[%c0_225, %c0_226, %c0_227] : memref<3x128x256xbf16, #tpu.memory_space<vmem>>, vector<1x128x256xbf16>
    %480 = vector.shape_cast %479 : vector<1x128x256xbf16> to vector<128x256xbf16>
    %cst_228 = arith.constant dense<0.000000e+00> : vector<16x256xf32>
    %481 = tpu.matmul %478, %480, %cst_228 {dimension_numbers = #tpu.dot_dimension_numbers<[1], [0], [0], [1], [0, 0, 1, 1], [], []>} : vector<16x128xbf16>, vector<128x256xbf16>, vector<16x256xf32> -> vector<16x256xf32>
    %482 = arith.truncf %326 : vector<16x128xf32> to vector<16x128xbf16>
    %c1_229 = arith.constant 1 : index
    %c0_230 = arith.constant 0 : index
    %c0_231 = arith.constant 0 : index
    %483 = vector.load %arg22[%c1_229, %c0_230, %c0_231] : memref<3x128x256xbf16, #tpu.memory_space<vmem>>, vector<1x128x256xbf16>
    %484 = vector.shape_cast %483 : vector<1x128x256xbf16> to vector<128x256xbf16>
    %cst_232 = arith.constant dense<0.000000e+00> : vector<16x256xf32>
    %485 = tpu.matmul %482, %484, %cst_232 {dimension_numbers = #tpu.dot_dimension_numbers<[1], [0], [0], [1], [0, 0, 1, 1], [], []>} : vector<16x128xbf16>, vector<128x256xbf16>, vector<16x256xf32> -> vector<16x256xf32>
    %486 = arith.addf %481, %485 : vector<16x256xf32>
    %487 = arith.truncf %477 : vector<16x128xf32> to vector<16x128xbf16>
    %c2_233 = arith.constant 2 : index
    %c0_234 = arith.constant 0 : index
    %c0_235 = arith.constant 0 : index
    %488 = vector.load %arg22[%c2_233, %c0_234, %c0_235] : memref<3x128x256xbf16, #tpu.memory_space<vmem>>, vector<1x128x256xbf16>
    %489 = vector.shape_cast %488 : vector<1x128x256xbf16> to vector<128x256xbf16>
    %cst_236 = arith.constant dense<0.000000e+00> : vector<16x256xf32>
    %490 = tpu.matmul %487, %489, %cst_236 {dimension_numbers = #tpu.dot_dimension_numbers<[1], [0], [0], [1], [0, 0, 1, 1], [], []>} : vector<16x128xbf16>, vector<128x256xbf16>, vector<16x256xf32> -> vector<16x256xf32>
    %491 = arith.addf %486, %490 : vector<16x256xf32>
    %c0_237 = arith.constant 0 : index
    %c0_238 = arith.constant 0 : index
    %492 = vector.load %arg23[%c0_237, %c0_238] : memref<1x256xf32, #tpu.memory_space<vmem>>, vector<1x256xf32>
    %493 = vector.broadcast %492 : vector<1x256xf32> to vector<16x256xf32>
    %494 = arith.addf %491, %493 : vector<16x256xf32>
    %cst_239 = arith.constant 5.000000e-01 : f32
    %495 = vector.broadcast %cst_239 : f32 to vector<16x256xf32>
    %496 = arith.mulf %495, %494 : vector<16x256xf32>
    %cst_240 = arith.constant 0.707106769 : f32
    %497 = vector.broadcast %cst_240 : f32 to vector<16x256xf32>
    %498 = arith.mulf %494, %497 : vector<16x256xf32>
    %cst_241 = arith.constant 0.000000e+00 : f32
    %499 = vector.broadcast %cst_241 : f32 to vector<16x256xf32>
    %500 = arith.cmpf oge, %498, %499 : vector<16x256xf32>
    %cst_242 = arith.constant 1.000000e+00 : f32
    %cst_243 = arith.constant -1.000000e+00 : f32
    %501 = vector.broadcast %cst_242 : f32 to vector<16x256xf32>
    %502 = vector.broadcast %cst_243 : f32 to vector<16x256xf32>
    %503 = arith.select %500, %501, %502 : vector<16x256xi1>, vector<16x256xf32>
    %504 = math.absf %498 : vector<16x256xf32>
    %cst_244 = arith.constant 0.327591091 : f32
    %505 = vector.broadcast %cst_244 : f32 to vector<16x256xf32>
    %506 = arith.mulf %505, %504 : vector<16x256xf32>
    %cst_245 = arith.constant 1.000000e+00 : f32
    %507 = vector.broadcast %cst_245 : f32 to vector<16x256xf32>
    %508 = arith.addf %507, %506 : vector<16x256xf32>
    %cst_246 = arith.constant 1.000000e+00 : f32
    %509 = vector.broadcast %cst_246 : f32 to vector<16x256xf32>
    %510 = arith.divf %509, %508 : vector<16x256xf32>
    %cst_247 = arith.constant 1.06140542 : f32
    %511 = vector.broadcast %cst_247 : f32 to vector<16x256xf32>
    %512 = arith.mulf %511, %510 : vector<16x256xf32>
    %cst_248 = arith.constant -1.45315206 : f32
    %513 = vector.broadcast %cst_248 : f32 to vector<16x256xf32>
    %514 = arith.addf %512, %513 : vector<16x256xf32>
    %515 = arith.mulf %514, %510 : vector<16x256xf32>
    %cst_249 = arith.constant 1.42141378 : f32
    %516 = vector.broadcast %cst_249 : f32 to vector<16x256xf32>
    %517 = arith.addf %515, %516 : vector<16x256xf32>
    %518 = arith.mulf %517, %510 : vector<16x256xf32>
    %cst_250 = arith.constant -0.284496725 : f32
    %519 = vector.broadcast %cst_250 : f32 to vector<16x256xf32>
    %520 = arith.addf %518, %519 : vector<16x256xf32>
    %521 = arith.mulf %520, %510 : vector<16x256xf32>
    %cst_251 = arith.constant 0.254829586 : f32
    %522 = vector.broadcast %cst_251 : f32 to vector<16x256xf32>
    %523 = arith.addf %521, %522 : vector<16x256xf32>
    %524 = arith.mulf %523, %510 : vector<16x256xf32>
    %cst_252 = arith.constant 0.000000e+00 : f32
    %525 = vector.broadcast %cst_252 : f32 to vector<16x256xf32>
    %526 = arith.subf %525, %504 : vector<16x256xf32>
    %527 = arith.mulf %526, %504 : vector<16x256xf32>
    %528 = math.exp %527 : vector<16x256xf32>
    %529 = arith.mulf %524, %528 : vector<16x256xf32>
    %cst_253 = arith.constant 1.000000e+00 : f32
    %530 = vector.broadcast %cst_253 : f32 to vector<16x256xf32>
    %531 = arith.subf %530, %529 : vector<16x256xf32>
    %532 = arith.mulf %503, %531 : vector<16x256xf32>
    %cst_254 = arith.constant 1.000000e+00 : f32
    %533 = vector.broadcast %cst_254 : f32 to vector<16x256xf32>
    %534 = arith.addf %533, %532 : vector<16x256xf32>
    %535 = arith.mulf %496, %534 : vector<16x256xf32>
    %536 = arith.truncf %535 : vector<16x256xf32> to vector<16x256xbf16>
    %c0_255 = arith.constant 0 : index
    %c0_256 = arith.constant 0 : index
    %537 = vector.load %arg24[%c0_255, %c0_256] : memref<256x128xbf16, #tpu.memory_space<vmem>>, vector<256x128xbf16>
    %cst_257 = arith.constant dense<0.000000e+00> : vector<16x128xf32>
    %538 = tpu.matmul %536, %537, %cst_257 {dimension_numbers = #tpu.dot_dimension_numbers<[1], [0], [0], [1], [0, 0, 1, 1], [], []>} : vector<16x256xbf16>, vector<256x128xbf16>, vector<16x128xf32> -> vector<16x128xf32>
    %c0_258 = arith.constant 0 : index
    %c0_259 = arith.constant 0 : index
    %539 = vector.load %arg25[%c0_258, %c0_259] : memref<1x128xf32, #tpu.memory_space<vmem>>, vector<1x128xf32>
    %540 = vector.broadcast %539 : vector<1x128xf32> to vector<16x128xf32>
    %541 = arith.addf %538, %540 : vector<16x128xf32>
    %542 = math.tanh %541 : vector<16x128xf32>
    %c0_260 = arith.constant 0 : index
    %c0_261 = arith.constant 0 : index
    %543 = vector.load %arg26[%c0_260, %c0_261] : memref<16x128xf32, #tpu.memory_space<vmem>>, vector<16x128xf32>
    tpu.vector_store %arg26[%c0_260, %c0_261], %542 {strides = array<i32>} : memref<16x128xf32, #tpu.memory_space<vmem>>, vector<16x128xf32>,
    return
  }
  func.func @transform_0(%arg0: i32) -> (i32, i32) {
    %c0_i32 = arith.constant 0 : i32
    %c0_i32_0 = arith.constant 0 : i32
    return %arg0, %c0_i32 : i32, i32
  }
  func.func @transform_1(%arg0: i32) -> (i32, i32) {
    %c0_i32 = arith.constant 0 : i32
    %c0_i32_0 = arith.constant 0 : i32
    return %arg0, %c0_i32 : i32, i32
  }
  func.func @transform_2(%arg0: i32) -> (i32, i32) {
    %c0_i32 = arith.constant 0 : i32
    %c0_i32_0 = arith.constant 0 : i32
    return %arg0, %c0_i32 : i32, i32
  }
  func.func @transform_3(%arg0: i32) -> (i32, i32) {
    %c0_i32 = arith.constant 0 : i32
    %c0_i32_0 = arith.constant 0 : i32
    %c0_i32_1 = arith.constant 0 : i32
    return %c0_i32, %c0_i32_0 : i32, i32
  }
  func.func @transform_4(%arg0: i32) -> (i32, i32) {
    %c0_i32 = arith.constant 0 : i32
    %c0_i32_0 = arith.constant 0 : i32
    %c0_i32_1 = arith.constant 0 : i32
    return %c0_i32, %c0_i32_0 : i32, i32
  }
  func.func @transform_5(%arg0: i32) -> (i32, i32) {
    %c0_i32 = arith.constant 0 : i32
    %c0_i32_0 = arith.constant 0 : i32
    %c0_i32_1 = arith.constant 0 : i32
    return %c0_i32, %c0_i32_0 : i32, i32
  }
  func.func @transform_6(%arg0: i32) -> (i32, i32) {
    %c0_i32 = arith.constant 0 : i32
    %c0_i32_0 = arith.constant 0 : i32
    %c0_i32_1 = arith.constant 0 : i32
    return %c0_i32, %c0_i32_0 : i32, i32
  }
  func.func @transform_7(%arg0: i32) -> (i32, i32) {
    %c0_i32 = arith.constant 0 : i32
    %c0_i32_0 = arith.constant 0 : i32
    %c0_i32_1 = arith.constant 0 : i32
    return %c0_i32, %c0_i32_0 : i32, i32
  }
  func.func @transform_8(%arg0: i32) -> (i32, i32) {
    %c0_i32 = arith.constant 0 : i32
    %c0_i32_0 = arith.constant 0 : i32
    %c0_i32_1 = arith.constant 0 : i32
    return %c0_i32, %c0_i32_0 : i32, i32
  }
  func.func @transform_9(%arg0: i32) -> (i32, i32) {
    %c0_i32 = arith.constant 0 : i32
    %c0_i32_0 = arith.constant 0 : i32
    %c0_i32_1 = arith.constant 0 : i32
    return %c0_i32, %c0_i32_0 : i32, i32
  }
  func.func @transform_10(%arg0: i32) -> (i32, i32) {
    %c0_i32 = arith.constant 0 : i32
    %c0_i32_0 = arith.constant 0 : i32
    %c0_i32_1 = arith.constant 0 : i32
    return %c0_i32, %c0_i32_0 : i32, i32
  }
  func.func @transform_11(%arg0: i32) -> (i32, i32, i32) {
    %c0_i32 = arith.constant 0 : i32
    %c0_i32_0 = arith.constant 0 : i32
    %c0_i32_1 = arith.constant 0 : i32
    %c0_i32_2 = arith.constant 0 : i32
    return %c0_i32, %c0_i32_0, %c0_i32_1 : i32, i32, i32
  }
  func.func @transform_12(%arg0: i32) -> (i32, i32, i32) {
    %c0_i32 = arith.constant 0 : i32
    %c0_i32_0 = arith.constant 0 : i32
    %c0_i32_1 = arith.constant 0 : i32
    %c0_i32_2 = arith.constant 0 : i32
    return %c0_i32, %c0_i32_0, %c0_i32_1 : i32, i32, i32
  }
  func.func @transform_13(%arg0: i32) -> (i32, i32, i32) {
    %c0_i32 = arith.constant 0 : i32
    %c0_i32_0 = arith.constant 0 : i32
    %c0_i32_1 = arith.constant 0 : i32
    %c0_i32_2 = arith.constant 0 : i32
    return %c0_i32, %c0_i32_0, %c0_i32_1 : i32, i32, i32
  }
  func.func @transform_14(%arg0: i32) -> (i32, i32, i32) {
    %c0_i32 = arith.constant 0 : i32
    %c0_i32_0 = arith.constant 0 : i32
    %c0_i32_1 = arith.constant 0 : i32
    %c0_i32_2 = arith.constant 0 : i32
    return %c0_i32, %c0_i32_0, %c0_i32_1 : i32, i32, i32
  }
  func.func @transform_15(%arg0: i32) -> (i32, i32, i32) {
    %c0_i32 = arith.constant 0 : i32
    %c0_i32_0 = arith.constant 0 : i32
    %c0_i32_1 = arith.constant 0 : i32
    %c0_i32_2 = arith.constant 0 : i32
    return %c0_i32, %c0_i32_0, %c0_i32_1 : i32, i32, i32
  }
  func.func @transform_16(%arg0: i32) -> (i32, i32, i32) {
    %c0_i32 = arith.constant 0 : i32
    %c0_i32_0 = arith.constant 0 : i32
    %c0_i32_1 = arith.constant 0 : i32
    %c0_i32_2 = arith.constant 0 : i32
    return %c0_i32, %c0_i32_0, %c0_i32_1 : i32, i32, i32
  }
  func.func @transform_17(%arg0: i32) -> (i32, i32, i32) {
    %c0_i32 = arith.constant 0 : i32
    %c0_i32_0 = arith.constant 0 : i32
    %c0_i32_1 = arith.constant 0 : i32
    %c0_i32_2 = arith.constant 0 : i32
    return %c0_i32, %c0_i32_0, %c0_i32_1 : i32, i32, i32
  }
  func.func @transform_18(%arg0: i32) -> (i32, i32, i32) {
    %c0_i32 = arith.constant 0 : i32
    %c0_i32_0 = arith.constant 0 : i32
    %c0_i32_1 = arith.constant 0 : i32
    %c0_i32_2 = arith.constant 0 : i32
    return %c0_i32, %c0_i32_0, %c0_i32_1 : i32, i32, i32
  }
  func.func @transform_19(%arg0: i32) -> (i32, i32, i32) {
    %c0_i32 = arith.constant 0 : i32
    %c0_i32_0 = arith.constant 0 : i32
    %c0_i32_1 = arith.constant 0 : i32
    %c0_i32_2 = arith.constant 0 : i32
    return %c0_i32, %c0_i32_0, %c0_i32_1 : i32, i32, i32
  }
  func.func @transform_20(%arg0: i32) -> (i32, i32, i32) {
    %c0_i32 = arith.constant 0 : i32
    %c0_i32_0 = arith.constant 0 : i32
    %c0_i32_1 = arith.constant 0 : i32
    %c0_i32_2 = arith.constant 0 : i32
    return %c0_i32, %c0_i32_0, %c0_i32_1 : i32, i32, i32
  }
  func.func @transform_21(%arg0: i32) -> (i32, i32, i32) {
    %c0_i32 = arith.constant 0 : i32
    %c0_i32_0 = arith.constant 0 : i32
    %c0_i32_1 = arith.constant 0 : i32
    %c0_i32_2 = arith.constant 0 : i32
    return %c0_i32, %c0_i32_0, %c0_i32_1 : i32, i32, i32
  }
  func.func @transform_22(%arg0: i32) -> (i32, i32) {
    %c0_i32 = arith.constant 0 : i32
    %c0_i32_0 = arith.constant 0 : i32
    %c0_i32_1 = arith.constant 0 : i32
    return %c0_i32, %c0_i32_0 : i32, i32
  }
  func.func @transform_23(%arg0: i32) -> (i32, i32) {
    %c0_i32 = arith.constant 0 : i32
    %c0_i32_0 = arith.constant 0 : i32
    %c0_i32_1 = arith.constant 0 : i32
    return %c0_i32, %c0_i32_0 : i32, i32
  }
  func.func @transform_24(%arg0: i32) -> (i32, i32) {
    %c0_i32 = arith.constant 0 : i32
    %c0_i32_0 = arith.constant 0 : i32
    %c0_i32_1 = arith.constant 0 : i32
    return %c0_i32, %c0_i32_0 : i32, i32
  }
  func.func @transform_25(%arg0: i32) -> (i32, i32) {
    %c0_i32 = arith.constant 0 : i32
    %c0_i32_0 = arith.constant 0 : i32
    return %arg0, %c0_i32 : i32, i32
  }
}

</mosaic_0001>

<llo_original>
// kernel: tpu_custom_call.1
$region0: #{tpu_custom_call.1}
  #allocation0 [shape = 'u32[]', space=smem, size = 0x4, offset = 0x4, fixed_abs, tag = 'smem constant byte address 0x4 - core index']
  #allocation1 [shape = 'u32[144,128]{1,0:T(1,128)}', space=vmem, size = 0x12000, scoped, tag = 'internal scratch']
  %s0 = inlined_call_operand.hbm [shape: f32[16,50], index: 0, kind: input, shape index: {}]
  %s1 = inlined_call_operand.hbm [shape: f32[16,100], index: 1, kind: input, shape index: {}]
  %s2 = inlined_call_operand.hbm [shape: f32[16,32], index: 2, kind: input, shape index: {}]
  %s3 = inlined_call_operand.vmem [shape: f32[128,8], index: 3, kind: input, shape index: {}]
  %s4 = inlined_call_operand.hbm [shape: f32[8,128], index: 4, kind: input, shape index: {}]
  %s5 = inlined_call_operand.vmem [shape: bf16[50,128], index: 5, kind: input, shape index: {}]
  %s6 = inlined_call_operand.hbm [shape: f32[1,128], index: 6, kind: input, shape index: {}]
  %s7 = inlined_call_operand.vmem [shape: bf16[100,128], index: 7, kind: input, shape index: {}]
  %s8 = inlined_call_operand.hbm [shape: f32[1,128], index: 8, kind: input, shape index: {}]
  %s9 = inlined_call_operand.hbm [shape: bf16[32,128], index: 9, kind: input, shape index: {}]
  %s10 = inlined_call_operand.hbm [shape: f32[1,128], index: 10, kind: input, shape index: {}]
  %s11 = inlined_call_operand.hbm [shape: bf16[3,128,384], index: 11, kind: input, shape index: {}]
  %s12 = inlined_call_operand.hbm [shape: f32[3,1,384], index: 12, kind: input, shape index: {}]
  %s13 = inlined_call_operand.hbm [shape: bf16[3,128,128], index: 13, kind: input, shape index: {}]
  %s14 = inlined_call_operand.vmem [shape: f32[3,1,128], index: 14, kind: input, shape index: {}]
  %s15 = inlined_call_operand.hbm [shape: f32[6,1,128], index: 15, kind: input, shape index: {}]
  %s16 = inlined_call_operand.hbm [shape: f32[6,1,128], index: 16, kind: input, shape index: {}]
  %s17 = inlined_call_operand.hbm [shape: bf16[3,128,512], index: 17, kind: input, shape index: {}]
  %s18 = inlined_call_operand.vmem [shape: f32[3,1,512], index: 18, kind: input, shape index: {}]
  %s19 = inlined_call_operand.hbm [shape: bf16[3,512,128], index: 19, kind: input, shape index: {}]
  %s20 = inlined_call_operand.hbm [shape: f32[3,1,128], index: 20, kind: input, shape index: {}]
  %s21 = inlined_call_operand.hbm [shape: bf16[3,128,256], index: 21, kind: input, shape index: {}]
  %s22 = inlined_call_operand.hbm [shape: f32[1,256], index: 22, kind: input, shape index: {}]
  %s23 = inlined_call_operand.vmem [shape: bf16[256,128], index: 23, kind: input, shape index: {}]
  %s24 = inlined_call_operand.vmem [shape: f32[1,128], index: 24, kind: input, shape index: {}]
  %s25 = inlined_call_operand.hbm [shape: f32[16,128], index: 25, kind: output, shape index: {}]
  %s26 = sld [smem:[#allocation0]]
  $region182: #{tpu_custom_call.1} parent=0
    _
  %s28 = ssub.s32 1, %s26
  %s29 = scalar_select 0, %s28, %s26
  $region1: #{tpu_custom_call.1} parent=0
    #allocation2 [shape = 'u8[8192]{0}', space=vmem, size = 0x2000, scoped, tag = 'input window, operand 0, single buffered']
    #allocation3 [shape = 's32[1]{0}', space=sflag, size = 0x4, scoped, tag = 'scoped memory for tpu_custom_call.1']
    #allocation4 [shape = 's32[1]{0}', space=sflag, size = 0x4, scoped, tag = 'scoped memory for tpu_custom_call.1']
    #allocation5 [shape = 'u8[8192]{0}', space=vmem, size = 0x2000, scoped, tag = 'input window, operand 1, single buffered']
    #allocation6 [shape = 's32[1]{0}', space=sflag, size = 0x4, scoped, tag = 'scoped memory for tpu_custom_call.1']
    #allocation7 [shape = 'u8[8192]{0}', space=vmem, size = 0x2000, scoped, tag = 'input window, operand 2, single buffered']
    #allocation8 [shape = 'u8[4096]{0}', space=vmem, size = 0x1000, scoped, tag = 'input window, operand 4, single buffered']
    #allocation9 [shape = 's32[1]{0}', space=sflag, size = 0x4, scoped, tag = 'scoped memory for tpu_custom_call.1']
    #allocation10 [shape = 'u8[512]{0}', space=vmem, size = 0x400, scoped, tag = 'input window, operand 6, single buffered']
    #allocation11 [shape = 'u8[512]{0}', space=vmem, size = 0x400, scoped, tag = 'input window, operand 8, single buffered']
    #allocation12 [shape = 's32[1]{0}', space=sflag, size = 0x4, scoped, tag = 'scoped memory for tpu_custom_call.1']
    #allocation13 [shape = 'u8[8192]{0}', space=vmem, size = 0x2000, scoped, tag = 'input window, operand 9, single buffered']
    #allocation14 [shape = 'u8[512]{0}', space=vmem, size = 0x400, scoped, tag = 'input window, operand 10, single buffered']
    #allocation15 [shape = 's32[1]{0}', space=sflag, size = 0x4, scoped, tag = 'scoped memory for tpu_custom_call.1']
    #allocation16 [shape = 'u8[294912]{0}', space=vmem, size = 0x48000, scoped, tag = 'input window, operand 11, single buffered']
    #allocation17 [shape = 'u8[4608]{0}', space=vmem, size = 0x1400, scoped, tag = 'input window, operand 12, single buffered']
    #allocation18 [shape = 's32[1]{0}', space=sflag, size = 0x4, scoped, tag = 'scoped memory for tpu_custom_call.1']
    #allocation19 [shape = 'u8[98304]{0}', space=vmem, size = 0x18000, scoped, tag = 'input window, operand 13, single buffered']
    #allocation20 [shape = 'u8[3072]{0}', space=vmem, size = 0xc00, scoped, tag = 'input window, operand 15, single buffered']
    #allocation21 [shape = 's32[1]{0}', space=sflag, size = 0x4, scoped, tag = 'scoped memory for tpu_custom_call.1']
    #allocation22 [shape = 'u8[3072]{0}', space=vmem, size = 0xc00, scoped, tag = 'input window, operand 16, single buffered']
    #allocation23 [shape = 'u8[393216]{0}', space=vmem, size = 0x60000, scoped, tag = 'input window, operand 17, single buffered']
    #allocation24 [shape = 's32[1]{0}', space=sflag, size = 0x4, scoped, tag = 'scoped memory for tpu_custom_call.1']
    #allocation25 [shape = 'u8[393216]{0}', space=vmem, size = 0x60000, scoped, tag = 'input window, operand 19, single buffered']
    #allocation26 [shape = 'u8[1536]{0}', space=vmem, size = 0x800, scoped, tag = 'input window, operand 20, single buffered']
    #allocation27 [shape = 's32[1]{0}', space=sflag, size = 0x4, scoped, tag = 'scoped memory for tpu_custom_call.1']
    #allocation28 [shape = 'u8[196608]{0}', space=vmem, size = 0x30000, scoped, tag = 'input window, operand 21, single buffered']
    #allocation29 [shape = 'u8[1024]{0}', space=vmem, size = 0x400, scoped, tag = 'input window, operand 22, single buffered']
    #allocation30 [shape = 's32[1]{0}', space=sflag, size = 0x4, scoped, tag = 'scoped memory for tpu_custom_call.1']
    #allocation31 [shape = 'u8[8192]{0}', space=vmem, size = 0x2000, scoped, tag = 'output window, operand 0, single buffered']
    %30 = vsyncpa [#allocation3], 0
    %31 = vsyncpa [#allocation6], 0
    %32 = vsyncpa [#allocation9], 0
    %33 = vsyncpa [#allocation12], 0
    %34 = vsyncpa [#allocation15], 0
    %35 = vsyncpa [#allocation18], 0
    %36 = vsyncpa [#allocation21], 0
    %37 = vsyncpa [#allocation24], 0
    %38 = vsyncpa [#allocation27], 0
    %39 = vsyncpa [#allocation30], 0
    %40 = vsyncpa [#allocation4], 0
    // Predicated region
    $region2: #{tpu_custom_call.1} parent=1 // pred_check
      _
    $region3: #{tpu_custom_call.1} parent=1 // pred_check_branch
      %42 = sbr.rel (0) target = $region5
    $region4: #{tpu_custom_call.1} parent=1 // pred_region
      %s44 = ssub.s32 256, 256
      %45 = vsyncadd [#allocation3], %s44
      %s46 = sshll.u32 [#allocation2], 4
      %s47 = int_to_ptr.vmem [resolvable:$true] %s46
      %52 = dma.hbm_to_vmem [thread:$0]  %s0, 256, %s47, [#allocation3], 128, 128, 8
    $region5: #{tpu_custom_call.1} parent=1 // pred_fallthru
      _
    // Predicated region
    $region6: #{tpu_custom_call.1} parent=1 // pred_check
      _
    $region7: #{tpu_custom_call.1} parent=1 // pred_check_branch
      %54 = sbr.rel (0) target = $region9
    $region8: #{tpu_custom_call.1} parent=1 // pred_region
      %s56 = ssub.s32 256, 256
      %57 = vsyncadd [#allocation6], %s56
      %s58 = sshll.u32 [#allocation5], 4
      %s59 = int_to_ptr.vmem [resolvable:$true] %s58
      %64 = dma.hbm_to_vmem [thread:$0]  %s1, 256, %s59, [#allocation6], 128, 128, 8
    $region9: #{tpu_custom_call.1} parent=1 // pred_fallthru
      _
    // Predicated region
    $region10: #{tpu_custom_call.1} parent=1 // pred_check
      _
    $region11: #{tpu_custom_call.1} parent=1 // pred_check_branch
      %66 = sbr.rel (0) target = $region13
    $region12: #{tpu_custom_call.1} parent=1 // pred_region
      %s68 = ssub.s32 256, 256
      %69 = vsyncadd [#allocation6], %s68
      %s70 = sshll.u32 [#allocation7], 4
      %s71 = int_to_ptr.vmem [resolvable:$true] %s70
      %76 = dma.hbm_to_vmem [thread:$0]  %s2, 256, %s71, [#allocation6], 128, 128, 8
    $region13: #{tpu_custom_call.1} parent=1 // pred_fallthru
      _
    // Predicated region
    $region14: #{tpu_custom_call.1} parent=1 // pred_check
      _
    $region15: #{tpu_custom_call.1} parent=1 // pred_check_branch
      %78 = sbr.rel (0) target = $region17
    $region16: #{tpu_custom_call.1} parent=1 // pred_region
      _
    $region17: #{tpu_custom_call.1} parent=1 // pred_fallthru
      _
    // Predicated region
    $region18: #{tpu_custom_call.1} parent=1 // pred_check
      _
    $region19: #{tpu_custom_call.1} parent=1 // pred_check_branch
      %80 = sbr.rel (0) target = $region21
    $region20: #{tpu_custom_call.1} parent=1 // pred_region
      %s82 = ssub.s32 128, 128
      %83 = vsyncadd [#allocation9], %s82
      %s85 = sshll.u32 [#allocation8], 4
      %s86 = int_to_ptr.vmem [resolvable:$true] %s85
      %88 = dma.hbm_to_vmem [thread:$0]  %s4, 128, %s86, [#allocation9]
    $region21: #{tpu_custom_call.1} parent=1 // pred_fallthru
      _
    // Predicated region
    $region22: #{tpu_custom_call.1} parent=1 // pred_check
      _
    $region23: #{tpu_custom_call.1} parent=1 // pred_check_branch
      %90 = sbr.rel (0) target = $region25
    $region24: #{tpu_custom_call.1} parent=1 // pred_region
      _
    $region25: #{tpu_custom_call.1} parent=1 // pred_fallthru
      _
    // Predicated region
    $region26: #{tpu_custom_call.1} parent=1 // pred_check
      _
    $region27: #{tpu_custom_call.1} parent=1 // pred_check_branch
      %92 = sbr.rel (0) target = $region29
    $region28: #{tpu_custom_call.1} parent=1 // pred_region
      %s94 = ssub.s32 16, 16
      %95 = vsyncadd [#allocation9], %s94
      %s97 = sshll.u32 [#allocation10], 4
      %s98 = int_to_ptr.vmem [resolvable:$true] %s97
      %100 = dma.hbm_to_vmem [thread:$0]  %s6, 16, %s98, [#allocation9]
    $region29: #{tpu_custom_call.1} parent=1 // pred_fallthru
      _
    // Predicated region
    $region30: #{tpu_custom_call.1} parent=1 // pred_check
      _
    $region31: #{tpu_custom_call.1} parent=1 // pred_check_branch
      %102 = sbr.rel (0) target = $region33
    $region32: #{tpu_custom_call.1} parent=1 // pred_region
      _
    $region33: #{tpu_custom_call.1} parent=1 // pred_fallthru
      _
    // Predicated region
    $region34: #{tpu_custom_call.1} parent=1 // pred_check
      _
    $region35: #{tpu_custom_call.1} parent=1 // pred_check_branch
      %104 = sbr.rel (0) target = $region37
    $region36: #{tpu_custom_call.1} parent=1 // pred_region
      %s106 = ssub.s32 16, 16
      %107 = vsyncadd [#allocation12], %s106
      %s109 = sshll.u32 [#allocation11], 4
      %s110 = int_to_ptr.vmem [resolvable:$true] %s109
      %112 = dma.hbm_to_vmem [thread:$0]  %s8, 16, %s110, [#allocation12]
    $region37: #{tpu_custom_call.1} parent=1 // pred_fallthru
      _
    // Predicated region
    $region38: #{tpu_custom_call.1} parent=1 // pred_check
      _
    $region39: #{tpu_custom_call.1} parent=1 // pred_check_branch
      %114 = sbr.rel (0) target = $region41
    $region40: #{tpu_custom_call.1} parent=1 // pred_region
      %s116 = ssub.s32 256, 256
      %117 = vsyncadd [#allocation12], %s116
      %s118 = sshll.u32 [#allocation13], 4
      %s119 = int_to_ptr.vmem [resolvable:$true] %s118
      %124 = dma.hbm_to_vmem [thread:$0]  %s9, 256, %s119, [#allocation12], 64, 64, 4
    $region41: #{tpu_custom_call.1} parent=1 // pred_fallthru
      _
    // Predicated region
    $region42: #{tpu_custom_call.1} parent=1 // pred_check
      _
    $region43: #{tpu_custom_call.1} parent=1 // pred_check_branch
      %126 = sbr.rel (0) target = $region45
    $region44: #{tpu_custom_call.1} parent=1 // pred_region
      %s128 = ssub.s32 16, 16
      %129 = vsyncadd [#allocation15], %s128
      %s131 = sshll.u32 [#allocation14], 4
      %s132 = int_to_ptr.vmem [resolvable:$true] %s131
      %134 = dma.hbm_to_vmem [thread:$0]  %s10, 16, %s132, [#allocation15]
    $region45: #{tpu_custom_call.1} parent=1 // pred_fallthru
      _
    // Predicated region
    $region46: #{tpu_custom_call.1} parent=1 // pred_check
      _
    $region47: #{tpu_custom_call.1} parent=1 // pred_check_branch
      %136 = sbr.rel (0) target = $region49
    $region48: #{tpu_custom_call.1} parent=1 // pred_region
      %s138 = ssub.s32 9216, 9216
      %139 = vsyncadd [#allocation15], %s138
      %s140 = sshll.u32 [#allocation16], 4
      %s141 = int_to_ptr.vmem [resolvable:$true] %s140
      %146 = dma.hbm_to_vmem [thread:$0]  %s11, 9216, %s141, [#allocation15], 192, 192, 12
    $region49: #{tpu_custom_call.1} parent=1 // pred_fallthru
      _
    // Predicated region
    $region50: #{tpu_custom_call.1} parent=1 // pred_check
      _
    $region51: #{tpu_custom_call.1} parent=1 // pred_check_branch
      %148 = sbr.rel (0) target = $region53
    $region52: #{tpu_custom_call.1} parent=1 // pred_region
      %s150 = ssub.s32 144, 144
      %151 = vsyncadd [#allocation18], %s150
      %s152 = sshll.u32 [#allocation17], 4
      %s153 = int_to_ptr.vmem [resolvable:$true] %s152
      %158 = dma.hbm_to_vmem [thread:$0]  %s12, 144, %s153, [#allocation18], 48, 48, 3
    $region53: #{tpu_custom_call.1} parent=1 // pred_fallthru
      _
    // Predicated region
    $region54: #{tpu_custom_call.1} parent=1 // pred_check
      _
    $region55: #{tpu_custom_call.1} parent=1 // pred_check_branch
      %160 = sbr.rel (0) target = $region57
    $region56: #{tpu_custom_call.1} parent=1 // pred_region
      %s162 = ssub.s32 3072, 3072
      %163 = vsyncadd [#allocation18], %s162
      %s164 = sshll.u32 [#allocation19], 4
      %s165 = int_to_ptr.vmem [resolvable:$true] %s164
      %170 = dma.hbm_to_vmem [thread:$0]  %s13, 3072, %s165, [#allocation18], 64, 64, 4
    $region57: #{tpu_custom_call.1} parent=1 // pred_fallthru
      _
    // Predicated region
    $region58: #{tpu_custom_call.1} parent=1 // pred_check
      _
    $region59: #{tpu_custom_call.1} parent=1 // pred_check_branch
      %172 = sbr.rel (0) target = $region61
    $region60: #{tpu_custom_call.1} parent=1 // pred_region
      _
    $region61: #{tpu_custom_call.1} parent=1 // pred_fallthru
      _
    // Predicated region
    $region62: #{tpu_custom_call.1} parent=1 // pred_check
      _
    $region63: #{tpu_custom_call.1} parent=1 // pred_check_branch
      %174 = sbr.rel (0) target = $region65
    $region64: #{tpu_custom_call.1} parent=1 // pred_region
      %s176 = ssub.s32 96, 96
      %177 = vsyncadd [#allocation21], %s176
      %s178 = sshll.u32 [#allocation20], 4
      %s179 = int_to_ptr.vmem [resolvable:$true] %s178
      %184 = dma.hbm_to_vmem [thread:$0]  %s15, 96, %s179, [#allocation21], 16, 16, 1
    $region65: #{tpu_custom_call.1} parent=1 // pred_fallthru
      _
    // Predicated region
    $region66: #{tpu_custom_call.1} parent=1 // pred_check
      _
    $region67: #{tpu_custom_call.1} parent=1 // pred_check_branch
      %186 = sbr.rel (0) target = $region69
    $region68: #{tpu_custom_call.1} parent=1 // pred_region
      %s188 = ssub.s32 96, 96
      %189 = vsyncadd [#allocation21], %s188
      %s190 = sshll.u32 [#allocation22], 4
      %s191 = int_to_ptr.vmem [resolvable:$true] %s190
      %196 = dma.hbm_to_vmem [thread:$0]  %s16, 96, %s191, [#allocation21], 16, 16, 1
    $region69: #{tpu_custom_call.1} parent=1 // pred_fallthru
      _
    // Predicated region
    $region70: #{tpu_custom_call.1} parent=1 // pred_check
      _
    $region71: #{tpu_custom_call.1} parent=1 // pred_check_branch
      %198 = sbr.rel (0) target = $region73
    $region72: #{tpu_custom_call.1} parent=1 // pred_region
      %s200 = ssub.s32 12288, 12288
      %201 = vsyncadd [#allocation24], %s200
      %s202 = sshll.u32 [#allocation23], 4
      %s203 = int_to_ptr.vmem [resolvable:$true] %s202
      %208 = dma.hbm_to_vmem [thread:$0]  %s17, 12288, %s203, [#allocation24], 256, 256, 16
    $region73: #{tpu_custom_call.1} parent=1 // pred_fallthru
      _
    // Predicated region
    $region74: #{tpu_custom_call.1} parent=1 // pred_check
      _
    $region75: #{tpu_custom_call.1} parent=1 // pred_check_branch
      %210 = sbr.rel (0) target = $region77
    $region76: #{tpu_custom_call.1} parent=1 // pred_region
      _
    $region77: #{tpu_custom_call.1} parent=1 // pred_fallthru
      _
    // Predicated region
    $region78: #{tpu_custom_call.1} parent=1 // pred_check
      _
    $region79: #{tpu_custom_call.1} parent=1 // pred_check_branch
      %212 = sbr.rel (0) target = $region81
    $region80: #{tpu_custom_call.1} parent=1 // pred_region
      %s214 = ssub.s32 12288, 12288
      %215 = vsyncadd [#allocation24], %s214
      %s216 = sshll.u32 [#allocation25], 4
      %s217 = int_to_ptr.vmem [resolvable:$true] %s216
      %222 = dma.hbm_to_vmem [thread:$0]  %s19, 12288, %s217, [#allocation24], 64, 64, 4
    $region81: #{tpu_custom_call.1} parent=1 // pred_fallthru
      _
    // Predicated region
    $region82: #{tpu_custom_call.1} parent=1 // pred_check
      _
    $region83: #{tpu_custom_call.1} parent=1 // pred_check_branch
      %224 = sbr.rel (0) target = $region85
    $region84: #{tpu_custom_call.1} parent=1 // pred_region
      %s226 = ssub.s32 48, 48
      %227 = vsyncadd [#allocation27], %s226
      %s228 = sshll.u32 [#allocation26], 4
      %s229 = int_to_ptr.vmem [resolvable:$true] %s228
      %234 = dma.hbm_to_vmem [thread:$0]  %s20, 48, %s229, [#allocation27], 16, 16, 1
    $region85: #{tpu_custom_call.1} parent=1 // pred_fallthru
      _
    // Predicated region
    $region86: #{tpu_custom_call.1} parent=1 // pred_check
      _
    $region87: #{tpu_custom_call.1} parent=1 // pred_check_branch
      %236 = sbr.rel (0) target = $region89
    $region88: #{tpu_custom_call.1} parent=1 // pred_region
      %s238 = ssub.s32 6144, 6144
      %239 = vsyncadd [#allocation27], %s238
      %s240 = sshll.u32 [#allocation28], 4
      %s241 = int_to_ptr.vmem [resolvable:$true] %s240
      %246 = dma.hbm_to_vmem [thread:$0]  %s21, 6144, %s241, [#allocation27], 128, 128, 8
    $region89: #{tpu_custom_call.1} parent=1 // pred_fallthru
      _
    // Predicated region
    $region90: #{tpu_custom_call.1} parent=1 // pred_check
      _
    $region91: #{tpu_custom_call.1} parent=1 // pred_check_branch
      %248 = sbr.rel (0) target = $region93
    $region92: #{tpu_custom_call.1} parent=1 // pred_region
      %s250 = ssub.s32 32, 32
      %251 = vsyncadd [#allocation30], %s250
      %s253 = sshll.u32 [#allocation29], 4
      %s254 = int_to_ptr.vmem [resolvable:$true] %s253
      %256 = dma.hbm_to_vmem [thread:$0]  %s22, 32, %s254, [#allocation30]
    $region93: #{tpu_custom_call.1} parent=1 // pred_fallthru
      _
    // Predicated region
    $region94: #{tpu_custom_call.1} parent=1 // pred_check
      _
    $region95: #{tpu_custom_call.1} parent=1 // pred_check_branch
      %258 = sbr.rel (0) target = $region97
    $region96: #{tpu_custom_call.1} parent=1 // pred_region
      _
    $region97: #{tpu_custom_call.1} parent=1 // pred_fallthru
      _
    // Predicated region
    $region98: #{tpu_custom_call.1} parent=1 // pred_check
      _
    $region99: #{tpu_custom_call.1} parent=1 // pred_check_branch
      %260 = sbr.rel (0) target = $region101
    $region100: #{tpu_custom_call.1} parent=1 // pred_region
      _
    $region101: #{tpu_custom_call.1} parent=1 // pred_fallthru
      _
    // Predicated region
    $region102: #{tpu_custom_call.1} parent=1 // pred_check
      _
    $region103: #{tpu_custom_call.1} parent=1 // pred_check_branch
      %262 = sbr.rel (0) target = $region105
    $region104: #{tpu_custom_call.1} parent=1 // pred_region
      %263 = dma.done [#allocation3], 256
    $region105: #{tpu_custom_call.1} parent=1 // pred_fallthru
      _
    // Predicated region
    $region106: #{tpu_custom_call.1} parent=1 // pred_check
      _
    $region107: #{tpu_custom_call.1} parent=1 // pred_check_branch
      %265 = sbr.rel (0) target = $region109
    $region108: #{tpu_custom_call.1} parent=1 // pred_region
      %266 = dma.done [#allocation6], 256
    $region109: #{tpu_custom_call.1} parent=1 // pred_fallthru
      _
    // Predicated region
    $region110: #{tpu_custom_call.1} parent=1 // pred_check
      _
    $region111: #{tpu_custom_call.1} parent=1 // pred_check_branch
      %268 = sbr.rel (0) target = $region113
    $region112: #{tpu_custom_call.1} parent=1 // pred_region
      %269 = dma.done [#allocation6], 256
    $region113: #{tpu_custom_call.1} parent=1 // pred_fallthru
      _
    // Predicated region
    $region114: #{tpu_custom_call.1} parent=1 // pred_check
      _
    $region115: #{tpu_custom_call.1} parent=1 // pred_check_branch
      %271 = sbr.rel (0) target = $region117
    $region116: #{tpu_custom_call.1} parent=1 // pred_region
      %272 = dma.done [#allocation9], 128
    $region117: #{tpu_custom_call.1} parent=1 // pred_fallthru
      _
    // Predicated region
    $region118: #{tpu_custom_call.1} parent=1 // pred_check
      _
    $region119: #{tpu_custom_call.1} parent=1 // pred_check_branch
      %274 = sbr.rel (0) target = $region121
    $region120: #{tpu_custom_call.1} parent=1 // pred_region
      %275 = dma.done [#allocation9], 16
    $region121: #{tpu_custom_call.1} parent=1 // pred_fallthru
      _
    // Predicated region
    $region122: #{tpu_custom_call.1} parent=1 // pred_check
      _
    $region123: #{tpu_custom_call.1} parent=1 // pred_check_branch
      %277 = sbr.rel (0) target = $region125
    $region124: #{tpu_custom_call.1} parent=1 // pred_region
      %278 = dma.done [#allocation12], 16
    $region125: #{tpu_custom_call.1} parent=1 // pred_fallthru
      _
    // Predicated region
    $region126: #{tpu_custom_call.1} parent=1 // pred_check
      _
    $region127: #{tpu_custom_call.1} parent=1 // pred_check_branch
      %280 = sbr.rel (0) target = $region129
    $region128: #{tpu_custom_call.1} parent=1 // pred_region
      %281 = dma.done [#allocation12], 256
    $region129: #{tpu_custom_call.1} parent=1 // pred_fallthru
      _
    // Predicated region
    $region130: #{tpu_custom_call.1} parent=1 // pred_check
      _
    $region131: #{tpu_custom_call.1} parent=1 // pred_check_branch
      %283 = sbr.rel (0) target = $region133
    $region132: #{tpu_custom_call.1} parent=1 // pred_region
      %284 = dma.done [#allocation15], 16
    $region133: #{tpu_custom_call.1} parent=1 // pred_fallthru
      _
    // Predicated region
    $region134: #{tpu_custom_call.1} parent=1 // pred_check
      _
    $region135: #{tpu_custom_call.1} parent=1 // pred_check_branch
      %286 = sbr.rel (0) target = $region137
    $region136: #{tpu_custom_call.1} parent=1 // pred_region
      %287 = dma.done [#allocation15], 9216
    $region137: #{tpu_custom_call.1} parent=1 // pred_fallthru
      _
    // Predicated region
    $region138: #{tpu_custom_call.1} parent=1 // pred_check
      _
    $region139: #{tpu_custom_call.1} parent=1 // pred_check_branch
      %289 = sbr.rel (0) target = $region141
    $region140: #{tpu_custom_call.1} parent=1 // pred_region
      %290 = dma.done [#allocation18], 144
    $region141: #{tpu_custom_call.1} parent=1 // pred_fallthru
      _
    // Predicated region
    $region142: #{tpu_custom_call.1} parent=1 // pred_check
      _
    $region143: #{tpu_custom_call.1} parent=1 // pred_check_branch
      %292 = sbr.rel (0) target = $region145
    $region144: #{tpu_custom_call.1} parent=1 // pred_region
      %293 = dma.done [#allocation18], 3072
    $region145: #{tpu_custom_call.1} parent=1 // pred_fallthru
      _
    // Predicated region
    $region146: #{tpu_custom_call.1} parent=1 // pred_check
      _
    $region147: #{tpu_custom_call.1} parent=1 // pred_check_branch
      %295 = sbr.rel (0) target = $region149
    $region148: #{tpu_custom_call.1} parent=1 // pred_region
      %296 = dma.done [#allocation21], 96
    $region149: #{tpu_custom_call.1} parent=1 // pred_fallthru
      _
    // Predicated region
    $region150: #{tpu_custom_call.1} parent=1 // pred_check
      _
    $region151: #{tpu_custom_call.1} parent=1 // pred_check_branch
      %298 = sbr.rel (0) target = $region153
    $region152: #{tpu_custom_call.1} parent=1 // pred_region
      %299 = dma.done [#allocation21], 96
    $region153: #{tpu_custom_call.1} parent=1 // pred_fallthru
      _
    // Predicated region
    $region154: #{tpu_custom_call.1} parent=1 // pred_check
      _
    $region155: #{tpu_custom_call.1} parent=1 // pred_check_branch
      %301 = sbr.rel (0) target = $region157
    $region156: #{tpu_custom_call.1} parent=1 // pred_region
      %302 = dma.done [#allocation24], 12288
    $region157: #{tpu_custom_call.1} parent=1 // pred_fallthru
      _
    // Predicated region
    $region158: #{tpu_custom_call.1} parent=1 // pred_check
      _
    $region159: #{tpu_custom_call.1} parent=1 // pred_check_branch
      %304 = sbr.rel (0) target = $region161
    $region160: #{tpu_custom_call.1} parent=1 // pred_region
      %305 = dma.done [#allocation24], 12288
    $region161: #{tpu_custom_call.1} parent=1 // pred_fallthru
      _
    // Predicated region
    $region162: #{tpu_custom_call.1} parent=1 // pred_check
      _
    $region163: #{tpu_custom_call.1} parent=1 // pred_check_branch
      %307 = sbr.rel (0) target = $region165
    $region164: #{tpu_custom_call.1} parent=1 // pred_region
      %308 = dma.done [#allocation27], 48
    $region165: #{tpu_custom_call.1} parent=1 // pred_fallthru
      _
    // Predicated region
    $region166: #{tpu_custom_call.1} parent=1 // pred_check
      _
    $region167: #{tpu_custom_call.1} parent=1 // pred_check_branch
      %310 = sbr.rel (0) target = $region169
    $region168: #{tpu_custom_call.1} parent=1 // pred_region
      %311 = dma.done [#allocation27], 6144
    $region169: #{tpu_custom_call.1} parent=1 // pred_fallthru
      _
    // Predicated region
    $region170: #{tpu_custom_call.1} parent=1 // pred_check
      _
    $region171: #{tpu_custom_call.1} parent=1 // pred_check_branch
      %313 = sbr.rel (0) target = $region173
    $region172: #{tpu_custom_call.1} parent=1 // pred_region
      %314 = dma.done [#allocation30], 32
    $region173: #{tpu_custom_call.1} parent=1 // pred_fallthru
      _
    %v316 = vld [vmem:[#allocation2] sm:$0xff]
    %v317 = vld [vmem:[#allocation2 + $0x8] sm:$0xff]
    %v318 = vpack.c.bf16 %v317, %v316
    %v319 = vld [vmem:[%s5] sm:$0xf]
    %v320 = vld [vmem:[%s5 + $0x4] sm:$0xf]
    %v321 = vld [vmem:[%s5 + $0x8] sm:$0xf]
    %v322 = vld [vmem:[%s5 + $0xc] sm:$0xf]
    %v323 = vld [vmem:[%s5 + $0x10] sm:$0xf]
    %v324 = vld [vmem:[%s5 + $0x14] sm:$0xf]
    %v325 = vld [vmem:[%s5 + $0x18] sm:$0x1]
    %v326 = vld [vmem:[#allocation10] sm:$0x1]
    %v328 = vlaneseq
    %v329 = vshrl.u32 %v328, 7
    %v330 = vsub.s32 0, %v329
    %v331 = vrot.slane %v326, %v330
    %v340 = vunpack.c.l.b16 %v319
    %v341 = vunpack.c.l.b16 %v320
    %v342 = vunpack.c.l.b16 %v321
    %v343 = vunpack.c.l.b16 %v322
    %v344 = vunpack.c.l.b16 %v323
    %v345 = vunpack.c.l.b16 %v324
    %v346 = vunpack.c.l.b16 %v325
    %v347 = vpack.c.b16 %v341, %v340
    %v348 = vpack.c.b16 %v343, %v342
    %v349 = vpack.c.b16 %v345, %v344
    %v350 = vpack.c.b16 %v346, %v346
    %vm354 = vcmask 408576
    %v356 = vsel %vm354, %v318, 0
    %vm358 = vcmask 1040384
    %v360 = vsel %vm358, %v350, 0
    %362 = vmatprep.subr.bf16.mxu0 0
    %363 = vmatpush1.bf16.msra.mxu0 %v347
    %364 = vmatprep.subr.bf16.mxu0 0
    %365 = vmatpush1.bf16.msra.mxu0 %v348
    %366 = vmatprep.subr.bf16.mxu0 0
    %367 = vmatpush1.bf16.msra.mxu0 %v349
    %368 = vmatprep.subr.bf16.mxu0 0
    %369 = vmatpush1.bf16.msra.mxu0 %v360
    %370 = vmatprep.subr.bf16.mxu0 0
    %371 = vmatpush1.bf16.msra.mxu0 0
    %372 = vmatprep.subr.bf16.mxu0 0
    %373 = vmatpush1.bf16.msra.mxu0 0
    %374 = vmatprep.subr.bf16.mxu0 0
    %375 = vmatpush1.bf16.msra.mxu0 0
    %376 = vmatprep.subr.bf16.mxu0 0
    %377 = vmatpush1.bf16.msra.mxu0 0
    %378 = vmatprep.subr.bf16.mxu0 0
    %379 = vmatpush1.bf16.msra.mxu0 0
    %380 = vmatprep.subr.bf16.mxu0 0
    %381 = vmatpush1.bf16.msra.mxu0 0
    %382 = vmatprep.subr.bf16.mxu0 0
    %383 = vmatpush1.bf16.msra.mxu0 0
    %384 = vmatprep.subr.bf16.mxu0 0
    %385 = vmatpush1.bf16.msra.mxu0 0
    %386 = vmatprep.subr.bf16.mxu0 0
    %387 = vmatpush1.bf16.msra.mxu0 0
    %388 = vmatprep.subr.bf16.mxu0 0
    %389 = vmatpush1.bf16.msra.mxu0 0
    %390 = vmatprep.subr.bf16.mxu0 0
    %391 = vmatpush1.bf16.msra.mxu0 0
    %392 = vmatprep.subr.bf16.mxu0 0
    %393 = vmatpush1.bf16.msra.mxu0 0
    %394 = vmatprep.mubr.bf16.mxu0 0
    %395 = vmatmul.mubr.bf16.gmra.mrb[0].mxu0 %v356
    %v396 = vpop.f32.mrb[0].mxu0
    %v397 = vadd.f32 %v331, %v396
    %v398 = vpop.f32.mrb[0].mxu0
    %v399 = vpop.f32.mrb[0].mxu0
    %v400 = vadd.f32 %v331, %v399
    %v401 = vpop.f32.mrb[0].mxu0
    %402 = vdwg.mxu0
    %v403 = vld [vmem:[#allocation5] sm:$0xff]
    %v404 = vld [vmem:[#allocation5 + $0x8] sm:$0xff]
    %v405 = vpack.c.bf16 %v404, %v403
    %v406 = vld [vmem:[%s7] sm:$0xf]
    %v407 = vld [vmem:[%s7 + $0x4] sm:$0xf]
    %v408 = vld [vmem:[%s7 + $0x8] sm:$0xf]
    %v409 = vld [vmem:[%s7 + $0xc] sm:$0xf]
    %v410 = vld [vmem:[%s7 + $0x10] sm:$0xf]
    %v411 = vld [vmem:[%s7 + $0x14] sm:$0xf]
    %v412 = vld [vmem:[%s7 + $0x18] sm:$0xf]
    %v413 = vld [vmem:[%s7 + $0x1c] sm:$0xf]
    %v414 = vld [vmem:[%s7 + $0x20] sm:$0xf]
    %v415 = vld [vmem:[%s7 + $0x24] sm:$0xf]
    %v416 = vld [vmem:[%s7 + $0x28] sm:$0xf]
    %v417 = vld [vmem:[%s7 + $0x2c] sm:$0xf]
    %v418 = vld [vmem:[%s7 + $0x30] sm:$0x3]
    %v419 = vld [vmem:[#allocation11] sm:$0x1]
    %v421 = vlaneseq
    %v422 = vshrl.u32 %v421, 7
    %v423 = vsub.s32 0, %v422
    %v424 = vrot.slane %v419, %v423
    %v439 = vunpack.c.l.b16 %v406
    %v440 = vunpack.c.l.b16 %v407
    %v441 = vunpack.c.l.b16 %v408
    %v442 = vunpack.c.l.b16 %v409
    %v443 = vunpack.c.l.b16 %v410
    %v444 = vunpack.c.l.b16 %v411
    %v445 = vunpack.c.l.b16 %v412
    %v446 = vunpack.c.l.b16 %v413
    %v447 = vunpack.c.l.b16 %v414
    %v448 = vunpack.c.l.b16 %v415
    %v449 = vunpack.c.l.b16 %v416
    %v450 = vunpack.c.l.b16 %v417
    %v451 = vunpack.c.l.b16 %v418
    %v452 = vpack.c.b16 %v440, %v439
    %v453 = vpack.c.b16 %v442, %v441
    %v454 = vpack.c.b16 %v444, %v443
    %v455 = vpack.c.b16 %v446, %v445
    %v456 = vpack.c.b16 %v448, %v447
    %v457 = vpack.c.b16 %v450, %v449
    %v458 = vpack.c.b16 %v451, %v451
    %vm465 = vcmask 818176
    %v467 = vsel %vm465, %v405, 0
    %vm469 = vcmask 1041408
    %v471 = vsel %vm469, %v458, 0
    %473 = vmatprep.subr.bf16.mxu0 0
    %474 = vmatpush1.bf16.msra.mxu0 %v452
    %475 = vmatprep.subr.bf16.mxu0 0
    %476 = vmatpush1.bf16.msra.mxu0 %v453
    %477 = vmatprep.subr.bf16.mxu0 0
    %478 = vmatpush1.bf16.msra.mxu0 %v454
    %479 = vmatprep.subr.bf16.mxu0 0
    %480 = vmatpush1.bf16.msra.mxu0 %v455
    %481 = vmatprep.subr.bf16.mxu0 0
    %482 = vmatpush1.bf16.msra.mxu0 %v456
    %483 = vmatprep.subr.bf16.mxu0 0
    %484 = vmatpush1.bf16.msra.mxu0 %v457
    %485 = vmatprep.subr.bf16.mxu0 0
    %486 = vmatpush1.bf16.msra.mxu0 %v471
    %487 = vmatprep.subr.bf16.mxu0 0
    %488 = vmatpush1.bf16.msra.mxu0 0
    %489 = vmatprep.subr.bf16.mxu0 0
    %490 = vmatpush1.bf16.msra.mxu0 0
    %491 = vmatprep.subr.bf16.mxu0 0
    %492 = vmatpush1.bf16.msra.mxu0 0
    %493 = vmatprep.subr.bf16.mxu0 0
    %494 = vmatpush1.bf16.msra.mxu0 0
    %495 = vmatprep.subr.bf16.mxu0 0
    %496 = vmatpush1.bf16.msra.mxu0 0
    %497 = vmatprep.subr.bf16.mxu0 0
    %498 = vmatpush1.bf16.msra.mxu0 0
    %499 = vmatprep.subr.bf16.mxu0 0
    %500 = vmatpush1.bf16.msra.mxu0 0
    %501 = vmatprep.subr.bf16.mxu0 0
    %502 = vmatpush1.bf16.msra.mxu0 0
    %503 = vmatprep.subr.bf16.mxu0 0
    %504 = vmatpush1.bf16.msra.mxu0 0
    %505 = vmatprep.mubr.bf16.mxu0 0
    %506 = vmatmul.mubr.bf16.gmra.mrb[0].mxu0 %v467
    %v507 = vpop.f32.mrb[0].mxu0
    %v508 = vadd.f32 %v424, %v507
    %v509 = vpop.f32.mrb[0].mxu0
    %v510 = vpop.f32.mrb[0].mxu0
    %v511 = vadd.f32 %v424, %v510
    %v512 = vpop.f32.mrb[0].mxu0
    %513 = vdwg.mxu0
    %v514 = vld [vmem:[#allocation7] sm:$0xff]
    %v515 = vld [vmem:[#allocation7 + $0x8] sm:$0xff]
    %v516 = vpack.c.bf16 %v515, %v514
    %v517 = vld [vmem:[#allocation13] sm:$0xf]
    %v518 = vld [vmem:[#allocation13 + $0x4] sm:$0xf]
    %v519 = vld [vmem:[#allocation13 + $0x8] sm:$0xf]
    %v520 = vld [vmem:[#allocation13 + $0xc] sm:$0xf]
    %v521 = vld [vmem:[#allocation14] sm:$0x1]
    %v523 = vlaneseq
    %v524 = vshrl.u32 %v523, 7
    %v525 = vsub.s32 0, %v524
    %v526 = vrot.slane %v521, %v525
    %v532 = vunpack.c.l.b16 %v517
    %v533 = vunpack.c.l.b16 %v518
    %v534 = vunpack.c.l.b16 %v519
    %v535 = vunpack.c.l.b16 %v520
    %v536 = vpack.c.b16 %v533, %v532
    %v537 = vpack.c.b16 %v535, %v534
    %vm540 = vcmask 261120
    %v542 = vsel %vm540, %v516, 0
    %544 = vmatprep.subr.bf16.mxu0 0
    %545 = vmatpush1.bf16.msra.mxu0 %v536
    %546 = vmatprep.subr.bf16.mxu0 0
    %547 = vmatpush1.bf16.msra.mxu0 %v537
    %548 = vmatprep.subr.bf16.mxu0 0
    %549 = vmatpush1.bf16.msra.mxu0 0
    %550 = vmatprep.subr.bf16.mxu0 0
    %551 = vmatpush1.bf16.msra.mxu0 0
    %552 = vmatprep.subr.bf16.mxu0 0
    %553 = vmatpush1.bf16.msra.mxu0 0
    %554 = vmatprep.subr.bf16.mxu0 0
    %555 = vmatpush1.bf16.msra.mxu0 0
    %556 = vmatprep.subr.bf16.mxu0 0
    %557 = vmatpush1.bf16.msra.mxu0 0
    %558 = vmatprep.subr.bf16.mxu0 0
    %559 = vmatpush1.bf16.msra.mxu0 0
    %560 = vmatprep.subr.bf16.mxu0 0
    %561 = vmatpush1.bf16.msra.mxu0 0
    %562 = vmatprep.subr.bf16.mxu0 0
    %563 = vmatpush1.bf16.msra.mxu0 0
    %564 = vmatprep.subr.bf16.mxu0 0
    %565 = vmatpush1.bf16.msra.mxu0 0
    %566 = vmatprep.subr.bf16.mxu0 0
    %567 = vmatpush1.bf16.msra.mxu0 0
    %568 = vmatprep.subr.bf16.mxu0 0
    %569 = vmatpush1.bf16.msra.mxu0 0
    %570 = vmatprep.subr.bf16.mxu0 0
    %571 = vmatpush1.bf16.msra.mxu0 0
    %572 = vmatprep.subr.bf16.mxu0 0
    %573 = vmatpush1.bf16.msra.mxu0 0
    %574 = vmatprep.subr.bf16.mxu0 0
    %575 = vmatpush1.bf16.msra.mxu0 0
    %576 = vmatprep.mubr.bf16.mxu0 0
    %577 = vmatmul.mubr.bf16.gmra.mrb[0].mxu0 %v542
    %v578 = vpop.f32.mrb[0].mxu0
    %v579 = vadd.f32 %v526, %v578
    %v580 = vpop.f32.mrb[0].mxu0
    %v581 = vpop.f32.mrb[0].mxu0
    %v582 = vadd.f32 %v526, %v581
    %v583 = vpop.f32.mrb[0].mxu0
    %584 = vdwg.mxu0
    %v585 = vpack.c.bf16 %v400, %v397
    %v586 = vpack.c.bf16 %v511, %v508
    %v587 = vpack.c.bf16 %v582, %v579
    %v588 = vld [vmem:[%s3] sm:$0xff]
    %v589 = vld [vmem:[%s3 + $0x8] sm:$0xff]
    %v590 = vld [vmem:[%s3 + $0x10] sm:$0xff]
    %v591 = vld [vmem:[%s3 + $0x18] sm:$0xff]
    %v592 = vld [vmem:[%s3 + $0x20] sm:$0xff]
    %v593 = vld [vmem:[%s3 + $0x28] sm:$0xff]
    %v594 = vld [vmem:[%s3 + $0x30] sm:$0xff]
    %v595 = vld [vmem:[%s3 + $0x38] sm:$0xff]
    %v596 = vld [vmem:[%s3 + $0x40] sm:$0xff]
    %v597 = vld [vmem:[%s3 + $0x48] sm:$0xff]
    %v598 = vld [vmem:[%s3 + $0x50] sm:$0xff]
    %v599 = vld [vmem:[%s3 + $0x58] sm:$0xff]
    %v600 = vld [vmem:[%s3 + $0x60] sm:$0xff]
    %v601 = vld [vmem:[%s3 + $0x68] sm:$0xff]
    %v602 = vld [vmem:[%s3 + $0x70] sm:$0xff]
    %v603 = vld [vmem:[%s3 + $0x78] sm:$0xff]
    %v604 = vld [vmem:[#allocation8] sm:$0xff]
    %v605 = vld [vmem:[#allocation16] sm:$0xff]
    %v606 = vld [vmem:[#allocation16 + $0x8] sm:$0xf]
    %v607 = vld [vmem:[#allocation16 + $0xc] sm:$0xff]
    %v608 = vld [vmem:[#allocation16 + $0x14] sm:$0xf]
    %v609 = vld [vmem:[#allocation16 + $0x18] sm:$0xff]
    %v610 = vld [vmem:[#allocation16 + $0x20] sm:$0xf]
    %v611 = vld [vmem:[#allocation16 + $0x24] sm:$0xff]
    %v612 = vld [vmem:[#allocation16 + $0x2c] sm:$0xf]
    %v613 = vld [vmem:[#allocation16 + $0x30] sm:$0xff]
    %v614 = vld [vmem:[#allocation16 + $0x38] sm:$0xf]
    %v615 = vld [vmem:[#allocation16 + $0x3c] sm:$0xff]
    %v616 = vld [vmem:[#allocation16 + $0x44] sm:$0xf]
    %v617 = vld [vmem:[#allocation16 + $0x48] sm:$0xff]
    %v618 = vld [vmem:[#allocation16 + $0x50] sm:$0xf]
    %v619 = vld [vmem:[#allocation16 + $0x54] sm:$0xff]
    %v620 = vld [vmem:[#allocation16 + $0x5c] sm:$0xf]
    %v621 = vld [vmem:[#allocation16 + $0x60] sm:$0xff]
    %v622 = vld [vmem:[#allocation16 + $0x68] sm:$0xf]
    %v623 = vld [vmem:[#allocation16 + $0x6c] sm:$0xff]
    %v624 = vld [vmem:[#allocation16 + $0x74] sm:$0xf]
    %v625 = vld [vmem:[#allocation16 + $0x78] sm:$0xff]
    %v626 = vld [vmem:[#allocation16 + $0x80] sm:$0xf]
    %v627 = vld [vmem:[#allocation16 + $0x84] sm:$0xff]
    %v628 = vld [vmem:[#allocation16 + $0x8c] sm:$0xf]
    %v629 = vld [vmem:[#allocation16 + $0x90] sm:$0xff]
    %v630 = vld [vmem:[#allocation16 + $0x98] sm:$0xf]
    %v631 = vld [vmem:[#allocation16 + $0x9c] sm:$0xff]
    %v632 = vld [vmem:[#allocation16 + $0xa4] sm:$0xf]
    %v633 = vld [vmem:[#allocation16 + $0xa8] sm:$0xff]
    %v634 = vld [vmem:[#allocation16 + $0xb0] sm:$0xf]
    %v635 = vld [vmem:[#allocation16 + $0xb4] sm:$0xff]
    %v636 = vld [vmem:[#allocation16 + $0xbc] sm:$0xf]
    %v637 = vld [vmem:[#allocation17] sm:$0x7]
    %v639 = vlaneseq
    %v640 = vshrl.u32 %v639, 7
    %v641 = vsub.s32 0, %v640
    %v642 = vrot.slane %v637, %v641
    %v643 = vlaneseq
    %v644 = vshrl.u32 %v643, 7
    %v645 = vsub.s32 1, %v644
    %v646 = vrot.slane %v637, %v645
    %v647 = vlaneseq
    %v648 = vshrl.u32 %v647, 7
    %v649 = vsub.s32 2, %v648
    %v650 = vrot.slane %v637, %v649
    %v686 = vunpack.c.l.b16 %v605
    %v687 = vunpack.c.h.b16 %v605
    %v688 = vunpack.c.l.b16 %v606
    %v689 = vunpack.c.l.b16 %v607
    %v690 = vunpack.c.h.b16 %v607
    %v691 = vunpack.c.l.b16 %v608
    %v692 = vunpack.c.l.b16 %v609
    %v693 = vunpack.c.h.b16 %v609
    %v694 = vunpack.c.l.b16 %v610
    %v695 = vunpack.c.l.b16 %v611
    %v696 = vunpack.c.h.b16 %v611
    %v697 = vunpack.c.l.b16 %v612
    %v698 = vunpack.c.l.b16 %v613
    %v699 = vunpack.c.h.b16 %v613
    %v700 = vunpack.c.l.b16 %v614
    %v701 = vunpack.c.l.b16 %v615
    %v702 = vunpack.c.h.b16 %v615
    %v703 = vunpack.c.l.b16 %v616
    %v704 = vunpack.c.l.b16 %v617
    %v705 = vunpack.c.h.b16 %v617
    %v706 = vunpack.c.l.b16 %v618
    %v707 = vunpack.c.l.b16 %v619
    %v708 = vunpack.c.h.b16 %v619
    %v709 = vunpack.c.l.b16 %v620
    %v710 = vunpack.c.l.b16 %v621
    %v711 = vunpack.c.h.b16 %v621
    %v712 = vunpack.c.l.b16 %v622
    %v713 = vunpack.c.l.b16 %v623
    %v714 = vunpack.c.h.b16 %v623
    %v715 = vunpack.c.l.b16 %v624
    %v716 = vunpack.c.l.b16 %v625
    %v717 = vunpack.c.h.b16 %v625
    %v718 = vunpack.c.l.b16 %v626
    %v719 = vunpack.c.l.b16 %v627
    %v720 = vunpack.c.h.b16 %v627
    %v721 = vunpack.c.l.b16 %v628
    %v722 = vunpack.c.l.b16 %v629
    %v723 = vunpack.c.h.b16 %v629
    %v724 = vunpack.c.l.b16 %v630
    %v725 = vunpack.c.l.b16 %v631
    %v726 = vunpack.c.h.b16 %v631
    %v727 = vunpack.c.l.b16 %v632
    %v728 = vunpack.c.l.b16 %v633
    %v729 = vunpack.c.h.b16 %v633
    %v730 = vunpack.c.l.b16 %v634
    %v731 = vunpack.c.l.b16 %v635
    %v732 = vunpack.c.h.b16 %v635
    %v733 = vunpack.c.l.b16 %v636
    %v734 = vpack.c.b16 %v689, %v686
    %v735 = vpack.c.b16 %v690, %v687
    %v736 = vpack.c.b16 %v691, %v688
    %v737 = vpack.c.b16 %v695, %v692
    %v738 = vpack.c.b16 %v696, %v693
    %v739 = vpack.c.b16 %v697, %v694
    %v740 = vpack.c.b16 %v701, %v698
    %v741 = vpack.c.b16 %v702, %v699
    %v742 = vpack.c.b16 %v703, %v700
    %v743 = vpack.c.b16 %v707, %v704
    %v744 = vpack.c.b16 %v708, %v705
    %v745 = vpack.c.b16 %v709, %v706
    %v746 = vpack.c.b16 %v713, %v710
    %v747 = vpack.c.b16 %v714, %v711
    %v748 = vpack.c.b16 %v715, %v712
    %v749 = vpack.c.b16 %v719, %v716
    %v750 = vpack.c.b16 %v720, %v717
    %v751 = vpack.c.b16 %v721, %v718
    %v752 = vpack.c.b16 %v725, %v722
    %v753 = vpack.c.b16 %v726, %v723
    %v754 = vpack.c.b16 %v727, %v724
    %v755 = vpack.c.b16 %v731, %v728
    %v756 = vpack.c.b16 %v732, %v729
    %v757 = vpack.c.b16 %v733, %v730
    %782 = vmatprep.subr.bf16.mxu0 %v735
    %783 = vmatpush1.bf16.msra.mxu0 %v734
    %784 = vmatprep.subr.bf16.mxu0 %v738
    %785 = vmatpush1.bf16.msra.mxu0 %v737
    %786 = vmatprep.subr.bf16.mxu0 %v741
    %787 = vmatpush1.bf16.msra.mxu0 %v740
    %788 = vmatprep.subr.bf16.mxu0 %v744
    %789 = vmatpush1.bf16.msra.mxu0 %v743
    %790 = vmatprep.subr.bf16.mxu0 %v747
    %791 = vmatpush1.bf16.msra.mxu0 %v746
    %792 = vmatprep.subr.bf16.mxu0 %v750
    %793 = vmatpush1.bf16.msra.mxu0 %v749
    %794 = vmatprep.subr.bf16.mxu0 %v753
    %795 = vmatpush1.bf16.msra.mxu0 %v752
    %796 = vmatprep.subr.bf16.mxu0 %v756
    %797 = vmatpush1.bf16.msra.mxu0 %v755
    %798 = vmatprep.subr.bf16.mxu0 0
    %799 = vmatpush1.bf16.msra.mxu0 0
    %800 = vmatprep.subr.bf16.mxu0 0
    %801 = vmatpush1.bf16.msra.mxu0 0
    %802 = vmatprep.subr.bf16.mxu0 0
    %803 = vmatpush1.bf16.msra.mxu0 0
    %804 = vmatprep.subr.bf16.mxu0 0
    %805 = vmatpush1.bf16.msra.mxu0 0
    %806 = vmatprep.subr.bf16.mxu0 0
    %807 = vmatpush1.bf16.msra.mxu0 0
    %808 = vmatprep.subr.bf16.mxu0 0
    %809 = vmatpush1.bf16.msra.mxu0 0
    %810 = vmatprep.subr.bf16.mxu0 0
    %811 = vmatpush1.bf16.msra.mxu0 0
    %812 = vmatprep.subr.bf16.mxu0 0
    %813 = vmatpush1.bf16.msra.mxu0 0
    %814 = vmatprep.mubr.bf16.mxu0 0
    %815 = vmatmul.mubr.bf16.gmra.mrb[0].mxu0 %v585
    %v816 = vpop.f32.mrb[0].mxu0
    %v817 = vadd.f32 %v642, %v816
    %v818 = vpop.f32.mrb[0].mxu0
    %v819 = vpop.f32.mrb[0].mxu0
    %v820 = vadd.f32 %v642, %v819
    %v821 = vpop.f32.mrb[0].mxu0
    %822 = vmatprep.mubr.bf16.mxu0 0
    %823 = vmatmul.mubr.bf16.gmra.mrb[0].mxu0 %v586
    %v824 = vpop.f32.mrb[0].mxu0
    %v825 = vpop.f32.mrb[0].mxu0
    %v826 = vadd.f32 %v646, %v825
    %v827 = vpop.f32.mrb[0].mxu0
    %v828 = vpop.f32.mrb[0].mxu0
    %v829 = vadd.f32 %v646, %v828
    %830 = vmatprep.mubr.bf16.mxu0 0
    %831 = vmatmul.mubr.bf16.gmra.mrb[0].mxu0 %v587
    %v832 = vpop.f32.mrb[0].mxu0
    %v833 = vpop.f32.mrb[0].mxu0
    %v834 = vadd.f32 %v646, %v833
    %v835 = vpop.f32.mrb[0].mxu0
    %v836 = vpop.f32.mrb[0].mxu0
    %v837 = vadd.f32 %v646, %v836
    %838 = vdwg.mxu0
    %839 = vmatprep.subr.bf16.mxu0 0
    %840 = vmatpush1.bf16.msra.mxu0 %v736
    %841 = vmatprep.subr.bf16.mxu0 0
    %842 = vmatpush1.bf16.msra.mxu0 %v739
    %843 = vmatprep.subr.bf16.mxu0 0
    %844 = vmatpush1.bf16.msra.mxu0 %v742
    %845 = vmatprep.subr.bf16.mxu0 0
    %846 = vmatpush1.bf16.msra.mxu0 %v745
    %847 = vmatprep.subr.bf16.mxu0 0
    %848 = vmatpush1.bf16.msra.mxu0 %v748
    %849 = vmatprep.subr.bf16.mxu0 0
    %850 = vmatpush1.bf16.msra.mxu0 %v751
    %851 = vmatprep.subr.bf16.mxu0 0
    %852 = vmatpush1.bf16.msra.mxu0 %v754
    %853 = vmatprep.subr.bf16.mxu0 0
    %854 = vmatpush1.bf16.msra.mxu0 %v757
    %855 = vmatprep.subr.bf16.mxu0 0
    %856 = vmatpush1.bf16.msra.mxu0 0
    %857 = vmatprep.subr.bf16.mxu0 0
    %858 = vmatpush1.bf16.msra.mxu0 0
    %859 = vmatprep.subr.bf16.mxu0 0
    %860 = vmatpush1.bf16.msra.mxu0 0
    %861 = vmatprep.subr.bf16.mxu0 0
    %862 = vmatpush1.bf16.msra.mxu0 0
    %863 = vmatprep.subr.bf16.mxu0 0
    %864 = vmatpush1.bf16.msra.mxu0 0
    %865 = vmatprep.subr.bf16.mxu0 0
    %866 = vmatpush1.bf16.msra.mxu0 0
    %867 = vmatprep.subr.bf16.mxu0 0
    %868 = vmatpush1.bf16.msra.mxu0 0
    %869 = vmatprep.subr.bf16.mxu0 0
    %870 = vmatpush1.bf16.msra.mxu0 0
    %871 = vmatprep.mubr.bf16.mxu0 0
    %872 = vmatmul.mubr.bf16.gmra.mrb[0].mxu0 %v585
    %v873 = vpop.f32.mrb[0].mxu0
    %v874 = vpop.f32.mrb[0].mxu0
    %v875 = vpop.f32.mrb[0].mxu0
    %v876 = vpop.f32.mrb[0].mxu0
    %877 = vmatprep.mubr.bf16.mxu0 0
    %878 = vmatmul.mubr.bf16.gmra.mrb[0].mxu0 %v586
    %v879 = vpop.f32.mrb[0].mxu0
    %v880 = vadd.f32 %v650, %v879
    %v881 = vpop.f32.mrb[0].mxu0
    %v882 = vpop.f32.mrb[0].mxu0
    %v883 = vadd.f32 %v650, %v882
    %v884 = vpop.f32.mrb[0].mxu0
    %885 = vmatprep.mubr.bf16.mxu0 0
    %886 = vmatmul.mubr.bf16.gmra.mrb[0].mxu0 %v587
    %v887 = vpop.f32.mrb[0].mxu0
    %v888 = vadd.f32 %v650, %v887
    %v889 = vpop.f32.mrb[0].mxu0
    %v890 = vpop.f32.mrb[0].mxu0
    %v891 = vadd.f32 %v650, %v890
    %v892 = vpop.f32.mrb[0].mxu0
    %893 = vdwg.mxu0
    %v894 = vmul.f32 %v817, %v826
    %v895 = vmul.f32 %v820, %v829
    %v896 = vmul.f32 %v817, %v834
    %v897 = vmul.f32 %v820, %v837
    %898 = vmatprep.subr.mxu0 0.0
    %899 = vmatpush1.msra.mxu0 %v588
    %900 = vmatprep.subr.mxu0 0.0
    %901 = vmatpush1.msra.mxu0 %v589
    %902 = vmatprep.subr.mxu0 0.0
    %903 = vmatpush1.msra.mxu0 %v590
    %904 = vmatprep.subr.mxu0 0.0
    %905 = vmatpush1.msra.mxu0 %v591
    %906 = vmatprep.subr.mxu0 0.0
    %907 = vmatpush1.msra.mxu0 %v592
    %908 = vmatprep.subr.mxu0 0.0
    %909 = vmatpush1.msra.mxu0 %v593
    %910 = vmatprep.subr.mxu0 0.0
    %911 = vmatpush1.msra.mxu0 %v594
    %912 = vmatprep.subr.mxu0 0.0
    %913 = vmatpush1.msra.mxu0 %v595
    %914 = vmatprep.subr.mxu0 0.0
    %915 = vmatpush1.msra.mxu0 %v596
    %916 = vmatprep.subr.mxu0 0.0
    %917 = vmatpush1.msra.mxu0 %v597
    %918 = vmatprep.subr.mxu0 0.0
    %919 = vmatpush1.msra.mxu0 %v598
    %920 = vmatprep.subr.mxu0 0.0
    %921 = vmatpush1.msra.mxu0 %v599
    %922 = vmatprep.subr.mxu0 0.0
    %923 = vmatpush1.msra.mxu0 %v600
    %924 = vmatprep.subr.mxu0 0.0
    %925 = vmatpush1.msra.mxu0 %v601
    %926 = vmatprep.subr.mxu0 0.0
    %927 = vmatpush1.msra.mxu0 %v602
    %928 = vmatprep.subr.mxu0 0.0
    %929 = vmatpush1.msra.mxu0 %v603
    %930 = vmatprep.subr.mxu0 0.0
    %931 = vmatpush1.msra.mxu0 0.0
    %932 = vmatprep.subr.mxu0 0.0
    %933 = vmatpush1.msra.mxu0 0.0
    %934 = vmatprep.subr.mxu0 0.0
    %935 = vmatpush1.msra.mxu0 0.0
    %936 = vmatprep.subr.mxu0 0.0
    %937 = vmatpush1.msra.mxu0 0.0
    %938 = vmatprep.subr.mxu0 0.0
    %939 = vmatpush1.msra.mxu0 0.0
    %940 = vmatprep.subr.mxu0 0.0
    %941 = vmatpush1.msra.mxu0 0.0
    %942 = vmatprep.subr.mxu0 0.0
    %943 = vmatpush1.msra.mxu0 0.0
    %944 = vmatprep.subr.mxu0 0.0
    %945 = vmatpush1.msra.mxu0 0.0
    %946 = vmatprep.subr.mxu0 0.0
    %947 = vmatpush1.msra.mxu0 0.0
    %948 = vmatprep.subr.mxu0 0.0
    %949 = vmatpush1.msra.mxu0 0.0
    %950 = vmatprep.subr.mxu0 0.0
    %951 = vmatpush1.msra.mxu0 0.0
    %952 = vmatprep.subr.mxu0 0.0
    %953 = vmatpush1.msra.mxu0 0.0
    %954 = vmatprep.subr.mxu0 0.0
    %955 = vmatpush1.msra.mxu0 0.0
    %956 = vmatprep.subr.mxu0 0.0
    %957 = vmatpush1.msra.mxu0 0.0
    %958 = vmatprep.subr.mxu0 0.0
    %959 = vmatpush1.msra.mxu0 0.0
    %960 = vmatprep.subr.mxu0 0.0
    %961 = vmatpush1.msra.mxu0 0.0
    %962 = vmatprep.mubr.f32.mxu0 0.0
    %963 = vmatmul.mubr.f32.gmra.mrb[0].mxu0 %v894
    %v964 = vpop.f32.mrb[0].mxu0
    %v965 = vadd.f32 0.0, %v964
    %v966 = vpop.f32.mrb[0].mxu0
    %967 = vmatprep.mubr.f32.mxu0 0.0
    %968 = vmatmul.mubr.f32.gmra.mrb[0].mxu0 %v895
    %v969 = vpop.f32.mrb[0].mxu0
    %v970 = vadd.f32 0.0, %v969
    %v971 = vpop.f32.mrb[0].mxu0
    %972 = vmatprep.mubr.f32.mxu0 0.0
    %973 = vmatmul.mubr.f32.gmra.mrb[0].mxu0 %v896
    %v974 = vpop.f32.mrb[0].mxu0
    %v975 = vadd.f32 0.0, %v974
    %v976 = vpop.f32.mrb[0].mxu0
    %977 = vmatprep.mubr.f32.mxu0 0.0
    %978 = vmatmul.mubr.f32.gmra.mrb[0].mxu0 %v897
    %v979 = vpop.f32.mrb[0].mxu0
    %v980 = vadd.f32 0.0, %v979
    %v981 = vpop.f32.mrb[0].mxu0
    %982 = vdwg.mxu0
    %v983 = vmul.f32 %v965, 0.25
    %v984 = vmul.f32 %v970, 0.25
    %v985 = vmul.f32 %v975, 0.25
    %v986 = vmul.f32 %v980, 0.25
    %v987 = vmax.f32 %v983, %v985
    %v988 = vmax.f32 %v984, %v986
    %v989 = vsub.f32 %v983, %v987
    %v990 = vsub.f32 %v984, %v988
    %v991 = vmul.f32 %v989, 1.442695
    %v992 = vpow.pop %v991
    %v993 = vmul.f32 %v990, 1.442695
    %v994 = vpow.pop %v993
    %v995 = vsub.f32 %v985, %v987
    %v996 = vsub.f32 %v986, %v988
    %v997 = vmul.f32 %v995, 1.442695
    %v998 = vpow.pop %v997
    %v999 = vmul.f32 %v996, 1.442695
    %v1000 = vpow.pop %v999
    %v1001 = vadd.f32 %v992, %v998
    %v1002 = vadd.f32 %v994, %v1000
    %v1003 = vrcp.pop %v1001
    %v1004 = vrcp.pop %v1002
    %v1005 = vmul.f32 %v992, %v1003
    %v1006 = vmul.f32 %v994, %v1004
    %v1007 = vmul.f32 %v998, %v1003
    %v1008 = vmul.f32 %v1000, %v1004
    %vm1009 = vcmask 64512
    %v1011 = vsel %vm1009, %v1005, 0
    %v1014 = vsel %vm1009, %v1006, 0
    %v1017 = vsel %vm1009, %v1007, 0
    %v1020 = vsel %vm1009, %v1008, 0
    %1022 = vmatprep.subr.mxu0 0.0
    %1023 = vmatpush1.msra.mxu0 %v604
    %1024 = vmatprep.subr.mxu0 0.0
    %1025 = vmatpush1.msra.mxu0 0.0
    %1026 = vmatprep.subr.mxu0 0.0
    %1027 = vmatpush1.msra.mxu0 0.0
    %1028 = vmatprep.subr.mxu0 0.0
    %1029 = vmatpush1.msra.mxu0 0.0
    %1030 = vmatprep.subr.mxu0 0.0
    %1031 = vmatpush1.msra.mxu0 0.0
    %1032 = vmatprep.subr.mxu0 0.0
    %1033 = vmatpush1.msra.mxu0 0.0
    %1034 = vmatprep.subr.mxu0 0.0
    %1035 = vmatpush1.msra.mxu0 0.0
    %1036 = vmatprep.subr.mxu0 0.0
    %1037 = vmatpush1.msra.mxu0 0.0
    %1038 = vmatprep.subr.mxu0 0.0
    %1039 = vmatpush1.msra.mxu0 0.0
    %1040 = vmatprep.subr.mxu0 0.0
    %1041 = vmatpush1.msra.mxu0 0.0
    %1042 = vmatprep.subr.mxu0 0.0
    %1043 = vmatpush1.msra.mxu0 0.0
    %1044 = vmatprep.subr.mxu0 0.0
    %1045 = vmatpush1.msra.mxu0 0.0
    %1046 = vmatprep.subr.mxu0 0.0
    %1047 = vmatpush1.msra.mxu0 0.0
    %1048 = vmatprep.subr.mxu0 0.0
    %1049 = vmatpush1.msra.mxu0 0.0
    %1050 = vmatprep.subr.mxu0 0.0
    %1051 = vmatpush1.msra.mxu0 0.0
    %1052 = vmatprep.subr.mxu0 0.0
    %1053 = vmatpush1.msra.mxu0 0.0
    %1054 = vmatprep.subr.mxu0 0.0
    %1055 = vmatpush1.msra.mxu0 0.0
    %1056 = vmatprep.subr.mxu0 0.0
    %1057 = vmatpush1.msra.mxu0 0.0
    %1058 = vmatprep.subr.mxu0 0.0
    %1059 = vmatpush1.msra.mxu0 0.0
    %1060 = vmatprep.subr.mxu0 0.0
    %1061 = vmatpush1.msra.mxu0 0.0
    %1062 = vmatprep.subr.mxu0 0.0
    %1063 = vmatpush1.msra.mxu0 0.0
    %1064 = vmatprep.subr.mxu0 0.0
    %1065 = vmatpush1.msra.mxu0 0.0
    %1066 = vmatprep.subr.mxu0 0.0
    %1067 = vmatpush1.msra.mxu0 0.0
    %1068 = vmatprep.subr.mxu0 0.0
    %1069 = vmatpush1.msra.mxu0 0.0
    %1070 = vmatprep.subr.mxu0 0.0
    %1071 = vmatpush1.msra.mxu0 0.0
    %1072 = vmatprep.subr.mxu0 0.0
    %1073 = vmatpush1.msra.mxu0 0.0
    %1074 = vmatprep.subr.mxu0 0.0
    %1075 = vmatpush1.msra.mxu0 0.0
    %1076 = vmatprep.subr.mxu0 0.0
    %1077 = vmatpush1.msra.mxu0 0.0
    %1078 = vmatprep.subr.mxu0 0.0
    %1079 = vmatpush1.msra.mxu0 0.0
    %1080 = vmatprep.subr.mxu0 0.0
    %1081 = vmatpush1.msra.mxu0 0.0
    %1082 = vmatprep.subr.mxu0 0.0
    %1083 = vmatpush1.msra.mxu0 0.0
    %1084 = vmatprep.subr.mxu0 0.0
    %1085 = vmatpush1.msra.mxu0 0.0
    %1086 = vmatprep.mubr.f32.mxu0 0.0
    %1087 = vmatmul.mubr.f32.gmra.mrb[0].mxu0 %v1011
    %v1088 = vpop.f32.mrb[0].mxu0
    %v1089 = vadd.f32 0.0, %v1088
    %v1090 = vpop.f32.mrb[0].mxu0
    %1091 = vmatprep.mubr.f32.mxu0 0.0
    %1092 = vmatmul.mubr.f32.gmra.mrb[0].mxu0 %v1014
    %v1093 = vpop.f32.mrb[0].mxu0
    %v1094 = vadd.f32 0.0, %v1093
    %v1095 = vpop.f32.mrb[0].mxu0
    %1096 = vmatprep.mubr.f32.mxu0 0.0
    %1097 = vmatmul.mubr.f32.gmra.mrb[0].mxu0 %v1017
    %v1098 = vpop.f32.mrb[0].mxu0
    %v1099 = vadd.f32 0.0, %v1098
    %v1100 = vpop.f32.mrb[0].mxu0
    %1101 = vmatprep.mubr.f32.mxu0 0.0
    %1102 = vmatmul.mubr.f32.gmra.mrb[0].mxu0 %v1020
    %v1103 = vpop.f32.mrb[0].mxu0
    %v1104 = vadd.f32 0.0, %v1103
    %v1105 = vpop.f32.mrb[0].mxu0
    %1106 = vdwg.mxu0
    %v1107 = vmul.f32 %v1089, %v880
    %v1108 = vmul.f32 %v1094, %v883
    %v1109 = vmul.f32 %v1099, %v888
    %v1110 = vmul.f32 %v1104, %v891
    %v1111 = vadd.f32 %v1107, %v1109
    %v1112 = vadd.f32 %v1108, %v1110
    %v1113 = vpack.c.bf16 %v1112, %v1111
    %v1114 = vld [vmem:[#allocation19] sm:$0xf]
    %v1115 = vld [vmem:[#allocation19 + $0x4] sm:$0xf]
    %v1116 = vld [vmem:[#allocation19 + $0x8] sm:$0xf]
    %v1117 = vld [vmem:[#allocation19 + $0xc] sm:$0xf]
    %v1118 = vld [vmem:[#allocation19 + $0x10] sm:$0xf]
    %v1119 = vld [vmem:[#allocation19 + $0x14] sm:$0xf]
    %v1120 = vld [vmem:[#allocation19 + $0x18] sm:$0xf]
    %v1121 = vld [vmem:[#allocation19 + $0x1c] sm:$0xf]
    %v1122 = vld [vmem:[#allocation19 + $0x20] sm:$0xf]
    %v1123 = vld [vmem:[#allocation19 + $0x24] sm:$0xf]
    %v1124 = vld [vmem:[#allocation19 + $0x28] sm:$0xf]
    %v1125 = vld [vmem:[#allocation19 + $0x2c] sm:$0xf]
    %v1126 = vld [vmem:[#allocation19 + $0x30] sm:$0xf]
    %v1127 = vld [vmem:[#allocation19 + $0x34] sm:$0xf]
    %v1128 = vld [vmem:[#allocation19 + $0x38] sm:$0xf]
    %v1129 = vld [vmem:[#allocation19 + $0x3c] sm:$0xf]
    %v1130 = vld [vmem:[%s14] sm:$0x1]
    %v1132 = vlaneseq
    %v1133 = vshrl.u32 %v1132, 7
    %v1134 = vsub.s32 0, %v1133
    %v1135 = vrot.slane %v1130, %v1134
    %v1153 = vunpack.c.l.b16 %v1114
    %v1154 = vunpack.c.l.b16 %v1115
    %v1155 = vunpack.c.l.b16 %v1116
    %v1156 = vunpack.c.l.b16 %v1117
    %v1157 = vunpack.c.l.b16 %v1118
    %v1158 = vunpack.c.l.b16 %v1119
    %v1159 = vunpack.c.l.b16 %v1120
    %v1160 = vunpack.c.l.b16 %v1121
    %v1161 = vunpack.c.l.b16 %v1122
    %v1162 = vunpack.c.l.b16 %v1123
    %v1163 = vunpack.c.l.b16 %v1124
    %v1164 = vunpack.c.l.b16 %v1125
    %v1165 = vunpack.c.l.b16 %v1126
    %v1166 = vunpack.c.l.b16 %v1127
    %v1167 = vunpack.c.l.b16 %v1128
    %v1168 = vunpack.c.l.b16 %v1129
    %v1169 = vpack.c.b16 %v1154, %v1153
    %v1170 = vpack.c.b16 %v1156, %v1155
    %v1171 = vpack.c.b16 %v1158, %v1157
    %v1172 = vpack.c.b16 %v1160, %v1159
    %v1173 = vpack.c.b16 %v1162, %v1161
    %v1174 = vpack.c.b16 %v1164, %v1163
    %v1175 = vpack.c.b16 %v1166, %v1165
    %v1176 = vpack.c.b16 %v1168, %v1167
    %1185 = vmatprep.subr.bf16.mxu0 0
    %1186 = vmatpush1.bf16.msra.mxu0 %v1169
    %1187 = vmatprep.subr.bf16.mxu0 0
    %1188 = vmatpush1.bf16.msra.mxu0 %v1170
    %1189 = vmatprep.subr.bf16.mxu0 0
    %1190 = vmatpush1.bf16.msra.mxu0 %v1171
    %1191 = vmatprep.subr.bf16.mxu0 0
    %1192 = vmatpush1.bf16.msra.mxu0 %v1172
    %1193 = vmatprep.subr.bf16.mxu0 0
    %1194 = vmatpush1.bf16.msra.mxu0 %v1173
    %1195 = vmatprep.subr.bf16.mxu0 0
    %1196 = vmatpush1.bf16.msra.mxu0 %v1174
    %1197 = vmatprep.subr.bf16.mxu0 0
    %1198 = vmatpush1.bf16.msra.mxu0 %v1175
    %1199 = vmatprep.subr.bf16.mxu0 0
    %1200 = vmatpush1.bf16.msra.mxu0 %v1176
    %1201 = vmatprep.subr.bf16.mxu0 0
    %1202 = vmatpush1.bf16.msra.mxu0 0
    %1203 = vmatprep.subr.bf16.mxu0 0
    %1204 = vmatpush1.bf16.msra.mxu0 0
    %1205 = vmatprep.subr.bf16.mxu0 0
    %1206 = vmatpush1.bf16.msra.mxu0 0
    %1207 = vmatprep.subr.bf16.mxu0 0
    %1208 = vmatpush1.bf16.msra.mxu0 0
    %1209 = vmatprep.subr.bf16.mxu0 0
    %1210 = vmatpush1.bf16.msra.mxu0 0
    %1211 = vmatprep.subr.bf16.mxu0 0
    %1212 = vmatpush1.bf16.msra.mxu0 0
    %1213 = vmatprep.subr.bf16.mxu0 0
    %1214 = vmatpush1.bf16.msra.mxu0 0
    %1215 = vmatprep.subr.bf16.mxu0 0
    %1216 = vmatpush1.bf16.msra.mxu0 0
    %1217 = vmatprep.mubr.bf16.mxu0 0
    %1218 = vmatmul.mubr.bf16.gmra.mrb[0].mxu0 %v1113
    %v1219 = vpop.f32.mrb[0].mxu0
    %v1220 = vadd.f32 %v1135, %v1219
    %v1221 = vpop.f32.mrb[0].mxu0
    %v1222 = vpop.f32.mrb[0].mxu0
    %v1223 = vadd.f32 %v1135, %v1222
    %v1224 = vpop.f32.mrb[0].mxu0
    %1225 = vdwg.mxu0
    %v1226 = vadd.f32 %v397, %v1220
    %v1227 = vadd.f32 %v400, %v1223
    %v1228 = vld [vmem:[#allocation20] sm:$0x1]
    %v1229 = vld [vmem:[#allocation22] sm:$0x1]
    %1230 = vadd.xlane.f32.xlu0 %v1226
    %v1231 = vpop.xlane.xlu0 %1230
    %1232 = vadd.xlane.f32.xlu0 %v1227
    %v1233 = vpop.xlane.xlu0 %1232
    %v1234 = vrcp.pop 128.0
    %v1235 = vmul.f32 %v1231, %v1234
    %v1236 = vmul.f32 %v1233, %v1234
    %v1237 = vsub.f32 %v1226, %v1235
    %v1238 = vsub.f32 %v1227, %v1236
    %v1239 = vmul.f32 %v1237, %v1237
    %v1240 = vmul.f32 %v1238, %v1238
    %1241 = vadd.xlane.f32.xlu0 %v1239
    %v1242 = vpop.xlane.xlu0 %1241
    %1243 = vadd.xlane.f32.xlu0 %v1240
    %v1244 = vpop.xlane.xlu0 %1243
    %v1245 = vmul.f32 %v1242, %v1234
    %v1246 = vmul.f32 %v1244, %v1234
    %v1247 = vadd.f32 %v1245, 1e-05
    %v1248 = vadd.f32 %v1246, 1e-05
    %v1249 = vrsqrt.pop %v1247
    %v1250 = vrsqrt.pop %v1248
    %v1251 = vmul.f32 %v1237, %v1249
    %v1252 = vmul.f32 %v1238, %v1250
    %v1254 = vlaneseq
    %v1255 = vshrl.u32 %v1254, 7
    %v1256 = vsub.s32 0, %v1255
    %v1257 = vrot.slane %v1228, %v1256
    %v1259 = vmul.f32 %v1251, %v1257
    %v1260 = vmul.f32 %v1252, %v1257
    %v1262 = vlaneseq
    %v1263 = vshrl.u32 %v1262, 7
    %v1264 = vsub.s32 0, %v1263
    %v1265 = vrot.slane %v1229, %v1264
    %v1267 = vadd.f32 %v1259, %v1265
    %v1268 = vadd.f32 %v1260, %v1265
    %v1269 = vpack.c.bf16 %v1268, %v1267
    %v1270 = vld [vmem:[#allocation23] sm:$0xff]
    %v1271 = vld [vmem:[#allocation23 + $0x8] sm:$0xff]
    %v1272 = vld [vmem:[#allocation23 + $0x10] sm:$0xff]
    %v1273 = vld [vmem:[#allocation23 + $0x18] sm:$0xff]
    %v1274 = vld [vmem:[#allocation23 + $0x20] sm:$0xff]
    %v1275 = vld [vmem:[#allocation23 + $0x28] sm:$0xff]
    %v1276 = vld [vmem:[#allocation23 + $0x30] sm:$0xff]
    %v1277 = vld [vmem:[#allocation23 + $0x38] sm:$0xff]
    %v1278 = vld [vmem:[#allocation23 + $0x40] sm:$0xff]
    %v1279 = vld [vmem:[#allocation23 + $0x48] sm:$0xff]
    %v1280 = vld [vmem:[#allocation23 + $0x50] sm:$0xff]
    %v1281 = vld [vmem:[#allocation23 + $0x58] sm:$0xff]
    %v1282 = vld [vmem:[#allocation23 + $0x60] sm:$0xff]
    %v1283 = vld [vmem:[#allocation23 + $0x68] sm:$0xff]
    %v1284 = vld [vmem:[#allocation23 + $0x70] sm:$0xff]
    %v1285 = vld [vmem:[#allocation23 + $0x78] sm:$0xff]
    %v1286 = vld [vmem:[#allocation23 + $0x80] sm:$0xff]
    %v1287 = vld [vmem:[#allocation23 + $0x88] sm:$0xff]
    %v1288 = vld [vmem:[#allocation23 + $0x90] sm:$0xff]
    %v1289 = vld [vmem:[#allocation23 + $0x98] sm:$0xff]
    %v1290 = vld [vmem:[#allocation23 + $0xa0] sm:$0xff]
    %v1291 = vld [vmem:[#allocation23 + $0xa8] sm:$0xff]
    %v1292 = vld [vmem:[#allocation23 + $0xb0] sm:$0xff]
    %v1293 = vld [vmem:[#allocation23 + $0xb8] sm:$0xff]
    %v1294 = vld [vmem:[#allocation23 + $0xc0] sm:$0xff]
    %v1295 = vld [vmem:[#allocation23 + $0xc8] sm:$0xff]
    %v1296 = vld [vmem:[#allocation23 + $0xd0] sm:$0xff]
    %v1297 = vld [vmem:[#allocation23 + $0xd8] sm:$0xff]
    %v1298 = vld [vmem:[#allocation23 + $0xe0] sm:$0xff]
    %v1299 = vld [vmem:[#allocation23 + $0xe8] sm:$0xff]
    %v1300 = vld [vmem:[#allocation23 + $0xf0] sm:$0xff]
    %v1301 = vld [vmem:[#allocation23 + $0xf8] sm:$0xff]
    %v1302 = vld [vmem:[%s18] sm:$0xf]
    %v1304 = vlaneseq
    %v1305 = vshrl.u32 %v1304, 7
    %v1306 = vsub.s32 0, %v1305
    %v1307 = vrot.slane %v1302, %v1306
    %v1308 = vlaneseq
    %v1309 = vshrl.u32 %v1308, 7
    %v1310 = vsub.s32 1, %v1309
    %v1311 = vrot.slane %v1302, %v1310
    %v1312 = vlaneseq
    %v1313 = vshrl.u32 %v1312, 7
    %v1314 = vsub.s32 2, %v1313
    %v1315 = vrot.slane %v1302, %v1314
    %v1316 = vlaneseq
    %v1317 = vshrl.u32 %v1316, 7
    %v1318 = vsub.s32 3, %v1317
    %v1319 = vrot.slane %v1302, %v1318
    %v1356 = vunpack.c.l.b16 %v1270
    %v1357 = vunpack.c.h.b16 %v1270
    %v1358 = vunpack.c.l.b16 %v1271
    %v1359 = vunpack.c.h.b16 %v1271
    %v1360 = vunpack.c.l.b16 %v1272
    %v1361 = vunpack.c.h.b16 %v1272
    %v1362 = vunpack.c.l.b16 %v1273
    %v1363 = vunpack.c.h.b16 %v1273
    %v1364 = vunpack.c.l.b16 %v1274
    %v1365 = vunpack.c.h.b16 %v1274
    %v1366 = vunpack.c.l.b16 %v1275
    %v1367 = vunpack.c.h.b16 %v1275
    %v1368 = vunpack.c.l.b16 %v1276
    %v1369 = vunpack.c.h.b16 %v1276
    %v1370 = vunpack.c.l.b16 %v1277
    %v1371 = vunpack.c.h.b16 %v1277
    %v1372 = vunpack.c.l.b16 %v1278
    %v1373 = vunpack.c.h.b16 %v1278
    %v1374 = vunpack.c.l.b16 %v1279
    %v1375 = vunpack.c.h.b16 %v1279
    %v1376 = vunpack.c.l.b16 %v1280
    %v1377 = vunpack.c.h.b16 %v1280
    %v1378 = vunpack.c.l.b16 %v1281
    %v1379 = vunpack.c.h.b16 %v1281
    %v1380 = vunpack.c.l.b16 %v1282
    %v1381 = vunpack.c.h.b16 %v1282
    %v1382 = vunpack.c.l.b16 %v1283
    %v1383 = vunpack.c.h.b16 %v1283
    %v1384 = vunpack.c.l.b16 %v1284
    %v1385 = vunpack.c.h.b16 %v1284
    %v1386 = vunpack.c.l.b16 %v1285
    %v1387 = vunpack.c.h.b16 %v1285
    %v1388 = vunpack.c.l.b16 %v1286
    %v1389 = vunpack.c.h.b16 %v1286
    %v1390 = vunpack.c.l.b16 %v1287
    %v1391 = vunpack.c.h.b16 %v1287
    %v1392 = vunpack.c.l.b16 %v1288
    %v1393 = vunpack.c.h.b16 %v1288
    %v1394 = vunpack.c.l.b16 %v1289
    %v1395 = vunpack.c.h.b16 %v1289
    %v1396 = vunpack.c.l.b16 %v1290
    %v1397 = vunpack.c.h.b16 %v1290
    %v1398 = vunpack.c.l.b16 %v1291
    %v1399 = vunpack.c.h.b16 %v1291
    %v1400 = vunpack.c.l.b16 %v1292
    %v1401 = vunpack.c.h.b16 %v1292
    %v1402 = vunpack.c.l.b16 %v1293
    %v1403 = vunpack.c.h.b16 %v1293
    %v1404 = vunpack.c.l.b16 %v1294
    %v1405 = vunpack.c.h.b16 %v1294
    %v1406 = vunpack.c.l.b16 %v1295
    %v1407 = vunpack.c.h.b16 %v1295
    %v1408 = vunpack.c.l.b16 %v1296
    %v1409 = vunpack.c.h.b16 %v1296
    %v1410 = vunpack.c.l.b16 %v1297
    %v1411 = vunpack.c.h.b16 %v1297
    %v1412 = vunpack.c.l.b16 %v1298
    %v1413 = vunpack.c.h.b16 %v1298
    %v1414 = vunpack.c.l.b16 %v1299
    %v1415 = vunpack.c.h.b16 %v1299
    %v1416 = vunpack.c.l.b16 %v1300
    %v1417 = vunpack.c.h.b16 %v1300
    %v1418 = vunpack.c.l.b16 %v1301
    %v1419 = vunpack.c.h.b16 %v1301
    %v1420 = vpack.c.b16 %v1360, %v1356
    %v1421 = vpack.c.b16 %v1361, %v1357
    %v1422 = vpack.c.b16 %v1362, %v1358
    %v1423 = vpack.c.b16 %v1363, %v1359
    %v1424 = vpack.c.b16 %v1368, %v1364
    %v1425 = vpack.c.b16 %v1369, %v1365
    %v1426 = vpack.c.b16 %v1370, %v1366
    %v1427 = vpack.c.b16 %v1371, %v1367
    %v1428 = vpack.c.b16 %v1376, %v1372
    %v1429 = vpack.c.b16 %v1377, %v1373
    %v1430 = vpack.c.b16 %v1378, %v1374
    %v1431 = vpack.c.b16 %v1379, %v1375
    %v1432 = vpack.c.b16 %v1384, %v1380
    %v1433 = vpack.c.b16 %v1385, %v1381
    %v1434 = vpack.c.b16 %v1386, %v1382
    %v1435 = vpack.c.b16 %v1387, %v1383
    %v1436 = vpack.c.b16 %v1392, %v1388
    %v1437 = vpack.c.b16 %v1393, %v1389
    %v1438 = vpack.c.b16 %v1394, %v1390
    %v1439 = vpack.c.b16 %v1395, %v1391
    %v1440 = vpack.c.b16 %v1400, %v1396
    %v1441 = vpack.c.b16 %v1401, %v1397
    %v1442 = vpack.c.b16 %v1402, %v1398
    %v1443 = vpack.c.b16 %v1403, %v1399
    %v1444 = vpack.c.b16 %v1408, %v1404
    %v1445 = vpack.c.b16 %v1409, %v1405
    %v1446 = vpack.c.b16 %v1410, %v1406
    %v1447 = vpack.c.b16 %v1411, %v1407
    %v1448 = vpack.c.b16 %v1416, %v1412
    %v1449 = vpack.c.b16 %v1417, %v1413
    %v1450 = vpack.c.b16 %v1418, %v1414
    %v1451 = vpack.c.b16 %v1419, %v1415
    %1484 = vmatprep.subr.bf16.mxu0 %v1421
    %1485 = vmatpush1.bf16.msra.mxu0 %v1420
    %1486 = vmatprep.subr.bf16.mxu0 %v1425
    %1487 = vmatpush1.bf16.msra.mxu0 %v1424
    %1488 = vmatprep.subr.bf16.mxu0 %v1429
    %1489 = vmatpush1.bf16.msra.mxu0 %v1428
    %1490 = vmatprep.subr.bf16.mxu0 %v1433
    %1491 = vmatpush1.bf16.msra.mxu0 %v1432
    %1492 = vmatprep.subr.bf16.mxu0 %v1437
    %1493 = vmatpush1.bf16.msra.mxu0 %v1436
    %1494 = vmatprep.subr.bf16.mxu0 %v1441
    %1495 = vmatpush1.bf16.msra.mxu0 %v1440
    %1496 = vmatprep.subr.bf16.mxu0 %v1445
    %1497 = vmatpush1.bf16.msra.mxu0 %v1444
    %1498 = vmatprep.subr.bf16.mxu0 %v1449
    %1499 = vmatpush1.bf16.msra.mxu0 %v1448
    %1500 = vmatprep.subr.bf16.mxu0 0
    %1501 = vmatpush1.bf16.msra.mxu0 0
    %1502 = vmatprep.subr.bf16.mxu0 0
    %1503 = vmatpush1.bf16.msra.mxu0 0
    %1504 = vmatprep.subr.bf16.mxu0 0
    %1505 = vmatpush1.bf16.msra.mxu0 0
    %1506 = vmatprep.subr.bf16.mxu0 0
    %1507 = vmatpush1.bf16.msra.mxu0 0
    %1508 = vmatprep.subr.bf16.mxu0 0
    %1509 = vmatpush1.bf16.msra.mxu0 0
    %1510 = vmatprep.subr.bf16.mxu0 0
    %1511 = vmatpush1.bf16.msra.mxu0 0
    %1512 = vmatprep.subr.bf16.mxu0 0
    %1513 = vmatpush1.bf16.msra.mxu0 0
    %1514 = vmatprep.subr.bf16.mxu0 0
    %1515 = vmatpush1.bf16.msra.mxu0 0
    %1516 = vmatprep.mubr.bf16.mxu0 0
    %1517 = vmatmul.mubr.bf16.gmra.mrb[0].mxu0 %v1269
    %v1518 = vpop.f32.mrb[0].mxu0
    %v1519 = vadd.f32 %v1307, %v1518
    %v1520 = vpop.f32.mrb[0].mxu0
    %v1521 = vadd.f32 %v1311, %v1520
    %v1522 = vpop.f32.mrb[0].mxu0
    %v1523 = vadd.f32 %v1307, %v1522
    %v1524 = vpop.f32.mrb[0].mxu0
    %v1525 = vadd.f32 %v1311, %v1524
    %1526 = vdwg.mxu0
    %1527 = vmatprep.subr.bf16.mxu0 %v1423
    %1528 = vmatpush1.bf16.msra.mxu0 %v1422
    %1529 = vmatprep.subr.bf16.mxu0 %v1427
    %1530 = vmatpush1.bf16.msra.mxu0 %v1426
    %1531 = vmatprep.subr.bf16.mxu0 %v1431
    %1532 = vmatpush1.bf16.msra.mxu0 %v1430
    %1533 = vmatprep.subr.bf16.mxu0 %v1435
    %1534 = vmatpush1.bf16.msra.mxu0 %v1434
    %1535 = vmatprep.subr.bf16.mxu0 %v1439
    %1536 = vmatpush1.bf16.msra.mxu0 %v1438
    %1537 = vmatprep.subr.bf16.mxu0 %v1443
    %1538 = vmatpush1.bf16.msra.mxu0 %v1442
    %1539 = vmatprep.subr.bf16.mxu0 %v1447
    %1540 = vmatpush1.bf16.msra.mxu0 %v1446
    %1541 = vmatprep.subr.bf16.mxu0 %v1451
    %1542 = vmatpush1.bf16.msra.mxu0 %v1450
    %1543 = vmatprep.subr.bf16.mxu0 0
    %1544 = vmatpush1.bf16.msra.mxu0 0
    %1545 = vmatprep.subr.bf16.mxu0 0
    %1546 = vmatpush1.bf16.msra.mxu0 0
    %1547 = vmatprep.subr.bf16.mxu0 0
    %1548 = vmatpush1.bf16.msra.mxu0 0
    %1549 = vmatprep.subr.bf16.mxu0 0
    %1550 = vmatpush1.bf16.msra.mxu0 0
    %1551 = vmatprep.subr.bf16.mxu0 0
    %1552 = vmatpush1.bf16.msra.mxu0 0
    %1553 = vmatprep.subr.bf16.mxu0 0
    %1554 = vmatpush1.bf16.msra.mxu0 0
    %1555 = vmatprep.subr.bf16.mxu0 0
    %1556 = vmatpush1.bf16.msra.mxu0 0
    %1557 = vmatprep.subr.bf16.mxu0 0
    %1558 = vmatpush1.bf16.msra.mxu0 0
    %1559 = vmatprep.mubr.bf16.mxu0 0
    %1560 = vmatmul.mubr.bf16.gmra.mrb[0].mxu0 %v1269
    %v1561 = vpop.f32.mrb[0].mxu0
    %v1562 = vadd.f32 %v1315, %v1561
    %v1563 = vpop.f32.mrb[0].mxu0
    %v1564 = vadd.f32 %v1319, %v1563
    %v1565 = vpop.f32.mrb[0].mxu0
    %v1566 = vadd.f32 %v1315, %v1565
    %v1567 = vpop.f32.mrb[0].mxu0
    %v1568 = vadd.f32 %v1319, %v1567
    %1569 = vdwg.mxu0
    %v1570 = vmul.f32 %v1519, 0.5
    %v1571 = vmul.f32 %v1521, 0.5
    %v1572 = vmul.f32 %v1562, 0.5
    %v1573 = vmul.f32 %v1564, 0.5
    %v1574 = vmul.f32 %v1523, 0.5
    %v1575 = vmul.f32 %v1525, 0.5
    %v1576 = vmul.f32 %v1566, 0.5
    %v1577 = vmul.f32 %v1568, 0.5
    %v1578 = vmul.f32 %v1519, 0.70710677
    %v1579 = vmul.f32 %v1521, 0.70710677
    %v1580 = vmul.f32 %v1562, 0.70710677
    %v1581 = vmul.f32 %v1564, 0.70710677
    %v1582 = vmul.f32 %v1523, 0.70710677
    %v1583 = vmul.f32 %v1525, 0.70710677
    %v1584 = vmul.f32 %v1566, 0.70710677
    %v1585 = vmul.f32 %v1568, 0.70710677
    %vm1586 = vcmp.ge.f32.partialorder %v1578, 0.0
    %vm1587 = vcmp.ge.f32.partialorder %v1579, 0.0
    %vm1588 = vcmp.ge.f32.partialorder %v1580, 0.0
    %vm1589 = vcmp.ge.f32.partialorder %v1581, 0.0
    %vm1590 = vcmp.ge.f32.partialorder %v1582, 0.0
    %vm1591 = vcmp.ge.f32.partialorder %v1583, 0.0
    %vm1592 = vcmp.ge.f32.partialorder %v1584, 0.0
    %vm1593 = vcmp.ge.f32.partialorder %v1585, 0.0
    %v1594 = vsel %vm1586, 1.0, -1.0
    %v1595 = vsel %vm1587, 1.0, -1.0
    %v1596 = vsel %vm1588, 1.0, -1.0
    %v1597 = vsel %vm1589, 1.0, -1.0
    %v1598 = vsel %vm1590, 1.0, -1.0
    %v1599 = vsel %vm1591, 1.0, -1.0
    %v1600 = vsel %vm1592, 1.0, -1.0
    %v1601 = vsel %vm1593, 1.0, -1.0
    %v1602 = vand.u32 2147483647, %v1578
    %v1603 = vand.u32 2147483647, %v1579
    %v1604 = vand.u32 2147483647, %v1580
    %v1605 = vand.u32 2147483647, %v1581
    %v1606 = vand.u32 2147483647, %v1582
    %v1607 = vand.u32 2147483647, %v1583
    %v1608 = vand.u32 2147483647, %v1584
    %v1609 = vand.u32 2147483647, %v1585
    %v1610 = vmul.f32 %v1602, 0.3275911
    %v1611 = vmul.f32 %v1603, 0.3275911
    %v1612 = vmul.f32 %v1604, 0.3275911
    %v1613 = vmul.f32 %v1605, 0.3275911
    %v1614 = vmul.f32 %v1606, 0.3275911
    %v1615 = vmul.f32 %v1607, 0.3275911
    %v1616 = vmul.f32 %v1608, 0.3275911
    %v1617 = vmul.f32 %v1609, 0.3275911
    %v1618 = vadd.f32 %v1610, 1.0
    %v1619 = vadd.f32 %v1611, 1.0
    %v1620 = vadd.f32 %v1612, 1.0
    %v1621 = vadd.f32 %v1613, 1.0
    %v1622 = vadd.f32 %v1614, 1.0
    %v1623 = vadd.f32 %v1615, 1.0
    %v1624 = vadd.f32 %v1616, 1.0
    %v1625 = vadd.f32 %v1617, 1.0
    %v1626 = vrcp.pop %v1618
    %v1627 = vmul.f32 1.0, %v1626
    %v1628 = vrcp.pop %v1619
    %v1629 = vmul.f32 1.0, %v1628
    %v1630 = vrcp.pop %v1620
    %v1631 = vmul.f32 1.0, %v1630
    %v1632 = vrcp.pop %v1621
    %v1633 = vmul.f32 1.0, %v1632
    %v1634 = vrcp.pop %v1622
    %v1635 = vmul.f32 1.0, %v1634
    %v1636 = vrcp.pop %v1623
    %v1637 = vmul.f32 1.0, %v1636
    %v1638 = vrcp.pop %v1624
    %v1639 = vmul.f32 1.0, %v1638
    %v1640 = vrcp.pop %v1625
    %v1641 = vmul.f32 1.0, %v1640
    %v1642 = vmul.f32 %v1627, 1.0614054
    %v1643 = vmul.f32 %v1629, 1.0614054
    %v1644 = vmul.f32 %v1631, 1.0614054
    %v1645 = vmul.f32 %v1633, 1.0614054
    %v1646 = vmul.f32 %v1635, 1.0614054
    %v1647 = vmul.f32 %v1637, 1.0614054
    %v1648 = vmul.f32 %v1639, 1.0614054
    %v1649 = vmul.f32 %v1641, 1.0614054
    %v1650 = vadd.f32 %v1642, -1.4531521
    %v1651 = vadd.f32 %v1643, -1.4531521
    %v1652 = vadd.f32 %v1644, -1.4531521
    %v1653 = vadd.f32 %v1645, -1.4531521
    %v1654 = vadd.f32 %v1646, -1.4531521
    %v1655 = vadd.f32 %v1647, -1.4531521
    %v1656 = vadd.f32 %v1648, -1.4531521
    %v1657 = vadd.f32 %v1649, -1.4531521
    %v1658 = vmul.f32 %v1650, %v1627
    %v1659 = vmul.f32 %v1651, %v1629
    %v1660 = vmul.f32 %v1652, %v1631
    %v1661 = vmul.f32 %v1653, %v1633
    %v1662 = vmul.f32 %v1654, %v1635
    %v1663 = vmul.f32 %v1655, %v1637
    %v1664 = vmul.f32 %v1656, %v1639
    %v1665 = vmul.f32 %v1657, %v1641
    %v1666 = vadd.f32 %v1658, 1.4214138
    %v1667 = vadd.f32 %v1659, 1.4214138
    %v1668 = vadd.f32 %v1660, 1.4214138
    %v1669 = vadd.f32 %v1661, 1.4214138
    %v1670 = vadd.f32 %v1662, 1.4214138
    %v1671 = vadd.f32 %v1663, 1.4214138
    %v1672 = vadd.f32 %v1664, 1.4214138
    %v1673 = vadd.f32 %v1665, 1.4214138
    %v1674 = vmul.f32 %v1666, %v1627
    %v1675 = vmul.f32 %v1667, %v1629
    %v1676 = vmul.f32 %v1668, %v1631
    %v1677 = vmul.f32 %v1669, %v1633
    %v1678 = vmul.f32 %v1670, %v1635
    %v1679 = vmul.f32 %v1671, %v1637
    %v1680 = vmul.f32 %v1672, %v1639
    %v1681 = vmul.f32 %v1673, %v1641
    %v1682 = vadd.f32 %v1674, -0.28449672
    %v1683 = vadd.f32 %v1675, -0.28449672
    %v1684 = vadd.f32 %v1676, -0.28449672
    %v1685 = vadd.f32 %v1677, -0.28449672
    %v1686 = vadd.f32 %v1678, -0.28449672
    %v1687 = vadd.f32 %v1679, -0.28449672
    %v1688 = vadd.f32 %v1680, -0.28449672
    %v1689 = vadd.f32 %v1681, -0.28449672
    %v1690 = vmul.f32 %v1682, %v1627
    %v1691 = vmul.f32 %v1683, %v1629
    %v1692 = vmul.f32 %v1684, %v1631
    %v1693 = vmul.f32 %v1685, %v1633
    %v1694 = vmul.f32 %v1686, %v1635
    %v1695 = vmul.f32 %v1687, %v1637
    %v1696 = vmul.f32 %v1688, %v1639
    %v1697 = vmul.f32 %v1689, %v1641
    %v1698 = vadd.f32 %v1690, 0.2548296
    %v1699 = vadd.f32 %v1691, 0.2548296
    %v1700 = vadd.f32 %v1692, 0.2548296
    %v1701 = vadd.f32 %v1693, 0.2548296
    %v1702 = vadd.f32 %v1694, 0.2548296
    %v1703 = vadd.f32 %v1695, 0.2548296
    %v1704 = vadd.f32 %v1696, 0.2548296
    %v1705 = vadd.f32 %v1697, 0.2548296
    %v1706 = vmul.f32 %v1698, %v1627
    %v1707 = vmul.f32 %v1699, %v1629
    %v1708 = vmul.f32 %v1700, %v1631
    %v1709 = vmul.f32 %v1701, %v1633
    %v1710 = vmul.f32 %v1702, %v1635
    %v1711 = vmul.f32 %v1703, %v1637
    %v1712 = vmul.f32 %v1704, %v1639
    %v1713 = vmul.f32 %v1705, %v1641
    %v1714 = vsub.f32 0.0, %v1602
    %v1715 = vsub.f32 0.0, %v1603
    %v1716 = vsub.f32 0.0, %v1604
    %v1717 = vsub.f32 0.0, %v1605
    %v1718 = vsub.f32 0.0, %v1606
    %v1719 = vsub.f32 0.0, %v1607
    %v1720 = vsub.f32 0.0, %v1608
    %v1721 = vsub.f32 0.0, %v1609
    %v1722 = vmul.f32 %v1714, %v1602
    %v1723 = vmul.f32 %v1715, %v1603
    %v1724 = vmul.f32 %v1716, %v1604
    %v1725 = vmul.f32 %v1717, %v1605
    %v1726 = vmul.f32 %v1718, %v1606
    %v1727 = vmul.f32 %v1719, %v1607
    %v1728 = vmul.f32 %v1720, %v1608
    %v1729 = vmul.f32 %v1721, %v1609
    %v1730 = vmul.f32 %v1722, 1.442695
    %v1731 = vpow.pop %v1730
    %v1732 = vmul.f32 %v1723, 1.442695
    %v1733 = vpow.pop %v1732
    %v1734 = vmul.f32 %v1724, 1.442695
    %v1735 = vpow.pop %v1734
    %v1736 = vmul.f32 %v1725, 1.442695
    %v1737 = vpow.pop %v1736
    %v1738 = vmul.f32 %v1726, 1.442695
    %v1739 = vpow.pop %v1738
    %v1740 = vmul.f32 %v1727, 1.442695
    %v1741 = vpow.pop %v1740
    %v1742 = vmul.f32 %v1728, 1.442695
    %v1743 = vpow.pop %v1742
    %v1744 = vmul.f32 %v1729, 1.442695
    %v1745 = vpow.pop %v1744
    %v1746 = vmul.f32 %v1706, %v1731
    %v1747 = vmul.f32 %v1707, %v1733
    %v1748 = vmul.f32 %v1708, %v1735
    %v1749 = vmul.f32 %v1709, %v1737
    %v1750 = vmul.f32 %v1710, %v1739
    %v1751 = vmul.f32 %v1711, %v1741
    %v1752 = vmul.f32 %v1712, %v1743
    %v1753 = vmul.f32 %v1713, %v1745
    %v1754 = vsub.f32 1.0, %v1746
    %v1755 = vsub.f32 1.0, %v1747
    %v1756 = vsub.f32 1.0, %v1748
    %v1757 = vsub.f32 1.0, %v1749
    %v1758 = vsub.f32 1.0, %v1750
    %v1759 = vsub.f32 1.0, %v1751
    %v1760 = vsub.f32 1.0, %v1752
    %v1761 = vsub.f32 1.0, %v1753
    %v1762 = vmul.f32 %v1594, %v1754
    %v1763 = vmul.f32 %v1595, %v1755
    %v1764 = vmul.f32 %v1596, %v1756
    %v1765 = vmul.f32 %v1597, %v1757
    %v1766 = vmul.f32 %v1598, %v1758
    %v1767 = vmul.f32 %v1599, %v1759
    %v1768 = vmul.f32 %v1600, %v1760
    %v1769 = vmul.f32 %v1601, %v1761
    %v1770 = vadd.f32 %v1762, 1.0
    %v1771 = vadd.f32 %v1763, 1.0
    %v1772 = vadd.f32 %v1764, 1.0
    %v1773 = vadd.f32 %v1765, 1.0
    %v1774 = vadd.f32 %v1766, 1.0
    %v1775 = vadd.f32 %v1767, 1.0
    %v1776 = vadd.f32 %v1768, 1.0
    %v1777 = vadd.f32 %v1769, 1.0
    %v1778 = vmul.f32 %v1570, %v1770
    %v1779 = vmul.f32 %v1571, %v1771
    %v1780 = vmul.f32 %v1572, %v1772
    %v1781 = vmul.f32 %v1573, %v1773
    %v1782 = vmul.f32 %v1574, %v1774
    %v1783 = vmul.f32 %v1575, %v1775
    %v1784 = vmul.f32 %v1576, %v1776
    %v1785 = vmul.f32 %v1577, %v1777
    %v1786 = vpack.c.bf16 %v1782, %v1778
    %v1787 = vpack.c.bf16 %v1783, %v1779
    %v1788 = vpack.c.bf16 %v1784, %v1780
    %v1789 = vpack.c.bf16 %v1785, %v1781
    %v1790 = vld [vmem:[#allocation25] sm:$0xf]
    %v1791 = vld [vmem:[#allocation25 + $0x4] sm:$0xf]
    %v1792 = vld [vmem:[#allocation25 + $0x8] sm:$0xf]
    %v1793 = vld [vmem:[#allocation25 + $0xc] sm:$0xf]
    %v1794 = vld [vmem:[#allocation25 + $0x10] sm:$0xf]
    %v1795 = vld [vmem:[#allocation25 + $0x14] sm:$0xf]
    %v1796 = vld [vmem:[#allocation25 + $0x18] sm:$0xf]
    %v1797 = vld [vmem:[#allocation25 + $0x1c] sm:$0xf]
    %v1798 = vld [vmem:[#allocation25 + $0x20] sm:$0xf]
    %v1799 = vld [vmem:[#allocation25 + $0x24] sm:$0xf]
    %v1800 = vld [vmem:[#allocation25 + $0x28] sm:$0xf]
    %v1801 = vld [vmem:[#allocation25 + $0x2c] sm:$0xf]
    %v1802 = vld [vmem:[#allocation25 + $0x30] sm:$0xf]
    %v1803 = vld [vmem:[#allocation25 + $0x34] sm:$0xf]
    %v1804 = vld [vmem:[#allocation25 + $0x38] sm:$0xf]
    %v1805 = vld [vmem:[#allocation25 + $0x3c] sm:$0xf]
    %v1806 = vld [vmem:[#allocation25 + $0x40] sm:$0xf]
    %v1807 = vld [vmem:[#allocation25 + $0x44] sm:$0xf]
    %v1808 = vld [vmem:[#allocation25 + $0x48] sm:$0xf]
    %v1809 = vld [vmem:[#allocation25 + $0x4c] sm:$0xf]
    %v1810 = vld [vmem:[#allocation25 + $0x50] sm:$0xf]
    %v1811 = vld [vmem:[#allocation25 + $0x54] sm:$0xf]
    %v1812 = vld [vmem:[#allocation25 + $0x58] sm:$0xf]
    %v1813 = vld [vmem:[#allocation25 + $0x5c] sm:$0xf]
    %v1814 = vld [vmem:[#allocation25 + $0x60] sm:$0xf]
    %v1815 = vld [vmem:[#allocation25 + $0x64] sm:$0xf]
    %v1816 = vld [vmem:[#allocation25 + $0x68] sm:$0xf]
    %v1817 = vld [vmem:[#allocation25 + $0x6c] sm:$0xf]
    %v1818 = vld [vmem:[#allocation25 + $0x70] sm:$0xf]
    %v1819 = vld [vmem:[#allocation25 + $0x74] sm:$0xf]
    %v1820 = vld [vmem:[#allocation25 + $0x78] sm:$0xf]
    %v1821 = vld [vmem:[#allocation25 + $0x7c] sm:$0xf]
    %v1822 = vld [vmem:[#allocation25 + $0x80] sm:$0xf]
    %v1823 = vld [vmem:[#allocation25 + $0x84] sm:$0xf]
    %v1824 = vld [vmem:[#allocation25 + $0x88] sm:$0xf]
    %v1825 = vld [vmem:[#allocation25 + $0x8c] sm:$0xf]
    %v1826 = vld [vmem:[#allocation25 + $0x90] sm:$0xf]
    %v1827 = vld [vmem:[#allocation25 + $0x94] sm:$0xf]
    %v1828 = vld [vmem:[#allocation25 + $0x98] sm:$0xf]
    %v1829 = vld [vmem:[#allocation25 + $0x9c] sm:$0xf]
    %v1830 = vld [vmem:[#allocation25 + $0xa0] sm:$0xf]
    %v1831 = vld [vmem:[#allocation25 + $0xa4] sm:$0xf]
    %v1832 = vld [vmem:[#allocation25 + $0xa8] sm:$0xf]
    %v1833 = vld [vmem:[#allocation25 + $0xac] sm:$0xf]
    %v1834 = vld [vmem:[#allocation25 + $0xb0] sm:$0xf]
    %v1835 = vld [vmem:[#allocation25 + $0xb4] sm:$0xf]
    %v1836 = vld [vmem:[#allocation25 + $0xb8] sm:$0xf]
    %v1837 = vld [vmem:[#allocation25 + $0xbc] sm:$0xf]
    %v1838 = vld [vmem:[#allocation25 + $0xc0] sm:$0xf]
    %v1839 = vld [vmem:[#allocation25 + $0xc4] sm:$0xf]
    %v1840 = vld [vmem:[#allocation25 + $0xc8] sm:$0xf]
    %v1841 = vld [vmem:[#allocation25 + $0xcc] sm:$0xf]
    %v1842 = vld [vmem:[#allocation25 + $0xd0] sm:$0xf]
    %v1843 = vld [vmem:[#allocation25 + $0xd4] sm:$0xf]
    %v1844 = vld [vmem:[#allocation25 + $0xd8] sm:$0xf]
    %v1845 = vld [vmem:[#allocation25 + $0xdc] sm:$0xf]
    %v1846 = vld [vmem:[#allocation25 + $0xe0] sm:$0xf]
    %v1847 = vld [vmem:[#allocation25 + $0xe4] sm:$0xf]
    %v1848 = vld [vmem:[#allocation25 + $0xe8] sm:$0xf]
    %v1849 = vld [vmem:[#allocation25 + $0xec] sm:$0xf]
    %v1850 = vld [vmem:[#allocation25 + $0xf0] sm:$0xf]
    %v1851 = vld [vmem:[#allocation25 + $0xf4] sm:$0xf]
    %v1852 = vld [vmem:[#allocation25 + $0xf8] sm:$0xf]
    %v1853 = vld [vmem:[#allocation25 + $0xfc] sm:$0xf]
    %v1854 = vld [vmem:[#allocation26] sm:$0x1]
    %v1856 = vlaneseq
    %v1857 = vshrl.u32 %v1856, 7
    %v1858 = vsub.s32 0, %v1857
    %v1859 = vrot.slane %v1854, %v1858
    %v1925 = vunpack.c.l.b16 %v1790
    %v1926 = vunpack.c.l.b16 %v1791
    %v1927 = vunpack.c.l.b16 %v1792
    %v1928 = vunpack.c.l.b16 %v1793
    %v1929 = vunpack.c.l.b16 %v1794
    %v1930 = vunpack.c.l.b16 %v1795
    %v1931 = vunpack.c.l.b16 %v1796
    %v1932 = vunpack.c.l.b16 %v1797
    %v1933 = vunpack.c.l.b16 %v1798
    %v1934 = vunpack.c.l.b16 %v1799
    %v1935 = vunpack.c.l.b16 %v1800
    %v1936 = vunpack.c.l.b16 %v1801
    %v1937 = vunpack.c.l.b16 %v1802
    %v1938 = vunpack.c.l.b16 %v1803
    %v1939 = vunpack.c.l.b16 %v1804
    %v1940 = vunpack.c.l.b16 %v1805
    %v1941 = vunpack.c.l.b16 %v1806
    %v1942 = vunpack.c.l.b16 %v1807
    %v1943 = vunpack.c.l.b16 %v1808
    %v1944 = vunpack.c.l.b16 %v1809
    %v1945 = vunpack.c.l.b16 %v1810
    %v1946 = vunpack.c.l.b16 %v1811
    %v1947 = vunpack.c.l.b16 %v1812
    %v1948 = vunpack.c.l.b16 %v1813
    %v1949 = vunpack.c.l.b16 %v1814
    %v1950 = vunpack.c.l.b16 %v1815
    %v1951 = vunpack.c.l.b16 %v1816
    %v1952 = vunpack.c.l.b16 %v1817
    %v1953 = vunpack.c.l.b16 %v1818
    %v1954 = vunpack.c.l.b16 %v1819
    %v1955 = vunpack.c.l.b16 %v1820
    %v1956 = vunpack.c.l.b16 %v1821
    %v1957 = vunpack.c.l.b16 %v1822
    %v1958 = vunpack.c.l.b16 %v1823
    %v1959 = vunpack.c.l.b16 %v1824
    %v1960 = vunpack.c.l.b16 %v1825
    %v1961 = vunpack.c.l.b16 %v1826
    %v1962 = vunpack.c.l.b16 %v1827
    %v1963 = vunpack.c.l.b16 %v1828
    %v1964 = vunpack.c.l.b16 %v1829
    %v1965 = vunpack.c.l.b16 %v1830
    %v1966 = vunpack.c.l.b16 %v1831
    %v1967 = vunpack.c.l.b16 %v1832
    %v1968 = vunpack.c.l.b16 %v1833
    %v1969 = vunpack.c.l.b16 %v1834
    %v1970 = vunpack.c.l.b16 %v1835
    %v1971 = vunpack.c.l.b16 %v1836
    %v1972 = vunpack.c.l.b16 %v1837
    %v1973 = vunpack.c.l.b16 %v1838
    %v1974 = vunpack.c.l.b16 %v1839
    %v1975 = vunpack.c.l.b16 %v1840
    %v1976 = vunpack.c.l.b16 %v1841
    %v1977 = vunpack.c.l.b16 %v1842
    %v1978 = vunpack.c.l.b16 %v1843
    %v1979 = vunpack.c.l.b16 %v1844
    %v1980 = vunpack.c.l.b16 %v1845
    %v1981 = vunpack.c.l.b16 %v1846
    %v1982 = vunpack.c.l.b16 %v1847
    %v1983 = vunpack.c.l.b16 %v1848
    %v1984 = vunpack.c.l.b16 %v1849
    %v1985 = vunpack.c.l.b16 %v1850
    %v1986 = vunpack.c.l.b16 %v1851
    %v1987 = vunpack.c.l.b16 %v1852
    %v1988 = vunpack.c.l.b16 %v1853
    %v1989 = vpack.c.b16 %v1926, %v1925
    %v1990 = vpack.c.b16 %v1928, %v1927
    %v1991 = vpack.c.b16 %v1930, %v1929
    %v1992 = vpack.c.b16 %v1932, %v1931
    %v1993 = vpack.c.b16 %v1934, %v1933
    %v1994 = vpack.c.b16 %v1936, %v1935
    %v1995 = vpack.c.b16 %v1938, %v1937
    %v1996 = vpack.c.b16 %v1940, %v1939
    %v1997 = vpack.c.b16 %v1942, %v1941
    %v1998 = vpack.c.b16 %v1944, %v1943
    %v1999 = vpack.c.b16 %v1946, %v1945
    %v2000 = vpack.c.b16 %v1948, %v1947
    %v2001 = vpack.c.b16 %v1950, %v1949
    %v2002 = vpack.c.b16 %v1952, %v1951
    %v2003 = vpack.c.b16 %v1954, %v1953
    %v2004 = vpack.c.b16 %v1956, %v1955
    %v2005 = vpack.c.b16 %v1958, %v1957
    %v2006 = vpack.c.b16 %v1960, %v1959
    %v2007 = vpack.c.b16 %v1962, %v1961
    %v2008 = vpack.c.b16 %v1964, %v1963
    %v2009 = vpack.c.b16 %v1966, %v1965
    %v2010 = vpack.c.b16 %v1968, %v1967
    %v2011 = vpack.c.b16 %v1970, %v1969
    %v2012 = vpack.c.b16 %v1972, %v1971
    %v2013 = vpack.c.b16 %v1974, %v1973
    %v2014 = vpack.c.b16 %v1976, %v1975
    %v2015 = vpack.c.b16 %v1978, %v1977
    %v2016 = vpack.c.b16 %v1980, %v1979
    %v2017 = vpack.c.b16 %v1982, %v1981
    %v2018 = vpack.c.b16 %v1984, %v1983
    %v2019 = vpack.c.b16 %v1986, %v1985
    %v2020 = vpack.c.b16 %v1988, %v1987
    %2053 = vmatprep.subr.bf16.mxu0 0
    %2054 = vmatpush1.bf16.msra.mxu0 %v1989
    %2055 = vmatprep.subr.bf16.mxu0 0
    %2056 = vmatpush1.bf16.msra.mxu0 %v1990
    %2057 = vmatprep.subr.bf16.mxu0 0
    %2058 = vmatpush1.bf16.msra.mxu0 %v1991
    %2059 = vmatprep.subr.bf16.mxu0 0
    %2060 = vmatpush1.bf16.msra.mxu0 %v1992
    %2061 = vmatprep.subr.bf16.mxu0 0
    %2062 = vmatpush1.bf16.msra.mxu0 %v1993
    %2063 = vmatprep.subr.bf16.mxu0 0
    %2064 = vmatpush1.bf16.msra.mxu0 %v1994
    %2065 = vmatprep.subr.bf16.mxu0 0
    %2066 = vmatpush1.bf16.msra.mxu0 %v1995
    %2067 = vmatprep.subr.bf16.mxu0 0
    %2068 = vmatpush1.bf16.msra.mxu0 %v1996
    %2069 = vmatprep.subr.bf16.mxu0 0
    %2070 = vmatpush1.bf16.msra.mxu0 %v1997
    %2071 = vmatprep.subr.bf16.mxu0 0
    %2072 = vmatpush1.bf16.msra.mxu0 %v1998
    %2073 = vmatprep.subr.bf16.mxu0 0
    %2074 = vmatpush1.bf16.msra.mxu0 %v1999
    %2075 = vmatprep.subr.bf16.mxu0 0
    %2076 = vmatpush1.bf16.msra.mxu0 %v2000
    %2077 = vmatprep.subr.bf16.mxu0 0
    %2078 = vmatpush1.bf16.msra.mxu0 %v2001
    %2079 = vmatprep.subr.bf16.mxu0 0
    %2080 = vmatpush1.bf16.msra.mxu0 %v2002
    %2081 = vmatprep.subr.bf16.mxu0 0
    %2082 = vmatpush1.bf16.msra.mxu0 %v2003
    %2083 = vmatprep.subr.bf16.mxu0 0
    %2084 = vmatpush1.bf16.msra.mxu0 %v2004
    %2085 = vmatprep.mubr.bf16.mxu0 %v1787
    %2086 = vmatmul.mubr.bf16.gmra.mrb[0].mxu0 %v1786
    %v2087 = vpop.f32.mrb[0].mxu0
    %v2088 = vadd.f32 %v1859, %v2087
    %v2089 = vpop.f32.mrb[0].mxu0
    %v2090 = vpop.f32.mrb[0].mxu0
    %v2091 = vadd.f32 %v1859, %v2090
    %v2092 = vpop.f32.mrb[0].mxu0
    %2093 = vdwg.mxu0
    %2094 = vmatprep.subr.bf16.mxu0 0
    %2095 = vmatpush1.bf16.msra.mxu0 %v2005
    %2096 = vmatprep.subr.bf16.mxu0 0
    %2097 = vmatpush1.bf16.msra.mxu0 %v2006
    %2098 = vmatprep.subr.bf16.mxu0 0
    %2099 = vmatpush1.bf16.msra.mxu0 %v2007
    %2100 = vmatprep.subr.bf16.mxu0 0
    %2101 = vmatpush1.bf16.msra.mxu0 %v2008
    %2102 = vmatprep.subr.bf16.mxu0 0
    %2103 = vmatpush1.bf16.msra.mxu0 %v2009
    %2104 = vmatprep.subr.bf16.mxu0 0
    %2105 = vmatpush1.bf16.msra.mxu0 %v2010
    %2106 = vmatprep.subr.bf16.mxu0 0
    %2107 = vmatpush1.bf16.msra.mxu0 %v2011
    %2108 = vmatprep.subr.bf16.mxu0 0
    %2109 = vmatpush1.bf16.msra.mxu0 %v2012
    %2110 = vmatprep.subr.bf16.mxu0 0
    %2111 = vmatpush1.bf16.msra.mxu0 %v2013
    %2112 = vmatprep.subr.bf16.mxu0 0
    %2113 = vmatpush1.bf16.msra.mxu0 %v2014
    %2114 = vmatprep.subr.bf16.mxu0 0
    %2115 = vmatpush1.bf16.msra.mxu0 %v2015
    %2116 = vmatprep.subr.bf16.mxu0 0
    %2117 = vmatpush1.bf16.msra.mxu0 %v2016
    %2118 = vmatprep.subr.bf16.mxu0 0
    %2119 = vmatpush1.bf16.msra.mxu0 %v2017
    %2120 = vmatprep.subr.bf16.mxu0 0
    %2121 = vmatpush1.bf16.msra.mxu0 %v2018
    %2122 = vmatprep.subr.bf16.mxu0 0
    %2123 = vmatpush1.bf16.msra.mxu0 %v2019
    %2124 = vmatprep.subr.bf16.mxu0 0
    %2125 = vmatpush1.bf16.msra.mxu0 %v2020
    %2126 = vmatprep.mubr.bf16.mxu0 %v1789
    %2127 = vmatmul.mubr.bf16.gmra.mrb[0].mxu0 %v1788
    %v2128 = vpop.f32.mrb[0].mxu0
    %v2129 = vadd.f32 %v2088, %v2128
    %v2130 = vpop.f32.mrb[0].mxu0
    %v2131 = vpop.f32.mrb[0].mxu0
    %v2132 = vadd.f32 %v2091, %v2131
    %v2133 = vpop.f32.mrb[0].mxu0
    %2134 = vdwg.mxu0
    %v2135 = vadd.f32 %v1267, %v2129
    %v2136 = vadd.f32 %v1268, %v2132
    %s2137 = scalar_lea.vmem [#allocation20], 1
    %v2138 = vld [vmem:[%s2137] sm:$0x1]
    %s2139 = scalar_lea.vmem [#allocation22], 1
    %v2140 = vld [vmem:[%s2139] sm:$0x1]
    %2141 = vadd.xlane.f32.xlu0 %v2135
    %v2142 = vpop.xlane.xlu0 %2141
    %2143 = vadd.xlane.f32.xlu0 %v2136
    %v2144 = vpop.xlane.xlu0 %2143
    %v2145 = vmul.f32 %v2142, %v1234
    %v2146 = vmul.f32 %v2144, %v1234
    %v2147 = vsub.f32 %v2135, %v2145
    %v2148 = vsub.f32 %v2136, %v2146
    %v2149 = vmul.f32 %v2147, %v2147
    %v2150 = vmul.f32 %v2148, %v2148
    %2151 = vadd.xlane.f32.xlu0 %v2149
    %v2152 = vpop.xlane.xlu0 %2151
    %2153 = vadd.xlane.f32.xlu0 %v2150
    %v2154 = vpop.xlane.xlu0 %2153
    %v2155 = vmul.f32 %v2152, %v1234
    %v2156 = vmul.f32 %v2154, %v1234
    %v2157 = vadd.f32 %v2155, 1e-05
    %v2158 = vadd.f32 %v2156, 1e-05
    %v2159 = vrsqrt.pop %v2157
    %v2160 = vrsqrt.pop %v2158
    %v2161 = vmul.f32 %v2147, %v2159
    %v2162 = vmul.f32 %v2148, %v2160
    %v2164 = vlaneseq
    %v2165 = vshrl.u32 %v2164, 7
    %v2166 = vsub.s32 0, %v2165
    %v2167 = vrot.slane %v2138, %v2166
    %v2169 = vmul.f32 %v2161, %v2167
    %v2170 = vmul.f32 %v2162, %v2167
    %v2172 = vlaneseq
    %v2173 = vshrl.u32 %v2172, 7
    %v2174 = vsub.s32 0, %v2173
    %v2175 = vrot.slane %v2140, %v2174
    %v2177 = vadd.f32 %v2169, %v2175
    %v2178 = vadd.f32 %v2170, %v2175
    %s2179 = scalar_lea.vmem [#allocation16], 192
    %v2180 = vld [vmem:[%s2179] sm:$0xff]
    %v2181 = vld [vmem:[%s2179 + $0x8] sm:$0xf]
    %v2182 = vld [vmem:[%s2179 + $0xc] sm:$0xff]
    %v2183 = vld [vmem:[%s2179 + $0x14] sm:$0xf]
    %v2184 = vld [vmem:[%s2179 + $0x18] sm:$0xff]
    %v2185 = vld [vmem:[%s2179 + $0x20] sm:$0xf]
    %v2186 = vld [vmem:[%s2179 + $0x24] sm:$0xff]
    %v2187 = vld [vmem:[%s2179 + $0x2c] sm:$0xf]
    %v2188 = vld [vmem:[%s2179 + $0x30] sm:$0xff]
    %v2189 = vld [vmem:[%s2179 + $0x38] sm:$0xf]
    %v2190 = vld [vmem:[%s2179 + $0x3c] sm:$0xff]
    %v2191 = vld [vmem:[%s2179 + $0x44] sm:$0xf]
    %v2192 = vld [vmem:[%s2179 + $0x48] sm:$0xff]
    %v2193 = vld [vmem:[%s2179 + $0x50] sm:$0xf]
    %v2194 = vld [vmem:[%s2179 + $0x54] sm:$0xff]
    %v2195 = vld [vmem:[%s2179 + $0x5c] sm:$0xf]
    %v2196 = vld [vmem:[%s2179 + $0x60] sm:$0xff]
    %v2197 = vld [vmem:[%s2179 + $0x68] sm:$0xf]
    %v2198 = vld [vmem:[%s2179 + $0x6c] sm:$0xff]
    %v2199 = vld [vmem:[%s2179 + $0x74] sm:$0xf]
    %v2200 = vld [vmem:[%s2179 + $0x78] sm:$0xff]
    %v2201 = vld [vmem:[%s2179 + $0x80] sm:$0xf]
    %v2202 = vld [vmem:[%s2179 + $0x84] sm:$0xff]
    %v2203 = vld [vmem:[%s2179 + $0x8c] sm:$0xf]
    %v2204 = vld [vmem:[%s2179 + $0x90] sm:$0xff]
    %v2205 = vld [vmem:[%s2179 + $0x98] sm:$0xf]
    %v2206 = vld [vmem:[%s2179 + $0x9c] sm:$0xff]
    %v2207 = vld [vmem:[%s2179 + $0xa4] sm:$0xf]
    %v2208 = vld [vmem:[%s2179 + $0xa8] sm:$0xff]
    %v2209 = vld [vmem:[%s2179 + $0xb0] sm:$0xf]
    %v2210 = vld [vmem:[%s2179 + $0xb4] sm:$0xff]
    %v2211 = vld [vmem:[%s2179 + $0xbc] sm:$0xf]
    %s2212 = scalar_lea.vmem [#allocation17], 3
    %v2213 = vld [vmem:[%s2212] sm:$0x7]
    %v2215 = vlaneseq
    %v2216 = vshrl.u32 %v2215, 7
    %v2217 = vsub.s32 0, %v2216
    %v2218 = vrot.slane %v2213, %v2217
    %v2219 = vlaneseq
    %v2220 = vshrl.u32 %v2219, 7
    %v2221 = vsub.s32 1, %v2220
    %v2222 = vrot.slane %v2213, %v2221
    %v2223 = vlaneseq
    %v2224 = vshrl.u32 %v2223, 7
    %v2225 = vsub.s32 2, %v2224
    %v2226 = vrot.slane %v2213, %v2225
    %v2262 = vunpack.c.l.b16 %v2180
    %v2263 = vunpack.c.h.b16 %v2180
    %v2264 = vunpack.c.l.b16 %v2181
    %v2265 = vunpack.c.l.b16 %v2182
    %v2266 = vunpack.c.h.b16 %v2182
    %v2267 = vunpack.c.l.b16 %v2183
    %v2268 = vunpack.c.l.b16 %v2184
    %v2269 = vunpack.c.h.b16 %v2184
    %v2270 = vunpack.c.l.b16 %v2185
    %v2271 = vunpack.c.l.b16 %v2186
    %v2272 = vunpack.c.h.b16 %v2186
    %v2273 = vunpack.c.l.b16 %v2187
    %v2274 = vunpack.c.l.b16 %v2188
    %v2275 = vunpack.c.h.b16 %v2188
    %v2276 = vunpack.c.l.b16 %v2189
    %v2277 = vunpack.c.l.b16 %v2190
    %v2278 = vunpack.c.h.b16 %v2190
    %v2279 = vunpack.c.l.b16 %v2191
    %v2280 = vunpack.c.l.b16 %v2192
    %v2281 = vunpack.c.h.b16 %v2192
    %v2282 = vunpack.c.l.b16 %v2193
    %v2283 = vunpack.c.l.b16 %v2194
    %v2284 = vunpack.c.h.b16 %v2194
    %v2285 = vunpack.c.l.b16 %v2195
    %v2286 = vunpack.c.l.b16 %v2196
    %v2287 = vunpack.c.h.b16 %v2196
    %v2288 = vunpack.c.l.b16 %v2197
    %v2289 = vunpack.c.l.b16 %v2198
    %v2290 = vunpack.c.h.b16 %v2198
    %v2291 = vunpack.c.l.b16 %v2199
    %v2292 = vunpack.c.l.b16 %v2200
    %v2293 = vunpack.c.h.b16 %v2200
    %v2294 = vunpack.c.l.b16 %v2201
    %v2295 = vunpack.c.l.b16 %v2202
    %v2296 = vunpack.c.h.b16 %v2202
    %v2297 = vunpack.c.l.b16 %v2203
    %v2298 = vunpack.c.l.b16 %v2204
    %v2299 = vunpack.c.h.b16 %v2204
    %v2300 = vunpack.c.l.b16 %v2205
    %v2301 = vunpack.c.l.b16 %v2206
    %v2302 = vunpack.c.h.b16 %v2206
    %v2303 = vunpack.c.l.b16 %v2207
    %v2304 = vunpack.c.l.b16 %v2208
    %v2305 = vunpack.c.h.b16 %v2208
    %v2306 = vunpack.c.l.b16 %v2209
    %v2307 = vunpack.c.l.b16 %v2210
    %v2308 = vunpack.c.h.b16 %v2210
    %v2309 = vunpack.c.l.b16 %v2211
    %v2310 = vpack.c.b16 %v2265, %v2262
    %v2311 = vpack.c.b16 %v2266, %v2263
    %v2312 = vpack.c.b16 %v2267, %v2264
    %v2313 = vpack.c.b16 %v2271, %v2268
    %v2314 = vpack.c.b16 %v2272, %v2269
    %v2315 = vpack.c.b16 %v2273, %v2270
    %v2316 = vpack.c.b16 %v2277, %v2274
    %v2317 = vpack.c.b16 %v2278, %v2275
    %v2318 = vpack.c.b16 %v2279, %v2276
    %v2319 = vpack.c.b16 %v2283, %v2280
    %v2320 = vpack.c.b16 %v2284, %v2281
    %v2321 = vpack.c.b16 %v2285, %v2282
    %v2322 = vpack.c.b16 %v2289, %v2286
    %v2323 = vpack.c.b16 %v2290, %v2287
    %v2324 = vpack.c.b16 %v2291, %v2288
    %v2325 = vpack.c.b16 %v2295, %v2292
    %v2326 = vpack.c.b16 %v2296, %v2293
    %v2327 = vpack.c.b16 %v2297, %v2294
    %v2328 = vpack.c.b16 %v2301, %v2298
    %v2329 = vpack.c.b16 %v2302, %v2299
    %v2330 = vpack.c.b16 %v2303, %v2300
    %v2331 = vpack.c.b16 %v2307, %v2304
    %v2332 = vpack.c.b16 %v2308, %v2305
    %v2333 = vpack.c.b16 %v2309, %v2306
    %2358 = vmatprep.subr.bf16.mxu0 %v2311
    %2359 = vmatpush1.bf16.msra.mxu0 %v2310
    %2360 = vmatprep.subr.bf16.mxu0 %v2314
    %2361 = vmatpush1.bf16.msra.mxu0 %v2313
    %2362 = vmatprep.subr.bf16.mxu0 %v2317
    %2363 = vmatpush1.bf16.msra.mxu0 %v2316
    %2364 = vmatprep.subr.bf16.mxu0 %v2320
    %2365 = vmatpush1.bf16.msra.mxu0 %v2319
    %2366 = vmatprep.subr.bf16.mxu0 %v2323
    %2367 = vmatpush1.bf16.msra.mxu0 %v2322
    %2368 = vmatprep.subr.bf16.mxu0 %v2326
    %2369 = vmatpush1.bf16.msra.mxu0 %v2325
    %2370 = vmatprep.subr.bf16.mxu0 %v2329
    %2371 = vmatpush1.bf16.msra.mxu0 %v2328
    %2372 = vmatprep.subr.bf16.mxu0 %v2332
    %2373 = vmatpush1.bf16.msra.mxu0 %v2331
    %2374 = vmatprep.subr.bf16.mxu0 0
    %2375 = vmatpush1.bf16.msra.mxu0 0
    %2376 = vmatprep.subr.bf16.mxu0 0
    %2377 = vmatpush1.bf16.msra.mxu0 0
    %2378 = vmatprep.subr.bf16.mxu0 0
    %2379 = vmatpush1.bf16.msra.mxu0 0
    %2380 = vmatprep.subr.bf16.mxu0 0
    %2381 = vmatpush1.bf16.msra.mxu0 0
    %2382 = vmatprep.subr.bf16.mxu0 0
    %2383 = vmatpush1.bf16.msra.mxu0 0
    %2384 = vmatprep.subr.bf16.mxu0 0
    %2385 = vmatpush1.bf16.msra.mxu0 0
    %2386 = vmatprep.subr.bf16.mxu0 0
    %2387 = vmatpush1.bf16.msra.mxu0 0
    %2388 = vmatprep.subr.bf16.mxu0 0
    %2389 = vmatpush1.bf16.msra.mxu0 0
    %2390 = vmatprep.mubr.bf16.mxu0 0
    %2391 = vmatmul.mubr.bf16.gmra.mrb[0].mxu0 %v585
    %v2392 = vpop.f32.mrb[0].mxu0
    %v2393 = vpop.f32.mrb[0].mxu0
    %v2394 = vadd.f32 %v2222, %v2393
    %v2395 = vpop.f32.mrb[0].mxu0
    %v2396 = vpop.f32.mrb[0].mxu0
    %v2397 = vadd.f32 %v2222, %v2396
    %2398 = vmatprep.mubr.bf16.mxu0 0
    %2399 = vmatmul.mubr.bf16.gmra.mrb[0].mxu0 %v586
    %v2400 = vpop.f32.mrb[0].mxu0
    %v2401 = vadd.f32 %v2218, %v2400
    %v2402 = vpop.f32.mrb[0].mxu0
    %v2403 = vpop.f32.mrb[0].mxu0
    %v2404 = vadd.f32 %v2218, %v2403
    %v2405 = vpop.f32.mrb[0].mxu0
    %2406 = vmatprep.mubr.bf16.mxu0 0
    %2407 = vmatmul.mubr.bf16.gmra.mrb[0].mxu0 %v587
    %v2408 = vpop.f32.mrb[0].mxu0
    %v2409 = vpop.f32.mrb[0].mxu0
    %v2410 = vadd.f32 %v2222, %v2409
    %v2411 = vpop.f32.mrb[0].mxu0
    %v2412 = vpop.f32.mrb[0].mxu0
    %v2413 = vadd.f32 %v2222, %v2412
    %2414 = vdwg.mxu0
    %2415 = vmatprep.subr.bf16.mxu0 0
    %2416 = vmatpush1.bf16.msra.mxu0 %v2312
    %2417 = vmatprep.subr.bf16.mxu0 0
    %2418 = vmatpush1.bf16.msra.mxu0 %v2315
    %2419 = vmatprep.subr.bf16.mxu0 0
    %2420 = vmatpush1.bf16.msra.mxu0 %v2318
    %2421 = vmatprep.subr.bf16.mxu0 0
    %2422 = vmatpush1.bf16.msra.mxu0 %v2321
    %2423 = vmatprep.subr.bf16.mxu0 0
    %2424 = vmatpush1.bf16.msra.mxu0 %v2324
    %2425 = vmatprep.subr.bf16.mxu0 0
    %2426 = vmatpush1.bf16.msra.mxu0 %v2327
    %2427 = vmatprep.subr.bf16.mxu0 0
    %2428 = vmatpush1.bf16.msra.mxu0 %v2330
    %2429 = vmatprep.subr.bf16.mxu0 0
    %2430 = vmatpush1.bf16.msra.mxu0 %v2333
    %2431 = vmatprep.subr.bf16.mxu0 0
    %2432 = vmatpush1.bf16.msra.mxu0 0
    %2433 = vmatprep.subr.bf16.mxu0 0
    %2434 = vmatpush1.bf16.msra.mxu0 0
    %2435 = vmatprep.subr.bf16.mxu0 0
    %2436 = vmatpush1.bf16.msra.mxu0 0
    %2437 = vmatprep.subr.bf16.mxu0 0
    %2438 = vmatpush1.bf16.msra.mxu0 0
    %2439 = vmatprep.subr.bf16.mxu0 0
    %2440 = vmatpush1.bf16.msra.mxu0 0
    %2441 = vmatprep.subr.bf16.mxu0 0
    %2442 = vmatpush1.bf16.msra.mxu0 0
    %2443 = vmatprep.subr.bf16.mxu0 0
    %2444 = vmatpush1.bf16.msra.mxu0 0
    %2445 = vmatprep.subr.bf16.mxu0 0
    %2446 = vmatpush1.bf16.msra.mxu0 0
    %2447 = vmatprep.mubr.bf16.mxu0 0
    %2448 = vmatmul.mubr.bf16.gmra.mrb[0].mxu0 %v585
    %v2449 = vpop.f32.mrb[0].mxu0
    %v2450 = vadd.f32 %v2226, %v2449
    %v2451 = vpop.f32.mrb[0].mxu0
    %v2452 = vpop.f32.mrb[0].mxu0
    %v2453 = vadd.f32 %v2226, %v2452
    %v2454 = vpop.f32.mrb[0].mxu0
    %2455 = vmatprep.mubr.bf16.mxu0 0
    %2456 = vmatmul.mubr.bf16.gmra.mrb[0].mxu0 %v586
    %v2457 = vpop.f32.mrb[0].mxu0
    %v2458 = vpop.f32.mrb[0].mxu0
    %v2459 = vpop.f32.mrb[0].mxu0
    %v2460 = vpop.f32.mrb[0].mxu0
    %2461 = vmatprep.mubr.bf16.mxu0 0
    %2462 = vmatmul.mubr.bf16.gmra.mrb[0].mxu0 %v587
    %v2463 = vpop.f32.mrb[0].mxu0
    %v2464 = vadd.f32 %v2226, %v2463
    %v2465 = vpop.f32.mrb[0].mxu0
    %v2466 = vpop.f32.mrb[0].mxu0
    %v2467 = vadd.f32 %v2226, %v2466
    %v2468 = vpop.f32.mrb[0].mxu0
    %2469 = vdwg.mxu0
    %v2470 = vmul.f32 %v2401, %v2394
    %v2471 = vmul.f32 %v2404, %v2397
    %v2472 = vmul.f32 %v2401, %v2410
    %v2473 = vmul.f32 %v2404, %v2413
    %2474 = vmatprep.subr.mxu0 0.0
    %2475 = vmatpush1.msra.mxu0 %v588
    %2476 = vmatprep.subr.mxu0 0.0
    %2477 = vmatpush1.msra.mxu0 %v589
    %2478 = vmatprep.subr.mxu0 0.0
    %2479 = vmatpush1.msra.mxu0 %v590
    %2480 = vmatprep.subr.mxu0 0.0
    %2481 = vmatpush1.msra.mxu0 %v591
    %2482 = vmatprep.subr.mxu0 0.0
    %2483 = vmatpush1.msra.mxu0 %v592
    %2484 = vmatprep.subr.mxu0 0.0
    %2485 = vmatpush1.msra.mxu0 %v593
    %2486 = vmatprep.subr.mxu0 0.0
    %2487 = vmatpush1.msra.mxu0 %v594
    %2488 = vmatprep.subr.mxu0 0.0
    %2489 = vmatpush1.msra.mxu0 %v595
    %2490 = vmatprep.subr.mxu0 0.0
    %2491 = vmatpush1.msra.mxu0 %v596
    %2492 = vmatprep.subr.mxu0 0.0
    %2493 = vmatpush1.msra.mxu0 %v597
    %2494 = vmatprep.subr.mxu0 0.0
    %2495 = vmatpush1.msra.mxu0 %v598
    %2496 = vmatprep.subr.mxu0 0.0
    %2497 = vmatpush1.msra.mxu0 %v599
    %2498 = vmatprep.subr.mxu0 0.0
    %2499 = vmatpush1.msra.mxu0 %v600
    %2500 = vmatprep.subr.mxu0 0.0
    %2501 = vmatpush1.msra.mxu0 %v601
    %2502 = vmatprep.subr.mxu0 0.0
    %2503 = vmatpush1.msra.mxu0 %v602
    %2504 = vmatprep.subr.mxu0 0.0
    %2505 = vmatpush1.msra.mxu0 %v603
    %2506 = vmatprep.subr.mxu0 0.0
    %2507 = vmatpush1.msra.mxu0 0.0
    %2508 = vmatprep.subr.mxu0 0.0
    %2509 = vmatpush1.msra.mxu0 0.0
    %2510 = vmatprep.subr.mxu0 0.0
    %2511 = vmatpush1.msra.mxu0 0.0
    %2512 = vmatprep.subr.mxu0 0.0
    %2513 = vmatpush1.msra.mxu0 0.0
    %2514 = vmatprep.subr.mxu0 0.0
    %2515 = vmatpush1.msra.mxu0 0.0
    %2516 = vmatprep.subr.mxu0 0.0
    %2517 = vmatpush1.msra.mxu0 0.0
    %2518 = vmatprep.subr.mxu0 0.0
    %2519 = vmatpush1.msra.mxu0 0.0
    %2520 = vmatprep.subr.mxu0 0.0
    %2521 = vmatpush1.msra.mxu0 0.0
    %2522 = vmatprep.subr.mxu0 0.0
    %2523 = vmatpush1.msra.mxu0 0.0
    %2524 = vmatprep.subr.mxu0 0.0
    %2525 = vmatpush1.msra.mxu0 0.0
    %2526 = vmatprep.subr.mxu0 0.0
    %2527 = vmatpush1.msra.mxu0 0.0
    %2528 = vmatprep.subr.mxu0 0.0
    %2529 = vmatpush1.msra.mxu0 0.0
    %2530 = vmatprep.subr.mxu0 0.0
    %2531 = vmatpush1.msra.mxu0 0.0
    %2532 = vmatprep.subr.mxu0 0.0
    %2533 = vmatpush1.msra.mxu0 0.0
    %2534 = vmatprep.subr.mxu0 0.0
    %2535 = vmatpush1.msra.mxu0 0.0
    %2536 = vmatprep.subr.mxu0 0.0
    %2537 = vmatpush1.msra.mxu0 0.0
    %2538 = vmatprep.mubr.f32.mxu0 0.0
    %2539 = vmatmul.mubr.f32.gmra.mrb[0].mxu0 %v2470
    %v2540 = vpop.f32.mrb[0].mxu0
    %v2541 = vadd.f32 0.0, %v2540
    %v2542 = vpop.f32.mrb[0].mxu0
    %2543 = vmatprep.mubr.f32.mxu0 0.0
    %2544 = vmatmul.mubr.f32.gmra.mrb[0].mxu0 %v2471
    %v2545 = vpop.f32.mrb[0].mxu0
    %v2546 = vadd.f32 0.0, %v2545
    %v2547 = vpop.f32.mrb[0].mxu0
    %2548 = vmatprep.mubr.f32.mxu0 0.0
    %2549 = vmatmul.mubr.f32.gmra.mrb[0].mxu0 %v2472
    %v2550 = vpop.f32.mrb[0].mxu0
    %v2551 = vadd.f32 0.0, %v2550
    %v2552 = vpop.f32.mrb[0].mxu0
    %2553 = vmatprep.mubr.f32.mxu0 0.0
    %2554 = vmatmul.mubr.f32.gmra.mrb[0].mxu0 %v2473
    %v2555 = vpop.f32.mrb[0].mxu0
    %v2556 = vadd.f32 0.0, %v2555
    %v2557 = vpop.f32.mrb[0].mxu0
    %2558 = vdwg.mxu0
    %v2559 = vmul.f32 %v2541, 0.25
    %v2560 = vmul.f32 %v2546, 0.25
    %v2561 = vmul.f32 %v2551, 0.25
    %v2562 = vmul.f32 %v2556, 0.25
    %v2563 = vmax.f32 %v2559, %v2561
    %v2564 = vmax.f32 %v2560, %v2562
    %v2565 = vsub.f32 %v2559, %v2563
    %v2566 = vsub.f32 %v2560, %v2564
    %v2567 = vmul.f32 %v2565, 1.442695
    %v2568 = vpow.pop %v2567
    %v2569 = vmul.f32 %v2566, 1.442695
    %v2570 = vpow.pop %v2569
    %v2571 = vsub.f32 %v2561, %v2563
    %v2572 = vsub.f32 %v2562, %v2564
    %v2573 = vmul.f32 %v2571, 1.442695
    %v2574 = vpow.pop %v2573
    %v2575 = vmul.f32 %v2572, 1.442695
    %v2576 = vpow.pop %v2575
    %v2577 = vadd.f32 %v2568, %v2574
    %v2578 = vadd.f32 %v2570, %v2576
    %v2579 = vrcp.pop %v2577
    %v2580 = vrcp.pop %v2578
    %v2581 = vmul.f32 %v2568, %v2579
    %v2582 = vmul.f32 %v2570, %v2580
    %v2583 = vmul.f32 %v2574, %v2579
    %v2584 = vmul.f32 %v2576, %v2580
    %v2586 = vsel %vm1009, %v2581, 0
    %v2589 = vsel %vm1009, %v2582, 0
    %v2592 = vsel %vm1009, %v2583, 0
    %v2595 = vsel %vm1009, %v2584, 0
    %2597 = vmatprep.subr.mxu0 0.0
    %2598 = vmatpush1.msra.mxu0 %v604
    %2599 = vmatprep.subr.mxu0 0.0
    %2600 = vmatpush1.msra.mxu0 0.0
    %2601 = vmatprep.subr.mxu0 0.0
    %2602 = vmatpush1.msra.mxu0 0.0
    %2603 = vmatprep.subr.mxu0 0.0
    %2604 = vmatpush1.msra.mxu0 0.0
    %2605 = vmatprep.subr.mxu0 0.0
    %2606 = vmatpush1.msra.mxu0 0.0
    %2607 = vmatprep.subr.mxu0 0.0
    %2608 = vmatpush1.msra.mxu0 0.0
    %2609 = vmatprep.subr.mxu0 0.0
    %2610 = vmatpush1.msra.mxu0 0.0
    %2611 = vmatprep.subr.mxu0 0.0
    %2612 = vmatpush1.msra.mxu0 0.0
    %2613 = vmatprep.subr.mxu0 0.0
    %2614 = vmatpush1.msra.mxu0 0.0
    %2615 = vmatprep.subr.mxu0 0.0
    %2616 = vmatpush1.msra.mxu0 0.0
    %2617 = vmatprep.subr.mxu0 0.0
    %2618 = vmatpush1.msra.mxu0 0.0
    %2619 = vmatprep.subr.mxu0 0.0
    %2620 = vmatpush1.msra.mxu0 0.0
    %2621 = vmatprep.subr.mxu0 0.0
    %2622 = vmatpush1.msra.mxu0 0.0
    %2623 = vmatprep.subr.mxu0 0.0
    %2624 = vmatpush1.msra.mxu0 0.0
    %2625 = vmatprep.subr.mxu0 0.0
    %2626 = vmatpush1.msra.mxu0 0.0
    %2627 = vmatprep.subr.mxu0 0.0
    %2628 = vmatpush1.msra.mxu0 0.0
    %2629 = vmatprep.subr.mxu0 0.0
    %2630 = vmatpush1.msra.mxu0 0.0
    %2631 = vmatprep.subr.mxu0 0.0
    %2632 = vmatpush1.msra.mxu0 0.0
    %2633 = vmatprep.subr.mxu0 0.0
    %2634 = vmatpush1.msra.mxu0 0.0
    %2635 = vmatprep.subr.mxu0 0.0
    %2636 = vmatpush1.msra.mxu0 0.0
    %2637 = vmatprep.subr.mxu0 0.0
    %2638 = vmatpush1.msra.mxu0 0.0
    %2639 = vmatprep.subr.mxu0 0.0
    %2640 = vmatpush1.msra.mxu0 0.0
    %2641 = vmatprep.subr.mxu0 0.0
    %2642 = vmatpush1.msra.mxu0 0.0
    %2643 = vmatprep.subr.mxu0 0.0
    %2644 = vmatpush1.msra.mxu0 0.0
    %2645 = vmatprep.subr.mxu0 0.0
    %2646 = vmatpush1.msra.mxu0 0.0
    %2647 = vmatprep.subr.mxu0 0.0
    %2648 = vmatpush1.msra.mxu0 0.0
    %2649 = vmatprep.subr.mxu0 0.0
    %2650 = vmatpush1.msra.mxu0 0.0
    %2651 = vmatprep.subr.mxu0 0.0
    %2652 = vmatpush1.msra.mxu0 0.0
    %2653 = vmatprep.subr.mxu0 0.0
    %2654 = vmatpush1.msra.mxu0 0.0
    %2655 = vmatprep.subr.mxu0 0.0
    %2656 = vmatpush1.msra.mxu0 0.0
    %2657 = vmatprep.subr.mxu0 0.0
    %2658 = vmatpush1.msra.mxu0 0.0
    %2659 = vmatprep.subr.mxu0 0.0
    %2660 = vmatpush1.msra.mxu0 0.0
    %2661 = vmatprep.mubr.f32.mxu0 0.0
    %2662 = vmatmul.mubr.f32.gmra.mrb[0].mxu0 %v2586
    %v2663 = vpop.f32.mrb[0].mxu0
    %v2664 = vadd.f32 0.0, %v2663
    %v2665 = vpop.f32.mrb[0].mxu0
    %2666 = vmatprep.mubr.f32.mxu0 0.0
    %2667 = vmatmul.mubr.f32.gmra.mrb[0].mxu0 %v2589
    %v2668 = vpop.f32.mrb[0].mxu0
    %v2669 = vadd.f32 0.0, %v2668
    %v2670 = vpop.f32.mrb[0].mxu0
    %2671 = vmatprep.mubr.f32.mxu0 0.0
    %2672 = vmatmul.mubr.f32.gmra.mrb[0].mxu0 %v2592
    %v2673 = vpop.f32.mrb[0].mxu0
    %v2674 = vadd.f32 0.0, %v2673
    %v2675 = vpop.f32.mrb[0].mxu0
    %2676 = vmatprep.mubr.f32.mxu0 0.0
    %2677 = vmatmul.mubr.f32.gmra.mrb[0].mxu0 %v2595
    %v2678 = vpop.f32.mrb[0].mxu0
    %v2679 = vadd.f32 0.0, %v2678
    %v2680 = vpop.f32.mrb[0].mxu0
    %2681 = vdwg.mxu0
    %v2682 = vmul.f32 %v2664, %v2450
    %v2683 = vmul.f32 %v2669, %v2453
    %v2684 = vmul.f32 %v2674, %v2464
    %v2685 = vmul.f32 %v2679, %v2467
    %v2686 = vadd.f32 %v2682, %v2684
    %v2687 = vadd.f32 %v2683, %v2685
    %v2688 = vpack.c.bf16 %v2687, %v2686
    %s2689 = scalar_lea.vmem [#allocation19], 64
    %v2690 = vld [vmem:[%s2689] sm:$0xf]
    %v2691 = vld [vmem:[%s2689 + $0x4] sm:$0xf]
    %v2692 = vld [vmem:[%s2689 + $0x8] sm:$0xf]
    %v2693 = vld [vmem:[%s2689 + $0xc] sm:$0xf]
    %v2694 = vld [vmem:[%s2689 + $0x10] sm:$0xf]
    %v2695 = vld [vmem:[%s2689 + $0x14] sm:$0xf]
    %v2696 = vld [vmem:[%s2689 + $0x18] sm:$0xf]
    %v2697 = vld [vmem:[%s2689 + $0x1c] sm:$0xf]
    %v2698 = vld [vmem:[%s2689 + $0x20] sm:$0xf]
    %v2699 = vld [vmem:[%s2689 + $0x24] sm:$0xf]
    %v2700 = vld [vmem:[%s2689 + $0x28] sm:$0xf]
    %v2701 = vld [vmem:[%s2689 + $0x2c] sm:$0xf]
    %v2702 = vld [vmem:[%s2689 + $0x30] sm:$0xf]
    %v2703 = vld [vmem:[%s2689 + $0x34] sm:$0xf]
    %v2704 = vld [vmem:[%s2689 + $0x38] sm:$0xf]
    %v2705 = vld [vmem:[%s2689 + $0x3c] sm:$0xf]
    %s2706 = scalar_lea.vmem %s14, 1
    %v2707 = vld [vmem:[%s2706] sm:$0x1]
    %v2709 = vlaneseq
    %v2710 = vshrl.u32 %v2709, 7
    %v2711 = vsub.s32 0, %v2710
    %v2712 = vrot.slane %v2707, %v2711
    %v2730 = vunpack.c.l.b16 %v2690
    %v2731 = vunpack.c.l.b16 %v2691
    %v2732 = vunpack.c.l.b16 %v2692
    %v2733 = vunpack.c.l.b16 %v2693
    %v2734 = vunpack.c.l.b16 %v2694
    %v2735 = vunpack.c.l.b16 %v2695
    %v2736 = vunpack.c.l.b16 %v2696
    %v2737 = vunpack.c.l.b16 %v2697
    %v2738 = vunpack.c.l.b16 %v2698
    %v2739 = vunpack.c.l.b16 %v2699
    %v2740 = vunpack.c.l.b16 %v2700
    %v2741 = vunpack.c.l.b16 %v2701
    %v2742 = vunpack.c.l.b16 %v2702
    %v2743 = vunpack.c.l.b16 %v2703
    %v2744 = vunpack.c.l.b16 %v2704
    %v2745 = vunpack.c.l.b16 %v2705
    %v2746 = vpack.c.b16 %v2731, %v2730
    %v2747 = vpack.c.b16 %v2733, %v2732
    %v2748 = vpack.c.b16 %v2735, %v2734
    %v2749 = vpack.c.b16 %v2737, %v2736
    %v2750 = vpack.c.b16 %v2739, %v2738
    %v2751 = vpack.c.b16 %v2741, %v2740
    %v2752 = vpack.c.b16 %v2743, %v2742
    %v2753 = vpack.c.b16 %v2745, %v2744
    %2762 = vmatprep.subr.bf16.mxu0 0
    %2763 = vmatpush1.bf16.msra.mxu0 %v2746
    %2764 = vmatprep.subr.bf16.mxu0 0
    %2765 = vmatpush1.bf16.msra.mxu0 %v2747
    %2766 = vmatprep.subr.bf16.mxu0 0
    %2767 = vmatpush1.bf16.msra.mxu0 %v2748
    %2768 = vmatprep.subr.bf16.mxu0 0
    %2769 = vmatpush1.bf16.msra.mxu0 %v2749
    %2770 = vmatprep.subr.bf16.mxu0 0
    %2771 = vmatpush1.bf16.msra.mxu0 %v2750
    %2772 = vmatprep.subr.bf16.mxu0 0
    %2773 = vmatpush1.bf16.msra.mxu0 %v2751
    %2774 = vmatprep.subr.bf16.mxu0 0
    %2775 = vmatpush1.bf16.msra.mxu0 %v2752
    %2776 = vmatprep.subr.bf16.mxu0 0
    %2777 = vmatpush1.bf16.msra.mxu0 %v2753
    %2778 = vmatprep.subr.bf16.mxu0 0
    %2779 = vmatpush1.bf16.msra.mxu0 0
    %2780 = vmatprep.subr.bf16.mxu0 0
    %2781 = vmatpush1.bf16.msra.mxu0 0
    %2782 = vmatprep.subr.bf16.mxu0 0
    %2783 = vmatpush1.bf16.msra.mxu0 0
    %2784 = vmatprep.subr.bf16.mxu0 0
    %2785 = vmatpush1.bf16.msra.mxu0 0
    %2786 = vmatprep.subr.bf16.mxu0 0
    %2787 = vmatpush1.bf16.msra.mxu0 0
    %2788 = vmatprep.subr.bf16.mxu0 0
    %2789 = vmatpush1.bf16.msra.mxu0 0
    %2790 = vmatprep.subr.bf16.mxu0 0
    %2791 = vmatpush1.bf16.msra.mxu0 0
    %2792 = vmatprep.subr.bf16.mxu0 0
    %2793 = vmatpush1.bf16.msra.mxu0 0
    %2794 = vmatprep.mubr.bf16.mxu0 0
    %2795 = vmatmul.mubr.bf16.gmra.mrb[0].mxu0 %v2688
    %v2796 = vpop.f32.mrb[0].mxu0
    %v2797 = vadd.f32 %v2712, %v2796
    %v2798 = vpop.f32.mrb[0].mxu0
    %v2799 = vpop.f32.mrb[0].mxu0
    %v2800 = vadd.f32 %v2712, %v2799
    %v2801 = vpop.f32.mrb[0].mxu0
    %2802 = vdwg.mxu0
    %v2803 = vadd.f32 %v508, %v2797
    %v2804 = vadd.f32 %v511, %v2800
    %s2805 = scalar_lea.vmem [#allocation20], 2
    %v2806 = vld [vmem:[%s2805] sm:$0x1]
    %s2807 = scalar_lea.vmem [#allocation22], 2
    %v2808 = vld [vmem:[%s2807] sm:$0x1]
    %2809 = vadd.xlane.f32.xlu0 %v2803
    %v2810 = vpop.xlane.xlu0 %2809
    %2811 = vadd.xlane.f32.xlu0 %v2804
    %v2812 = vpop.xlane.xlu0 %2811
    %v2813 = vmul.f32 %v2810, %v1234
    %v2814 = vmul.f32 %v2812, %v1234
    %v2815 = vsub.f32 %v2803, %v2813
    %v2816 = vsub.f32 %v2804, %v2814
    %v2817 = vmul.f32 %v2815, %v2815
    %v2818 = vmul.f32 %v2816, %v2816
    %2819 = vadd.xlane.f32.xlu0 %v2817
    %v2820 = vpop.xlane.xlu0 %2819
    %2821 = vadd.xlane.f32.xlu0 %v2818
    %v2822 = vpop.xlane.xlu0 %2821
    %v2823 = vmul.f32 %v2820, %v1234
    %v2824 = vmul.f32 %v2822, %v1234
    %v2825 = vadd.f32 %v2823, 1e-05
    %v2826 = vadd.f32 %v2824, 1e-05
    %v2827 = vrsqrt.pop %v2825
    %v2828 = vrsqrt.pop %v2826
    %v2829 = vmul.f32 %v2815, %v2827
    %v2830 = vmul.f32 %v2816, %v2828
    %v2832 = vlaneseq
    %v2833 = vshrl.u32 %v2832, 7
    %v2834 = vsub.s32 0, %v2833
    %v2835 = vrot.slane %v2806, %v2834
    %v2837 = vmul.f32 %v2829, %v2835
    %v2838 = vmul.f32 %v2830, %v2835
    %v2840 = vlaneseq
    %v2841 = vshrl.u32 %v2840, 7
    %v2842 = vsub.s32 0, %v2841
    %v2843 = vrot.slane %v2808, %v2842
    %v2845 = vadd.f32 %v2837, %v2843
    %v2846 = vadd.f32 %v2838, %v2843
    %v2847 = vpack.c.bf16 %v2846, %v2845
    %s2848 = scalar_lea.vmem [#allocation23], 256
    %v2849 = vld [vmem:[%s2848] sm:$0xff]
    %v2850 = vld [vmem:[%s2848 + $0x8] sm:$0xff]
    %v2851 = vld [vmem:[%s2848 + $0x10] sm:$0xff]
    %v2852 = vld [vmem:[%s2848 + $0x18] sm:$0xff]
    %v2853 = vld [vmem:[%s2848 + $0x20] sm:$0xff]
    %v2854 = vld [vmem:[%s2848 + $0x28] sm:$0xff]
    %v2855 = vld [vmem:[%s2848 + $0x30] sm:$0xff]
    %v2856 = vld [vmem:[%s2848 + $0x38] sm:$0xff]
    %v2857 = vld [vmem:[%s2848 + $0x40] sm:$0xff]
    %v2858 = vld [vmem:[%s2848 + $0x48] sm:$0xff]
    %v2859 = vld [vmem:[%s2848 + $0x50] sm:$0xff]
    %v2860 = vld [vmem:[%s2848 + $0x58] sm:$0xff]
    %v2861 = vld [vmem:[%s2848 + $0x60] sm:$0xff]
    %v2862 = vld [vmem:[%s2848 + $0x68] sm:$0xff]
    %v2863 = vld [vmem:[%s2848 + $0x70] sm:$0xff]
    %v2864 = vld [vmem:[%s2848 + $0x78] sm:$0xff]
    %v2865 = vld [vmem:[%s2848 + $0x80] sm:$0xff]
    %v2866 = vld [vmem:[%s2848 + $0x88] sm:$0xff]
    %v2867 = vld [vmem:[%s2848 + $0x90] sm:$0xff]
    %v2868 = vld [vmem:[%s2848 + $0x98] sm:$0xff]
    %v2869 = vld [vmem:[%s2848 + $0xa0] sm:$0xff]
    %v2870 = vld [vmem:[%s2848 + $0xa8] sm:$0xff]
    %v2871 = vld [vmem:[%s2848 + $0xb0] sm:$0xff]
    %v2872 = vld [vmem:[%s2848 + $0xb8] sm:$0xff]
    %v2873 = vld [vmem:[%s2848 + $0xc0] sm:$0xff]
    %v2874 = vld [vmem:[%s2848 + $0xc8] sm:$0xff]
    %v2875 = vld [vmem:[%s2848 + $0xd0] sm:$0xff]
    %v2876 = vld [vmem:[%s2848 + $0xd8] sm:$0xff]
    %v2877 = vld [vmem:[%s2848 + $0xe0] sm:$0xff]
    %v2878 = vld [vmem:[%s2848 + $0xe8] sm:$0xff]
    %v2879 = vld [vmem:[%s2848 + $0xf0] sm:$0xff]
    %v2880 = vld [vmem:[%s2848 + $0xf8] sm:$0xff]
    %s2881 = scalar_lea.vmem %s18, 4
    %v2882 = vld [vmem:[%s2881] sm:$0xf]
    %v2884 = vlaneseq
    %v2885 = vshrl.u32 %v2884, 7
    %v2886 = vsub.s32 0, %v2885
    %v2887 = vrot.slane %v2882, %v2886
    %v2888 = vlaneseq
    %v2889 = vshrl.u32 %v2888, 7
    %v2890 = vsub.s32 1, %v2889
    %v2891 = vrot.slane %v2882, %v2890
    %v2892 = vlaneseq
    %v2893 = vshrl.u32 %v2892, 7
    %v2894 = vsub.s32 2, %v2893
    %v2895 = vrot.slane %v2882, %v2894
    %v2896 = vlaneseq
    %v2897 = vshrl.u32 %v2896, 7
    %v2898 = vsub.s32 3, %v2897
    %v2899 = vrot.slane %v2882, %v2898
    %v2936 = vunpack.c.l.b16 %v2849
    %v2937 = vunpack.c.h.b16 %v2849
    %v2938 = vunpack.c.l.b16 %v2850
    %v2939 = vunpack.c.h.b16 %v2850
    %v2940 = vunpack.c.l.b16 %v2851
    %v2941 = vunpack.c.h.b16 %v2851
    %v2942 = vunpack.c.l.b16 %v2852
    %v2943 = vunpack.c.h.b16 %v2852
    %v2944 = vunpack.c.l.b16 %v2853
    %v2945 = vunpack.c.h.b16 %v2853
    %v2946 = vunpack.c.l.b16 %v2854
    %v2947 = vunpack.c.h.b16 %v2854
    %v2948 = vunpack.c.l.b16 %v2855
    %v2949 = vunpack.c.h.b16 %v2855
    %v2950 = vunpack.c.l.b16 %v2856
    %v2951 = vunpack.c.h.b16 %v2856
    %v2952 = vunpack.c.l.b16 %v2857
    %v2953 = vunpack.c.h.b16 %v2857
    %v2954 = vunpack.c.l.b16 %v2858
    %v2955 = vunpack.c.h.b16 %v2858
    %v2956 = vunpack.c.l.b16 %v2859
    %v2957 = vunpack.c.h.b16 %v2859
    %v2958 = vunpack.c.l.b16 %v2860
    %v2959 = vunpack.c.h.b16 %v2860
    %v2960 = vunpack.c.l.b16 %v2861
    %v2961 = vunpack.c.h.b16 %v2861
    %v2962 = vunpack.c.l.b16 %v2862
    %v2963 = vunpack.c.h.b16 %v2862
    %v2964 = vunpack.c.l.b16 %v2863
    %v2965 = vunpack.c.h.b16 %v2863
    %v2966 = vunpack.c.l.b16 %v2864
    %v2967 = vunpack.c.h.b16 %v2864
    %v2968 = vunpack.c.l.b16 %v2865
    %v2969 = vunpack.c.h.b16 %v2865
    %v2970 = vunpack.c.l.b16 %v2866
    %v2971 = vunpack.c.h.b16 %v2866
    %v2972 = vunpack.c.l.b16 %v2867
    %v2973 = vunpack.c.h.b16 %v2867
    %v2974 = vunpack.c.l.b16 %v2868
    %v2975 = vunpack.c.h.b16 %v2868
    %v2976 = vunpack.c.l.b16 %v2869
    %v2977 = vunpack.c.h.b16 %v2869
    %v2978 = vunpack.c.l.b16 %v2870
    %v2979 = vunpack.c.h.b16 %v2870
    %v2980 = vunpack.c.l.b16 %v2871
    %v2981 = vunpack.c.h.b16 %v2871
    %v2982 = vunpack.c.l.b16 %v2872
    %v2983 = vunpack.c.h.b16 %v2872
    %v2984 = vunpack.c.l.b16 %v2873
    %v2985 = vunpack.c.h.b16 %v2873
    %v2986 = vunpack.c.l.b16 %v2874
    %v2987 = vunpack.c.h.b16 %v2874
    %v2988 = vunpack.c.l.b16 %v2875
    %v2989 = vunpack.c.h.b16 %v2875
    %v2990 = vunpack.c.l.b16 %v2876
    %v2991 = vunpack.c.h.b16 %v2876
    %v2992 = vunpack.c.l.b16 %v2877
    %v2993 = vunpack.c.h.b16 %v2877
    %v2994 = vunpack.c.l.b16 %v2878
    %v2995 = vunpack.c.h.b16 %v2878
    %v2996 = vunpack.c.l.b16 %v2879
    %v2997 = vunpack.c.h.b16 %v2879
    %v2998 = vunpack.c.l.b16 %v2880
    %v2999 = vunpack.c.h.b16 %v2880
    %v3000 = vpack.c.b16 %v2940, %v2936
    %v3001 = vpack.c.b16 %v2941, %v2937
    %v3002 = vpack.c.b16 %v2942, %v2938
    %v3003 = vpack.c.b16 %v2943, %v2939
    %v3004 = vpack.c.b16 %v2948, %v2944
    %v3005 = vpack.c.b16 %v2949, %v2945
    %v3006 = vpack.c.b16 %v2950, %v2946
    %v3007 = vpack.c.b16 %v2951, %v2947
    %v3008 = vpack.c.b16 %v2956, %v2952
    %v3009 = vpack.c.b16 %v2957, %v2953
    %v3010 = vpack.c.b16 %v2958, %v2954
    %v3011 = vpack.c.b16 %v2959, %v2955
    %v3012 = vpack.c.b16 %v2964, %v2960
    %v3013 = vpack.c.b16 %v2965, %v2961
    %v3014 = vpack.c.b16 %v2966, %v2962
    %v3015 = vpack.c.b16 %v2967, %v2963
    %v3016 = vpack.c.b16 %v2972, %v2968
    %v3017 = vpack.c.b16 %v2973, %v2969
    %v3018 = vpack.c.b16 %v2974, %v2970
    %v3019 = vpack.c.b16 %v2975, %v2971
    %v3020 = vpack.c.b16 %v2980, %v2976
    %v3021 = vpack.c.b16 %v2981, %v2977
    %v3022 = vpack.c.b16 %v2982, %v2978
    %v3023 = vpack.c.b16 %v2983, %v2979
    %v3024 = vpack.c.b16 %v2988, %v2984
    %v3025 = vpack.c.b16 %v2989, %v2985
    %v3026 = vpack.c.b16 %v2990, %v2986
    %v3027 = vpack.c.b16 %v2991, %v2987
    %v3028 = vpack.c.b16 %v2996, %v2992
    %v3029 = vpack.c.b16 %v2997, %v2993
    %v3030 = vpack.c.b16 %v2998, %v2994
    %v3031 = vpack.c.b16 %v2999, %v2995
    %3064 = vmatprep.subr.bf16.mxu0 %v3001
    %3065 = vmatpush1.bf16.msra.mxu0 %v3000
    %3066 = vmatprep.subr.bf16.mxu0 %v3005
    %3067 = vmatpush1.bf16.msra.mxu0 %v3004
    %3068 = vmatprep.subr.bf16.mxu0 %v3009
    %3069 = vmatpush1.bf16.msra.mxu0 %v3008
    %3070 = vmatprep.subr.bf16.mxu0 %v3013
    %3071 = vmatpush1.bf16.msra.mxu0 %v3012
    %3072 = vmatprep.subr.bf16.mxu0 %v3017
    %3073 = vmatpush1.bf16.msra.mxu0 %v3016
    %3074 = vmatprep.subr.bf16.mxu0 %v3021
    %3075 = vmatpush1.bf16.msra.mxu0 %v3020
    %3076 = vmatprep.subr.bf16.mxu0 %v3025
    %3077 = vmatpush1.bf16.msra.mxu0 %v3024
    %3078 = vmatprep.subr.bf16.mxu0 %v3029
    %3079 = vmatpush1.bf16.msra.mxu0 %v3028
    %3080 = vmatprep.subr.bf16.mxu0 0
    %3081 = vmatpush1.bf16.msra.mxu0 0
    %3082 = vmatprep.subr.bf16.mxu0 0
    %3083 = vmatpush1.bf16.msra.mxu0 0
    %3084 = vmatprep.subr.bf16.mxu0 0
    %3085 = vmatpush1.bf16.msra.mxu0 0
    %3086 = vmatprep.subr.bf16.mxu0 0
    %3087 = vmatpush1.bf16.msra.mxu0 0
    %3088 = vmatprep.subr.bf16.mxu0 0
    %3089 = vmatpush1.bf16.msra.mxu0 0
    %3090 = vmatprep.subr.bf16.mxu0 0
    %3091 = vmatpush1.bf16.msra.mxu0 0
    %3092 = vmatprep.subr.bf16.mxu0 0
    %3093 = vmatpush1.bf16.msra.mxu0 0
    %3094 = vmatprep.subr.bf16.mxu0 0
    %3095 = vmatpush1.bf16.msra.mxu0 0
    %3096 = vmatprep.mubr.bf16.mxu0 0
    %3097 = vmatmul.mubr.bf16.gmra.mrb[0].mxu0 %v2847
    %v3098 = vpop.f32.mrb[0].mxu0
    %v3099 = vadd.f32 %v2887, %v3098
    %v3100 = vpop.f32.mrb[0].mxu0
    %v3101 = vadd.f32 %v2891, %v3100
    %v3102 = vpop.f32.mrb[0].mxu0
    %v3103 = vadd.f32 %v2887, %v3102
    %v3104 = vpop.f32.mrb[0].mxu0
    %v3105 = vadd.f32 %v2891, %v3104
    %3106 = vdwg.mxu0
    %3107 = vmatprep.subr.bf16.mxu0 %v3003
    %3108 = vmatpush1.bf16.msra.mxu0 %v3002
    %3109 = vmatprep.subr.bf16.mxu0 %v3007
    %3110 = vmatpush1.bf16.msra.mxu0 %v3006
    %3111 = vmatprep.subr.bf16.mxu0 %v3011
    %3112 = vmatpush1.bf16.msra.mxu0 %v3010
    %3113 = vmatprep.subr.bf16.mxu0 %v3015
    %3114 = vmatpush1.bf16.msra.mxu0 %v3014
    %3115 = vmatprep.subr.bf16.mxu0 %v3019
    %3116 = vmatpush1.bf16.msra.mxu0 %v3018
    %3117 = vmatprep.subr.bf16.mxu0 %v3023
    %3118 = vmatpush1.bf16.msra.mxu0 %v3022
    %3119 = vmatprep.subr.bf16.mxu0 %v3027
    %3120 = vmatpush1.bf16.msra.mxu0 %v3026
    %3121 = vmatprep.subr.bf16.mxu0 %v3031
    %3122 = vmatpush1.bf16.msra.mxu0 %v3030
    %3123 = vmatprep.subr.bf16.mxu0 0
    %3124 = vmatpush1.bf16.msra.mxu0 0
    %3125 = vmatprep.subr.bf16.mxu0 0
    %3126 = vmatpush1.bf16.msra.mxu0 0
    %3127 = vmatprep.subr.bf16.mxu0 0
    %3128 = vmatpush1.bf16.msra.mxu0 0
    %3129 = vmatprep.subr.bf16.mxu0 0
    %3130 = vmatpush1.bf16.msra.mxu0 0
    %3131 = vmatprep.subr.bf16.mxu0 0
    %3132 = vmatpush1.bf16.msra.mxu0 0
    %3133 = vmatprep.subr.bf16.mxu0 0
    %3134 = vmatpush1.bf16.msra.mxu0 0
    %3135 = vmatprep.subr.bf16.mxu0 0
    %3136 = vmatpush1.bf16.msra.mxu0 0
    %3137 = vmatprep.subr.bf16.mxu0 0
    %3138 = vmatpush1.bf16.msra.mxu0 0
    %3139 = vmatprep.mubr.bf16.mxu0 0
    %3140 = vmatmul.mubr.bf16.gmra.mrb[0].mxu0 %v2847
    %v3141 = vpop.f32.mrb[0].mxu0
    %v3142 = vadd.f32 %v2895, %v3141
    %v3143 = vpop.f32.mrb[0].mxu0
    %v3144 = vadd.f32 %v2899, %v3143
    %v3145 = vpop.f32.mrb[0].mxu0
    %v3146 = vadd.f32 %v2895, %v3145
    %v3147 = vpop.f32.mrb[0].mxu0
    %v3148 = vadd.f32 %v2899, %v3147
    %3149 = vdwg.mxu0
    %v3150 = vmul.f32 %v3099, 0.5
    %v3151 = vmul.f32 %v3101, 0.5
    %v3152 = vmul.f32 %v3142, 0.5
    %v3153 = vmul.f32 %v3144, 0.5
    %v3154 = vmul.f32 %v3103, 0.5
    %v3155 = vmul.f32 %v3105, 0.5
    %v3156 = vmul.f32 %v3146, 0.5
    %v3157 = vmul.f32 %v3148, 0.5
    %v3158 = vmul.f32 %v3099, 0.70710677
    %v3159 = vmul.f32 %v3101, 0.70710677
    %v3160 = vmul.f32 %v3142, 0.70710677
    %v3161 = vmul.f32 %v3144, 0.70710677
    %v3162 = vmul.f32 %v3103, 0.70710677
    %v3163 = vmul.f32 %v3105, 0.70710677
    %v3164 = vmul.f32 %v3146, 0.70710677
    %v3165 = vmul.f32 %v3148, 0.70710677
    %vm3166 = vcmp.ge.f32.partialorder %v3158, 0.0
    %vm3167 = vcmp.ge.f32.partialorder %v3159, 0.0
    %vm3168 = vcmp.ge.f32.partialorder %v3160, 0.0
    %vm3169 = vcmp.ge.f32.partialorder %v3161, 0.0
    %vm3170 = vcmp.ge.f32.partialorder %v3162, 0.0
    %vm3171 = vcmp.ge.f32.partialorder %v3163, 0.0
    %vm3172 = vcmp.ge.f32.partialorder %v3164, 0.0
    %vm3173 = vcmp.ge.f32.partialorder %v3165, 0.0
    %v3174 = vsel %vm3166, 1.0, -1.0
    %v3175 = vsel %vm3167, 1.0, -1.0
    %v3176 = vsel %vm3168, 1.0, -1.0
    %v3177 = vsel %vm3169, 1.0, -1.0
    %v3178 = vsel %vm3170, 1.0, -1.0
    %v3179 = vsel %vm3171, 1.0, -1.0
    %v3180 = vsel %vm3172, 1.0, -1.0
    %v3181 = vsel %vm3173, 1.0, -1.0
    %v3182 = vand.u32 2147483647, %v3158
    %v3183 = vand.u32 2147483647, %v3159
    %v3184 = vand.u32 2147483647, %v3160
    %v3185 = vand.u32 2147483647, %v3161
    %v3186 = vand.u32 2147483647, %v3162
    %v3187 = vand.u32 2147483647, %v3163
    %v3188 = vand.u32 2147483647, %v3164
    %v3189 = vand.u32 2147483647, %v3165
    %v3190 = vmul.f32 %v3182, 0.3275911
    %v3191 = vmul.f32 %v3183, 0.3275911
    %v3192 = vmul.f32 %v3184, 0.3275911
    %v3193 = vmul.f32 %v3185, 0.3275911
    %v3194 = vmul.f32 %v3186, 0.3275911
    %v3195 = vmul.f32 %v3187, 0.3275911
    %v3196 = vmul.f32 %v3188, 0.3275911
    %v3197 = vmul.f32 %v3189, 0.3275911
    %v3198 = vadd.f32 %v3190, 1.0
    %v3199 = vadd.f32 %v3191, 1.0
    %v3200 = vadd.f32 %v3192, 1.0
    %v3201 = vadd.f32 %v3193, 1.0
    %v3202 = vadd.f32 %v3194, 1.0
    %v3203 = vadd.f32 %v3195, 1.0
    %v3204 = vadd.f32 %v3196, 1.0
    %v3205 = vadd.f32 %v3197, 1.0
    %v3206 = vrcp.pop %v3198
    %v3207 = vmul.f32 1.0, %v3206
    %v3208 = vrcp.pop %v3199
    %v3209 = vmul.f32 1.0, %v3208
    %v3210 = vrcp.pop %v3200
    %v3211 = vmul.f32 1.0, %v3210
    %v3212 = vrcp.pop %v3201
    %v3213 = vmul.f32 1.0, %v3212
    %v3214 = vrcp.pop %v3202
    %v3215 = vmul.f32 1.0, %v3214
    %v3216 = vrcp.pop %v3203
    %v3217 = vmul.f32 1.0, %v3216
    %v3218 = vrcp.pop %v3204
    %v3219 = vmul.f32 1.0, %v3218
    %v3220 = vrcp.pop %v3205
    %v3221 = vmul.f32 1.0, %v3220
    %v3222 = vmul.f32 %v3207, 1.0614054
    %v3223 = vmul.f32 %v3209, 1.0614054
    %v3224 = vmul.f32 %v3211, 1.0614054
    %v3225 = vmul.f32 %v3213, 1.0614054
    %v3226 = vmul.f32 %v3215, 1.0614054
    %v3227 = vmul.f32 %v3217, 1.0614054
    %v3228 = vmul.f32 %v3219, 1.0614054
    %v3229 = vmul.f32 %v3221, 1.0614054
    %v3230 = vadd.f32 %v3222, -1.4531521
    %v3231 = vadd.f32 %v3223, -1.4531521
    %v3232 = vadd.f32 %v3224, -1.4531521
    %v3233 = vadd.f32 %v3225, -1.4531521
    %v3234 = vadd.f32 %v3226, -1.4531521
    %v3235 = vadd.f32 %v3227, -1.4531521
    %v3236 = vadd.f32 %v3228, -1.4531521
    %v3237 = vadd.f32 %v3229, -1.4531521
    %v3238 = vmul.f32 %v3230, %v3207
    %v3239 = vmul.f32 %v3231, %v3209
    %v3240 = vmul.f32 %v3232, %v3211
    %v3241 = vmul.f32 %v3233, %v3213
    %v3242 = vmul.f32 %v3234, %v3215
    %v3243 = vmul.f32 %v3235, %v3217
    %v3244 = vmul.f32 %v3236, %v3219
    %v3245 = vmul.f32 %v3237, %v3221
    %v3246 = vadd.f32 %v3238, 1.4214138
    %v3247 = vadd.f32 %v3239, 1.4214138
    %v3248 = vadd.f32 %v3240, 1.4214138
    %v3249 = vadd.f32 %v3241, 1.4214138
    %v3250 = vadd.f32 %v3242, 1.4214138
    %v3251 = vadd.f32 %v3243, 1.4214138
    %v3252 = vadd.f32 %v3244, 1.4214138
    %v3253 = vadd.f32 %v3245, 1.4214138
    %v3254 = vmul.f32 %v3246, %v3207
    %v3255 = vmul.f32 %v3247, %v3209
    %v3256 = vmul.f32 %v3248, %v3211
    %v3257 = vmul.f32 %v3249, %v3213
    %v3258 = vmul.f32 %v3250, %v3215
    %v3259 = vmul.f32 %v3251, %v3217
    %v3260 = vmul.f32 %v3252, %v3219
    %v3261 = vmul.f32 %v3253, %v3221
    %v3262 = vadd.f32 %v3254, -0.28449672
    %v3263 = vadd.f32 %v3255, -0.28449672
    %v3264 = vadd.f32 %v3256, -0.28449672
    %v3265 = vadd.f32 %v3257, -0.28449672
    %v3266 = vadd.f32 %v3258, -0.28449672
    %v3267 = vadd.f32 %v3259, -0.28449672
    %v3268 = vadd.f32 %v3260, -0.28449672
    %v3269 = vadd.f32 %v3261, -0.28449672
    %v3270 = vmul.f32 %v3262, %v3207
    %v3271 = vmul.f32 %v3263, %v3209
    %v3272 = vmul.f32 %v3264, %v3211
    %v3273 = vmul.f32 %v3265, %v3213
    %v3274 = vmul.f32 %v3266, %v3215
    %v3275 = vmul.f32 %v3267, %v3217
    %v3276 = vmul.f32 %v3268, %v3219
    %v3277 = vmul.f32 %v3269, %v3221
    %v3278 = vadd.f32 %v3270, 0.2548296
    %v3279 = vadd.f32 %v3271, 0.2548296
    %v3280 = vadd.f32 %v3272, 0.2548296
    %v3281 = vadd.f32 %v3273, 0.2548296
    %v3282 = vadd.f32 %v3274, 0.2548296
    %v3283 = vadd.f32 %v3275, 0.2548296
    %v3284 = vadd.f32 %v3276, 0.2548296
    %v3285 = vadd.f32 %v3277, 0.2548296
    %v3286 = vmul.f32 %v3278, %v3207
    %v3287 = vmul.f32 %v3279, %v3209
    %v3288 = vmul.f32 %v3280, %v3211
    %v3289 = vmul.f32 %v3281, %v3213
    %v3290 = vmul.f32 %v3282, %v3215
    %v3291 = vmul.f32 %v3283, %v3217
    %v3292 = vmul.f32 %v3284, %v3219
    %v3293 = vmul.f32 %v3285, %v3221
    %v3294 = vsub.f32 0.0, %v3182
    %v3295 = vsub.f32 0.0, %v3183
    %v3296 = vsub.f32 0.0, %v3184
    %v3297 = vsub.f32 0.0, %v3185
    %v3298 = vsub.f32 0.0, %v3186
    %v3299 = vsub.f32 0.0, %v3187
    %v3300 = vsub.f32 0.0, %v3188
    %v3301 = vsub.f32 0.0, %v3189
    %v3302 = vmul.f32 %v3294, %v3182
    %v3303 = vmul.f32 %v3295, %v3183
    %v3304 = vmul.f32 %v3296, %v3184
    %v3305 = vmul.f32 %v3297, %v3185
    %v3306 = vmul.f32 %v3298, %v3186
    %v3307 = vmul.f32 %v3299, %v3187
    %v3308 = vmul.f32 %v3300, %v3188
    %v3309 = vmul.f32 %v3301, %v3189
    %v3310 = vmul.f32 %v3302, 1.442695
    %v3311 = vpow.pop %v3310
    %v3312 = vmul.f32 %v3303, 1.442695
    %v3313 = vpow.pop %v3312
    %v3314 = vmul.f32 %v3304, 1.442695
    %v3315 = vpow.pop %v3314
    %v3316 = vmul.f32 %v3305, 1.442695
    %v3317 = vpow.pop %v3316
    %v3318 = vmul.f32 %v3306, 1.442695
    %v3319 = vpow.pop %v3318
    %v3320 = vmul.f32 %v3307, 1.442695
    %v3321 = vpow.pop %v3320
    %v3322 = vmul.f32 %v3308, 1.442695
    %v3323 = vpow.pop %v3322
    %v3324 = vmul.f32 %v3309, 1.442695
    %v3325 = vpow.pop %v3324
    %v3326 = vmul.f32 %v3286, %v3311
    %v3327 = vmul.f32 %v3287, %v3313
    %v3328 = vmul.f32 %v3288, %v3315
    %v3329 = vmul.f32 %v3289, %v3317
    %v3330 = vmul.f32 %v3290, %v3319
    %v3331 = vmul.f32 %v3291, %v3321
    %v3332 = vmul.f32 %v3292, %v3323
    %v3333 = vmul.f32 %v3293, %v3325
    %v3334 = vsub.f32 1.0, %v3326
    %v3335 = vsub.f32 1.0, %v3327
    %v3336 = vsub.f32 1.0, %v3328
    %v3337 = vsub.f32 1.0, %v3329
    %v3338 = vsub.f32 1.0, %v3330
    %v3339 = vsub.f32 1.0, %v3331
    %v3340 = vsub.f32 1.0, %v3332
    %v3341 = vsub.f32 1.0, %v3333
    %v3342 = vmul.f32 %v3174, %v3334
    %v3343 = vmul.f32 %v3175, %v3335
    %v3344 = vmul.f32 %v3176, %v3336
    %v3345 = vmul.f32 %v3177, %v3337
    %v3346 = vmul.f32 %v3178, %v3338
    %v3347 = vmul.f32 %v3179, %v3339
    %v3348 = vmul.f32 %v3180, %v3340
    %v3349 = vmul.f32 %v3181, %v3341
    %v3350 = vadd.f32 %v3342, 1.0
    %v3351 = vadd.f32 %v3343, 1.0
    %v3352 = vadd.f32 %v3344, 1.0
    %v3353 = vadd.f32 %v3345, 1.0
    %v3354 = vadd.f32 %v3346, 1.0
    %v3355 = vadd.f32 %v3347, 1.0
    %v3356 = vadd.f32 %v3348, 1.0
    %v3357 = vadd.f32 %v3349, 1.0
    %v3358 = vmul.f32 %v3150, %v3350
    %v3359 = vmul.f32 %v3151, %v3351
    %v3360 = vmul.f32 %v3152, %v3352
    %v3361 = vmul.f32 %v3153, %v3353
    %v3362 = vmul.f32 %v3154, %v3354
    %v3363 = vmul.f32 %v3155, %v3355
    %v3364 = vmul.f32 %v3156, %v3356
    %v3365 = vmul.f32 %v3157, %v3357
    %v3366 = vpack.c.bf16 %v3362, %v3358
    %v3367 = vpack.c.bf16 %v3363, %v3359
    %v3368 = vpack.c.bf16 %v3364, %v3360
    %v3369 = vpack.c.bf16 %v3365, %v3361
    %s3370 = scalar_lea.vmem [#allocation25], 256
    %v3371 = vld [vmem:[%s3370] sm:$0xf]
    %v3372 = vld [vmem:[%s3370 + $0x4] sm:$0xf]
    %v3373 = vld [vmem:[%s3370 + $0x8] sm:$0xf]
    %v3374 = vld [vmem:[%s3370 + $0xc] sm:$0xf]
    %v3375 = vld [vmem:[%s3370 + $0x10] sm:$0xf]
    %v3376 = vld [vmem:[%s3370 + $0x14] sm:$0xf]
    %v3377 = vld [vmem:[%s3370 + $0x18] sm:$0xf]
    %v3378 = vld [vmem:[%s3370 + $0x1c] sm:$0xf]
    %v3379 = vld [vmem:[%s3370 + $0x20] sm:$0xf]
    %v3380 = vld [vmem:[%s3370 + $0x24] sm:$0xf]
    %v3381 = vld [vmem:[%s3370 + $0x28] sm:$0xf]
    %v3382 = vld [vmem:[%s3370 + $0x2c] sm:$0xf]
    %v3383 = vld [vmem:[%s3370 + $0x30] sm:$0xf]
    %v3384 = vld [vmem:[%s3370 + $0x34] sm:$0xf]
    %v3385 = vld [vmem:[%s3370 + $0x38] sm:$0xf]
    %v3386 = vld [vmem:[%s3370 + $0x3c] sm:$0xf]
    %v3387 = vld [vmem:[%s3370 + $0x40] sm:$0xf]
    %v3388 = vld [vmem:[%s3370 + $0x44] sm:$0xf]
    %v3389 = vld [vmem:[%s3370 + $0x48] sm:$0xf]
    %v3390 = vld [vmem:[%s3370 + $0x4c] sm:$0xf]
    %v3391 = vld [vmem:[%s3370 + $0x50] sm:$0xf]
    %v3392 = vld [vmem:[%s3370 + $0x54] sm:$0xf]
    %v3393 = vld [vmem:[%s3370 + $0x58] sm:$0xf]
    %v3394 = vld [vmem:[%s3370 + $0x5c] sm:$0xf]
    %v3395 = vld [vmem:[%s3370 + $0x60] sm:$0xf]
    %v3396 = vld [vmem:[%s3370 + $0x64] sm:$0xf]
    %v3397 = vld [vmem:[%s3370 + $0x68] sm:$0xf]
    %v3398 = vld [vmem:[%s3370 + $0x6c] sm:$0xf]
    %v3399 = vld [vmem:[%s3370 + $0x70] sm:$0xf]
    %v3400 = vld [vmem:[%s3370 + $0x74] sm:$0xf]
    %v3401 = vld [vmem:[%s3370 + $0x78] sm:$0xf]
    %v3402 = vld [vmem:[%s3370 + $0x7c] sm:$0xf]
    %v3403 = vld [vmem:[%s3370 + $0x80] sm:$0xf]
    %v3404 = vld [vmem:[%s3370 + $0x84] sm:$0xf]
    %v3405 = vld [vmem:[%s3370 + $0x88] sm:$0xf]
    %v3406 = vld [vmem:[%s3370 + $0x8c] sm:$0xf]
    %v3407 = vld [vmem:[%s3370 + $0x90] sm:$0xf]
    %v3408 = vld [vmem:[%s3370 + $0x94] sm:$0xf]
    %v3409 = vld [vmem:[%s3370 + $0x98] sm:$0xf]
    %v3410 = vld [vmem:[%s3370 + $0x9c] sm:$0xf]
    %v3411 = vld [vmem:[%s3370 + $0xa0] sm:$0xf]
    %v3412 = vld [vmem:[%s3370 + $0xa4] sm:$0xf]
    %v3413 = vld [vmem:[%s3370 + $0xa8] sm:$0xf]
    %v3414 = vld [vmem:[%s3370 + $0xac] sm:$0xf]
    %v3415 = vld [vmem:[%s3370 + $0xb0] sm:$0xf]
    %v3416 = vld [vmem:[%s3370 + $0xb4] sm:$0xf]
    %v3417 = vld [vmem:[%s3370 + $0xb8] sm:$0xf]
    %v3418 = vld [vmem:[%s3370 + $0xbc] sm:$0xf]
    %v3419 = vld [vmem:[%s3370 + $0xc0] sm:$0xf]
    %v3420 = vld [vmem:[%s3370 + $0xc4] sm:$0xf]
    %v3421 = vld [vmem:[%s3370 + $0xc8] sm:$0xf]
    %v3422 = vld [vmem:[%s3370 + $0xcc] sm:$0xf]
    %v3423 = vld [vmem:[%s3370 + $0xd0] sm:$0xf]
    %v3424 = vld [vmem:[%s3370 + $0xd4] sm:$0xf]
    %v3425 = vld [vmem:[%s3370 + $0xd8] sm:$0xf]
    %v3426 = vld [vmem:[%s3370 + $0xdc] sm:$0xf]
    %v3427 = vld [vmem:[%s3370 + $0xe0] sm:$0xf]
    %v3428 = vld [vmem:[%s3370 + $0xe4] sm:$0xf]
    %v3429 = vld [vmem:[%s3370 + $0xe8] sm:$0xf]
    %v3430 = vld [vmem:[%s3370 + $0xec] sm:$0xf]
    %v3431 = vld [vmem:[%s3370 + $0xf0] sm:$0xf]
    %v3432 = vld [vmem:[%s3370 + $0xf4] sm:$0xf]
    %v3433 = vld [vmem:[%s3370 + $0xf8] sm:$0xf]
    %v3434 = vld [vmem:[%s3370 + $0xfc] sm:$0xf]
    %s3435 = scalar_lea.vmem [#allocation26], 1
    %v3436 = vld [vmem:[%s3435] sm:$0x1]
    %v3438 = vlaneseq
    %v3439 = vshrl.u32 %v3438, 7
    %v3440 = vsub.s32 0, %v3439
    %v3441 = vrot.slane %v3436, %v3440
    %v3507 = vunpack.c.l.b16 %v3371
    %v3508 = vunpack.c.l.b16 %v3372
    %v3509 = vunpack.c.l.b16 %v3373
    %v3510 = vunpack.c.l.b16 %v3374
    %v3511 = vunpack.c.l.b16 %v3375
    %v3512 = vunpack.c.l.b16 %v3376
    %v3513 = vunpack.c.l.b16 %v3377
    %v3514 = vunpack.c.l.b16 %v3378
    %v3515 = vunpack.c.l.b16 %v3379
    %v3516 = vunpack.c.l.b16 %v3380
    %v3517 = vunpack.c.l.b16 %v3381
    %v3518 = vunpack.c.l.b16 %v3382
    %v3519 = vunpack.c.l.b16 %v3383
    %v3520 = vunpack.c.l.b16 %v3384
    %v3521 = vunpack.c.l.b16 %v3385
    %v3522 = vunpack.c.l.b16 %v3386
    %v3523 = vunpack.c.l.b16 %v3387
    %v3524 = vunpack.c.l.b16 %v3388
    %v3525 = vunpack.c.l.b16 %v3389
    %v3526 = vunpack.c.l.b16 %v3390
    %v3527 = vunpack.c.l.b16 %v3391
    %v3528 = vunpack.c.l.b16 %v3392
    %v3529 = vunpack.c.l.b16 %v3393
    %v3530 = vunpack.c.l.b16 %v3394
    %v3531 = vunpack.c.l.b16 %v3395
    %v3532 = vunpack.c.l.b16 %v3396
    %v3533 = vunpack.c.l.b16 %v3397
    %v3534 = vunpack.c.l.b16 %v3398
    %v3535 = vunpack.c.l.b16 %v3399
    %v3536 = vunpack.c.l.b16 %v3400
    %v3537 = vunpack.c.l.b16 %v3401
    %v3538 = vunpack.c.l.b16 %v3402
    %v3539 = vunpack.c.l.b16 %v3403
    %v3540 = vunpack.c.l.b16 %v3404
    %v3541 = vunpack.c.l.b16 %v3405
    %v3542 = vunpack.c.l.b16 %v3406
    %v3543 = vunpack.c.l.b16 %v3407
    %v3544 = vunpack.c.l.b16 %v3408
    %v3545 = vunpack.c.l.b16 %v3409
    %v3546 = vunpack.c.l.b16 %v3410
    %v3547 = vunpack.c.l.b16 %v3411
    %v3548 = vunpack.c.l.b16 %v3412
    %v3549 = vunpack.c.l.b16 %v3413
    %v3550 = vunpack.c.l.b16 %v3414
    %v3551 = vunpack.c.l.b16 %v3415
    %v3552 = vunpack.c.l.b16 %v3416
    %v3553 = vunpack.c.l.b16 %v3417
    %v3554 = vunpack.c.l.b16 %v3418
    %v3555 = vunpack.c.l.b16 %v3419
    %v3556 = vunpack.c.l.b16 %v3420
    %v3557 = vunpack.c.l.b16 %v3421
    %v3558 = vunpack.c.l.b16 %v3422
    %v3559 = vunpack.c.l.b16 %v3423
    %v3560 = vunpack.c.l.b16 %v3424
    %v3561 = vunpack.c.l.b16 %v3425
    %v3562 = vunpack.c.l.b16 %v3426
    %v3563 = vunpack.c.l.b16 %v3427
    %v3564 = vunpack.c.l.b16 %v3428
    %v3565 = vunpack.c.l.b16 %v3429
    %v3566 = vunpack.c.l.b16 %v3430
    %v3567 = vunpack.c.l.b16 %v3431
    %v3568 = vunpack.c.l.b16 %v3432
    %v3569 = vunpack.c.l.b16 %v3433
    %v3570 = vunpack.c.l.b16 %v3434
    %v3571 = vpack.c.b16 %v3508, %v3507
    %v3572 = vpack.c.b16 %v3510, %v3509
    %v3573 = vpack.c.b16 %v3512, %v3511
    %v3574 = vpack.c.b16 %v3514, %v3513
    %v3575 = vpack.c.b16 %v3516, %v3515
    %v3576 = vpack.c.b16 %v3518, %v3517
    %v3577 = vpack.c.b16 %v3520, %v3519
    %v3578 = vpack.c.b16 %v3522, %v3521
    %v3579 = vpack.c.b16 %v3524, %v3523
    %v3580 = vpack.c.b16 %v3526, %v3525
    %v3581 = vpack.c.b16 %v3528, %v3527
    %v3582 = vpack.c.b16 %v3530, %v3529
    %v3583 = vpack.c.b16 %v3532, %v3531
    %v3584 = vpack.c.b16 %v3534, %v3533
    %v3585 = vpack.c.b16 %v3536, %v3535
    %v3586 = vpack.c.b16 %v3538, %v3537
    %v3587 = vpack.c.b16 %v3540, %v3539
    %v3588 = vpack.c.b16 %v3542, %v3541
    %v3589 = vpack.c.b16 %v3544, %v3543
    %v3590 = vpack.c.b16 %v3546, %v3545
    %v3591 = vpack.c.b16 %v3548, %v3547
    %v3592 = vpack.c.b16 %v3550, %v3549
    %v3593 = vpack.c.b16 %v3552, %v3551
    %v3594 = vpack.c.b16 %v3554, %v3553
    %v3595 = vpack.c.b16 %v3556, %v3555
    %v3596 = vpack.c.b16 %v3558, %v3557
    %v3597 = vpack.c.b16 %v3560, %v3559
    %v3598 = vpack.c.b16 %v3562, %v3561
    %v3599 = vpack.c.b16 %v3564, %v3563
    %v3600 = vpack.c.b16 %v3566, %v3565
    %v3601 = vpack.c.b16 %v3568, %v3567
    %v3602 = vpack.c.b16 %v3570, %v3569
    %3635 = vmatprep.subr.bf16.mxu0 0
    %3636 = vmatpush1.bf16.msra.mxu0 %v3571
    %3637 = vmatprep.subr.bf16.mxu0 0
    %3638 = vmatpush1.bf16.msra.mxu0 %v3572
    %3639 = vmatprep.subr.bf16.mxu0 0
    %3640 = vmatpush1.bf16.msra.mxu0 %v3573
    %3641 = vmatprep.subr.bf16.mxu0 0
    %3642 = vmatpush1.bf16.msra.mxu0 %v3574
    %3643 = vmatprep.subr.bf16.mxu0 0
    %3644 = vmatpush1.bf16.msra.mxu0 %v3575
    %3645 = vmatprep.subr.bf16.mxu0 0
    %3646 = vmatpush1.bf16.msra.mxu0 %v3576
    %3647 = vmatprep.subr.bf16.mxu0 0
    %3648 = vmatpush1.bf16.msra.mxu0 %v3577
    %3649 = vmatprep.subr.bf16.mxu0 0
    %3650 = vmatpush1.bf16.msra.mxu0 %v3578
    %3651 = vmatprep.subr.bf16.mxu0 0
    %3652 = vmatpush1.bf16.msra.mxu0 %v3579
    %3653 = vmatprep.subr.bf16.mxu0 0
    %3654 = vmatpush1.bf16.msra.mxu0 %v3580
    %3655 = vmatprep.subr.bf16.mxu0 0
    %3656 = vmatpush1.bf16.msra.mxu0 %v3581
    %3657 = vmatprep.subr.bf16.mxu0 0
    %3658 = vmatpush1.bf16.msra.mxu0 %v3582
    %3659 = vmatprep.subr.bf16.mxu0 0
    %3660 = vmatpush1.bf16.msra.mxu0 %v3583
    %3661 = vmatprep.subr.bf16.mxu0 0
    %3662 = vmatpush1.bf16.msra.mxu0 %v3584
    %3663 = vmatprep.subr.bf16.mxu0 0
    %3664 = vmatpush1.bf16.msra.mxu0 %v3585
    %3665 = vmatprep.subr.bf16.mxu0 0
    %3666 = vmatpush1.bf16.msra.mxu0 %v3586
    %3667 = vmatprep.mubr.bf16.mxu0 %v3367
    %3668 = vmatmul.mubr.bf16.gmra.mrb[0].mxu0 %v3366
    %v3669 = vpop.f32.mrb[0].mxu0
    %v3670 = vadd.f32 %v3441, %v3669
    %v3671 = vpop.f32.mrb[0].mxu0
    %v3672 = vpop.f32.mrb[0].mxu0
    %v3673 = vadd.f32 %v3441, %v3672
    %v3674 = vpop.f32.mrb[0].mxu0
    %3675 = vdwg.mxu0
    %3676 = vmatprep.subr.bf16.mxu0 0
    %3677 = vmatpush1.bf16.msra.mxu0 %v3587
    %3678 = vmatprep.subr.bf16.mxu0 0
    %3679 = vmatpush1.bf16.msra.mxu0 %v3588
    %3680 = vmatprep.subr.bf16.mxu0 0
    %3681 = vmatpush1.bf16.msra.mxu0 %v3589
    %3682 = vmatprep.subr.bf16.mxu0 0
    %3683 = vmatpush1.bf16.msra.mxu0 %v3590
    %3684 = vmatprep.subr.bf16.mxu0 0
    %3685 = vmatpush1.bf16.msra.mxu0 %v3591
    %3686 = vmatprep.subr.bf16.mxu0 0
    %3687 = vmatpush1.bf16.msra.mxu0 %v3592
    %3688 = vmatprep.subr.bf16.mxu0 0
    %3689 = vmatpush1.bf16.msra.mxu0 %v3593
    %3690 = vmatprep.subr.bf16.mxu0 0
    %3691 = vmatpush1.bf16.msra.mxu0 %v3594
    %3692 = vmatprep.subr.bf16.mxu0 0
    %3693 = vmatpush1.bf16.msra.mxu0 %v3595
    %3694 = vmatprep.subr.bf16.mxu0 0
    %3695 = vmatpush1.bf16.msra.mxu0 %v3596
    %3696 = vmatprep.subr.bf16.mxu0 0
    %3697 = vmatpush1.bf16.msra.mxu0 %v3597
    %3698 = vmatprep.subr.bf16.mxu0 0
    %3699 = vmatpush1.bf16.msra.mxu0 %v3598
    %3700 = vmatprep.subr.bf16.mxu0 0
    %3701 = vmatpush1.bf16.msra.mxu0 %v3599
    %3702 = vmatprep.subr.bf16.mxu0 0
    %3703 = vmatpush1.bf16.msra.mxu0 %v3600
    %3704 = vmatprep.subr.bf16.mxu0 0
    %3705 = vmatpush1.bf16.msra.mxu0 %v3601
    %3706 = vmatprep.subr.bf16.mxu0 0
    %3707 = vmatpush1.bf16.msra.mxu0 %v3602
    %3708 = vmatprep.mubr.bf16.mxu0 %v3369
    %3709 = vmatmul.mubr.bf16.gmra.mrb[0].mxu0 %v3368
    %v3710 = vpop.f32.mrb[0].mxu0
    %v3711 = vadd.f32 %v3670, %v3710
    %v3712 = vpop.f32.mrb[0].mxu0
    %v3713 = vpop.f32.mrb[0].mxu0
    %v3714 = vadd.f32 %v3673, %v3713
    %v3715 = vpop.f32.mrb[0].mxu0
    %3716 = vdwg.mxu0
    %v3717 = vadd.f32 %v2845, %v3711
    %v3718 = vadd.f32 %v2846, %v3714
    %s3719 = scalar_lea.vmem [#allocation20], 3
    %v3720 = vld [vmem:[%s3719] sm:$0x1]
    %s3721 = scalar_lea.vmem [#allocation22], 3
    %v3722 = vld [vmem:[%s3721] sm:$0x1]
    %3723 = vadd.xlane.f32.xlu0 %v3717
    %v3724 = vpop.xlane.xlu0 %3723
    %3725 = vadd.xlane.f32.xlu0 %v3718
    %v3726 = vpop.xlane.xlu0 %3725
    %v3727 = vmul.f32 %v3724, %v1234
    %v3728 = vmul.f32 %v3726, %v1234
    %v3729 = vsub.f32 %v3717, %v3727
    %v3730 = vsub.f32 %v3718, %v3728
    %v3731 = vmul.f32 %v3729, %v3729
    %v3732 = vmul.f32 %v3730, %v3730
    %3733 = vadd.xlane.f32.xlu0 %v3731
    %v3734 = vpop.xlane.xlu0 %3733
    %3735 = vadd.xlane.f32.xlu0 %v3732
    %v3736 = vpop.xlane.xlu0 %3735
    %v3737 = vmul.f32 %v3734, %v1234
    %v3738 = vmul.f32 %v3736, %v1234
    %v3739 = vadd.f32 %v3737, 1e-05
    %v3740 = vadd.f32 %v3738, 1e-05
    %v3741 = vrsqrt.pop %v3739
    %v3742 = vrsqrt.pop %v3740
    %v3743 = vmul.f32 %v3729, %v3741
    %v3744 = vmul.f32 %v3730, %v3742
    %v3746 = vlaneseq
    %v3747 = vshrl.u32 %v3746, 7
    %v3748 = vsub.s32 0, %v3747
    %v3749 = vrot.slane %v3720, %v3748
    %v3751 = vmul.f32 %v3743, %v3749
    %v3752 = vmul.f32 %v3744, %v3749
    %v3754 = vlaneseq
    %v3755 = vshrl.u32 %v3754, 7
    %v3756 = vsub.s32 0, %v3755
    %v3757 = vrot.slane %v3722, %v3756
    %v3759 = vadd.f32 %v3751, %v3757
    %v3760 = vadd.f32 %v3752, %v3757
    %s3761 = scalar_lea.vmem [#allocation16], 384
    %v3762 = vld [vmem:[%s3761] sm:$0xff]
    %v3763 = vld [vmem:[%s3761 + $0x8] sm:$0xf]
    %v3764 = vld [vmem:[%s3761 + $0xc] sm:$0xff]
    %v3765 = vld [vmem:[%s3761 + $0x14] sm:$0xf]
    %v3766 = vld [vmem:[%s3761 + $0x18] sm:$0xff]
    %v3767 = vld [vmem:[%s3761 + $0x20] sm:$0xf]
    %v3768 = vld [vmem:[%s3761 + $0x24] sm:$0xff]
    %v3769 = vld [vmem:[%s3761 + $0x2c] sm:$0xf]
    %v3770 = vld [vmem:[%s3761 + $0x30] sm:$0xff]
    %v3771 = vld [vmem:[%s3761 + $0x38] sm:$0xf]
    %v3772 = vld [vmem:[%s3761 + $0x3c] sm:$0xff]
    %v3773 = vld [vmem:[%s3761 + $0x44] sm:$0xf]
    %v3774 = vld [vmem:[%s3761 + $0x48] sm:$0xff]
    %v3775 = vld [vmem:[%s3761 + $0x50] sm:$0xf]
    %v3776 = vld [vmem:[%s3761 + $0x54] sm:$0xff]
    %v3777 = vld [vmem:[%s3761 + $0x5c] sm:$0xf]
    %v3778 = vld [vmem:[%s3761 + $0x60] sm:$0xff]
    %v3779 = vld [vmem:[%s3761 + $0x68] sm:$0xf]
    %v3780 = vld [vmem:[%s3761 + $0x6c] sm:$0xff]
    %v3781 = vld [vmem:[%s3761 + $0x74] sm:$0xf]
    %v3782 = vld [vmem:[%s3761 + $0x78] sm:$0xff]
    %v3783 = vld [vmem:[%s3761 + $0x80] sm:$0xf]
    %v3784 = vld [vmem:[%s3761 + $0x84] sm:$0xff]
    %v3785 = vld [vmem:[%s3761 + $0x8c] sm:$0xf]
    %v3786 = vld [vmem:[%s3761 + $0x90] sm:$0xff]
    %v3787 = vld [vmem:[%s3761 + $0x98] sm:$0xf]
    %v3788 = vld [vmem:[%s3761 + $0x9c] sm:$0xff]
    %v3789 = vld [vmem:[%s3761 + $0xa4] sm:$0xf]
    %v3790 = vld [vmem:[%s3761 + $0xa8] sm:$0xff]
    %v3791 = vld [vmem:[%s3761 + $0xb0] sm:$0xf]
    %v3792 = vld [vmem:[%s3761 + $0xb4] sm:$0xff]
    %v3793 = vld [vmem:[%s3761 + $0xbc] sm:$0xf]
    %s3794 = scalar_lea.vmem [#allocation17], 6
    %v3795 = vld [vmem:[%s3794] sm:$0x7]
    %v3797 = vlaneseq
    %v3798 = vshrl.u32 %v3797, 7
    %v3799 = vsub.s32 0, %v3798
    %v3800 = vrot.slane %v3795, %v3799
    %v3801 = vlaneseq
    %v3802 = vshrl.u32 %v3801, 7
    %v3803 = vsub.s32 1, %v3802
    %v3804 = vrot.slane %v3795, %v3803
    %v3805 = vlaneseq
    %v3806 = vshrl.u32 %v3805, 7
    %v3807 = vsub.s32 2, %v3806
    %v3808 = vrot.slane %v3795, %v3807
    %v3844 = vunpack.c.l.b16 %v3762
    %v3845 = vunpack.c.h.b16 %v3762
    %v3846 = vunpack.c.l.b16 %v3763
    %v3847 = vunpack.c.l.b16 %v3764
    %v3848 = vunpack.c.h.b16 %v3764
    %v3849 = vunpack.c.l.b16 %v3765
    %v3850 = vunpack.c.l.b16 %v3766
    %v3851 = vunpack.c.h.b16 %v3766
    %v3852 = vunpack.c.l.b16 %v3767
    %v3853 = vunpack.c.l.b16 %v3768
    %v3854 = vunpack.c.h.b16 %v3768
    %v3855 = vunpack.c.l.b16 %v3769
    %v3856 = vunpack.c.l.b16 %v3770
    %v3857 = vunpack.c.h.b16 %v3770
    %v3858 = vunpack.c.l.b16 %v3771
    %v3859 = vunpack.c.l.b16 %v3772
    %v3860 = vunpack.c.h.b16 %v3772
    %v3861 = vunpack.c.l.b16 %v3773
    %v3862 = vunpack.c.l.b16 %v3774
    %v3863 = vunpack.c.h.b16 %v3774
    %v3864 = vunpack.c.l.b16 %v3775
    %v3865 = vunpack.c.l.b16 %v3776
    %v3866 = vunpack.c.h.b16 %v3776
    %v3867 = vunpack.c.l.b16 %v3777
    %v3868 = vunpack.c.l.b16 %v3778
    %v3869 = vunpack.c.h.b16 %v3778
    %v3870 = vunpack.c.l.b16 %v3779
    %v3871 = vunpack.c.l.b16 %v3780
    %v3872 = vunpack.c.h.b16 %v3780
    %v3873 = vunpack.c.l.b16 %v3781
    %v3874 = vunpack.c.l.b16 %v3782
    %v3875 = vunpack.c.h.b16 %v3782
    %v3876 = vunpack.c.l.b16 %v3783
    %v3877 = vunpack.c.l.b16 %v3784
    %v3878 = vunpack.c.h.b16 %v3784
    %v3879 = vunpack.c.l.b16 %v3785
    %v3880 = vunpack.c.l.b16 %v3786
    %v3881 = vunpack.c.h.b16 %v3786
    %v3882 = vunpack.c.l.b16 %v3787
    %v3883 = vunpack.c.l.b16 %v3788
    %v3884 = vunpack.c.h.b16 %v3788
    %v3885 = vunpack.c.l.b16 %v3789
    %v3886 = vunpack.c.l.b16 %v3790
    %v3887 = vunpack.c.h.b16 %v3790
    %v3888 = vunpack.c.l.b16 %v3791
    %v3889 = vunpack.c.l.b16 %v3792
    %v3890 = vunpack.c.h.b16 %v3792
    %v3891 = vunpack.c.l.b16 %v3793
    %v3892 = vpack.c.b16 %v3847, %v3844
    %v3893 = vpack.c.b16 %v3848, %v3845
    %v3894 = vpack.c.b16 %v3849, %v3846
    %v3895 = vpack.c.b16 %v3853, %v3850
    %v3896 = vpack.c.b16 %v3854, %v3851
    %v3897 = vpack.c.b16 %v3855, %v3852
    %v3898 = vpack.c.b16 %v3859, %v3856
    %v3899 = vpack.c.b16 %v3860, %v3857
    %v3900 = vpack.c.b16 %v3861, %v3858
    %v3901 = vpack.c.b16 %v3865, %v3862
    %v3902 = vpack.c.b16 %v3866, %v3863
    %v3903 = vpack.c.b16 %v3867, %v3864
    %v3904 = vpack.c.b16 %v3871, %v3868
    %v3905 = vpack.c.b16 %v3872, %v3869
    %v3906 = vpack.c.b16 %v3873, %v3870
    %v3907 = vpack.c.b16 %v3877, %v3874
    %v3908 = vpack.c.b16 %v3878, %v3875
    %v3909 = vpack.c.b16 %v3879, %v3876
    %v3910 = vpack.c.b16 %v3883, %v3880
    %v3911 = vpack.c.b16 %v3884, %v3881
    %v3912 = vpack.c.b16 %v3885, %v3882
    %v3913 = vpack.c.b16 %v3889, %v3886
    %v3914 = vpack.c.b16 %v3890, %v3887
    %v3915 = vpack.c.b16 %v3891, %v3888
    %3940 = vmatprep.subr.bf16.mxu0 %v3893
    %3941 = vmatpush1.bf16.msra.mxu0 %v3892
    %3942 = vmatprep.subr.bf16.mxu0 %v3896
    %3943 = vmatpush1.bf16.msra.mxu0 %v3895
    %3944 = vmatprep.subr.bf16.mxu0 %v3899
    %3945 = vmatpush1.bf16.msra.mxu0 %v3898
    %3946 = vmatprep.subr.bf16.mxu0 %v3902
    %3947 = vmatpush1.bf16.msra.mxu0 %v3901
    %3948 = vmatprep.subr.bf16.mxu0 %v3905
    %3949 = vmatpush1.bf16.msra.mxu0 %v3904
    %3950 = vmatprep.subr.bf16.mxu0 %v3908
    %3951 = vmatpush1.bf16.msra.mxu0 %v3907
    %3952 = vmatprep.subr.bf16.mxu0 %v3911
    %3953 = vmatpush1.bf16.msra.mxu0 %v3910
    %3954 = vmatprep.subr.bf16.mxu0 %v3914
    %3955 = vmatpush1.bf16.msra.mxu0 %v3913
    %3956 = vmatprep.subr.bf16.mxu0 0
    %3957 = vmatpush1.bf16.msra.mxu0 0
    %3958 = vmatprep.subr.bf16.mxu0 0
    %3959 = vmatpush1.bf16.msra.mxu0 0
    %3960 = vmatprep.subr.bf16.mxu0 0
    %3961 = vmatpush1.bf16.msra.mxu0 0
    %3962 = vmatprep.subr.bf16.mxu0 0
    %3963 = vmatpush1.bf16.msra.mxu0 0
    %3964 = vmatprep.subr.bf16.mxu0 0
    %3965 = vmatpush1.bf16.msra.mxu0 0
    %3966 = vmatprep.subr.bf16.mxu0 0
    %3967 = vmatpush1.bf16.msra.mxu0 0
    %3968 = vmatprep.subr.bf16.mxu0 0
    %3969 = vmatpush1.bf16.msra.mxu0 0
    %3970 = vmatprep.subr.bf16.mxu0 0
    %3971 = vmatpush1.bf16.msra.mxu0 0
    %3972 = vmatprep.mubr.bf16.mxu0 0
    %3973 = vmatmul.mubr.bf16.gmra.mrb[0].mxu0 %v585
    %v3974 = vpop.f32.mrb[0].mxu0
    %v3975 = vpop.f32.mrb[0].mxu0
    %v3976 = vadd.f32 %v3804, %v3975
    %v3977 = vpop.f32.mrb[0].mxu0
    %v3978 = vpop.f32.mrb[0].mxu0
    %v3979 = vadd.f32 %v3804, %v3978
    %3980 = vmatprep.mubr.bf16.mxu0 0
    %3981 = vmatmul.mubr.bf16.gmra.mrb[0].mxu0 %v586
    %v3982 = vpop.f32.mrb[0].mxu0
    %v3983 = vpop.f32.mrb[0].mxu0
    %v3984 = vadd.f32 %v3804, %v3983
    %v3985 = vpop.f32.mrb[0].mxu0
    %v3986 = vpop.f32.mrb[0].mxu0
    %v3987 = vadd.f32 %v3804, %v3986
    %3988 = vmatprep.mubr.bf16.mxu0 0
    %3989 = vmatmul.mubr.bf16.gmra.mrb[0].mxu0 %v587
    %v3990 = vpop.f32.mrb[0].mxu0
    %v3991 = vadd.f32 %v3800, %v3990
    %v3992 = vpop.f32.mrb[0].mxu0
    %v3993 = vpop.f32.mrb[0].mxu0
    %v3994 = vadd.f32 %v3800, %v3993
    %v3995 = vpop.f32.mrb[0].mxu0
    %3996 = vdwg.mxu0
    %3997 = vmatprep.subr.bf16.mxu0 0
    %3998 = vmatpush1.bf16.msra.mxu0 %v3894
    %3999 = vmatprep.subr.bf16.mxu0 0
    %4000 = vmatpush1.bf16.msra.mxu0 %v3897
    %4001 = vmatprep.subr.bf16.mxu0 0
    %4002 = vmatpush1.bf16.msra.mxu0 %v3900
    %4003 = vmatprep.subr.bf16.mxu0 0
    %4004 = vmatpush1.bf16.msra.mxu0 %v3903
    %4005 = vmatprep.subr.bf16.mxu0 0
    %4006 = vmatpush1.bf16.msra.mxu0 %v3906
    %4007 = vmatprep.subr.bf16.mxu0 0
    %4008 = vmatpush1.bf16.msra.mxu0 %v3909
    %4009 = vmatprep.subr.bf16.mxu0 0
    %4010 = vmatpush1.bf16.msra.mxu0 %v3912
    %4011 = vmatprep.subr.bf16.mxu0 0
    %4012 = vmatpush1.bf16.msra.mxu0 %v3915
    %4013 = vmatprep.subr.bf16.mxu0 0
    %4014 = vmatpush1.bf16.msra.mxu0 0
    %4015 = vmatprep.subr.bf16.mxu0 0
    %4016 = vmatpush1.bf16.msra.mxu0 0
    %4017 = vmatprep.subr.bf16.mxu0 0
    %4018 = vmatpush1.bf16.msra.mxu0 0
    %4019 = vmatprep.subr.bf16.mxu0 0
    %4020 = vmatpush1.bf16.msra.mxu0 0
    %4021 = vmatprep.subr.bf16.mxu0 0
    %4022 = vmatpush1.bf16.msra.mxu0 0
    %4023 = vmatprep.subr.bf16.mxu0 0
    %4024 = vmatpush1.bf16.msra.mxu0 0
    %4025 = vmatprep.subr.bf16.mxu0 0
    %4026 = vmatpush1.bf16.msra.mxu0 0
    %4027 = vmatprep.subr.bf16.mxu0 0
    %4028 = vmatpush1.bf16.msra.mxu0 0
    %4029 = vmatprep.mubr.bf16.mxu0 0
    %4030 = vmatmul.mubr.bf16.gmra.mrb[0].mxu0 %v585
    %v4031 = vpop.f32.mrb[0].mxu0
    %v4032 = vadd.f32 %v3808, %v4031
    %v4033 = vpop.f32.mrb[0].mxu0
    %v4034 = vpop.f32.mrb[0].mxu0
    %v4035 = vadd.f32 %v3808, %v4034
    %v4036 = vpop.f32.mrb[0].mxu0
    %4037 = vmatprep.mubr.bf16.mxu0 0
    %4038 = vmatmul.mubr.bf16.gmra.mrb[0].mxu0 %v586
    %v4039 = vpop.f32.mrb[0].mxu0
    %v4040 = vadd.f32 %v3808, %v4039
    %v4041 = vpop.f32.mrb[0].mxu0
    %v4042 = vpop.f32.mrb[0].mxu0
    %v4043 = vadd.f32 %v3808, %v4042
    %v4044 = vpop.f32.mrb[0].mxu0
    %4045 = vmatprep.mubr.bf16.mxu0 0
    %4046 = vmatmul.mubr.bf16.gmra.mrb[0].mxu0 %v587
    %v4047 = vpop.f32.mrb[0].mxu0
    %v4048 = vpop.f32.mrb[0].mxu0
    %v4049 = vpop.f32.mrb[0].mxu0
    %v4050 = vpop.f32.mrb[0].mxu0
    %4051 = vdwg.mxu0
    %v4052 = vmul.f32 %v3991, %v3976
    %v4053 = vmul.f32 %v3994, %v3979
    %v4054 = vmul.f32 %v3991, %v3984
    %v4055 = vmul.f32 %v3994, %v3987
    %4056 = vmatprep.subr.mxu0 0.0
    %4057 = vmatpush1.msra.mxu0 %v588
    %4058 = vmatprep.subr.mxu0 0.0
    %4059 = vmatpush1.msra.mxu0 %v589
    %4060 = vmatprep.subr.mxu0 0.0
    %4061 = vmatpush1.msra.mxu0 %v590
    %4062 = vmatprep.subr.mxu0 0.0
    %4063 = vmatpush1.msra.mxu0 %v591
    %4064 = vmatprep.subr.mxu0 0.0
    %4065 = vmatpush1.msra.mxu0 %v592
    %4066 = vmatprep.subr.mxu0 0.0
    %4067 = vmatpush1.msra.mxu0 %v593
    %4068 = vmatprep.subr.mxu0 0.0
    %4069 = vmatpush1.msra.mxu0 %v594
    %4070 = vmatprep.subr.mxu0 0.0
    %4071 = vmatpush1.msra.mxu0 %v595
    %4072 = vmatprep.subr.mxu0 0.0
    %4073 = vmatpush1.msra.mxu0 %v596
    %4074 = vmatprep.subr.mxu0 0.0
    %4075 = vmatpush1.msra.mxu0 %v597
    %4076 = vmatprep.subr.mxu0 0.0
    %4077 = vmatpush1.msra.mxu0 %v598
    %4078 = vmatprep.subr.mxu0 0.0
    %4079 = vmatpush1.msra.mxu0 %v599
    %4080 = vmatprep.subr.mxu0 0.0
    %4081 = vmatpush1.msra.mxu0 %v600
    %4082 = vmatprep.subr.mxu0 0.0
    %4083 = vmatpush1.msra.mxu0 %v601
    %4084 = vmatprep.subr.mxu0 0.0
    %4085 = vmatpush1.msra.mxu0 %v602
    %4086 = vmatprep.subr.mxu0 0.0
    %4087 = vmatpush1.msra.mxu0 %v603
    %4088 = vmatprep.subr.mxu0 0.0
    %4089 = vmatpush1.msra.mxu0 0.0
    %4090 = vmatprep.subr.mxu0 0.0
    %4091 = vmatpush1.msra.mxu0 0.0
    %4092 = vmatprep.subr.mxu0 0.0
    %4093 = vmatpush1.msra.mxu0 0.0
    %4094 = vmatprep.subr.mxu0 0.0
    %4095 = vmatpush1.msra.mxu0 0.0
    %4096 = vmatprep.subr.mxu0 0.0
    %4097 = vmatpush1.msra.mxu0 0.0
    %4098 = vmatprep.subr.mxu0 0.0
    %4099 = vmatpush1.msra.mxu0 0.0
    %4100 = vmatprep.subr.mxu0 0.0
    %4101 = vmatpush1.msra.mxu0 0.0
    %4102 = vmatprep.subr.mxu0 0.0
    %4103 = vmatpush1.msra.mxu0 0.0
    %4104 = vmatprep.subr.mxu0 0.0
    %4105 = vmatpush1.msra.mxu0 0.0
    %4106 = vmatprep.subr.mxu0 0.0
    %4107 = vmatpush1.msra.mxu0 0.0
    %4108 = vmatprep.subr.mxu0 0.0
    %4109 = vmatpush1.msra.mxu0 0.0
    %4110 = vmatprep.subr.mxu0 0.0
    %4111 = vmatpush1.msra.mxu0 0.0
    %4112 = vmatprep.subr.mxu0 0.0
    %4113 = vmatpush1.msra.mxu0 0.0
    %4114 = vmatprep.subr.mxu0 0.0
    %4115 = vmatpush1.msra.mxu0 0.0
    %4116 = vmatprep.subr.mxu0 0.0
    %4117 = vmatpush1.msra.mxu0 0.0
    %4118 = vmatprep.subr.mxu0 0.0
    %4119 = vmatpush1.msra.mxu0 0.0
    %4120 = vmatprep.mubr.f32.mxu0 0.0
    %4121 = vmatmul.mubr.f32.gmra.mrb[0].mxu0 %v4052
    %v4122 = vpop.f32.mrb[0].mxu0
    %v4123 = vadd.f32 0.0, %v4122
    %v4124 = vpop.f32.mrb[0].mxu0
    %4125 = vmatprep.mubr.f32.mxu0 0.0
    %4126 = vmatmul.mubr.f32.gmra.mrb[0].mxu0 %v4053
    %v4127 = vpop.f32.mrb[0].mxu0
    %v4128 = vadd.f32 0.0, %v4127
    %v4129 = vpop.f32.mrb[0].mxu0
    %4130 = vmatprep.mubr.f32.mxu0 0.0
    %4131 = vmatmul.mubr.f32.gmra.mrb[0].mxu0 %v4054
    %v4132 = vpop.f32.mrb[0].mxu0
    %v4133 = vadd.f32 0.0, %v4132
    %v4134 = vpop.f32.mrb[0].mxu0
    %4135 = vmatprep.mubr.f32.mxu0 0.0
    %4136 = vmatmul.mubr.f32.gmra.mrb[0].mxu0 %v4055
    %v4137 = vpop.f32.mrb[0].mxu0
    %v4138 = vadd.f32 0.0, %v4137
    %v4139 = vpop.f32.mrb[0].mxu0
    %4140 = vdwg.mxu0
    %v4141 = vmul.f32 %v4123, 0.25
    %v4142 = vmul.f32 %v4128, 0.25
    %v4143 = vmul.f32 %v4133, 0.25
    %v4144 = vmul.f32 %v4138, 0.25
    %v4145 = vmax.f32 %v4141, %v4143
    %v4146 = vmax.f32 %v4142, %v4144
    %v4147 = vsub.f32 %v4141, %v4145
    %v4148 = vsub.f32 %v4142, %v4146
    %v4149 = vmul.f32 %v4147, 1.442695
    %v4150 = vpow.pop %v4149
    %v4151 = vmul.f32 %v4148, 1.442695
    %v4152 = vpow.pop %v4151
    %v4153 = vsub.f32 %v4143, %v4145
    %v4154 = vsub.f32 %v4144, %v4146
    %v4155 = vmul.f32 %v4153, 1.442695
    %v4156 = vpow.pop %v4155
    %v4157 = vmul.f32 %v4154, 1.442695
    %v4158 = vpow.pop %v4157
    %v4159 = vadd.f32 %v4150, %v4156
    %v4160 = vadd.f32 %v4152, %v4158
    %v4161 = vrcp.pop %v4159
    %v4162 = vrcp.pop %v4160
    %v4163 = vmul.f32 %v4150, %v4161
    %v4164 = vmul.f32 %v4152, %v4162
    %v4165 = vmul.f32 %v4156, %v4161
    %v4166 = vmul.f32 %v4158, %v4162
    %v4168 = vsel %vm1009, %v4163, 0
    %v4171 = vsel %vm1009, %v4164, 0
    %v4174 = vsel %vm1009, %v4165, 0
    %v4177 = vsel %vm1009, %v4166, 0
    %4179 = vmatprep.subr.mxu0 0.0
    %4180 = vmatpush1.msra.mxu0 %v604
    %4181 = vmatprep.subr.mxu0 0.0
    %4182 = vmatpush1.msra.mxu0 0.0
    %4183 = vmatprep.subr.mxu0 0.0
    %4184 = vmatpush1.msra.mxu0 0.0
    %4185 = vmatprep.subr.mxu0 0.0
    %4186 = vmatpush1.msra.mxu0 0.0
    %4187 = vmatprep.subr.mxu0 0.0
    %4188 = vmatpush1.msra.mxu0 0.0
    %4189 = vmatprep.subr.mxu0 0.0
    %4190 = vmatpush1.msra.mxu0 0.0
    %4191 = vmatprep.subr.mxu0 0.0
    %4192 = vmatpush1.msra.mxu0 0.0
    %4193 = vmatprep.subr.mxu0 0.0
    %4194 = vmatpush1.msra.mxu0 0.0
    %4195 = vmatprep.subr.mxu0 0.0
    %4196 = vmatpush1.msra.mxu0 0.0
    %4197 = vmatprep.subr.mxu0 0.0
    %4198 = vmatpush1.msra.mxu0 0.0
    %4199 = vmatprep.subr.mxu0 0.0
    %4200 = vmatpush1.msra.mxu0 0.0
    %4201 = vmatprep.subr.mxu0 0.0
    %4202 = vmatpush1.msra.mxu0 0.0
    %4203 = vmatprep.subr.mxu0 0.0
    %4204 = vmatpush1.msra.mxu0 0.0
    %4205 = vmatprep.subr.mxu0 0.0
    %4206 = vmatpush1.msra.mxu0 0.0
    %4207 = vmatprep.subr.mxu0 0.0
    %4208 = vmatpush1.msra.mxu0 0.0
    %4209 = vmatprep.subr.mxu0 0.0
    %4210 = vmatpush1.msra.mxu0 0.0
    %4211 = vmatprep.subr.mxu0 0.0
    %4212 = vmatpush1.msra.mxu0 0.0
    %4213 = vmatprep.subr.mxu0 0.0
    %4214 = vmatpush1.msra.mxu0 0.0
    %4215 = vmatprep.subr.mxu0 0.0
    %4216 = vmatpush1.msra.mxu0 0.0
    %4217 = vmatprep.subr.mxu0 0.0
    %4218 = vmatpush1.msra.mxu0 0.0
    %4219 = vmatprep.subr.mxu0 0.0
    %4220 = vmatpush1.msra.mxu0 0.0
    %4221 = vmatprep.subr.mxu0 0.0
    %4222 = vmatpush1.msra.mxu0 0.0
    %4223 = vmatprep.subr.mxu0 0.0
    %4224 = vmatpush1.msra.mxu0 0.0
    %4225 = vmatprep.subr.mxu0 0.0
    %4226 = vmatpush1.msra.mxu0 0.0
    %4227 = vmatprep.subr.mxu0 0.0
    %4228 = vmatpush1.msra.mxu0 0.0
    %4229 = vmatprep.subr.mxu0 0.0
    %4230 = vmatpush1.msra.mxu0 0.0
    %4231 = vmatprep.subr.mxu0 0.0
    %4232 = vmatpush1.msra.mxu0 0.0
    %4233 = vmatprep.subr.mxu0 0.0
    %4234 = vmatpush1.msra.mxu0 0.0
    %4235 = vmatprep.subr.mxu0 0.0
    %4236 = vmatpush1.msra.mxu0 0.0
    %4237 = vmatprep.subr.mxu0 0.0
    %4238 = vmatpush1.msra.mxu0 0.0
    %4239 = vmatprep.subr.mxu0 0.0
    %4240 = vmatpush1.msra.mxu0 0.0
    %4241 = vmatprep.subr.mxu0 0.0
    %4242 = vmatpush1.msra.mxu0 0.0
    %4243 = vmatprep.mubr.f32.mxu0 0.0
    %4244 = vmatmul.mubr.f32.gmra.mrb[0].mxu0 %v4168
    %v4245 = vpop.f32.mrb[0].mxu0
    %v4246 = vadd.f32 0.0, %v4245
    %v4247 = vpop.f32.mrb[0].mxu0
    %4248 = vmatprep.mubr.f32.mxu0 0.0
    %4249 = vmatmul.mubr.f32.gmra.mrb[0].mxu0 %v4171
    %v4250 = vpop.f32.mrb[0].mxu0
    %v4251 = vadd.f32 0.0, %v4250
    %v4252 = vpop.f32.mrb[0].mxu0
    %4253 = vmatprep.mubr.f32.mxu0 0.0
    %4254 = vmatmul.mubr.f32.gmra.mrb[0].mxu0 %v4174
    %v4255 = vpop.f32.mrb[0].mxu0
    %v4256 = vadd.f32 0.0, %v4255
    %v4257 = vpop.f32.mrb[0].mxu0
    %4258 = vmatprep.mubr.f32.mxu0 0.0
    %4259 = vmatmul.mubr.f32.gmra.mrb[0].mxu0 %v4177
    %v4260 = vpop.f32.mrb[0].mxu0
    %v4261 = vadd.f32 0.0, %v4260
    %v4262 = vpop.f32.mrb[0].mxu0
    %4263 = vdwg.mxu0
    %v4264 = vmul.f32 %v4246, %v4032
    %v4265 = vmul.f32 %v4251, %v4035
    %v4266 = vmul.f32 %v4256, %v4040
    %v4267 = vmul.f32 %v4261, %v4043
    %v4268 = vadd.f32 %v4264, %v4266
    %v4269 = vadd.f32 %v4265, %v4267
    %v4270 = vpack.c.bf16 %v4269, %v4268
    %s4271 = scalar_lea.vmem [#allocation19], 128
    %v4272 = vld [vmem:[%s4271] sm:$0xf]
    %v4273 = vld [vmem:[%s4271 + $0x4] sm:$0xf]
    %v4274 = vld [vmem:[%s4271 + $0x8] sm:$0xf]
    %v4275 = vld [vmem:[%s4271 + $0xc] sm:$0xf]
    %v4276 = vld [vmem:[%s4271 + $0x10] sm:$0xf]
    %v4277 = vld [vmem:[%s4271 + $0x14] sm:$0xf]
    %v4278 = vld [vmem:[%s4271 + $0x18] sm:$0xf]
    %v4279 = vld [vmem:[%s4271 + $0x1c] sm:$0xf]
    %v4280 = vld [vmem:[%s4271 + $0x20] sm:$0xf]
    %v4281 = vld [vmem:[%s4271 + $0x24] sm:$0xf]
    %v4282 = vld [vmem:[%s4271 + $0x28] sm:$0xf]
    %v4283 = vld [vmem:[%s4271 + $0x2c] sm:$0xf]
    %v4284 = vld [vmem:[%s4271 + $0x30] sm:$0xf]
    %v4285 = vld [vmem:[%s4271 + $0x34] sm:$0xf]
    %v4286 = vld [vmem:[%s4271 + $0x38] sm:$0xf]
    %v4287 = vld [vmem:[%s4271 + $0x3c] sm:$0xf]
    %s4288 = scalar_lea.vmem %s14, 2
    %v4289 = vld [vmem:[%s4288] sm:$0x1]
    %v4291 = vlaneseq
    %v4292 = vshrl.u32 %v4291, 7
    %v4293 = vsub.s32 0, %v4292
    %v4294 = vrot.slane %v4289, %v4293
    %v4312 = vunpack.c.l.b16 %v4272
    %v4313 = vunpack.c.l.b16 %v4273
    %v4314 = vunpack.c.l.b16 %v4274
    %v4315 = vunpack.c.l.b16 %v4275
    %v4316 = vunpack.c.l.b16 %v4276
    %v4317 = vunpack.c.l.b16 %v4277
    %v4318 = vunpack.c.l.b16 %v4278
    %v4319 = vunpack.c.l.b16 %v4279
    %v4320 = vunpack.c.l.b16 %v4280
    %v4321 = vunpack.c.l.b16 %v4281
    %v4322 = vunpack.c.l.b16 %v4282
    %v4323 = vunpack.c.l.b16 %v4283
    %v4324 = vunpack.c.l.b16 %v4284
    %v4325 = vunpack.c.l.b16 %v4285
    %v4326 = vunpack.c.l.b16 %v4286
    %v4327 = vunpack.c.l.b16 %v4287
    %v4328 = vpack.c.b16 %v4313, %v4312
    %v4329 = vpack.c.b16 %v4315, %v4314
    %v4330 = vpack.c.b16 %v4317, %v4316
    %v4331 = vpack.c.b16 %v4319, %v4318
    %v4332 = vpack.c.b16 %v4321, %v4320
    %v4333 = vpack.c.b16 %v4323, %v4322
    %v4334 = vpack.c.b16 %v4325, %v4324
    %v4335 = vpack.c.b16 %v4327, %v4326
    %4344 = vmatprep.subr.bf16.mxu0 0
    %4345 = vmatpush1.bf16.msra.mxu0 %v4328
    %4346 = vmatprep.subr.bf16.mxu0 0
    %4347 = vmatpush1.bf16.msra.mxu0 %v4329
    %4348 = vmatprep.subr.bf16.mxu0 0
    %4349 = vmatpush1.bf16.msra.mxu0 %v4330
    %4350 = vmatprep.subr.bf16.mxu0 0
    %4351 = vmatpush1.bf16.msra.mxu0 %v4331
    %4352 = vmatprep.subr.bf16.mxu0 0
    %4353 = vmatpush1.bf16.msra.mxu0 %v4332
    %4354 = vmatprep.subr.bf16.mxu0 0
    %4355 = vmatpush1.bf16.msra.mxu0 %v4333
    %4356 = vmatprep.subr.bf16.mxu0 0
    %4357 = vmatpush1.bf16.msra.mxu0 %v4334
    %4358 = vmatprep.subr.bf16.mxu0 0
    %4359 = vmatpush1.bf16.msra.mxu0 %v4335
    %4360 = vmatprep.subr.bf16.mxu0 0
    %4361 = vmatpush1.bf16.msra.mxu0 0
    %4362 = vmatprep.subr.bf16.mxu0 0
    %4363 = vmatpush1.bf16.msra.mxu0 0
    %4364 = vmatprep.subr.bf16.mxu0 0
    %4365 = vmatpush1.bf16.msra.mxu0 0
    %4366 = vmatprep.subr.bf16.mxu0 0
    %4367 = vmatpush1.bf16.msra.mxu0 0
    %4368 = vmatprep.subr.bf16.mxu0 0
    %4369 = vmatpush1.bf16.msra.mxu0 0
    %4370 = vmatprep.subr.bf16.mxu0 0
    %4371 = vmatpush1.bf16.msra.mxu0 0
    %4372 = vmatprep.subr.bf16.mxu0 0
    %4373 = vmatpush1.bf16.msra.mxu0 0
    %4374 = vmatprep.subr.bf16.mxu0 0
    %4375 = vmatpush1.bf16.msra.mxu0 0
    %4376 = vmatprep.mubr.bf16.mxu0 0
    %4377 = vmatmul.mubr.bf16.gmra.mrb[0].mxu0 %v4270
    %v4378 = vpop.f32.mrb[0].mxu0
    %v4379 = vadd.f32 %v4294, %v4378
    %v4380 = vpop.f32.mrb[0].mxu0
    %v4381 = vpop.f32.mrb[0].mxu0
    %v4382 = vadd.f32 %v4294, %v4381
    %v4383 = vpop.f32.mrb[0].mxu0
    %4384 = vdwg.mxu0
    %v4385 = vadd.f32 %v579, %v4379
    %v4386 = vadd.f32 %v582, %v4382
    %s4387 = scalar_lea.vmem [#allocation20], 4
    %v4388 = vld [vmem:[%s4387] sm:$0x1]
    %s4389 = scalar_lea.vmem [#allocation22], 4
    %v4390 = vld [vmem:[%s4389] sm:$0x1]
    %4391 = vadd.xlane.f32.xlu0 %v4385
    %v4392 = vpop.xlane.xlu0 %4391
    %4393 = vadd.xlane.f32.xlu0 %v4386
    %v4394 = vpop.xlane.xlu0 %4393
    %v4395 = vmul.f32 %v4392, %v1234
    %v4396 = vmul.f32 %v4394, %v1234
    %v4397 = vsub.f32 %v4385, %v4395
    %v4398 = vsub.f32 %v4386, %v4396
    %v4399 = vmul.f32 %v4397, %v4397
    %v4400 = vmul.f32 %v4398, %v4398
    %4401 = vadd.xlane.f32.xlu0 %v4399
    %v4402 = vpop.xlane.xlu0 %4401
    %4403 = vadd.xlane.f32.xlu0 %v4400
    %v4404 = vpop.xlane.xlu0 %4403
    %v4405 = vmul.f32 %v4402, %v1234
    %v4406 = vmul.f32 %v4404, %v1234
    %v4407 = vadd.f32 %v4405, 1e-05
    %v4408 = vadd.f32 %v4406, 1e-05
    %v4409 = vrsqrt.pop %v4407
    %v4410 = vrsqrt.pop %v4408
    %v4411 = vmul.f32 %v4397, %v4409
    %v4412 = vmul.f32 %v4398, %v4410
    %v4414 = vlaneseq
    %v4415 = vshrl.u32 %v4414, 7
    %v4416 = vsub.s32 0, %v4415
    %v4417 = vrot.slane %v4388, %v4416
    %v4419 = vmul.f32 %v4411, %v4417
    %v4420 = vmul.f32 %v4412, %v4417
    %v4422 = vlaneseq
    %v4423 = vshrl.u32 %v4422, 7
    %v4424 = vsub.s32 0, %v4423
    %v4425 = vrot.slane %v4390, %v4424
    %v4427 = vadd.f32 %v4419, %v4425
    %v4428 = vadd.f32 %v4420, %v4425
    %v4429 = vpack.c.bf16 %v4428, %v4427
    %s4430 = scalar_lea.vmem [#allocation23], 512
    %v4431 = vld [vmem:[%s4430] sm:$0xff]
    %v4432 = vld [vmem:[%s4430 + $0x8] sm:$0xff]
    %v4433 = vld [vmem:[%s4430 + $0x10] sm:$0xff]
    %v4434 = vld [vmem:[%s4430 + $0x18] sm:$0xff]
    %v4435 = vld [vmem:[%s4430 + $0x20] sm:$0xff]
    %v4436 = vld [vmem:[%s4430 + $0x28] sm:$0xff]
    %v4437 = vld [vmem:[%s4430 + $0x30] sm:$0xff]
    %v4438 = vld [vmem:[%s4430 + $0x38] sm:$0xff]
    %v4439 = vld [vmem:[%s4430 + $0x40] sm:$0xff]
    %v4440 = vld [vmem:[%s4430 + $0x48] sm:$0xff]
    %v4441 = vld [vmem:[%s4430 + $0x50] sm:$0xff]
    %v4442 = vld [vmem:[%s4430 + $0x58] sm:$0xff]
    %v4443 = vld [vmem:[%s4430 + $0x60] sm:$0xff]
    %v4444 = vld [vmem:[%s4430 + $0x68] sm:$0xff]
    %v4445 = vld [vmem:[%s4430 + $0x70] sm:$0xff]
    %v4446 = vld [vmem:[%s4430 + $0x78] sm:$0xff]
    %v4447 = vld [vmem:[%s4430 + $0x80] sm:$0xff]
    %v4448 = vld [vmem:[%s4430 + $0x88] sm:$0xff]
    %v4449 = vld [vmem:[%s4430 + $0x90] sm:$0xff]
    %v4450 = vld [vmem:[%s4430 + $0x98] sm:$0xff]
    %v4451 = vld [vmem:[%s4430 + $0xa0] sm:$0xff]
    %v4452 = vld [vmem:[%s4430 + $0xa8] sm:$0xff]
    %v4453 = vld [vmem:[%s4430 + $0xb0] sm:$0xff]
    %v4454 = vld [vmem:[%s4430 + $0xb8] sm:$0xff]
    %v4455 = vld [vmem:[%s4430 + $0xc0] sm:$0xff]
    %v4456 = vld [vmem:[%s4430 + $0xc8] sm:$0xff]
    %v4457 = vld [vmem:[%s4430 + $0xd0] sm:$0xff]
    %v4458 = vld [vmem:[%s4430 + $0xd8] sm:$0xff]
    %v4459 = vld [vmem:[%s4430 + $0xe0] sm:$0xff]
    %v4460 = vld [vmem:[%s4430 + $0xe8] sm:$0xff]
    %v4461 = vld [vmem:[%s4430 + $0xf0] sm:$0xff]
    %v4462 = vld [vmem:[%s4430 + $0xf8] sm:$0xff]
    %s4463 = scalar_lea.vmem %s18, 8
    %v4464 = vld [vmem:[%s4463] sm:$0xf]
    %v4466 = vlaneseq
    %v4467 = vshrl.u32 %v4466, 7
    %v4468 = vsub.s32 0, %v4467
    %v4469 = vrot.slane %v4464, %v4468
    %v4470 = vlaneseq
    %v4471 = vshrl.u32 %v4470, 7
    %v4472 = vsub.s32 1, %v4471
    %v4473 = vrot.slane %v4464, %v4472
    %v4474 = vlaneseq
    %v4475 = vshrl.u32 %v4474, 7
    %v4476 = vsub.s32 2, %v4475
    %v4477 = vrot.slane %v4464, %v4476
    %v4478 = vlaneseq
    %v4479 = vshrl.u32 %v4478, 7
    %v4480 = vsub.s32 3, %v4479
    %v4481 = vrot.slane %v4464, %v4480
    %v4518 = vunpack.c.l.b16 %v4431
    %v4519 = vunpack.c.h.b16 %v4431
    %v4520 = vunpack.c.l.b16 %v4432
    %v4521 = vunpack.c.h.b16 %v4432
    %v4522 = vunpack.c.l.b16 %v4433
    %v4523 = vunpack.c.h.b16 %v4433
    %v4524 = vunpack.c.l.b16 %v4434
    %v4525 = vunpack.c.h.b16 %v4434
    %v4526 = vunpack.c.l.b16 %v4435
    %v4527 = vunpack.c.h.b16 %v4435
    %v4528 = vunpack.c.l.b16 %v4436
    %v4529 = vunpack.c.h.b16 %v4436
    %v4530 = vunpack.c.l.b16 %v4437
    %v4531 = vunpack.c.h.b16 %v4437
    %v4532 = vunpack.c.l.b16 %v4438
    %v4533 = vunpack.c.h.b16 %v4438
    %v4534 = vunpack.c.l.b16 %v4439
    %v4535 = vunpack.c.h.b16 %v4439
    %v4536 = vunpack.c.l.b16 %v4440
    %v4537 = vunpack.c.h.b16 %v4440
    %v4538 = vunpack.c.l.b16 %v4441
    %v4539 = vunpack.c.h.b16 %v4441
    %v4540 = vunpack.c.l.b16 %v4442
    %v4541 = vunpack.c.h.b16 %v4442
    %v4542 = vunpack.c.l.b16 %v4443
    %v4543 = vunpack.c.h.b16 %v4443
    %v4544 = vunpack.c.l.b16 %v4444
    %v4545 = vunpack.c.h.b16 %v4444
    %v4546 = vunpack.c.l.b16 %v4445
    %v4547 = vunpack.c.h.b16 %v4445
    %v4548 = vunpack.c.l.b16 %v4446
    %v4549 = vunpack.c.h.b16 %v4446
    %v4550 = vunpack.c.l.b16 %v4447
    %v4551 = vunpack.c.h.b16 %v4447
    %v4552 = vunpack.c.l.b16 %v4448
    %v4553 = vunpack.c.h.b16 %v4448
    %v4554 = vunpack.c.l.b16 %v4449
    %v4555 = vunpack.c.h.b16 %v4449
    %v4556 = vunpack.c.l.b16 %v4450
    %v4557 = vunpack.c.h.b16 %v4450
    %v4558 = vunpack.c.l.b16 %v4451
    %v4559 = vunpack.c.h.b16 %v4451
    %v4560 = vunpack.c.l.b16 %v4452
    %v4561 = vunpack.c.h.b16 %v4452
    %v4562 = vunpack.c.l.b16 %v4453
    %v4563 = vunpack.c.h.b16 %v4453
    %v4564 = vunpack.c.l.b16 %v4454
    %v4565 = vunpack.c.h.b16 %v4454
    %v4566 = vunpack.c.l.b16 %v4455
    %v4567 = vunpack.c.h.b16 %v4455
    %v4568 = vunpack.c.l.b16 %v4456
    %v4569 = vunpack.c.h.b16 %v4456
    %v4570 = vunpack.c.l.b16 %v4457
    %v4571 = vunpack.c.h.b16 %v4457
    %v4572 = vunpack.c.l.b16 %v4458
    %v4573 = vunpack.c.h.b16 %v4458
    %v4574 = vunpack.c.l.b16 %v4459
    %v4575 = vunpack.c.h.b16 %v4459
    %v4576 = vunpack.c.l.b16 %v4460
    %v4577 = vunpack.c.h.b16 %v4460
    %v4578 = vunpack.c.l.b16 %v4461
    %v4579 = vunpack.c.h.b16 %v4461
    %v4580 = vunpack.c.l.b16 %v4462
    %v4581 = vunpack.c.h.b16 %v4462
    %v4582 = vpack.c.b16 %v4522, %v4518
    %v4583 = vpack.c.b16 %v4523, %v4519
    %v4584 = vpack.c.b16 %v4524, %v4520
    %v4585 = vpack.c.b16 %v4525, %v4521
    %v4586 = vpack.c.b16 %v4530, %v4526
    %v4587 = vpack.c.b16 %v4531, %v4527
    %v4588 = vpack.c.b16 %v4532, %v4528
    %v4589 = vpack.c.b16 %v4533, %v4529
    %v4590 = vpack.c.b16 %v4538, %v4534
    %v4591 = vpack.c.b16 %v4539, %v4535
    %v4592 = vpack.c.b16 %v4540, %v4536
    %v4593 = vpack.c.b16 %v4541, %v4537
    %v4594 = vpack.c.b16 %v4546, %v4542
    %v4595 = vpack.c.b16 %v4547, %v4543
    %v4596 = vpack.c.b16 %v4548, %v4544
    %v4597 = vpack.c.b16 %v4549, %v4545
    %v4598 = vpack.c.b16 %v4554, %v4550
    %v4599 = vpack.c.b16 %v4555, %v4551
    %v4600 = vpack.c.b16 %v4556, %v4552
    %v4601 = vpack.c.b16 %v4557, %v4553
    %v4602 = vpack.c.b16 %v4562, %v4558
    %v4603 = vpack.c.b16 %v4563, %v4559
    %v4604 = vpack.c.b16 %v4564, %v4560
    %v4605 = vpack.c.b16 %v4565, %v4561
    %v4606 = vpack.c.b16 %v4570, %v4566
    %v4607 = vpack.c.b16 %v4571, %v4567
    %v4608 = vpack.c.b16 %v4572, %v4568
    %v4609 = vpack.c.b16 %v4573, %v4569
    %v4610 = vpack.c.b16 %v4578, %v4574
    %v4611 = vpack.c.b16 %v4579, %v4575
    %v4612 = vpack.c.b16 %v4580, %v4576
    %v4613 = vpack.c.b16 %v4581, %v4577
    %4646 = vmatprep.subr.bf16.mxu0 %v4583
    %4647 = vmatpush1.bf16.msra.mxu0 %v4582
    %4648 = vmatprep.subr.bf16.mxu0 %v4587
    %4649 = vmatpush1.bf16.msra.mxu0 %v4586
    %4650 = vmatprep.subr.bf16.mxu0 %v4591
    %4651 = vmatpush1.bf16.msra.mxu0 %v4590
    %4652 = vmatprep.subr.bf16.mxu0 %v4595
    %4653 = vmatpush1.bf16.msra.mxu0 %v4594
    %4654 = vmatprep.subr.bf16.mxu0 %v4599
    %4655 = vmatpush1.bf16.msra.mxu0 %v4598
    %4656 = vmatprep.subr.bf16.mxu0 %v4603
    %4657 = vmatpush1.bf16.msra.mxu0 %v4602
    %4658 = vmatprep.subr.bf16.mxu0 %v4607
    %4659 = vmatpush1.bf16.msra.mxu0 %v4606
    %4660 = vmatprep.subr.bf16.mxu0 %v4611
    %4661 = vmatpush1.bf16.msra.mxu0 %v4610
    %4662 = vmatprep.subr.bf16.mxu0 0
    %4663 = vmatpush1.bf16.msra.mxu0 0
    %4664 = vmatprep.subr.bf16.mxu0 0
    %4665 = vmatpush1.bf16.msra.mxu0 0
    %4666 = vmatprep.subr.bf16.mxu0 0
    %4667 = vmatpush1.bf16.msra.mxu0 0
    %4668 = vmatprep.subr.bf16.mxu0 0
    %4669 = vmatpush1.bf16.msra.mxu0 0
    %4670 = vmatprep.subr.bf16.mxu0 0
    %4671 = vmatpush1.bf16.msra.mxu0 0
    %4672 = vmatprep.subr.bf16.mxu0 0
    %4673 = vmatpush1.bf16.msra.mxu0 0
    %4674 = vmatprep.subr.bf16.mxu0 0
    %4675 = vmatpush1.bf16.msra.mxu0 0
    %4676 = vmatprep.subr.bf16.mxu0 0
    %4677 = vmatpush1.bf16.msra.mxu0 0
    %4678 = vmatprep.mubr.bf16.mxu0 0
    %4679 = vmatmul.mubr.bf16.gmra.mrb[0].mxu0 %v4429
    %v4680 = vpop.f32.mrb[0].mxu0
    %v4681 = vadd.f32 %v4469, %v4680
    %v4682 = vpop.f32.mrb[0].mxu0
    %v4683 = vadd.f32 %v4473, %v4682
    %v4684 = vpop.f32.mrb[0].mxu0
    %v4685 = vadd.f32 %v4469, %v4684
    %v4686 = vpop.f32.mrb[0].mxu0
    %v4687 = vadd.f32 %v4473, %v4686
    %4688 = vdwg.mxu0
    %4689 = vmatprep.subr.bf16.mxu0 %v4585
    %4690 = vmatpush1.bf16.msra.mxu0 %v4584
    %4691 = vmatprep.subr.bf16.mxu0 %v4589
    %4692 = vmatpush1.bf16.msra.mxu0 %v4588
    %4693 = vmatprep.subr.bf16.mxu0 %v4593
    %4694 = vmatpush1.bf16.msra.mxu0 %v4592
    %4695 = vmatprep.subr.bf16.mxu0 %v4597
    %4696 = vmatpush1.bf16.msra.mxu0 %v4596
    %4697 = vmatprep.subr.bf16.mxu0 %v4601
    %4698 = vmatpush1.bf16.msra.mxu0 %v4600
    %4699 = vmatprep.subr.bf16.mxu0 %v4605
    %4700 = vmatpush1.bf16.msra.mxu0 %v4604
    %4701 = vmatprep.subr.bf16.mxu0 %v4609
    %4702 = vmatpush1.bf16.msra.mxu0 %v4608
    %4703 = vmatprep.subr.bf16.mxu0 %v4613
    %4704 = vmatpush1.bf16.msra.mxu0 %v4612
    %4705 = vmatprep.subr.bf16.mxu0 0
    %4706 = vmatpush1.bf16.msra.mxu0 0
    %4707 = vmatprep.subr.bf16.mxu0 0
    %4708 = vmatpush1.bf16.msra.mxu0 0
    %4709 = vmatprep.subr.bf16.mxu0 0
    %4710 = vmatpush1.bf16.msra.mxu0 0
    %4711 = vmatprep.subr.bf16.mxu0 0
    %4712 = vmatpush1.bf16.msra.mxu0 0
    %4713 = vmatprep.subr.bf16.mxu0 0
    %4714 = vmatpush1.bf16.msra.mxu0 0
    %4715 = vmatprep.subr.bf16.mxu0 0
    %4716 = vmatpush1.bf16.msra.mxu0 0
    %4717 = vmatprep.subr.bf16.mxu0 0
    %4718 = vmatpush1.bf16.msra.mxu0 0
    %4719 = vmatprep.subr.bf16.mxu0 0
    %4720 = vmatpush1.bf16.msra.mxu0 0
    %4721 = vmatprep.mubr.bf16.mxu0 0
    %4722 = vmatmul.mubr.bf16.gmra.mrb[0].mxu0 %v4429
    %v4723 = vpop.f32.mrb[0].mxu0
    %v4724 = vadd.f32 %v4477, %v4723
    %v4725 = vpop.f32.mrb[0].mxu0
    %v4726 = vadd.f32 %v4481, %v4725
    %v4727 = vpop.f32.mrb[0].mxu0
    %v4728 = vadd.f32 %v4477, %v4727
    %v4729 = vpop.f32.mrb[0].mxu0
    %v4730 = vadd.f32 %v4481, %v4729
    %4731 = vdwg.mxu0
    %v4732 = vmul.f32 %v4681, 0.5
    %v4733 = vmul.f32 %v4683, 0.5
    %v4734 = vmul.f32 %v4724, 0.5
    %v4735 = vmul.f32 %v4726, 0.5
    %v4736 = vmul.f32 %v4685, 0.5
    %v4737 = vmul.f32 %v4687, 0.5
    %v4738 = vmul.f32 %v4728, 0.5
    %v4739 = vmul.f32 %v4730, 0.5
    %v4740 = vmul.f32 %v4681, 0.70710677
    %v4741 = vmul.f32 %v4683, 0.70710677
    %v4742 = vmul.f32 %v4724, 0.70710677
    %v4743 = vmul.f32 %v4726, 0.70710677
    %v4744 = vmul.f32 %v4685, 0.70710677
    %v4745 = vmul.f32 %v4687, 0.70710677
    %v4746 = vmul.f32 %v4728, 0.70710677
    %v4747 = vmul.f32 %v4730, 0.70710677
    %vm4748 = vcmp.ge.f32.partialorder %v4740, 0.0
    %vm4749 = vcmp.ge.f32.partialorder %v4741, 0.0
    %vm4750 = vcmp.ge.f32.partialorder %v4742, 0.0
    %vm4751 = vcmp.ge.f32.partialorder %v4743, 0.0
    %vm4752 = vcmp.ge.f32.partialorder %v4744, 0.0
    %vm4753 = vcmp.ge.f32.partialorder %v4745, 0.0
    %vm4754 = vcmp.ge.f32.partialorder %v4746, 0.0
    %vm4755 = vcmp.ge.f32.partialorder %v4747, 0.0
    %v4756 = vsel %vm4748, 1.0, -1.0
    %v4757 = vsel %vm4749, 1.0, -1.0
    %v4758 = vsel %vm4750, 1.0, -1.0
    %v4759 = vsel %vm4751, 1.0, -1.0
    %v4760 = vsel %vm4752, 1.0, -1.0
    %v4761 = vsel %vm4753, 1.0, -1.0
    %v4762 = vsel %vm4754, 1.0, -1.0
    %v4763 = vsel %vm4755, 1.0, -1.0
    %v4764 = vand.u32 2147483647, %v4740
    %v4765 = vand.u32 2147483647, %v4741
    %v4766 = vand.u32 2147483647, %v4742
    %v4767 = vand.u32 2147483647, %v4743
    %v4768 = vand.u32 2147483647, %v4744
    %v4769 = vand.u32 2147483647, %v4745
    %v4770 = vand.u32 2147483647, %v4746
    %v4771 = vand.u32 2147483647, %v4747
    %v4772 = vmul.f32 %v4764, 0.3275911
    %v4773 = vmul.f32 %v4765, 0.3275911
    %v4774 = vmul.f32 %v4766, 0.3275911
    %v4775 = vmul.f32 %v4767, 0.3275911
    %v4776 = vmul.f32 %v4768, 0.3275911
    %v4777 = vmul.f32 %v4769, 0.3275911
    %v4778 = vmul.f32 %v4770, 0.3275911
    %v4779 = vmul.f32 %v4771, 0.3275911
    %v4780 = vadd.f32 %v4772, 1.0
    %v4781 = vadd.f32 %v4773, 1.0
    %v4782 = vadd.f32 %v4774, 1.0
    %v4783 = vadd.f32 %v4775, 1.0
    %v4784 = vadd.f32 %v4776, 1.0
    %v4785 = vadd.f32 %v4777, 1.0
    %v4786 = vadd.f32 %v4778, 1.0
    %v4787 = vadd.f32 %v4779, 1.0
    %v4788 = vrcp.pop %v4780
    %v4789 = vmul.f32 1.0, %v4788
    %v4790 = vrcp.pop %v4781
    %v4791 = vmul.f32 1.0, %v4790
    %v4792 = vrcp.pop %v4782
    %v4793 = vmul.f32 1.0, %v4792
    %v4794 = vrcp.pop %v4783
    %v4795 = vmul.f32 1.0, %v4794
    %v4796 = vrcp.pop %v4784
    %v4797 = vmul.f32 1.0, %v4796
    %v4798 = vrcp.pop %v4785
    %v4799 = vmul.f32 1.0, %v4798
    %v4800 = vrcp.pop %v4786
    %v4801 = vmul.f32 1.0, %v4800
    %v4802 = vrcp.pop %v4787
    %v4803 = vmul.f32 1.0, %v4802
    %v4804 = vmul.f32 %v4789, 1.0614054
    %v4805 = vmul.f32 %v4791, 1.0614054
    %v4806 = vmul.f32 %v4793, 1.0614054
    %v4807 = vmul.f32 %v4795, 1.0614054
    %v4808 = vmul.f32 %v4797, 1.0614054
    %v4809 = vmul.f32 %v4799, 1.0614054
    %v4810 = vmul.f32 %v4801, 1.0614054
    %v4811 = vmul.f32 %v4803, 1.0614054
    %v4812 = vadd.f32 %v4804, -1.4531521
    %v4813 = vadd.f32 %v4805, -1.4531521
    %v4814 = vadd.f32 %v4806, -1.4531521
    %v4815 = vadd.f32 %v4807, -1.4531521
    %v4816 = vadd.f32 %v4808, -1.4531521
    %v4817 = vadd.f32 %v4809, -1.4531521
    %v4818 = vadd.f32 %v4810, -1.4531521
    %v4819 = vadd.f32 %v4811, -1.4531521
    %v4820 = vmul.f32 %v4812, %v4789
    %v4821 = vmul.f32 %v4813, %v4791
    %v4822 = vmul.f32 %v4814, %v4793
    %v4823 = vmul.f32 %v4815, %v4795
    %v4824 = vmul.f32 %v4816, %v4797
    %v4825 = vmul.f32 %v4817, %v4799
    %v4826 = vmul.f32 %v4818, %v4801
    %v4827 = vmul.f32 %v4819, %v4803
    %v4828 = vadd.f32 %v4820, 1.4214138
    %v4829 = vadd.f32 %v4821, 1.4214138
    %v4830 = vadd.f32 %v4822, 1.4214138
    %v4831 = vadd.f32 %v4823, 1.4214138
    %v4832 = vadd.f32 %v4824, 1.4214138
    %v4833 = vadd.f32 %v4825, 1.4214138
    %v4834 = vadd.f32 %v4826, 1.4214138
    %v4835 = vadd.f32 %v4827, 1.4214138
    %v4836 = vmul.f32 %v4828, %v4789
    %v4837 = vmul.f32 %v4829, %v4791
    %v4838 = vmul.f32 %v4830, %v4793
    %v4839 = vmul.f32 %v4831, %v4795
    %v4840 = vmul.f32 %v4832, %v4797
    %v4841 = vmul.f32 %v4833, %v4799
    %v4842 = vmul.f32 %v4834, %v4801
    %v4843 = vmul.f32 %v4835, %v4803
    %v4844 = vadd.f32 %v4836, -0.28449672
    %v4845 = vadd.f32 %v4837, -0.28449672
    %v4846 = vadd.f32 %v4838, -0.28449672
    %v4847 = vadd.f32 %v4839, -0.28449672
    %v4848 = vadd.f32 %v4840, -0.28449672
    %v4849 = vadd.f32 %v4841, -0.28449672
    %v4850 = vadd.f32 %v4842, -0.28449672
    %v4851 = vadd.f32 %v4843, -0.28449672
    %v4852 = vmul.f32 %v4844, %v4789
    %v4853 = vmul.f32 %v4845, %v4791
    %v4854 = vmul.f32 %v4846, %v4793
    %v4855 = vmul.f32 %v4847, %v4795
    %v4856 = vmul.f32 %v4848, %v4797
    %v4857 = vmul.f32 %v4849, %v4799
    %v4858 = vmul.f32 %v4850, %v4801
    %v4859 = vmul.f32 %v4851, %v4803
    %v4860 = vadd.f32 %v4852, 0.2548296
    %v4861 = vadd.f32 %v4853, 0.2548296
    %v4862 = vadd.f32 %v4854, 0.2548296
    %v4863 = vadd.f32 %v4855, 0.2548296
    %v4864 = vadd.f32 %v4856, 0.2548296
    %v4865 = vadd.f32 %v4857, 0.2548296
    %v4866 = vadd.f32 %v4858, 0.2548296
    %v4867 = vadd.f32 %v4859, 0.2548296
    %v4868 = vmul.f32 %v4860, %v4789
    %v4869 = vmul.f32 %v4861, %v4791
    %v4870 = vmul.f32 %v4862, %v4793
    %v4871 = vmul.f32 %v4863, %v4795
    %v4872 = vmul.f32 %v4864, %v4797
    %v4873 = vmul.f32 %v4865, %v4799
    %v4874 = vmul.f32 %v4866, %v4801
    %v4875 = vmul.f32 %v4867, %v4803
    %v4876 = vsub.f32 0.0, %v4764
    %v4877 = vsub.f32 0.0, %v4765
    %v4878 = vsub.f32 0.0, %v4766
    %v4879 = vsub.f32 0.0, %v4767
    %v4880 = vsub.f32 0.0, %v4768
    %v4881 = vsub.f32 0.0, %v4769
    %v4882 = vsub.f32 0.0, %v4770
    %v4883 = vsub.f32 0.0, %v4771
    %v4884 = vmul.f32 %v4876, %v4764
    %v4885 = vmul.f32 %v4877, %v4765
    %v4886 = vmul.f32 %v4878, %v4766
    %v4887 = vmul.f32 %v4879, %v4767
    %v4888 = vmul.f32 %v4880, %v4768
    %v4889 = vmul.f32 %v4881, %v4769
    %v4890 = vmul.f32 %v4882, %v4770
    %v4891 = vmul.f32 %v4883, %v4771
    %v4892 = vmul.f32 %v4884, 1.442695
    %v4893 = vpow.pop %v4892
    %v4894 = vmul.f32 %v4885, 1.442695
    %v4895 = vpow.pop %v4894
    %v4896 = vmul.f32 %v4886, 1.442695
    %v4897 = vpow.pop %v4896
    %v4898 = vmul.f32 %v4887, 1.442695
    %v4899 = vpow.pop %v4898
    %v4900 = vmul.f32 %v4888, 1.442695
    %v4901 = vpow.pop %v4900
    %v4902 = vmul.f32 %v4889, 1.442695
    %v4903 = vpow.pop %v4902
    %v4904 = vmul.f32 %v4890, 1.442695
    %v4905 = vpow.pop %v4904
    %v4906 = vmul.f32 %v4891, 1.442695
    %v4907 = vpow.pop %v4906
    %v4908 = vmul.f32 %v4868, %v4893
    %v4909 = vmul.f32 %v4869, %v4895
    %v4910 = vmul.f32 %v4870, %v4897
    %v4911 = vmul.f32 %v4871, %v4899
    %v4912 = vmul.f32 %v4872, %v4901
    %v4913 = vmul.f32 %v4873, %v4903
    %v4914 = vmul.f32 %v4874, %v4905
    %v4915 = vmul.f32 %v4875, %v4907
    %v4916 = vsub.f32 1.0, %v4908
    %v4917 = vsub.f32 1.0, %v4909
    %v4918 = vsub.f32 1.0, %v4910
    %v4919 = vsub.f32 1.0, %v4911
    %v4920 = vsub.f32 1.0, %v4912
    %v4921 = vsub.f32 1.0, %v4913
    %v4922 = vsub.f32 1.0, %v4914
    %v4923 = vsub.f32 1.0, %v4915
    %v4924 = vmul.f32 %v4756, %v4916
    %v4925 = vmul.f32 %v4757, %v4917
    %v4926 = vmul.f32 %v4758, %v4918
    %v4927 = vmul.f32 %v4759, %v4919
    %v4928 = vmul.f32 %v4760, %v4920
    %v4929 = vmul.f32 %v4761, %v4921
    %v4930 = vmul.f32 %v4762, %v4922
    %v4931 = vmul.f32 %v4763, %v4923
    %v4932 = vadd.f32 %v4924, 1.0
    %v4933 = vadd.f32 %v4925, 1.0
    %v4934 = vadd.f32 %v4926, 1.0
    %v4935 = vadd.f32 %v4927, 1.0
    %v4936 = vadd.f32 %v4928, 1.0
    %v4937 = vadd.f32 %v4929, 1.0
    %v4938 = vadd.f32 %v4930, 1.0
    %v4939 = vadd.f32 %v4931, 1.0
    %v4940 = vmul.f32 %v4732, %v4932
    %v4941 = vmul.f32 %v4733, %v4933
    %v4942 = vmul.f32 %v4734, %v4934
    %v4943 = vmul.f32 %v4735, %v4935
    %v4944 = vmul.f32 %v4736, %v4936
    %v4945 = vmul.f32 %v4737, %v4937
    %v4946 = vmul.f32 %v4738, %v4938
    %v4947 = vmul.f32 %v4739, %v4939
    %v4948 = vpack.c.bf16 %v4944, %v4940
    %v4949 = vpack.c.bf16 %v4945, %v4941
    %v4950 = vpack.c.bf16 %v4946, %v4942
    %v4951 = vpack.c.bf16 %v4947, %v4943
    %s4952 = scalar_lea.vmem [#allocation25], 512
    %v4953 = vld [vmem:[%s4952] sm:$0xf]
    %v4954 = vld [vmem:[%s4952 + $0x4] sm:$0xf]
    %v4955 = vld [vmem:[%s4952 + $0x8] sm:$0xf]
    %v4956 = vld [vmem:[%s4952 + $0xc] sm:$0xf]
    %v4957 = vld [vmem:[%s4952 + $0x10] sm:$0xf]
    %v4958 = vld [vmem:[%s4952 + $0x14] sm:$0xf]
    %v4959 = vld [vmem:[%s4952 + $0x18] sm:$0xf]
    %v4960 = vld [vmem:[%s4952 + $0x1c] sm:$0xf]
    %v4961 = vld [vmem:[%s4952 + $0x20] sm:$0xf]
    %v4962 = vld [vmem:[%s4952 + $0x24] sm:$0xf]
    %v4963 = vld [vmem:[%s4952 + $0x28] sm:$0xf]
    %v4964 = vld [vmem:[%s4952 + $0x2c] sm:$0xf]
    %v4965 = vld [vmem:[%s4952 + $0x30] sm:$0xf]
    %v4966 = vld [vmem:[%s4952 + $0x34] sm:$0xf]
    %v4967 = vld [vmem:[%s4952 + $0x38] sm:$0xf]
    %v4968 = vld [vmem:[%s4952 + $0x3c] sm:$0xf]
    %v4969 = vld [vmem:[%s4952 + $0x40] sm:$0xf]
    %v4970 = vld [vmem:[%s4952 + $0x44] sm:$0xf]
    %v4971 = vld [vmem:[%s4952 + $0x48] sm:$0xf]
    %v4972 = vld [vmem:[%s4952 + $0x4c] sm:$0xf]
    %v4973 = vld [vmem:[%s4952 + $0x50] sm:$0xf]
    %v4974 = vld [vmem:[%s4952 + $0x54] sm:$0xf]
    %v4975 = vld [vmem:[%s4952 + $0x58] sm:$0xf]
    %v4976 = vld [vmem:[%s4952 + $0x5c] sm:$0xf]
    %v4977 = vld [vmem:[%s4952 + $0x60] sm:$0xf]
    %v4978 = vld [vmem:[%s4952 + $0x64] sm:$0xf]
    %v4979 = vld [vmem:[%s4952 + $0x68] sm:$0xf]
    %v4980 = vld [vmem:[%s4952 + $0x6c] sm:$0xf]
    %v4981 = vld [vmem:[%s4952 + $0x70] sm:$0xf]
    %v4982 = vld [vmem:[%s4952 + $0x74] sm:$0xf]
    %v4983 = vld [vmem:[%s4952 + $0x78] sm:$0xf]
    %v4984 = vld [vmem:[%s4952 + $0x7c] sm:$0xf]
    %v4985 = vld [vmem:[%s4952 + $0x80] sm:$0xf]
    %v4986 = vld [vmem:[%s4952 + $0x84] sm:$0xf]
    %v4987 = vld [vmem:[%s4952 + $0x88] sm:$0xf]
    %v4988 = vld [vmem:[%s4952 + $0x8c] sm:$0xf]
    %v4989 = vld [vmem:[%s4952 + $0x90] sm:$0xf]
    %v4990 = vld [vmem:[%s4952 + $0x94] sm:$0xf]
    %v4991 = vld [vmem:[%s4952 + $0x98] sm:$0xf]
    %v4992 = vld [vmem:[%s4952 + $0x9c] sm:$0xf]
    %v4993 = vld [vmem:[%s4952 + $0xa0] sm:$0xf]
    %v4994 = vld [vmem:[%s4952 + $0xa4] sm:$0xf]
    %v4995 = vld [vmem:[%s4952 + $0xa8] sm:$0xf]
    %v4996 = vld [vmem:[%s4952 + $0xac] sm:$0xf]
    %v4997 = vld [vmem:[%s4952 + $0xb0] sm:$0xf]
    %v4998 = vld [vmem:[%s4952 + $0xb4] sm:$0xf]
    %v4999 = vld [vmem:[%s4952 + $0xb8] sm:$0xf]
    %v5000 = vld [vmem:[%s4952 + $0xbc] sm:$0xf]
    %v5001 = vld [vmem:[%s4952 + $0xc0] sm:$0xf]
    %v5002 = vld [vmem:[%s4952 + $0xc4] sm:$0xf]
    %v5003 = vld [vmem:[%s4952 + $0xc8] sm:$0xf]
    %v5004 = vld [vmem:[%s4952 + $0xcc] sm:$0xf]
    %v5005 = vld [vmem:[%s4952 + $0xd0] sm:$0xf]
    %v5006 = vld [vmem:[%s4952 + $0xd4] sm:$0xf]
    %v5007 = vld [vmem:[%s4952 + $0xd8] sm:$0xf]
    %v5008 = vld [vmem:[%s4952 + $0xdc] sm:$0xf]
    %v5009 = vld [vmem:[%s4952 + $0xe0] sm:$0xf]
    %v5010 = vld [vmem:[%s4952 + $0xe4] sm:$0xf]
    %v5011 = vld [vmem:[%s4952 + $0xe8] sm:$0xf]
    %v5012 = vld [vmem:[%s4952 + $0xec] sm:$0xf]
    %v5013 = vld [vmem:[%s4952 + $0xf0] sm:$0xf]
    %v5014 = vld [vmem:[%s4952 + $0xf4] sm:$0xf]
    %v5015 = vld [vmem:[%s4952 + $0xf8] sm:$0xf]
    %v5016 = vld [vmem:[%s4952 + $0xfc] sm:$0xf]
    %s5017 = scalar_lea.vmem [#allocation26], 2
    %v5018 = vld [vmem:[%s5017] sm:$0x1]
    %v5020 = vlaneseq
    %v5021 = vshrl.u32 %v5020, 7
    %v5022 = vsub.s32 0, %v5021
    %v5023 = vrot.slane %v5018, %v5022
    %v5089 = vunpack.c.l.b16 %v4953
    %v5090 = vunpack.c.l.b16 %v4954
    %v5091 = vunpack.c.l.b16 %v4955
    %v5092 = vunpack.c.l.b16 %v4956
    %v5093 = vunpack.c.l.b16 %v4957
    %v5094 = vunpack.c.l.b16 %v4958
    %v5095 = vunpack.c.l.b16 %v4959
    %v5096 = vunpack.c.l.b16 %v4960
    %v5097 = vunpack.c.l.b16 %v4961
    %v5098 = vunpack.c.l.b16 %v4962
    %v5099 = vunpack.c.l.b16 %v4963
    %v5100 = vunpack.c.l.b16 %v4964
    %v5101 = vunpack.c.l.b16 %v4965
    %v5102 = vunpack.c.l.b16 %v4966
    %v5103 = vunpack.c.l.b16 %v4967
    %v5104 = vunpack.c.l.b16 %v4968
    %v5105 = vunpack.c.l.b16 %v4969
    %v5106 = vunpack.c.l.b16 %v4970
    %v5107 = vunpack.c.l.b16 %v4971
    %v5108 = vunpack.c.l.b16 %v4972
    %v5109 = vunpack.c.l.b16 %v4973
    %v5110 = vunpack.c.l.b16 %v4974
    %v5111 = vunpack.c.l.b16 %v4975
    %v5112 = vunpack.c.l.b16 %v4976
    %v5113 = vunpack.c.l.b16 %v4977
    %v5114 = vunpack.c.l.b16 %v4978
    %v5115 = vunpack.c.l.b16 %v4979
    %v5116 = vunpack.c.l.b16 %v4980
    %v5117 = vunpack.c.l.b16 %v4981
    %v5118 = vunpack.c.l.b16 %v4982
    %v5119 = vunpack.c.l.b16 %v4983
    %v5120 = vunpack.c.l.b16 %v4984
    %v5121 = vunpack.c.l.b16 %v4985
    %v5122 = vunpack.c.l.b16 %v4986
    %v5123 = vunpack.c.l.b16 %v4987
    %v5124 = vunpack.c.l.b16 %v4988
    %v5125 = vunpack.c.l.b16 %v4989
    %v5126 = vunpack.c.l.b16 %v4990
    %v5127 = vunpack.c.l.b16 %v4991
    %v5128 = vunpack.c.l.b16 %v4992
    %v5129 = vunpack.c.l.b16 %v4993
    %v5130 = vunpack.c.l.b16 %v4994
    %v5131 = vunpack.c.l.b16 %v4995
    %v5132 = vunpack.c.l.b16 %v4996
    %v5133 = vunpack.c.l.b16 %v4997
    %v5134 = vunpack.c.l.b16 %v4998
    %v5135 = vunpack.c.l.b16 %v4999
    %v5136 = vunpack.c.l.b16 %v5000
    %v5137 = vunpack.c.l.b16 %v5001
    %v5138 = vunpack.c.l.b16 %v5002
    %v5139 = vunpack.c.l.b16 %v5003
    %v5140 = vunpack.c.l.b16 %v5004
    %v5141 = vunpack.c.l.b16 %v5005
    %v5142 = vunpack.c.l.b16 %v5006
    %v5143 = vunpack.c.l.b16 %v5007
    %v5144 = vunpack.c.l.b16 %v5008
    %v5145 = vunpack.c.l.b16 %v5009
    %v5146 = vunpack.c.l.b16 %v5010
    %v5147 = vunpack.c.l.b16 %v5011
    %v5148 = vunpack.c.l.b16 %v5012
    %v5149 = vunpack.c.l.b16 %v5013
    %v5150 = vunpack.c.l.b16 %v5014
    %v5151 = vunpack.c.l.b16 %v5015
    %v5152 = vunpack.c.l.b16 %v5016
    %v5153 = vpack.c.b16 %v5090, %v5089
    %v5154 = vpack.c.b16 %v5092, %v5091
    %v5155 = vpack.c.b16 %v5094, %v5093
    %v5156 = vpack.c.b16 %v5096, %v5095
    %v5157 = vpack.c.b16 %v5098, %v5097
    %v5158 = vpack.c.b16 %v5100, %v5099
    %v5159 = vpack.c.b16 %v5102, %v5101
    %v5160 = vpack.c.b16 %v5104, %v5103
    %v5161 = vpack.c.b16 %v5106, %v5105
    %v5162 = vpack.c.b16 %v5108, %v5107
    %v5163 = vpack.c.b16 %v5110, %v5109
    %v5164 = vpack.c.b16 %v5112, %v5111
    %v5165 = vpack.c.b16 %v5114, %v5113
    %v5166 = vpack.c.b16 %v5116, %v5115
    %v5167 = vpack.c.b16 %v5118, %v5117
    %v5168 = vpack.c.b16 %v5120, %v5119
    %v5169 = vpack.c.b16 %v5122, %v5121
    %v5170 = vpack.c.b16 %v5124, %v5123
    %v5171 = vpack.c.b16 %v5126, %v5125
    %v5172 = vpack.c.b16 %v5128, %v5127
    %v5173 = vpack.c.b16 %v5130, %v5129
    %v5174 = vpack.c.b16 %v5132, %v5131
    %v5175 = vpack.c.b16 %v5134, %v5133
    %v5176 = vpack.c.b16 %v5136, %v5135
    %v5177 = vpack.c.b16 %v5138, %v5137
    %v5178 = vpack.c.b16 %v5140, %v5139
    %v5179 = vpack.c.b16 %v5142, %v5141
    %v5180 = vpack.c.b16 %v5144, %v5143
    %v5181 = vpack.c.b16 %v5146, %v5145
    %v5182 = vpack.c.b16 %v5148, %v5147
    %v5183 = vpack.c.b16 %v5150, %v5149
    %v5184 = vpack.c.b16 %v5152, %v5151
    %5217 = vmatprep.subr.bf16.mxu0 0
    %5218 = vmatpush1.bf16.msra.mxu0 %v5153
    %5219 = vmatprep.subr.bf16.mxu0 0
    %5220 = vmatpush1.bf16.msra.mxu0 %v5154
    %5221 = vmatprep.subr.bf16.mxu0 0
    %5222 = vmatpush1.bf16.msra.mxu0 %v5155
    %5223 = vmatprep.subr.bf16.mxu0 0
    %5224 = vmatpush1.bf16.msra.mxu0 %v5156
    %5225 = vmatprep.subr.bf16.mxu0 0
    %5226 = vmatpush1.bf16.msra.mxu0 %v5157
    %5227 = vmatprep.subr.bf16.mxu0 0
    %5228 = vmatpush1.bf16.msra.mxu0 %v5158
    %5229 = vmatprep.subr.bf16.mxu0 0
    %5230 = vmatpush1.bf16.msra.mxu0 %v5159
    %5231 = vmatprep.subr.bf16.mxu0 0
    %5232 = vmatpush1.bf16.msra.mxu0 %v5160
    %5233 = vmatprep.subr.bf16.mxu0 0
    %5234 = vmatpush1.bf16.msra.mxu0 %v5161
    %5235 = vmatprep.subr.bf16.mxu0 0
    %5236 = vmatpush1.bf16.msra.mxu0 %v5162
    %5237 = vmatprep.subr.bf16.mxu0 0
    %5238 = vmatpush1.bf16.msra.mxu0 %v5163
    %5239 = vmatprep.subr.bf16.mxu0 0
    %5240 = vmatpush1.bf16.msra.mxu0 %v5164
    %5241 = vmatprep.subr.bf16.mxu0 0
    %5242 = vmatpush1.bf16.msra.mxu0 %v5165
    %5243 = vmatprep.subr.bf16.mxu0 0
    %5244 = vmatpush1.bf16.msra.mxu0 %v5166
    %5245 = vmatprep.subr.bf16.mxu0 0
    %5246 = vmatpush1.bf16.msra.mxu0 %v5167
    %5247 = vmatprep.subr.bf16.mxu0 0
    %5248 = vmatpush1.bf16.msra.mxu0 %v5168
    %5249 = vmatprep.mubr.bf16.mxu0 %v4949
    %5250 = vmatmul.mubr.bf16.gmra.mrb[0].mxu0 %v4948
    %v5251 = vpop.f32.mrb[0].mxu0
    %v5252 = vadd.f32 %v5023, %v5251
    %v5253 = vpop.f32.mrb[0].mxu0
    %v5254 = vpop.f32.mrb[0].mxu0
    %v5255 = vadd.f32 %v5023, %v5254
    %v5256 = vpop.f32.mrb[0].mxu0
    %5257 = vdwg.mxu0
    %5258 = vmatprep.subr.bf16.mxu0 0
    %5259 = vmatpush1.bf16.msra.mxu0 %v5169
    %5260 = vmatprep.subr.bf16.mxu0 0
    %5261 = vmatpush1.bf16.msra.mxu0 %v5170
    %5262 = vmatprep.subr.bf16.mxu0 0
    %5263 = vmatpush1.bf16.msra.mxu0 %v5171
    %5264 = vmatprep.subr.bf16.mxu0 0
    %5265 = vmatpush1.bf16.msra.mxu0 %v5172
    %5266 = vmatprep.subr.bf16.mxu0 0
    %5267 = vmatpush1.bf16.msra.mxu0 %v5173
    %5268 = vmatprep.subr.bf16.mxu0 0
    %5269 = vmatpush1.bf16.msra.mxu0 %v5174
    %5270 = vmatprep.subr.bf16.mxu0 0
    %5271 = vmatpush1.bf16.msra.mxu0 %v5175
    %5272 = vmatprep.subr.bf16.mxu0 0
    %5273 = vmatpush1.bf16.msra.mxu0 %v5176
    %5274 = vmatprep.subr.bf16.mxu0 0
    %5275 = vmatpush1.bf16.msra.mxu0 %v5177
    %5276 = vmatprep.subr.bf16.mxu0 0
    %5277 = vmatpush1.bf16.msra.mxu0 %v5178
    %5278 = vmatprep.subr.bf16.mxu0 0
    %5279 = vmatpush1.bf16.msra.mxu0 %v5179
    %5280 = vmatprep.subr.bf16.mxu0 0
    %5281 = vmatpush1.bf16.msra.mxu0 %v5180
    %5282 = vmatprep.subr.bf16.mxu0 0
    %5283 = vmatpush1.bf16.msra.mxu0 %v5181
    %5284 = vmatprep.subr.bf16.mxu0 0
    %5285 = vmatpush1.bf16.msra.mxu0 %v5182
    %5286 = vmatprep.subr.bf16.mxu0 0
    %5287 = vmatpush1.bf16.msra.mxu0 %v5183
    %5288 = vmatprep.subr.bf16.mxu0 0
    %5289 = vmatpush1.bf16.msra.mxu0 %v5184
    %5290 = vmatprep.mubr.bf16.mxu0 %v4951
    %5291 = vmatmul.mubr.bf16.gmra.mrb[0].mxu0 %v4950
    %v5292 = vpop.f32.mrb[0].mxu0
    %v5293 = vadd.f32 %v5252, %v5292
    %v5294 = vpop.f32.mrb[0].mxu0
    %v5295 = vpop.f32.mrb[0].mxu0
    %v5296 = vadd.f32 %v5255, %v5295
    %v5297 = vpop.f32.mrb[0].mxu0
    %5298 = vdwg.mxu0
    %v5299 = vadd.f32 %v4427, %v5293
    %v5300 = vadd.f32 %v4428, %v5296
    %s5301 = scalar_lea.vmem [#allocation20], 5
    %v5302 = vld [vmem:[%s5301] sm:$0x1]
    %s5303 = scalar_lea.vmem [#allocation22], 5
    %v5304 = vld [vmem:[%s5303] sm:$0x1]
    %5305 = vadd.xlane.f32.xlu0 %v5299
    %v5306 = vpop.xlane.xlu0 %5305
    %5307 = vadd.xlane.f32.xlu0 %v5300
    %v5308 = vpop.xlane.xlu0 %5307
    %v5309 = vmul.f32 %v5306, %v1234
    %v5310 = vmul.f32 %v5308, %v1234
    %v5311 = vsub.f32 %v5299, %v5309
    %v5312 = vsub.f32 %v5300, %v5310
    %v5313 = vmul.f32 %v5311, %v5311
    %v5314 = vmul.f32 %v5312, %v5312
    %5315 = vadd.xlane.f32.xlu0 %v5313
    %v5316 = vpop.xlane.xlu0 %5315
    %5317 = vadd.xlane.f32.xlu0 %v5314
    %v5318 = vpop.xlane.xlu0 %5317
    %v5319 = vmul.f32 %v5316, %v1234
    %v5320 = vmul.f32 %v5318, %v1234
    %v5321 = vadd.f32 %v5319, 1e-05
    %v5322 = vadd.f32 %v5320, 1e-05
    %v5323 = vrsqrt.pop %v5321
    %v5324 = vrsqrt.pop %v5322
    %v5325 = vmul.f32 %v5311, %v5323
    %v5326 = vmul.f32 %v5312, %v5324
    %v5328 = vlaneseq
    %v5329 = vshrl.u32 %v5328, 7
    %v5330 = vsub.s32 0, %v5329
    %v5331 = vrot.slane %v5302, %v5330
    %v5333 = vmul.f32 %v5325, %v5331
    %v5334 = vmul.f32 %v5326, %v5331
    %v5336 = vlaneseq
    %v5337 = vshrl.u32 %v5336, 7
    %v5338 = vsub.s32 0, %v5337
    %v5339 = vrot.slane %v5304, %v5338
    %v5341 = vadd.f32 %v5333, %v5339
    %v5342 = vadd.f32 %v5334, %v5339
    %v5343 = vpack.c.bf16 %v2178, %v2177
    %v5344 = vld [vmem:[#allocation28] sm:$0xff]
    %v5345 = vld [vmem:[#allocation28 + $0x8] sm:$0xff]
    %v5346 = vld [vmem:[#allocation28 + $0x10] sm:$0xff]
    %v5347 = vld [vmem:[#allocation28 + $0x18] sm:$0xff]
    %v5348 = vld [vmem:[#allocation28 + $0x20] sm:$0xff]
    %v5349 = vld [vmem:[#allocation28 + $0x28] sm:$0xff]
    %v5350 = vld [vmem:[#allocation28 + $0x30] sm:$0xff]
    %v5351 = vld [vmem:[#allocation28 + $0x38] sm:$0xff]
    %v5352 = vld [vmem:[#allocation28 + $0x40] sm:$0xff]
    %v5353 = vld [vmem:[#allocation28 + $0x48] sm:$0xff]
    %v5354 = vld [vmem:[#allocation28 + $0x50] sm:$0xff]
    %v5355 = vld [vmem:[#allocation28 + $0x58] sm:$0xff]
    %v5356 = vld [vmem:[#allocation28 + $0x60] sm:$0xff]
    %v5357 = vld [vmem:[#allocation28 + $0x68] sm:$0xff]
    %v5358 = vld [vmem:[#allocation28 + $0x70] sm:$0xff]
    %v5359 = vld [vmem:[#allocation28 + $0x78] sm:$0xff]
    %v5360 = vpack.c.bf16 %v3760, %v3759
    %s5361 = scalar_lea.vmem [#allocation28], 128
    %v5362 = vld [vmem:[%s5361] sm:$0xff]
    %v5363 = vld [vmem:[%s5361 + $0x8] sm:$0xff]
    %v5364 = vld [vmem:[%s5361 + $0x10] sm:$0xff]
    %v5365 = vld [vmem:[%s5361 + $0x18] sm:$0xff]
    %v5366 = vld [vmem:[%s5361 + $0x20] sm:$0xff]
    %v5367 = vld [vmem:[%s5361 + $0x28] sm:$0xff]
    %v5368 = vld [vmem:[%s5361 + $0x30] sm:$0xff]
    %v5369 = vld [vmem:[%s5361 + $0x38] sm:$0xff]
    %v5370 = vld [vmem:[%s5361 + $0x40] sm:$0xff]
    %v5371 = vld [vmem:[%s5361 + $0x48] sm:$0xff]
    %v5372 = vld [vmem:[%s5361 + $0x50] sm:$0xff]
    %v5373 = vld [vmem:[%s5361 + $0x58] sm:$0xff]
    %v5374 = vld [vmem:[%s5361 + $0x60] sm:$0xff]
    %v5375 = vld [vmem:[%s5361 + $0x68] sm:$0xff]
    %v5376 = vld [vmem:[%s5361 + $0x70] sm:$0xff]
    %v5377 = vld [vmem:[%s5361 + $0x78] sm:$0xff]
    %v5394 = vunpack.c.l.b16 %v5362
    %v5395 = vunpack.c.h.b16 %v5362
    %v5396 = vunpack.c.l.b16 %v5363
    %v5397 = vunpack.c.h.b16 %v5363
    %v5398 = vunpack.c.l.b16 %v5364
    %v5399 = vunpack.c.h.b16 %v5364
    %v5400 = vunpack.c.l.b16 %v5365
    %v5401 = vunpack.c.h.b16 %v5365
    %v5402 = vunpack.c.l.b16 %v5366
    %v5403 = vunpack.c.h.b16 %v5366
    %v5404 = vunpack.c.l.b16 %v5367
    %v5405 = vunpack.c.h.b16 %v5367
    %v5406 = vunpack.c.l.b16 %v5368
    %v5407 = vunpack.c.h.b16 %v5368
    %v5408 = vunpack.c.l.b16 %v5369
    %v5409 = vunpack.c.h.b16 %v5369
    %v5410 = vunpack.c.l.b16 %v5370
    %v5411 = vunpack.c.h.b16 %v5370
    %v5412 = vunpack.c.l.b16 %v5371
    %v5413 = vunpack.c.h.b16 %v5371
    %v5414 = vunpack.c.l.b16 %v5372
    %v5415 = vunpack.c.h.b16 %v5372
    %v5416 = vunpack.c.l.b16 %v5373
    %v5417 = vunpack.c.h.b16 %v5373
    %v5418 = vunpack.c.l.b16 %v5374
    %v5419 = vunpack.c.h.b16 %v5374
    %v5420 = vunpack.c.l.b16 %v5375
    %v5421 = vunpack.c.h.b16 %v5375
    %v5422 = vunpack.c.l.b16 %v5376
    %v5423 = vunpack.c.h.b16 %v5376
    %v5424 = vunpack.c.l.b16 %v5377
    %v5425 = vunpack.c.h.b16 %v5377
    %v5426 = vpack.c.b16 %v5396, %v5394
    %v5427 = vpack.c.b16 %v5397, %v5395
    %v5428 = vpack.c.b16 %v5400, %v5398
    %v5429 = vpack.c.b16 %v5401, %v5399
    %v5430 = vpack.c.b16 %v5404, %v5402
    %v5431 = vpack.c.b16 %v5405, %v5403
    %v5432 = vpack.c.b16 %v5408, %v5406
    %v5433 = vpack.c.b16 %v5409, %v5407
    %v5434 = vpack.c.b16 %v5412, %v5410
    %v5435 = vpack.c.b16 %v5413, %v5411
    %v5436 = vpack.c.b16 %v5416, %v5414
    %v5437 = vpack.c.b16 %v5417, %v5415
    %v5438 = vpack.c.b16 %v5420, %v5418
    %v5439 = vpack.c.b16 %v5421, %v5419
    %v5440 = vpack.c.b16 %v5424, %v5422
    %v5441 = vpack.c.b16 %v5425, %v5423
    %5458 = vmatprep.subr.bf16.mxu0 %v5427
    %5459 = vmatpush1.bf16.msra.mxu0 %v5426
    %5460 = vmatprep.subr.bf16.mxu0 %v5429
    %5461 = vmatpush1.bf16.msra.mxu0 %v5428
    %5462 = vmatprep.subr.bf16.mxu0 %v5431
    %5463 = vmatpush1.bf16.msra.mxu0 %v5430
    %5464 = vmatprep.subr.bf16.mxu0 %v5433
    %5465 = vmatpush1.bf16.msra.mxu0 %v5432
    %5466 = vmatprep.subr.bf16.mxu0 %v5435
    %5467 = vmatpush1.bf16.msra.mxu0 %v5434
    %5468 = vmatprep.subr.bf16.mxu0 %v5437
    %5469 = vmatpush1.bf16.msra.mxu0 %v5436
    %5470 = vmatprep.subr.bf16.mxu0 %v5439
    %5471 = vmatpush1.bf16.msra.mxu0 %v5438
    %5472 = vmatprep.subr.bf16.mxu0 %v5441
    %5473 = vmatpush1.bf16.msra.mxu0 %v5440
    %5474 = vmatprep.subr.bf16.mxu0 0
    %5475 = vmatpush1.bf16.msra.mxu0 0
    %5476 = vmatprep.subr.bf16.mxu0 0
    %5477 = vmatpush1.bf16.msra.mxu0 0
    %5478 = vmatprep.subr.bf16.mxu0 0
    %5479 = vmatpush1.bf16.msra.mxu0 0
    %5480 = vmatprep.subr.bf16.mxu0 0
    %5481 = vmatpush1.bf16.msra.mxu0 0
    %5482 = vmatprep.subr.bf16.mxu0 0
    %5483 = vmatpush1.bf16.msra.mxu0 0
    %5484 = vmatprep.subr.bf16.mxu0 0
    %5485 = vmatpush1.bf16.msra.mxu0 0
    %5486 = vmatprep.subr.bf16.mxu0 0
    %5487 = vmatpush1.bf16.msra.mxu0 0
    %5488 = vmatprep.subr.bf16.mxu0 0
    %5489 = vmatpush1.bf16.msra.mxu0 0
    %5490 = vmatprep.mubr.bf16.mxu0 0
    %5491 = vmatmul.mubr.bf16.gmra.mrb[0].mxu0 %v5360
    %v5492 = vpop.f32.mrb[0].mxu0
    %v5493 = vadd.f32 0.0, %v5492
    %v5494 = vpop.f32.mrb[0].mxu0
    %v5495 = vadd.f32 0.0, %v5494
    %v5496 = vpop.f32.mrb[0].mxu0
    %v5497 = vadd.f32 0.0, %v5496
    %v5498 = vpop.f32.mrb[0].mxu0
    %v5499 = vadd.f32 0.0, %v5498
    %5500 = vdwg.mxu0
    %v5517 = vunpack.c.l.b16 %v5344
    %v5518 = vunpack.c.h.b16 %v5344
    %v5519 = vunpack.c.l.b16 %v5345
    %v5520 = vunpack.c.h.b16 %v5345
    %v5521 = vunpack.c.l.b16 %v5346
    %v5522 = vunpack.c.h.b16 %v5346
    %v5523 = vunpack.c.l.b16 %v5347
    %v5524 = vunpack.c.h.b16 %v5347
    %v5525 = vunpack.c.l.b16 %v5348
    %v5526 = vunpack.c.h.b16 %v5348
    %v5527 = vunpack.c.l.b16 %v5349
    %v5528 = vunpack.c.h.b16 %v5349
    %v5529 = vunpack.c.l.b16 %v5350
    %v5530 = vunpack.c.h.b16 %v5350
    %v5531 = vunpack.c.l.b16 %v5351
    %v5532 = vunpack.c.h.b16 %v5351
    %v5533 = vunpack.c.l.b16 %v5352
    %v5534 = vunpack.c.h.b16 %v5352
    %v5535 = vunpack.c.l.b16 %v5353
    %v5536 = vunpack.c.h.b16 %v5353
    %v5537 = vunpack.c.l.b16 %v5354
    %v5538 = vunpack.c.h.b16 %v5354
    %v5539 = vunpack.c.l.b16 %v5355
    %v5540 = vunpack.c.h.b16 %v5355
    %v5541 = vunpack.c.l.b16 %v5356
    %v5542 = vunpack.c.h.b16 %v5356
    %v5543 = vunpack.c.l.b16 %v5357
    %v5544 = vunpack.c.h.b16 %v5357
    %v5545 = vunpack.c.l.b16 %v5358
    %v5546 = vunpack.c.h.b16 %v5358
    %v5547 = vunpack.c.l.b16 %v5359
    %v5548 = vunpack.c.h.b16 %v5359
    %v5549 = vpack.c.b16 %v5519, %v5517
    %v5550 = vpack.c.b16 %v5520, %v5518
    %v5551 = vpack.c.b16 %v5523, %v5521
    %v5552 = vpack.c.b16 %v5524, %v5522
    %v5553 = vpack.c.b16 %v5527, %v5525
    %v5554 = vpack.c.b16 %v5528, %v5526
    %v5555 = vpack.c.b16 %v5531, %v5529
    %v5556 = vpack.c.b16 %v5532, %v5530
    %v5557 = vpack.c.b16 %v5535, %v5533
    %v5558 = vpack.c.b16 %v5536, %v5534
    %v5559 = vpack.c.b16 %v5539, %v5537
    %v5560 = vpack.c.b16 %v5540, %v5538
    %v5561 = vpack.c.b16 %v5543, %v5541
    %v5562 = vpack.c.b16 %v5544, %v5542
    %v5563 = vpack.c.b16 %v5547, %v5545
    %v5564 = vpack.c.b16 %v5548, %v5546
    %5581 = vmatprep.subr.bf16.mxu0 %v5550
    %5582 = vmatpush1.bf16.msra.mxu0 %v5549
    %5583 = vmatprep.subr.bf16.mxu0 %v5552
    %5584 = vmatpush1.bf16.msra.mxu0 %v5551
    %5585 = vmatprep.subr.bf16.mxu0 %v5554
    %5586 = vmatpush1.bf16.msra.mxu0 %v5553
    %5587 = vmatprep.subr.bf16.mxu0 %v5556
    %5588 = vmatpush1.bf16.msra.mxu0 %v5555
    %5589 = vmatprep.subr.bf16.mxu0 %v5558
    %5590 = vmatpush1.bf16.msra.mxu0 %v5557
    %5591 = vmatprep.subr.bf16.mxu0 %v5560
    %5592 = vmatpush1.bf16.msra.mxu0 %v5559
    %5593 = vmatprep.subr.bf16.mxu0 %v5562
    %5594 = vmatpush1.bf16.msra.mxu0 %v5561
    %5595 = vmatprep.subr.bf16.mxu0 %v5564
    %5596 = vmatpush1.bf16.msra.mxu0 %v5563
    %5597 = vmatprep.subr.bf16.mxu0 0
    %5598 = vmatpush1.bf16.msra.mxu0 0
    %5599 = vmatprep.subr.bf16.mxu0 0
    %5600 = vmatpush1.bf16.msra.mxu0 0
    %5601 = vmatprep.subr.bf16.mxu0 0
    %5602 = vmatpush1.bf16.msra.mxu0 0
    %5603 = vmatprep.subr.bf16.mxu0 0
    %5604 = vmatpush1.bf16.msra.mxu0 0
    %5605 = vmatprep.subr.bf16.mxu0 0
    %5606 = vmatpush1.bf16.msra.mxu0 0
    %5607 = vmatprep.subr.bf16.mxu0 0
    %5608 = vmatpush1.bf16.msra.mxu0 0
    %5609 = vmatprep.subr.bf16.mxu0 0
    %5610 = vmatpush1.bf16.msra.mxu0 0
    %5611 = vmatprep.subr.bf16.mxu0 0
    %5612 = vmatpush1.bf16.msra.mxu0 0
    %5613 = vmatprep.mubr.bf16.mxu0 0
    %5614 = vmatmul.mubr.bf16.gmra.mrb[0].mxu0 %v5343
    %v5615 = vpop.f32.mrb[0].mxu0
    %v5616 = vadd.f32 %v5493, %v5615
    %v5617 = vpop.f32.mrb[0].mxu0
    %v5618 = vadd.f32 %v5495, %v5617
    %v5619 = vpop.f32.mrb[0].mxu0
    %v5620 = vadd.f32 %v5497, %v5619
    %v5621 = vpop.f32.mrb[0].mxu0
    %v5622 = vadd.f32 %v5499, %v5621
    %5623 = vdwg.mxu0
    %v5624 = vpack.c.bf16 %v5342, %v5341
    %s5625 = scalar_lea.vmem [#allocation28], 256
    %v5626 = vld [vmem:[%s5625] sm:$0xff]
    %v5627 = vld [vmem:[%s5625 + $0x8] sm:$0xff]
    %v5628 = vld [vmem:[%s5625 + $0x10] sm:$0xff]
    %v5629 = vld [vmem:[%s5625 + $0x18] sm:$0xff]
    %v5630 = vld [vmem:[%s5625 + $0x20] sm:$0xff]
    %v5631 = vld [vmem:[%s5625 + $0x28] sm:$0xff]
    %v5632 = vld [vmem:[%s5625 + $0x30] sm:$0xff]
    %v5633 = vld [vmem:[%s5625 + $0x38] sm:$0xff]
    %v5634 = vld [vmem:[%s5625 + $0x40] sm:$0xff]
    %v5635 = vld [vmem:[%s5625 + $0x48] sm:$0xff]
    %v5636 = vld [vmem:[%s5625 + $0x50] sm:$0xff]
    %v5637 = vld [vmem:[%s5625 + $0x58] sm:$0xff]
    %v5638 = vld [vmem:[%s5625 + $0x60] sm:$0xff]
    %v5639 = vld [vmem:[%s5625 + $0x68] sm:$0xff]
    %v5640 = vld [vmem:[%s5625 + $0x70] sm:$0xff]
    %v5641 = vld [vmem:[%s5625 + $0x78] sm:$0xff]
    %v5658 = vunpack.c.l.b16 %v5626
    %v5659 = vunpack.c.h.b16 %v5626
    %v5660 = vunpack.c.l.b16 %v5627
    %v5661 = vunpack.c.h.b16 %v5627
    %v5662 = vunpack.c.l.b16 %v5628
    %v5663 = vunpack.c.h.b16 %v5628
    %v5664 = vunpack.c.l.b16 %v5629
    %v5665 = vunpack.c.h.b16 %v5629
    %v5666 = vunpack.c.l.b16 %v5630
    %v5667 = vunpack.c.h.b16 %v5630
    %v5668 = vunpack.c.l.b16 %v5631
    %v5669 = vunpack.c.h.b16 %v5631
    %v5670 = vunpack.c.l.b16 %v5632
    %v5671 = vunpack.c.h.b16 %v5632
    %v5672 = vunpack.c.l.b16 %v5633
    %v5673 = vunpack.c.h.b16 %v5633
    %v5674 = vunpack.c.l.b16 %v5634
    %v5675 = vunpack.c.h.b16 %v5634
    %v5676 = vunpack.c.l.b16 %v5635
    %v5677 = vunpack.c.h.b16 %v5635
    %v5678 = vunpack.c.l.b16 %v5636
    %v5679 = vunpack.c.h.b16 %v5636
    %v5680 = vunpack.c.l.b16 %v5637
    %v5681 = vunpack.c.h.b16 %v5637
    %v5682 = vunpack.c.l.b16 %v5638
    %v5683 = vunpack.c.h.b16 %v5638
    %v5684 = vunpack.c.l.b16 %v5639
    %v5685 = vunpack.c.h.b16 %v5639
    %v5686 = vunpack.c.l.b16 %v5640
    %v5687 = vunpack.c.h.b16 %v5640
    %v5688 = vunpack.c.l.b16 %v5641
    %v5689 = vunpack.c.h.b16 %v5641
    %v5690 = vpack.c.b16 %v5660, %v5658
    %v5691 = vpack.c.b16 %v5661, %v5659
    %v5692 = vpack.c.b16 %v5664, %v5662
    %v5693 = vpack.c.b16 %v5665, %v5663
    %v5694 = vpack.c.b16 %v5668, %v5666
    %v5695 = vpack.c.b16 %v5669, %v5667
    %v5696 = vpack.c.b16 %v5672, %v5670
    %v5697 = vpack.c.b16 %v5673, %v5671
    %v5698 = vpack.c.b16 %v5676, %v5674
    %v5699 = vpack.c.b16 %v5677, %v5675
    %v5700 = vpack.c.b16 %v5680, %v5678
    %v5701 = vpack.c.b16 %v5681, %v5679
    %v5702 = vpack.c.b16 %v5684, %v5682
    %v5703 = vpack.c.b16 %v5685, %v5683
    %v5704 = vpack.c.b16 %v5688, %v5686
    %v5705 = vpack.c.b16 %v5689, %v5687
    %5722 = vmatprep.subr.bf16.mxu0 %v5691
    %5723 = vmatpush1.bf16.msra.mxu0 %v5690
    %5724 = vmatprep.subr.bf16.mxu0 %v5693
    %5725 = vmatpush1.bf16.msra.mxu0 %v5692
    %5726 = vmatprep.subr.bf16.mxu0 %v5695
    %5727 = vmatpush1.bf16.msra.mxu0 %v5694
    %5728 = vmatprep.subr.bf16.mxu0 %v5697
    %5729 = vmatpush1.bf16.msra.mxu0 %v5696
    %5730 = vmatprep.subr.bf16.mxu0 %v5699
    %5731 = vmatpush1.bf16.msra.mxu0 %v5698
    %5732 = vmatprep.subr.bf16.mxu0 %v5701
    %5733 = vmatpush1.bf16.msra.mxu0 %v5700
    %5734 = vmatprep.subr.bf16.mxu0 %v5703
    %5735 = vmatpush1.bf16.msra.mxu0 %v5702
    %5736 = vmatprep.subr.bf16.mxu0 %v5705
    %5737 = vmatpush1.bf16.msra.mxu0 %v5704
    %5738 = vmatprep.subr.bf16.mxu0 0
    %5739 = vmatpush1.bf16.msra.mxu0 0
    %5740 = vmatprep.subr.bf16.mxu0 0
    %5741 = vmatpush1.bf16.msra.mxu0 0
    %5742 = vmatprep.subr.bf16.mxu0 0
    %5743 = vmatpush1.bf16.msra.mxu0 0
    %5744 = vmatprep.subr.bf16.mxu0 0
    %5745 = vmatpush1.bf16.msra.mxu0 0
    %5746 = vmatprep.subr.bf16.mxu0 0
    %5747 = vmatpush1.bf16.msra.mxu0 0
    %5748 = vmatprep.subr.bf16.mxu0 0
    %5749 = vmatpush1.bf16.msra.mxu0 0
    %5750 = vmatprep.subr.bf16.mxu0 0
    %5751 = vmatpush1.bf16.msra.mxu0 0
    %5752 = vmatprep.subr.bf16.mxu0 0
    %5753 = vmatpush1.bf16.msra.mxu0 0
    %5754 = vmatprep.mubr.bf16.mxu0 0
    %5755 = vmatmul.mubr.bf16.gmra.mrb[0].mxu0 %v5624
    %v5756 = vpop.f32.mrb[0].mxu0
    %v5757 = vadd.f32 0.0, %v5756
    %v5758 = vpop.f32.mrb[0].mxu0
    %v5759 = vadd.f32 0.0, %v5758
    %v5760 = vpop.f32.mrb[0].mxu0
    %v5761 = vadd.f32 0.0, %v5760
    %v5762 = vpop.f32.mrb[0].mxu0
    %v5763 = vadd.f32 0.0, %v5762
    %5764 = vdwg.mxu0
    %v5765 = vadd.f32 %v5616, %v5757
    %v5766 = vadd.f32 %v5618, %v5759
    %v5767 = vadd.f32 %v5620, %v5761
    %v5768 = vadd.f32 %v5622, %v5763
    %v5769 = vld [vmem:[#allocation29] sm:$0x3]
    %v5771 = vlaneseq
    %v5772 = vshrl.u32 %v5771, 7
    %v5773 = vsub.s32 0, %v5772
    %v5774 = vrot.slane %v5769, %v5773
    %v5775 = vlaneseq
    %v5776 = vshrl.u32 %v5775, 7
    %v5777 = vsub.s32 1, %v5776
    %v5778 = vrot.slane %v5769, %v5777
    %v5781 = vadd.f32 %v5765, %v5774
    %v5782 = vadd.f32 %v5766, %v5778
    %v5783 = vadd.f32 %v5767, %v5774
    %v5784 = vadd.f32 %v5768, %v5778
    %v5785 = vmul.f32 %v5781, 0.5
    %v5786 = vmul.f32 %v5782, 0.5
    %v5787 = vmul.f32 %v5783, 0.5
    %v5788 = vmul.f32 %v5784, 0.5
    %v5789 = vmul.f32 %v5781, 0.70710677
    %v5790 = vmul.f32 %v5782, 0.70710677
    %v5791 = vmul.f32 %v5783, 0.70710677
    %v5792 = vmul.f32 %v5784, 0.70710677
    %vm5793 = vcmp.ge.f32.partialorder %v5789, 0.0
    %vm5794 = vcmp.ge.f32.partialorder %v5790, 0.0
    %vm5795 = vcmp.ge.f32.partialorder %v5791, 0.0
    %vm5796 = vcmp.ge.f32.partialorder %v5792, 0.0
    %v5797 = vsel %vm5793, 1.0, -1.0
    %v5798 = vsel %vm5794, 1.0, -1.0
    %v5799 = vsel %vm5795, 1.0, -1.0
    %v5800 = vsel %vm5796, 1.0, -1.0
    %v5801 = vand.u32 2147483647, %v5789
    %v5802 = vand.u32 2147483647, %v5790
    %v5803 = vand.u32 2147483647, %v5791
    %v5804 = vand.u32 2147483647, %v5792
    %v5805 = vmul.f32 %v5801, 0.3275911
    %v5806 = vmul.f32 %v5802, 0.3275911
    %v5807 = vmul.f32 %v5803, 0.3275911
    %v5808 = vmul.f32 %v5804, 0.3275911
    %v5809 = vadd.f32 %v5805, 1.0
    %v5810 = vadd.f32 %v5806, 1.0
    %v5811 = vadd.f32 %v5807, 1.0
    %v5812 = vadd.f32 %v5808, 1.0
    %v5813 = vrcp.pop %v5809
    %v5814 = vmul.f32 1.0, %v5813
    %v5815 = vrcp.pop %v5810
    %v5816 = vmul.f32 1.0, %v5815
    %v5817 = vrcp.pop %v5811
    %v5818 = vmul.f32 1.0, %v5817
    %v5819 = vrcp.pop %v5812
    %v5820 = vmul.f32 1.0, %v5819
    %v5821 = vmul.f32 %v5814, 1.0614054
    %v5822 = vmul.f32 %v5816, 1.0614054
    %v5823 = vmul.f32 %v5818, 1.0614054
    %v5824 = vmul.f32 %v5820, 1.0614054
    %v5825 = vadd.f32 %v5821, -1.4531521
    %v5826 = vadd.f32 %v5822, -1.4531521
    %v5827 = vadd.f32 %v5823, -1.4531521
    %v5828 = vadd.f32 %v5824, -1.4531521
    %v5829 = vmul.f32 %v5825, %v5814
    %v5830 = vmul.f32 %v5826, %v5816
    %v5831 = vmul.f32 %v5827, %v5818
    %v5832 = vmul.f32 %v5828, %v5820
    %v5833 = vadd.f32 %v5829, 1.4214138
    %v5834 = vadd.f32 %v5830, 1.4214138
    %v5835 = vadd.f32 %v5831, 1.4214138
    %v5836 = vadd.f32 %v5832, 1.4214138
    %v5837 = vmul.f32 %v5833, %v5814
    %v5838 = vmul.f32 %v5834, %v5816
    %v5839 = vmul.f32 %v5835, %v5818
    %v5840 = vmul.f32 %v5836, %v5820
    %v5841 = vadd.f32 %v5837, -0.28449672
    %v5842 = vadd.f32 %v5838, -0.28449672
    %v5843 = vadd.f32 %v5839, -0.28449672
    %v5844 = vadd.f32 %v5840, -0.28449672
    %v5845 = vmul.f32 %v5841, %v5814
    %v5846 = vmul.f32 %v5842, %v5816
    %v5847 = vmul.f32 %v5843, %v5818
    %v5848 = vmul.f32 %v5844, %v5820
    %v5849 = vadd.f32 %v5845, 0.2548296
    %v5850 = vadd.f32 %v5846, 0.2548296
    %v5851 = vadd.f32 %v5847, 0.2548296
    %v5852 = vadd.f32 %v5848, 0.2548296
    %v5853 = vmul.f32 %v5849, %v5814
    %v5854 = vmul.f32 %v5850, %v5816
    %v5855 = vmul.f32 %v5851, %v5818
    %v5856 = vmul.f32 %v5852, %v5820
    %v5857 = vsub.f32 0.0, %v5801
    %v5858 = vsub.f32 0.0, %v5802
    %v5859 = vsub.f32 0.0, %v5803
    %v5860 = vsub.f32 0.0, %v5804
    %v5861 = vmul.f32 %v5857, %v5801
    %v5862 = vmul.f32 %v5858, %v5802
    %v5863 = vmul.f32 %v5859, %v5803
    %v5864 = vmul.f32 %v5860, %v5804
    %v5865 = vmul.f32 %v5861, 1.442695
    %v5866 = vpow.pop %v5865
    %v5867 = vmul.f32 %v5862, 1.442695
    %v5868 = vpow.pop %v5867
    %v5869 = vmul.f32 %v5863, 1.442695
    %v5870 = vpow.pop %v5869
    %v5871 = vmul.f32 %v5864, 1.442695
    %v5872 = vpow.pop %v5871
    %v5873 = vmul.f32 %v5853, %v5866
    %v5874 = vmul.f32 %v5854, %v5868
    %v5875 = vmul.f32 %v5855, %v5870
    %v5876 = vmul.f32 %v5856, %v5872
    %v5877 = vsub.f32 1.0, %v5873
    %v5878 = vsub.f32 1.0, %v5874
    %v5879 = vsub.f32 1.0, %v5875
    %v5880 = vsub.f32 1.0, %v5876
    %v5881 = vmul.f32 %v5797, %v5877
    %v5882 = vmul.f32 %v5798, %v5878
    %v5883 = vmul.f32 %v5799, %v5879
    %v5884 = vmul.f32 %v5800, %v5880
    %v5885 = vadd.f32 %v5881, 1.0
    %v5886 = vadd.f32 %v5882, 1.0
    %v5887 = vadd.f32 %v5883, 1.0
    %v5888 = vadd.f32 %v5884, 1.0
    %v5889 = vmul.f32 %v5785, %v5885
    %v5890 = vmul.f32 %v5786, %v5886
    %v5891 = vmul.f32 %v5787, %v5887
    %v5892 = vmul.f32 %v5788, %v5888
    %v5893 = vpack.c.bf16 %v5891, %v5889
    %v5894 = vpack.c.bf16 %v5892, %v5890
    %v5895 = vld [vmem:[%s23] sm:$0xf]
    %v5896 = vld [vmem:[%s23 + $0x4] sm:$0xf]
    %v5897 = vld [vmem:[%s23 + $0x8] sm:$0xf]
    %v5898 = vld [vmem:[%s23 + $0xc] sm:$0xf]
    %v5899 = vld [vmem:[%s23 + $0x10] sm:$0xf]
    %v5900 = vld [vmem:[%s23 + $0x14] sm:$0xf]
    %v5901 = vld [vmem:[%s23 + $0x18] sm:$0xf]
    %v5902 = vld [vmem:[%s23 + $0x1c] sm:$0xf]
    %v5903 = vld [vmem:[%s23 + $0x20] sm:$0xf]
    %v5904 = vld [vmem:[%s23 + $0x24] sm:$0xf]
    %v5905 = vld [vmem:[%s23 + $0x28] sm:$0xf]
    %v5906 = vld [vmem:[%s23 + $0x2c] sm:$0xf]
    %v5907 = vld [vmem:[%s23 + $0x30] sm:$0xf]
    %v5908 = vld [vmem:[%s23 + $0x34] sm:$0xf]
    %v5909 = vld [vmem:[%s23 + $0x38] sm:$0xf]
    %v5910 = vld [vmem:[%s23 + $0x3c] sm:$0xf]
    %v5911 = vld [vmem:[%s23 + $0x40] sm:$0xf]
    %v5912 = vld [vmem:[%s23 + $0x44] sm:$0xf]
    %v5913 = vld [vmem:[%s23 + $0x48] sm:$0xf]
    %v5914 = vld [vmem:[%s23 + $0x4c] sm:$0xf]
    %v5915 = vld [vmem:[%s23 + $0x50] sm:$0xf]
    %v5916 = vld [vmem:[%s23 + $0x54] sm:$0xf]
    %v5917 = vld [vmem:[%s23 + $0x58] sm:$0xf]
    %v5918 = vld [vmem:[%s23 + $0x5c] sm:$0xf]
    %v5919 = vld [vmem:[%s23 + $0x60] sm:$0xf]
    %v5920 = vld [vmem:[%s23 + $0x64] sm:$0xf]
    %v5921 = vld [vmem:[%s23 + $0x68] sm:$0xf]
    %v5922 = vld [vmem:[%s23 + $0x6c] sm:$0xf]
    %v5923 = vld [vmem:[%s23 + $0x70] sm:$0xf]
    %v5924 = vld [vmem:[%s23 + $0x74] sm:$0xf]
    %v5925 = vld [vmem:[%s23 + $0x78] sm:$0xf]
    %v5926 = vld [vmem:[%s23 + $0x7c] sm:$0xf]
    %v5927 = vld [vmem:[%s24] sm:$0x1]
    %v5929 = vlaneseq
    %v5930 = vshrl.u32 %v5929, 7
    %v5931 = vsub.s32 0, %v5930
    %v5932 = vrot.slane %v5927, %v5931
    %v5966 = vunpack.c.l.b16 %v5895
    %v5967 = vunpack.c.l.b16 %v5896
    %v5968 = vunpack.c.l.b16 %v5897
    %v5969 = vunpack.c.l.b16 %v5898
    %v5970 = vunpack.c.l.b16 %v5899
    %v5971 = vunpack.c.l.b16 %v5900
    %v5972 = vunpack.c.l.b16 %v5901
    %v5973 = vunpack.c.l.b16 %v5902
    %v5974 = vunpack.c.l.b16 %v5903
    %v5975 = vunpack.c.l.b16 %v5904
    %v5976 = vunpack.c.l.b16 %v5905
    %v5977 = vunpack.c.l.b16 %v5906
    %v5978 = vunpack.c.l.b16 %v5907
    %v5979 = vunpack.c.l.b16 %v5908
    %v5980 = vunpack.c.l.b16 %v5909
    %v5981 = vunpack.c.l.b16 %v5910
    %v5982 = vunpack.c.l.b16 %v5911
    %v5983 = vunpack.c.l.b16 %v5912
    %v5984 = vunpack.c.l.b16 %v5913
    %v5985 = vunpack.c.l.b16 %v5914
    %v5986 = vunpack.c.l.b16 %v5915
    %v5987 = vunpack.c.l.b16 %v5916
    %v5988 = vunpack.c.l.b16 %v5917
    %v5989 = vunpack.c.l.b16 %v5918
    %v5990 = vunpack.c.l.b16 %v5919
    %v5991 = vunpack.c.l.b16 %v5920
    %v5992 = vunpack.c.l.b16 %v5921
    %v5993 = vunpack.c.l.b16 %v5922
    %v5994 = vunpack.c.l.b16 %v5923
    %v5995 = vunpack.c.l.b16 %v5924
    %v5996 = vunpack.c.l.b16 %v5925
    %v5997 = vunpack.c.l.b16 %v5926
    %v5998 = vpack.c.b16 %v5967, %v5966
    %v5999 = vpack.c.b16 %v5969, %v5968
    %v6000 = vpack.c.b16 %v5971, %v5970
    %v6001 = vpack.c.b16 %v5973, %v5972
    %v6002 = vpack.c.b16 %v5975, %v5974
    %v6003 = vpack.c.b16 %v5977, %v5976
    %v6004 = vpack.c.b16 %v5979, %v5978
    %v6005 = vpack.c.b16 %v5981, %v5980
    %v6006 = vpack.c.b16 %v5983, %v5982
    %v6007 = vpack.c.b16 %v5985, %v5984
    %v6008 = vpack.c.b16 %v5987, %v5986
    %v6009 = vpack.c.b16 %v5989, %v5988
    %v6010 = vpack.c.b16 %v5991, %v5990
    %v6011 = vpack.c.b16 %v5993, %v5992
    %v6012 = vpack.c.b16 %v5995, %v5994
    %v6013 = vpack.c.b16 %v5997, %v5996
    %6030 = vmatprep.subr.bf16.mxu0 0
    %6031 = vmatpush1.bf16.msra.mxu0 %v5998
    %6032 = vmatprep.subr.bf16.mxu0 0
    %6033 = vmatpush1.bf16.msra.mxu0 %v5999
    %6034 = vmatprep.subr.bf16.mxu0 0
    %6035 = vmatpush1.bf16.msra.mxu0 %v6000
    %6036 = vmatprep.subr.bf16.mxu0 0
    %6037 = vmatpush1.bf16.msra.mxu0 %v6001
    %6038 = vmatprep.subr.bf16.mxu0 0
    %6039 = vmatpush1.bf16.msra.mxu0 %v6002
    %6040 = vmatprep.subr.bf16.mxu0 0
    %6041 = vmatpush1.bf16.msra.mxu0 %v6003
    %6042 = vmatprep.subr.bf16.mxu0 0
    %6043 = vmatpush1.bf16.msra.mxu0 %v6004
    %6044 = vmatprep.subr.bf16.mxu0 0
    %6045 = vmatpush1.bf16.msra.mxu0 %v6005
    %6046 = vmatprep.subr.bf16.mxu0 0
    %6047 = vmatpush1.bf16.msra.mxu0 %v6006
    %6048 = vmatprep.subr.bf16.mxu0 0
    %6049 = vmatpush1.bf16.msra.mxu0 %v6007
    %6050 = vmatprep.subr.bf16.mxu0 0
    %6051 = vmatpush1.bf16.msra.mxu0 %v6008
    %6052 = vmatprep.subr.bf16.mxu0 0
    %6053 = vmatpush1.bf16.msra.mxu0 %v6009
    %6054 = vmatprep.subr.bf16.mxu0 0
    %6055 = vmatpush1.bf16.msra.mxu0 %v6010
    %6056 = vmatprep.subr.bf16.mxu0 0
    %6057 = vmatpush1.bf16.msra.mxu0 %v6011
    %6058 = vmatprep.subr.bf16.mxu0 0
    %6059 = vmatpush1.bf16.msra.mxu0 %v6012
    %6060 = vmatprep.subr.bf16.mxu0 0
    %6061 = vmatpush1.bf16.msra.mxu0 %v6013
    %6062 = vmatprep.mubr.bf16.mxu0 %v5894
    %6063 = vmatmul.mubr.bf16.gmra.mrb[0].mxu0 %v5893
    %v6064 = vpop.f32.mrb[0].mxu0
    %v6065 = vadd.f32 %v5932, %v6064
    %v6066 = vpop.f32.mrb[0].mxu0
    %v6067 = vpop.f32.mrb[0].mxu0
    %v6068 = vadd.f32 %v5932, %v6067
    %v6069 = vpop.f32.mrb[0].mxu0
    %6070 = vdwg.mxu0
    %v6071 = vtanh.pop %v6065
    %v6072 = vtanh.pop %v6068
    %6073 = vst [vmem:[#allocation31] sm:$0xff] %v6071
    %6074 = vst [vmem:[#allocation31 + $0x8] sm:$0xff] %v6072
    // Predicated region
    $region174: #{tpu_custom_call.1} parent=1 // pred_check
      _
    $region175: #{tpu_custom_call.1} parent=1 // pred_check_branch
      %6076 = sbr.rel (0) target = $region177
    $region176: #{tpu_custom_call.1} parent=1 // pred_region
      %s6078 = ssub.s32 256, 256
      %6079 = vsyncadd [#allocation4], %s6078
      %s6080 = sshll.u32 [#allocation31], 4
      %s6081 = int_to_ptr.vmem [resolvable:$true] %s6080
      %6086 = dma.vmem_to_hbm [thread:$0]  %s6081, 256, %s25, [#allocation4], 128, 128, 8
    $region177: #{tpu_custom_call.1} parent=1 // pred_fallthru
      _
    // Predicated region
    $region178: #{tpu_custom_call.1} parent=1 // pred_check
      _
    $region179: #{tpu_custom_call.1} parent=1 // pred_check_branch
      %6088 = sbr.rel (0) target = $region181
    $region180: #{tpu_custom_call.1} parent=1 // pred_region
      %6089 = dma.done [#allocation4], 256
    $region181: #{tpu_custom_call.1} parent=1 // pred_fallthru
      _
    %6090 = vsyncpa [#allocation3], 1
    %6091 = vsyncpa [#allocation6], 1
    %6092 = vsyncpa [#allocation9], 1
    %6093 = vsyncpa [#allocation12], 1
    %6094 = vsyncpa [#allocation15], 1
    %6095 = vsyncpa [#allocation18], 1
    %6096 = vsyncpa [#allocation21], 1
    %6097 = vsyncpa [#allocation24], 1
    %6098 = vsyncpa [#allocation27], 1
    %6099 = vsyncpa [#allocation30], 1
    %6100 = vsyncpa [#allocation4], 1

</llo_original>
